<compile_context>
chip_gen: v5e
topology: v5e:2x2
jax: 0.10.0
libtpu: 0.0.40
codegen_flags: <defaults>
</compile_context>

<pallas_src>
import functools

import jax
import jax.numpy as jnp
import numpy as np
from jax import lax
from jax.experimental import pallas as pl
from jax.experimental.pallas import tpu as pltpu


def _round_up(x, m):
    return ((x + m - 1) // m) * m


# ----------------------------------------------------------------------------
# Fused conv1 -> relu -> pool -> conv2 -> relu -> pool kernel (one image/step).
#
# Layout trick: spatial positions are flattened as p = h * Wpad + w where Wpad
# is the zero-padded width (Wpad = W + 4 >= W + ksize - 1).  Then the im2col
# tap (kh, kw) for ALL output positions is simply rows [off, off + rows) of the
# flattened padded image with off = kh * Wpad + kw, i.e. a plain 2-D slice.
# Columns w >= W of each row are junk and are dropped by the pooling /
# zero linear-weight rows.  Width pooling of the flattened output is a single
# pair of stride-2 row reads (pairs (2j, 2j+1) are adjacent rows).
# ----------------------------------------------------------------------------
def _fused_cnn_kernel(x_ref, w1_ref, b1_ref, w2_ref, b2_ref, o_ref,
                      s1, s2, p1f, col2, s3, s4, *, ksize, H, Wp1, Ho, Wp2):
    KH = KW = ksize
    rows1 = H * Wp1                    # 28*32 = 896 conv1 output rows (flat)
    Wh1 = Wp1 // 2                     # 16  (row width after width-pool)
    rows2 = Ho * Wp2                   # 14*18 = 252 conv2 output rows (flat)
    C1 = w1_ref.shape[1]               # 32
    C2 = w2_ref.shape[1]               # 64
    K2 = KH * KW * C1                  # 800
    R2, K2p = col2.shape               # 256, 896
    Ho2 = Ho // 2                      # 7
    Wg2 = Wp2 // 2                     # 9

    # ---- conv1: ONE (896,128)@(128,32) MXU matmul, bias + ReLU fused -------
    a1 = jnp.dot(x_ref[0, :, :], w1_ref[...],
                 preferred_element_type=jnp.float32)          # (896, 32) f32
    a1 = jnp.maximum(a1 + b1_ref[...], 0.0)
    s1[...] = a1

    # ---- pool1, width: pairs (2j, 2j+1) are adjacent flat rows --------------
    s2[...] = jnp.maximum(s1[pl.ds(0, rows1 // 2, 2), :],
                          s1[pl.ds(1, rows1 // 2, 2), :])     # (448, 32)

    # ---- pool1, height + scatter into conv2's zero-padded flat input -------
    p1f[...] = jnp.zeros_like(p1f)                            # zero padding
    for i in range(Ho):                                       # 14 iterations
        blk = jnp.maximum(s2[pl.ds(2 * i * Wh1, Wh1), :],
                          s2[pl.ds((2 * i + 1) * Wh1, Wh1), :])   # (16, 32)
        # keep only the Ho real width positions; place inside SAME padding
        p1f[pl.ds((i + 2) * Wp2 + 2, Ho), :] = blk[0:Ho, :]

    # ---- conv2 im2col: 25 lane-aligned (R2, 32) tap copies ------------------
    if K2p > K2:
        col2[:, K2:] = jnp.zeros((R2, K2p - K2), jnp.bfloat16)   # zero K-pad
    for kh in range(KH):
        for kw in range(KW):
            t = kh * KW + kw
            col2[:, t * C1:(t + 1) * C1] = (
                p1f[pl.ds(kh * Wp2 + kw, R2), :].astype(jnp.bfloat16))

    # ---- conv2: ONE (256,896)@(896,64) MXU matmul, bias + ReLU fused --------
    a2 = jnp.dot(col2[...], w2_ref[...],
                 preferred_element_type=jnp.float32)          # (256, 64) f32
    a2 = jnp.maximum(a2 + b2_ref[...], 0.0)
    s3[...] = a2

    # ---- pool2, width --------------------------------------------------------
    s4[pl.ds(0, rows2 // 2), :] = jnp.maximum(
        s3[pl.ds(0, rows2 // 2, 2), :],
        s3[pl.ds(1, rows2 // 2, 2), :])                       # (126, 64)

    # ---- pool2, height -> output rows (Ho2*Wg2, C2); junk cols m>=7 kept ----
    for u in range(Ho2):                                      # 7 iterations
        o_ref[0, pl.ds(u * Wg2, Wg2), :] = jnp.maximum(
            s4[pl.ds(2 * u * Wg2, Wg2), :],
            s4[pl.ds((2 * u + 1) * Wg2, Wg2), :])


def fused_cnn_conv(patches1, w1m, b1, w2m, b2, *, ksize, H, Wp1, Ho, Wp2):
    """patches1: (N, H*Wp1, K1p) bf16 conv1 im2col patches (wrapper-built).

    Returns pooled conv2 features (N, (Ho//2) * (Wp2//2), C2) f32 in the flat
    layout (rows u*Wg2 + m; columns m >= Ho//2 per group are junk and are
    cancelled by zero rows of the prepared linear weight).
    """
    N, rows1, K1p = patches1.shape
    C1 = w1m.shape[1]
    K2p, C2 = w2m.shape
    Ho2, Wg2 = Ho // 2, Wp2 // 2
    rows2 = Ho * Wp2
    R2 = _round_up(rows2, 8)                       # 256 (col2 / conv2 rows)
    p1rows = _round_up(R2 + (ksize - 1) * (Wp2 + 1), 8)   # 336, covers overrun

    kernel = functools.partial(_fused_cnn_kernel, ksize=ksize, H=H, Wp1=Wp1,
                               Ho=Ho, Wp2=Wp2)
    return pl.pallas_call(
        kernel,
        out_shape=jax.ShapeDtypeStruct((N, Ho2 * Wg2, C2), jnp.float32),
        grid_spec=pltpu.PrefetchScalarGridSpec(
            num_scalar_prefetch=0,
            grid=(N,),
            in_specs=[
                pl.BlockSpec((1, rows1, K1p), lambda n: (n, 0, 0)),
                pl.BlockSpec((K1p, C1), lambda n: (0, 0)),
                pl.BlockSpec((1, C1), lambda n: (0, 0)),
                pl.BlockSpec((K2p, C2), lambda n: (0, 0)),
                pl.BlockSpec((1, C2), lambda n: (0, 0)),
            ],
            out_specs=pl.BlockSpec((1, Ho2 * Wg2, C2), lambda n: (n, 0, 0)),
            scratch_shapes=[
                pltpu.VMEM((rows1, C1), jnp.float32),            # s1: conv1 out
                pltpu.VMEM((rows1 // 2, C1), jnp.float32),       # s2: w-pooled
                pltpu.VMEM((p1rows, C1), jnp.float32),           # p1f: padded in2
                pltpu.VMEM((R2, K2p), jnp.bfloat16),             # col2: im2col
                pltpu.VMEM((R2, C2), jnp.float32),               # s3: conv2 out
                pltpu.VMEM((_round_up(rows2 // 2, 8), C2), jnp.float32),  # s4
            ],
        ),
        compiler_params=pltpu.CompilerParams(
            dimension_semantics=("parallel",)),
    )(patches1, w1m, b1, w2m, b2)


# ----------------------------------------------------------------------------
# Linear layer Pallas kernel: (N, D) @ (D, C) bf16 MXU matmul + bias.
# ----------------------------------------------------------------------------
def _linear_kernel(x_ref, w_ref, b_ref, o_ref):
    o_ref[...] = jnp.dot(x_ref[...].astype(jnp.bfloat16), w_ref[...],
                         preferred_element_type=jnp.float32) + b_ref[...]


def linear(x, w, b):
    N = x.shape[0]
    C = w.shape[1]
    return pl.pallas_call(
        _linear_kernel,
        out_shape=jax.ShapeDtypeStruct((N, C), jnp.float32),
    )(x, w, b)


# ----------------------------------------------------------------------------
# Wrapper-side conv1 patch construction (pure layout plumbing, no compute):
# pad input, flatten (h, w) -> p = h*Wp1 + w, stack the 25 shifted slices.
# ----------------------------------------------------------------------------
def build_conv1_patches(x_nhwc, *, ksize):
    N, H, W, Cin = x_nhwc.shape
    pad = ksize // 2
    Wp1 = W + 2 * pad
    # one extra zero row at the bottom so the flat-offset trick never reads OOB
    xp = jnp.pad(x_nhwc, ((0, 0), (pad, pad + 1), (pad, pad), (0, 0)))
    xf = xp.reshape(N, (H + 2 * pad + 1) * Wp1, Cin)
    rows1 = H * Wp1
    taps = [xf[:, kh * Wp1 + kw: kh * Wp1 + kw + rows1, :]
            for kh in range(ksize) for kw in range(ksize)]
    pat = jnp.concatenate(taps, axis=-1)                       # (N, rows1, K1)
    K1 = ksize * ksize * Cin
    K1p = _round_up(K1, 128)
    pat = jnp.pad(pat, ((0, 0), (0, 0), (0, K1p - K1)))
    return pat.astype(jnp.bfloat16), Wp1


# ----------------------------------------------------------------------------
# One-time parameter preparation (outside jit): reshape + K-pad + bf16 the conv
# weights, and permute / zero-pad the linear weight rows so the kernel's flat
# NHWC feature layout (with junk columns) multiplies straight into it.
# ----------------------------------------------------------------------------
def prepare_params(params, *, ksize=5, input_size=28):
    w1, b1, w2, b2, wl, bl = params               # conv weights stored as HWIO
    KH, KW, C0, F1 = w1.shape
    _, _, _, F2 = w2.shape
    ncls = wl.shape[1]

    K1 = KH * KW * C0
    K2 = KH * KW * F1
    K1p = _round_up(K1, 128)
    K2p = _round_up(K2, 128)
    w1m = jnp.pad(w1.reshape(K1, F1),
                  ((0, K1p - K1), (0, 0))).astype(jnp.bfloat16)
    w2m = jnp.pad(w2.reshape(K2, F2),
                  ((0, K2p - K2), (0, 0))).astype(jnp.bfloat16)

    s4 = input_size // 4                                        # 7
    Wg2 = (input_size // 2 + 2 * (ksize // 2)) // 2             # 9
    # torch flattens NCHW: row index = c*s4*s4 + i*s4 + j.
    wl3 = wl.reshape(F2, s4, s4, ncls)                          # (c, i, j, n)
    wlp = jnp.zeros((s4, Wg2, F2, ncls), wl.dtype)
    wlp = wlp.at[:, :s4, :, :].set(jnp.transpose(wl3, (1, 2, 0, 3)))
    wlp = wlp.reshape(s4 * Wg2 * F2, ncls).astype(jnp.bfloat16)

    return (w1m, b1.astype(jnp.float32), w2m, b2.astype(jnp.float32),
            wlp, bl.astype(jnp.float32))


# ----------------------------------------------------------------------------
# Full SimpleCNN forward: 2 Pallas launches (fused conv stack + linear).
# ----------------------------------------------------------------------------
@functools.partial(jax.jit, static_argnames=("ksize",))
def simple_cnn_forward(x_nchw, prep, *, ksize=5):
    w1m, b1, w2m, b2, wlp, bl = prep
    x = jnp.transpose(x_nchw, (0, 2, 3, 1))        # NCHW -> NHWC (C on lanes)
    N, H = x.shape[0], x.shape[1]
    patches, Wp1 = build_conv1_patches(x, ksize=ksize)
    Ho = H // 2
    Wp2 = Ho + 2 * (ksize // 2)
    feats = fused_cnn_conv(patches, w1m, b1, w2m, b2,
                           ksize=ksize, H=H, Wp1=Wp1, Ho=Ho, Wp2=Wp2)
    feats = feats.reshape(N, -1)                   # free row-major flatten
    return linear(feats, wlp, bl)                  # (N, num_classes)


# ----------------------------------------------------------------------------
# Pure-JAX reference (mirrors the kernel's bf16 MXU inputs / f32 accumulation).
# ----------------------------------------------------------------------------
def reference_forward(x_nchw, params):
    w1, b1, w2, b2, wl, bl = params
    x = jnp.transpose(x_nchw, (0, 2, 3, 1))
    dn = ("NHWC", "HWIO", "NHWC")

    def block(x, w, b):
        y = lax.conv_general_dilated(
            x.astype(jnp.bfloat16), w.astype(jnp.bfloat16), (1, 1), "SAME",
            dimension_numbers=dn, preferred_element_type=jnp.float32)
        y = jnp.maximum(y + b.reshape(1, 1, 1, -1), 0.0)
        return lax.reduce_window(y, -jnp.inf, lax.max,
                                 (1, 2, 2, 1), (1, 2, 2, 1), "VALID")

    x = block(x, w1, b1)
    x = block(x, w2, b2)
    x = jnp.transpose(x, (0, 3, 1, 2)).reshape(x.shape[0], -1)   # NCHW flatten
    return jnp.dot(x.astype(jnp.bfloat16), wl.astype(jnp.bfloat16),
                   preferred_element_type=jnp.float32) + bl


if __name__ == "__main__":
    # Module defaults: width=32, num_channels=3, input_size=28, num_classes=10
    N, C_IN, HW = 2, 3, 28
    F1, F2, NCLS = 32, 64, 10
    D = F2 * (HW // 4) * (HW // 4)  # 64 * 7 * 7 = 3136

    key = jax.random.PRNGKey(0)
    kx, k1, k2, k3, k4, k5, k6 = jax.random.split(key, 7)

    x = jax.random.normal(kx, (N, C_IN, HW, HW), jnp.float32)

    # Deterministic synthetic parameters (conv weights stored as HWIO).
    w1 = jax.random.normal(k1, (5, 5, C_IN, F1), jnp.float32) * 0.05
    b1 = jax.random.normal(k2, (1, F1), jnp.float32) * 0.05
    w2 = jax.random.normal(k3, (5, 5, F1, F2), jnp.float32) * 0.02
    b2 = jax.random.normal(k4, (1, F2), jnp.float32) * 0.02
    wl = jax.random.normal(k5, (D, NCLS), jnp.float32) * 0.02
    bl = jax.random.normal(k6, (1, NCLS), jnp.float32) * 0.02
    params = (w1, b1, w2, b2, wl, bl)
    prep = prepare_params(params, ksize=5, input_size=HW)

    out = jax.block_until_ready(simple_cnn_forward(x, prep))
    ref = jax.block_until_ready(reference_forward(x, params))
    np.testing.assert_allclose(np.asarray(out), np.asarray(ref),
                               rtol=2e-3, atol=2e-3)

    print("KERNEL_OK")
</pallas_src>

<mosaic_0001>
module attributes {stable_mosaic.version = 11 : i64} {
  func.func @_fused_cnn_kernel(%arg0: i32, %arg1: memref<1x896x128xbf16, #tpu.memory_space<vmem>>, %arg2: memref<128x32xbf16, #tpu.memory_space<vmem>>, %arg3: memref<1x32xf32, #tpu.memory_space<vmem>>, %arg4: memref<896x64xbf16, #tpu.memory_space<vmem>>, %arg5: memref<1x64xf32, #tpu.memory_space<vmem>>, %arg6: memref<1x63x64xf32, #tpu.memory_space<vmem>>, %arg7: memref<896x32xf32, #tpu.memory_space<vmem>>, %arg8: memref<448x32xf32, #tpu.memory_space<vmem>>, %arg9: memref<336x32xf32, #tpu.memory_space<vmem>>, %arg10: memref<256x896xbf16, #tpu.memory_space<vmem>>, %arg11: memref<256x64xf32, #tpu.memory_space<vmem>>, %arg12: memref<128x64xf32, #tpu.memory_space<vmem>>) attributes {dimension_semantics = [#tpu.dimension_semantics<parallel>], iteration_bounds = array<i64: 2>, scalar_prefetch = 0 : i64, scratch_operands = 6 : i64, tpu.core_type = #tpu.core_type<tc>, window_params = [{transform_indices = @transform_0, window_bounds = array<i64: 1, 896, 128>}, {pipeline_mode = #tpu.pipeline_mode<synchronous>, transform_indices = @transform_1, window_bounds = array<i64: 128, 32>}, {pipeline_mode = #tpu.pipeline_mode<synchronous>, transform_indices = @transform_2, window_bounds = array<i64: 1, 32>}, {pipeline_mode = #tpu.pipeline_mode<synchronous>, transform_indices = @transform_3, window_bounds = array<i64: 896, 64>}, {pipeline_mode = #tpu.pipeline_mode<synchronous>, transform_indices = @transform_4, window_bounds = array<i64: 1, 64>}, {transform_indices = @transform_5, window_bounds = array<i64: 1, 63, 64>}]} {
    %c0 = arith.constant 0 : index
    %c0_0 = arith.constant 0 : index
    %c0_1 = arith.constant 0 : index
    %0 = vector.load %arg1[%c0, %c0_0, %c0_1] : memref<1x896x128xbf16, #tpu.memory_space<vmem>>, vector<1x896x128xbf16>
    %1 = vector.shape_cast %0 : vector<1x896x128xbf16> to vector<896x128xbf16>
    %c0_2 = arith.constant 0 : index
    %c0_3 = arith.constant 0 : index
    %2 = vector.load %arg2[%c0_2, %c0_3] : memref<128x32xbf16, #tpu.memory_space<vmem>>, vector<128x32xbf16>
    %cst = arith.constant dense<0.000000e+00> : vector<896x32xf32>
    %3 = tpu.matmul %1, %2, %cst {dimension_numbers = #tpu.dot_dimension_numbers<[1], [0], [0], [1], [0, 0, 1, 1], [], []>} : vector<896x128xbf16>, vector<128x32xbf16>, vector<896x32xf32> -> vector<896x32xf32>
    %c0_4 = arith.constant 0 : index
    %c0_5 = arith.constant 0 : index
    %4 = vector.load %arg3[%c0_4, %c0_5] : memref<1x32xf32, #tpu.memory_space<vmem>>, vector<1x32xf32>
    %5 = vector.broadcast %4 : vector<1x32xf32> to vector<896x32xf32>
    %6 = arith.addf %3, %5 : vector<896x32xf32>
    %cst_6 = arith.constant 0.000000e+00 : f32
    %7 = vector.broadcast %cst_6 : f32 to vector<896x32xf32>
    %8 = arith.maximumf %6, %7 : vector<896x32xf32>
    %c0_7 = arith.constant 0 : index
    %c0_8 = arith.constant 0 : index
    %9 = vector.load %arg7[%c0_7, %c0_8] : memref<896x32xf32, #tpu.memory_space<vmem>>, vector<896x32xf32>
    tpu.vector_store %arg7[%c0_7, %c0_8], %8 {strides = array<i32>} : memref<896x32xf32, #tpu.memory_space<vmem>>, vector<896x32xf32>,
    %c0_9 = arith.constant 0 : index
    %c0_10 = arith.constant 0 : index
    %10 = tpu.strided_load %arg7[%c0_9, %c0_10] {strides = array<i32: 2, 1>} : memref<896x32xf32, #tpu.memory_space<vmem>>, vector<448x32xf32>
    %c1 = arith.constant 1 : index
    %c0_11 = arith.constant 0 : index
    %11 = tpu.strided_load %arg7[%c1, %c0_11] {strides = array<i32: 2, 1>} : memref<896x32xf32, #tpu.memory_space<vmem>>, vector<448x32xf32>
    %12 = arith.maximumf %10, %11 : vector<448x32xf32>
    %c0_12 = arith.constant 0 : index
    %c0_13 = arith.constant 0 : index
    %13 = vector.load %arg8[%c0_12, %c0_13] : memref<448x32xf32, #tpu.memory_space<vmem>>, vector<448x32xf32>
    tpu.vector_store %arg8[%c0_12, %c0_13], %12 {strides = array<i32>} : memref<448x32xf32, #tpu.memory_space<vmem>>, vector<448x32xf32>,
    %cst_14 = arith.constant 0.000000e+00 : f32
    %14 = vector.broadcast %cst_14 : f32 to vector<336x32xf32>
    %c0_15 = arith.constant 0 : index
    %c0_16 = arith.constant 0 : index
    %15 = vector.load %arg9[%c0_15, %c0_16] : memref<336x32xf32, #tpu.memory_space<vmem>>, vector<336x32xf32>
    tpu.vector_store %arg9[%c0_15, %c0_16], %14 {strides = array<i32>} : memref<336x32xf32, #tpu.memory_space<vmem>>, vector<336x32xf32>,
    %c0_17 = arith.constant 0 : index
    %c0_18 = arith.constant 0 : index
    %16 = vector.load %arg8[%c0_17, %c0_18] : memref<448x32xf32, #tpu.memory_space<vmem>>, vector<16x32xf32>
    %c16 = arith.constant 16 : index
    %c0_19 = arith.constant 0 : index
    %17 = vector.load %arg8[%c16, %c0_19] : memref<448x32xf32, #tpu.memory_space<vmem>>, vector<16x32xf32>
    %18 = arith.maximumf %16, %17 : vector<16x32xf32>
    %19 = vector.extract_strided_slice %18 {offsets = [0, 0], sizes = [14, 32], strides = [1, 1]} : vector<16x32xf32> to vector<14x32xf32>
    %c38 = arith.constant 38 : index
    %c0_20 = arith.constant 0 : index
    %20 = vector.load %arg9[%c38, %c0_20] : memref<336x32xf32, #tpu.memory_space<vmem>>, vector<14x32xf32>
    tpu.vector_store %arg9[%c38, %c0_20], %19 {strides = array<i32>} : memref<336x32xf32, #tpu.memory_space<vmem>>, vector<14x32xf32>,
    %c32 = arith.constant 32 : index
    %c0_21 = arith.constant 0 : index
    %21 = vector.load %arg8[%c32, %c0_21] : memref<448x32xf32, #tpu.memory_space<vmem>>, vector<16x32xf32>
    %c48 = arith.constant 48 : index
    %c0_22 = arith.constant 0 : index
    %22 = vector.load %arg8[%c48, %c0_22] : memref<448x32xf32, #tpu.memory_space<vmem>>, vector<16x32xf32>
    %23 = arith.maximumf %21, %22 : vector<16x32xf32>
    %24 = vector.extract_strided_slice %23 {offsets = [0, 0], sizes = [14, 32], strides = [1, 1]} : vector<16x32xf32> to vector<14x32xf32>
    %c56 = arith.constant 56 : index
    %c0_23 = arith.constant 0 : index
    %25 = vector.load %arg9[%c56, %c0_23] : memref<336x32xf32, #tpu.memory_space<vmem>>, vector<14x32xf32>
    tpu.vector_store %arg9[%c56, %c0_23], %24 {strides = array<i32>} : memref<336x32xf32, #tpu.memory_space<vmem>>, vector<14x32xf32>,
    %c64 = arith.constant 64 : index
    %c0_24 = arith.constant 0 : index
    %26 = vector.load %arg8[%c64, %c0_24] : memref<448x32xf32, #tpu.memory_space<vmem>>, vector<16x32xf32>
    %c80 = arith.constant 80 : index
    %c0_25 = arith.constant 0 : index
    %27 = vector.load %arg8[%c80, %c0_25] : memref<448x32xf32, #tpu.memory_space<vmem>>, vector<16x32xf32>
    %28 = arith.maximumf %26, %27 : vector<16x32xf32>
    %29 = vector.extract_strided_slice %28 {offsets = [0, 0], sizes = [14, 32], strides = [1, 1]} : vector<16x32xf32> to vector<14x32xf32>
    %c74 = arith.constant 74 : index
    %c0_26 = arith.constant 0 : index
    %30 = vector.load %arg9[%c74, %c0_26] : memref<336x32xf32, #tpu.memory_space<vmem>>, vector<14x32xf32>
    tpu.vector_store %arg9[%c74, %c0_26], %29 {strides = array<i32>} : memref<336x32xf32, #tpu.memory_space<vmem>>, vector<14x32xf32>,
    %c96 = arith.constant 96 : index
    %c0_27 = arith.constant 0 : index
    %31 = vector.load %arg8[%c96, %c0_27] : memref<448x32xf32, #tpu.memory_space<vmem>>, vector<16x32xf32>
    %c112 = arith.constant 112 : index
    %c0_28 = arith.constant 0 : index
    %32 = vector.load %arg8[%c112, %c0_28] : memref<448x32xf32, #tpu.memory_space<vmem>>, vector<16x32xf32>
    %33 = arith.maximumf %31, %32 : vector<16x32xf32>
    %34 = vector.extract_strided_slice %33 {offsets = [0, 0], sizes = [14, 32], strides = [1, 1]} : vector<16x32xf32> to vector<14x32xf32>
    %c92 = arith.constant 92 : index
    %c0_29 = arith.constant 0 : index
    %35 = vector.load %arg9[%c92, %c0_29] : memref<336x32xf32, #tpu.memory_space<vmem>>, vector<14x32xf32>
    tpu.vector_store %arg9[%c92, %c0_29], %34 {strides = array<i32>} : memref<336x32xf32, #tpu.memory_space<vmem>>, vector<14x32xf32>,
    %c128 = arith.constant 128 : index
    %c0_30 = arith.constant 0 : index
    %36 = vector.load %arg8[%c128, %c0_30] : memref<448x32xf32, #tpu.memory_space<vmem>>, vector<16x32xf32>
    %c144 = arith.constant 144 : index
    %c0_31 = arith.constant 0 : index
    %37 = vector.load %arg8[%c144, %c0_31] : memref<448x32xf32, #tpu.memory_space<vmem>>, vector<16x32xf32>
    %38 = arith.maximumf %36, %37 : vector<16x32xf32>
    %39 = vector.extract_strided_slice %38 {offsets = [0, 0], sizes = [14, 32], strides = [1, 1]} : vector<16x32xf32> to vector<14x32xf32>
    %c110 = arith.constant 110 : index
    %c0_32 = arith.constant 0 : index
    %40 = vector.load %arg9[%c110, %c0_32] : memref<336x32xf32, #tpu.memory_space<vmem>>, vector<14x32xf32>
    tpu.vector_store %arg9[%c110, %c0_32], %39 {strides = array<i32>} : memref<336x32xf32, #tpu.memory_space<vmem>>, vector<14x32xf32>,
    %c160 = arith.constant 160 : index
    %c0_33 = arith.constant 0 : index
    %41 = vector.load %arg8[%c160, %c0_33] : memref<448x32xf32, #tpu.memory_space<vmem>>, vector<16x32xf32>
    %c176 = arith.constant 176 : index
    %c0_34 = arith.constant 0 : index
    %42 = vector.load %arg8[%c176, %c0_34] : memref<448x32xf32, #tpu.memory_space<vmem>>, vector<16x32xf32>
    %43 = arith.maximumf %41, %42 : vector<16x32xf32>
    %44 = vector.extract_strided_slice %43 {offsets = [0, 0], sizes = [14, 32], strides = [1, 1]} : vector<16x32xf32> to vector<14x32xf32>
    %c128_35 = arith.constant 128 : index
    %c0_36 = arith.constant 0 : index
    %45 = vector.load %arg9[%c128_35, %c0_36] : memref<336x32xf32, #tpu.memory_space<vmem>>, vector<14x32xf32>
    tpu.vector_store %arg9[%c128_35, %c0_36], %44 {strides = array<i32>} : memref<336x32xf32, #tpu.memory_space<vmem>>, vector<14x32xf32>,
    %c192 = arith.constant 192 : index
    %c0_37 = arith.constant 0 : index
    %46 = vector.load %arg8[%c192, %c0_37] : memref<448x32xf32, #tpu.memory_space<vmem>>, vector<16x32xf32>
    %c208 = arith.constant 208 : index
    %c0_38 = arith.constant 0 : index
    %47 = vector.load %arg8[%c208, %c0_38] : memref<448x32xf32, #tpu.memory_space<vmem>>, vector<16x32xf32>
    %48 = arith.maximumf %46, %47 : vector<16x32xf32>
    %49 = vector.extract_strided_slice %48 {offsets = [0, 0], sizes = [14, 32], strides = [1, 1]} : vector<16x32xf32> to vector<14x32xf32>
    %c146 = arith.constant 146 : index
    %c0_39 = arith.constant 0 : index
    %50 = vector.load %arg9[%c146, %c0_39] : memref<336x32xf32, #tpu.memory_space<vmem>>, vector<14x32xf32>
    tpu.vector_store %arg9[%c146, %c0_39], %49 {strides = array<i32>} : memref<336x32xf32, #tpu.memory_space<vmem>>, vector<14x32xf32>,
    %c224 = arith.constant 224 : index
    %c0_40 = arith.constant 0 : index
    %51 = vector.load %arg8[%c224, %c0_40] : memref<448x32xf32, #tpu.memory_space<vmem>>, vector<16x32xf32>
    %c240 = arith.constant 240 : index
    %c0_41 = arith.constant 0 : index
    %52 = vector.load %arg8[%c240, %c0_41] : memref<448x32xf32, #tpu.memory_space<vmem>>, vector<16x32xf32>
    %53 = arith.maximumf %51, %52 : vector<16x32xf32>
    %54 = vector.extract_strided_slice %53 {offsets = [0, 0], sizes = [14, 32], strides = [1, 1]} : vector<16x32xf32> to vector<14x32xf32>
    %c164 = arith.constant 164 : index
    %c0_42 = arith.constant 0 : index
    %55 = vector.load %arg9[%c164, %c0_42] : memref<336x32xf32, #tpu.memory_space<vmem>>, vector<14x32xf32>
    tpu.vector_store %arg9[%c164, %c0_42], %54 {strides = array<i32>} : memref<336x32xf32, #tpu.memory_space<vmem>>, vector<14x32xf32>,
    %c256 = arith.constant 256 : index
    %c0_43 = arith.constant 0 : index
    %56 = vector.load %arg8[%c256, %c0_43] : memref<448x32xf32, #tpu.memory_space<vmem>>, vector<16x32xf32>
    %c272 = arith.constant 272 : index
    %c0_44 = arith.constant 0 : index
    %57 = vector.load %arg8[%c272, %c0_44] : memref<448x32xf32, #tpu.memory_space<vmem>>, vector<16x32xf32>
    %58 = arith.maximumf %56, %57 : vector<16x32xf32>
    %59 = vector.extract_strided_slice %58 {offsets = [0, 0], sizes = [14, 32], strides = [1, 1]} : vector<16x32xf32> to vector<14x32xf32>
    %c182 = arith.constant 182 : index
    %c0_45 = arith.constant 0 : index
    %60 = vector.load %arg9[%c182, %c0_45] : memref<336x32xf32, #tpu.memory_space<vmem>>, vector<14x32xf32>
    tpu.vector_store %arg9[%c182, %c0_45], %59 {strides = array<i32>} : memref<336x32xf32, #tpu.memory_space<vmem>>, vector<14x32xf32>,
    %c288 = arith.constant 288 : index
    %c0_46 = arith.constant 0 : index
    %61 = vector.load %arg8[%c288, %c0_46] : memref<448x32xf32, #tpu.memory_space<vmem>>, vector<16x32xf32>
    %c304 = arith.constant 304 : index
    %c0_47 = arith.constant 0 : index
    %62 = vector.load %arg8[%c304, %c0_47] : memref<448x32xf32, #tpu.memory_space<vmem>>, vector<16x32xf32>
    %63 = arith.maximumf %61, %62 : vector<16x32xf32>
    %64 = vector.extract_strided_slice %63 {offsets = [0, 0], sizes = [14, 32], strides = [1, 1]} : vector<16x32xf32> to vector<14x32xf32>
    %c200 = arith.constant 200 : index
    %c0_48 = arith.constant 0 : index
    %65 = vector.load %arg9[%c200, %c0_48] : memref<336x32xf32, #tpu.memory_space<vmem>>, vector<14x32xf32>
    tpu.vector_store %arg9[%c200, %c0_48], %64 {strides = array<i32>} : memref<336x32xf32, #tpu.memory_space<vmem>>, vector<14x32xf32>,
    %c320 = arith.constant 320 : index
    %c0_49 = arith.constant 0 : index
    %66 = vector.load %arg8[%c320, %c0_49] : memref<448x32xf32, #tpu.memory_space<vmem>>, vector<16x32xf32>
    %c336 = arith.constant 336 : index
    %c0_50 = arith.constant 0 : index
    %67 = vector.load %arg8[%c336, %c0_50] : memref<448x32xf32, #tpu.memory_space<vmem>>, vector<16x32xf32>
    %68 = arith.maximumf %66, %67 : vector<16x32xf32>
    %69 = vector.extract_strided_slice %68 {offsets = [0, 0], sizes = [14, 32], strides = [1, 1]} : vector<16x32xf32> to vector<14x32xf32>
    %c218 = arith.constant 218 : index
    %c0_51 = arith.constant 0 : index
    %70 = vector.load %arg9[%c218, %c0_51] : memref<336x32xf32, #tpu.memory_space<vmem>>, vector<14x32xf32>
    tpu.vector_store %arg9[%c218, %c0_51], %69 {strides = array<i32>} : memref<336x32xf32, #tpu.memory_space<vmem>>, vector<14x32xf32>,
    %c352 = arith.constant 352 : index
    %c0_52 = arith.constant 0 : index
    %71 = vector.load %arg8[%c352, %c0_52] : memref<448x32xf32, #tpu.memory_space<vmem>>, vector<16x32xf32>
    %c368 = arith.constant 368 : index
    %c0_53 = arith.constant 0 : index
    %72 = vector.load %arg8[%c368, %c0_53] : memref<448x32xf32, #tpu.memory_space<vmem>>, vector<16x32xf32>
    %73 = arith.maximumf %71, %72 : vector<16x32xf32>
    %74 = vector.extract_strided_slice %73 {offsets = [0, 0], sizes = [14, 32], strides = [1, 1]} : vector<16x32xf32> to vector<14x32xf32>
    %c236 = arith.constant 236 : index
    %c0_54 = arith.constant 0 : index
    %75 = vector.load %arg9[%c236, %c0_54] : memref<336x32xf32, #tpu.memory_space<vmem>>, vector<14x32xf32>
    tpu.vector_store %arg9[%c236, %c0_54], %74 {strides = array<i32>} : memref<336x32xf32, #tpu.memory_space<vmem>>, vector<14x32xf32>,
    %c384 = arith.constant 384 : index
    %c0_55 = arith.constant 0 : index
    %76 = vector.load %arg8[%c384, %c0_55] : memref<448x32xf32, #tpu.memory_space<vmem>>, vector<16x32xf32>
    %c400 = arith.constant 400 : index
    %c0_56 = arith.constant 0 : index
    %77 = vector.load %arg8[%c400, %c0_56] : memref<448x32xf32, #tpu.memory_space<vmem>>, vector<16x32xf32>
    %78 = arith.maximumf %76, %77 : vector<16x32xf32>
    %79 = vector.extract_strided_slice %78 {offsets = [0, 0], sizes = [14, 32], strides = [1, 1]} : vector<16x32xf32> to vector<14x32xf32>
    %c254 = arith.constant 254 : index
    %c0_57 = arith.constant 0 : index
    %80 = vector.load %arg9[%c254, %c0_57] : memref<336x32xf32, #tpu.memory_space<vmem>>, vector<14x32xf32>
    tpu.vector_store %arg9[%c254, %c0_57], %79 {strides = array<i32>} : memref<336x32xf32, #tpu.memory_space<vmem>>, vector<14x32xf32>,
    %c416 = arith.constant 416 : index
    %c0_58 = arith.constant 0 : index
    %81 = vector.load %arg8[%c416, %c0_58] : memref<448x32xf32, #tpu.memory_space<vmem>>, vector<16x32xf32>
    %c432 = arith.constant 432 : index
    %c0_59 = arith.constant 0 : index
    %82 = vector.load %arg8[%c432, %c0_59] : memref<448x32xf32, #tpu.memory_space<vmem>>, vector<16x32xf32>
    %83 = arith.maximumf %81, %82 : vector<16x32xf32>
    %84 = vector.extract_strided_slice %83 {offsets = [0, 0], sizes = [14, 32], strides = [1, 1]} : vector<16x32xf32> to vector<14x32xf32>
    %c272_60 = arith.constant 272 : index
    %c0_61 = arith.constant 0 : index
    %85 = vector.load %arg9[%c272_60, %c0_61] : memref<336x32xf32, #tpu.memory_space<vmem>>, vector<14x32xf32>
    tpu.vector_store %arg9[%c272_60, %c0_61], %84 {strides = array<i32>} : memref<336x32xf32, #tpu.memory_space<vmem>>, vector<14x32xf32>,
    %cst_62 = arith.constant 0.000000e+00 : bf16
    %86 = vector.broadcast %cst_62 : bf16 to vector<256x96xbf16>
    %c0_63 = arith.constant 0 : index
    %c800 = arith.constant 800 : index
    %87 = vector.load %arg10[%c0_63, %c800] : memref<256x896xbf16, #tpu.memory_space<vmem>>, vector<256x96xbf16>
    tpu.vector_store %arg10[%c0_63, %c800], %86 {strides = array<i32>} : memref<256x896xbf16, #tpu.memory_space<vmem>>, vector<256x96xbf16>,
    %c0_64 = arith.constant 0 : index
    %c0_65 = arith.constant 0 : index
    %88 = vector.load %arg9[%c0_64, %c0_65] : memref<336x32xf32, #tpu.memory_space<vmem>>, vector<256x32xf32>
    %89 = arith.truncf %88 : vector<256x32xf32> to vector<256x32xbf16>
    %c0_66 = arith.constant 0 : index
    %c0_67 = arith.constant 0 : index
    %90 = vector.load %arg10[%c0_66, %c0_67] : memref<256x896xbf16, #tpu.memory_space<vmem>>, vector<256x32xbf16>
    tpu.vector_store %arg10[%c0_66, %c0_67], %89 {strides = array<i32>} : memref<256x896xbf16, #tpu.memory_space<vmem>>, vector<256x32xbf16>,
    %c1_68 = arith.constant 1 : index
    %c0_69 = arith.constant 0 : index
    %91 = vector.load %arg9[%c1_68, %c0_69] : memref<336x32xf32, #tpu.memory_space<vmem>>, vector<256x32xf32>
    %92 = arith.truncf %91 : vector<256x32xf32> to vector<256x32xbf16>
    %c0_70 = arith.constant 0 : index
    %c32_71 = arith.constant 32 : index
    %93 = vector.load %arg10[%c0_70, %c32_71] : memref<256x896xbf16, #tpu.memory_space<vmem>>, vector<256x32xbf16>
    tpu.vector_store %arg10[%c0_70, %c32_71], %92 {strides = array<i32>} : memref<256x896xbf16, #tpu.memory_space<vmem>>, vector<256x32xbf16>,
    %c2 = arith.constant 2 : index
    %c0_72 = arith.constant 0 : index
    %94 = vector.load %arg9[%c2, %c0_72] : memref<336x32xf32, #tpu.memory_space<vmem>>, vector<256x32xf32>
    %95 = arith.truncf %94 : vector<256x32xf32> to vector<256x32xbf16>
    %c0_73 = arith.constant 0 : index
    %c64_74 = arith.constant 64 : index
    %96 = vector.load %arg10[%c0_73, %c64_74] : memref<256x896xbf16, #tpu.memory_space<vmem>>, vector<256x32xbf16>
    tpu.vector_store %arg10[%c0_73, %c64_74], %95 {strides = array<i32>} : memref<256x896xbf16, #tpu.memory_space<vmem>>, vector<256x32xbf16>,
    %c3 = arith.constant 3 : index
    %c0_75 = arith.constant 0 : index
    %97 = vector.load %arg9[%c3, %c0_75] : memref<336x32xf32, #tpu.memory_space<vmem>>, vector<256x32xf32>
    %98 = arith.truncf %97 : vector<256x32xf32> to vector<256x32xbf16>
    %c0_76 = arith.constant 0 : index
    %c96_77 = arith.constant 96 : index
    %99 = vector.load %arg10[%c0_76, %c96_77] : memref<256x896xbf16, #tpu.memory_space<vmem>>, vector<256x32xbf16>
    tpu.vector_store %arg10[%c0_76, %c96_77], %98 {strides = array<i32>} : memref<256x896xbf16, #tpu.memory_space<vmem>>, vector<256x32xbf16>,
    %c4 = arith.constant 4 : index
    %c0_78 = arith.constant 0 : index
    %100 = vector.load %arg9[%c4, %c0_78] : memref<336x32xf32, #tpu.memory_space<vmem>>, vector<256x32xf32>
    %101 = arith.truncf %100 : vector<256x32xf32> to vector<256x32xbf16>
    %c0_79 = arith.constant 0 : index
    %c128_80 = arith.constant 128 : index
    %102 = vector.load %arg10[%c0_79, %c128_80] : memref<256x896xbf16, #tpu.memory_space<vmem>>, vector<256x32xbf16>
    tpu.vector_store %arg10[%c0_79, %c128_80], %101 {strides = array<i32>} : memref<256x896xbf16, #tpu.memory_space<vmem>>, vector<256x32xbf16>,
    %c18 = arith.constant 18 : index
    %c0_81 = arith.constant 0 : index
    %103 = vector.load %arg9[%c18, %c0_81] : memref<336x32xf32, #tpu.memory_space<vmem>>, vector<256x32xf32>
    %104 = arith.truncf %103 : vector<256x32xf32> to vector<256x32xbf16>
    %c0_82 = arith.constant 0 : index
    %c160_83 = arith.constant 160 : index
    %105 = vector.load %arg10[%c0_82, %c160_83] : memref<256x896xbf16, #tpu.memory_space<vmem>>, vector<256x32xbf16>
    tpu.vector_store %arg10[%c0_82, %c160_83], %104 {strides = array<i32>} : memref<256x896xbf16, #tpu.memory_space<vmem>>, vector<256x32xbf16>,
    %c19 = arith.constant 19 : index
    %c0_84 = arith.constant 0 : index
    %106 = vector.load %arg9[%c19, %c0_84] : memref<336x32xf32, #tpu.memory_space<vmem>>, vector<256x32xf32>
    %107 = arith.truncf %106 : vector<256x32xf32> to vector<256x32xbf16>
    %c0_85 = arith.constant 0 : index
    %c192_86 = arith.constant 192 : index
    %108 = vector.load %arg10[%c0_85, %c192_86] : memref<256x896xbf16, #tpu.memory_space<vmem>>, vector<256x32xbf16>
    tpu.vector_store %arg10[%c0_85, %c192_86], %107 {strides = array<i32>} : memref<256x896xbf16, #tpu.memory_space<vmem>>, vector<256x32xbf16>,
    %c20 = arith.constant 20 : index
    %c0_87 = arith.constant 0 : index
    %109 = vector.load %arg9[%c20, %c0_87] : memref<336x32xf32, #tpu.memory_space<vmem>>, vector<256x32xf32>
    %110 = arith.truncf %109 : vector<256x32xf32> to vector<256x32xbf16>
    %c0_88 = arith.constant 0 : index
    %c224_89 = arith.constant 224 : index
    %111 = vector.load %arg10[%c0_88, %c224_89] : memref<256x896xbf16, #tpu.memory_space<vmem>>, vector<256x32xbf16>
    tpu.vector_store %arg10[%c0_88, %c224_89], %110 {strides = array<i32>} : memref<256x896xbf16, #tpu.memory_space<vmem>>, vector<256x32xbf16>,
    %c21 = arith.constant 21 : index
    %c0_90 = arith.constant 0 : index
    %112 = vector.load %arg9[%c21, %c0_90] : memref<336x32xf32, #tpu.memory_space<vmem>>, vector<256x32xf32>
    %113 = arith.truncf %112 : vector<256x32xf32> to vector<256x32xbf16>
    %c0_91 = arith.constant 0 : index
    %c256_92 = arith.constant 256 : index
    %114 = vector.load %arg10[%c0_91, %c256_92] : memref<256x896xbf16, #tpu.memory_space<vmem>>, vector<256x32xbf16>
    tpu.vector_store %arg10[%c0_91, %c256_92], %113 {strides = array<i32>} : memref<256x896xbf16, #tpu.memory_space<vmem>>, vector<256x32xbf16>,
    %c22 = arith.constant 22 : index
    %c0_93 = arith.constant 0 : index
    %115 = vector.load %arg9[%c22, %c0_93] : memref<336x32xf32, #tpu.memory_space<vmem>>, vector<256x32xf32>
    %116 = arith.truncf %115 : vector<256x32xf32> to vector<256x32xbf16>
    %c0_94 = arith.constant 0 : index
    %c288_95 = arith.constant 288 : index
    %117 = vector.load %arg10[%c0_94, %c288_95] : memref<256x896xbf16, #tpu.memory_space<vmem>>, vector<256x32xbf16>
    tpu.vector_store %arg10[%c0_94, %c288_95], %116 {strides = array<i32>} : memref<256x896xbf16, #tpu.memory_space<vmem>>, vector<256x32xbf16>,
    %c36 = arith.constant 36 : index
    %c0_96 = arith.constant 0 : index
    %118 = vector.load %arg9[%c36, %c0_96] : memref<336x32xf32, #tpu.memory_space<vmem>>, vector<256x32xf32>
    %119 = arith.truncf %118 : vector<256x32xf32> to vector<256x32xbf16>
    %c0_97 = arith.constant 0 : index
    %c320_98 = arith.constant 320 : index
    %120 = vector.load %arg10[%c0_97, %c320_98] : memref<256x896xbf16, #tpu.memory_space<vmem>>, vector<256x32xbf16>
    tpu.vector_store %arg10[%c0_97, %c320_98], %119 {strides = array<i32>} : memref<256x896xbf16, #tpu.memory_space<vmem>>, vector<256x32xbf16>,
    %c37 = arith.constant 37 : index
    %c0_99 = arith.constant 0 : index
    %121 = vector.load %arg9[%c37, %c0_99] : memref<336x32xf32, #tpu.memory_space<vmem>>, vector<256x32xf32>
    %122 = arith.truncf %121 : vector<256x32xf32> to vector<256x32xbf16>
    %c0_100 = arith.constant 0 : index
    %c352_101 = arith.constant 352 : index
    %123 = vector.load %arg10[%c0_100, %c352_101] : memref<256x896xbf16, #tpu.memory_space<vmem>>, vector<256x32xbf16>
    tpu.vector_store %arg10[%c0_100, %c352_101], %122 {strides = array<i32>} : memref<256x896xbf16, #tpu.memory_space<vmem>>, vector<256x32xbf16>,
    %c38_102 = arith.constant 38 : index
    %c0_103 = arith.constant 0 : index
    %124 = vector.load %arg9[%c38_102, %c0_103] : memref<336x32xf32, #tpu.memory_space<vmem>>, vector<256x32xf32>
    %125 = arith.truncf %124 : vector<256x32xf32> to vector<256x32xbf16>
    %c0_104 = arith.constant 0 : index
    %c384_105 = arith.constant 384 : index
    %126 = vector.load %arg10[%c0_104, %c384_105] : memref<256x896xbf16, #tpu.memory_space<vmem>>, vector<256x32xbf16>
    tpu.vector_store %arg10[%c0_104, %c384_105], %125 {strides = array<i32>} : memref<256x896xbf16, #tpu.memory_space<vmem>>, vector<256x32xbf16>,
    %c39 = arith.constant 39 : index
    %c0_106 = arith.constant 0 : index
    %127 = vector.load %arg9[%c39, %c0_106] : memref<336x32xf32, #tpu.memory_space<vmem>>, vector<256x32xf32>
    %128 = arith.truncf %127 : vector<256x32xf32> to vector<256x32xbf16>
    %c0_107 = arith.constant 0 : index
    %c416_108 = arith.constant 416 : index
    %129 = vector.load %arg10[%c0_107, %c416_108] : memref<256x896xbf16, #tpu.memory_space<vmem>>, vector<256x32xbf16>
    tpu.vector_store %arg10[%c0_107, %c416_108], %128 {strides = array<i32>} : memref<256x896xbf16, #tpu.memory_space<vmem>>, vector<256x32xbf16>,
    %c40 = arith.constant 40 : index
    %c0_109 = arith.constant 0 : index
    %130 = vector.load %arg9[%c40, %c0_109] : memref<336x32xf32, #tpu.memory_space<vmem>>, vector<256x32xf32>
    %131 = arith.truncf %130 : vector<256x32xf32> to vector<256x32xbf16>
    %c0_110 = arith.constant 0 : index
    %c448 = arith.constant 448 : index
    %132 = vector.load %arg10[%c0_110, %c448] : memref<256x896xbf16, #tpu.memory_space<vmem>>, vector<256x32xbf16>
    tpu.vector_store %arg10[%c0_110, %c448], %131 {strides = array<i32>} : memref<256x896xbf16, #tpu.memory_space<vmem>>, vector<256x32xbf16>,
    %c54 = arith.constant 54 : index
    %c0_111 = arith.constant 0 : index
    %133 = vector.load %arg9[%c54, %c0_111] : memref<336x32xf32, #tpu.memory_space<vmem>>, vector<256x32xf32>
    %134 = arith.truncf %133 : vector<256x32xf32> to vector<256x32xbf16>
    %c0_112 = arith.constant 0 : index
    %c480 = arith.constant 480 : index
    %135 = vector.load %arg10[%c0_112, %c480] : memref<256x896xbf16, #tpu.memory_space<vmem>>, vector<256x32xbf16>
    tpu.vector_store %arg10[%c0_112, %c480], %134 {strides = array<i32>} : memref<256x896xbf16, #tpu.memory_space<vmem>>, vector<256x32xbf16>,
    %c55 = arith.constant 55 : index
    %c0_113 = arith.constant 0 : index
    %136 = vector.load %arg9[%c55, %c0_113] : memref<336x32xf32, #tpu.memory_space<vmem>>, vector<256x32xf32>
    %137 = arith.truncf %136 : vector<256x32xf32> to vector<256x32xbf16>
    %c0_114 = arith.constant 0 : index
    %c512 = arith.constant 512 : index
    %138 = vector.load %arg10[%c0_114, %c512] : memref<256x896xbf16, #tpu.memory_space<vmem>>, vector<256x32xbf16>
    tpu.vector_store %arg10[%c0_114, %c512], %137 {strides = array<i32>} : memref<256x896xbf16, #tpu.memory_space<vmem>>, vector<256x32xbf16>,
    %c56_115 = arith.constant 56 : index
    %c0_116 = arith.constant 0 : index
    %139 = vector.load %arg9[%c56_115, %c0_116] : memref<336x32xf32, #tpu.memory_space<vmem>>, vector<256x32xf32>
    %140 = arith.truncf %139 : vector<256x32xf32> to vector<256x32xbf16>
    %c0_117 = arith.constant 0 : index
    %c544 = arith.constant 544 : index
    %141 = vector.load %arg10[%c0_117, %c544] : memref<256x896xbf16, #tpu.memory_space<vmem>>, vector<256x32xbf16>
    tpu.vector_store %arg10[%c0_117, %c544], %140 {strides = array<i32>} : memref<256x896xbf16, #tpu.memory_space<vmem>>, vector<256x32xbf16>,
    %c57 = arith.constant 57 : index
    %c0_118 = arith.constant 0 : index
    %142 = vector.load %arg9[%c57, %c0_118] : memref<336x32xf32, #tpu.memory_space<vmem>>, vector<256x32xf32>
    %143 = arith.truncf %142 : vector<256x32xf32> to vector<256x32xbf16>
    %c0_119 = arith.constant 0 : index
    %c576 = arith.constant 576 : index
    %144 = vector.load %arg10[%c0_119, %c576] : memref<256x896xbf16, #tpu.memory_space<vmem>>, vector<256x32xbf16>
    tpu.vector_store %arg10[%c0_119, %c576], %143 {strides = array<i32>} : memref<256x896xbf16, #tpu.memory_space<vmem>>, vector<256x32xbf16>,
    %c58 = arith.constant 58 : index
    %c0_120 = arith.constant 0 : index
    %145 = vector.load %arg9[%c58, %c0_120] : memref<336x32xf32, #tpu.memory_space<vmem>>, vector<256x32xf32>
    %146 = arith.truncf %145 : vector<256x32xf32> to vector<256x32xbf16>
    %c0_121 = arith.constant 0 : index
    %c608 = arith.constant 608 : index
    %147 = vector.load %arg10[%c0_121, %c608] : memref<256x896xbf16, #tpu.memory_space<vmem>>, vector<256x32xbf16>
    tpu.vector_store %arg10[%c0_121, %c608], %146 {strides = array<i32>} : memref<256x896xbf16, #tpu.memory_space<vmem>>, vector<256x32xbf16>,
    %c72 = arith.constant 72 : index
    %c0_122 = arith.constant 0 : index
    %148 = vector.load %arg9[%c72, %c0_122] : memref<336x32xf32, #tpu.memory_space<vmem>>, vector<256x32xf32>
    %149 = arith.truncf %148 : vector<256x32xf32> to vector<256x32xbf16>
    %c0_123 = arith.constant 0 : index
    %c640 = arith.constant 640 : index
    %150 = vector.load %arg10[%c0_123, %c640] : memref<256x896xbf16, #tpu.memory_space<vmem>>, vector<256x32xbf16>
    tpu.vector_store %arg10[%c0_123, %c640], %149 {strides = array<i32>} : memref<256x896xbf16, #tpu.memory_space<vmem>>, vector<256x32xbf16>,
    %c73 = arith.constant 73 : index
    %c0_124 = arith.constant 0 : index
    %151 = vector.load %arg9[%c73, %c0_124] : memref<336x32xf32, #tpu.memory_space<vmem>>, vector<256x32xf32>
    %152 = arith.truncf %151 : vector<256x32xf32> to vector<256x32xbf16>
    %c0_125 = arith.constant 0 : index
    %c672 = arith.constant 672 : index
    %153 = vector.load %arg10[%c0_125, %c672] : memref<256x896xbf16, #tpu.memory_space<vmem>>, vector<256x32xbf16>
    tpu.vector_store %arg10[%c0_125, %c672], %152 {strides = array<i32>} : memref<256x896xbf16, #tpu.memory_space<vmem>>, vector<256x32xbf16>,
    %c74_126 = arith.constant 74 : index
    %c0_127 = arith.constant 0 : index
    %154 = vector.load %arg9[%c74_126, %c0_127] : memref<336x32xf32, #tpu.memory_space<vmem>>, vector<256x32xf32>
    %155 = arith.truncf %154 : vector<256x32xf32> to vector<256x32xbf16>
    %c0_128 = arith.constant 0 : index
    %c704 = arith.constant 704 : index
    %156 = vector.load %arg10[%c0_128, %c704] : memref<256x896xbf16, #tpu.memory_space<vmem>>, vector<256x32xbf16>
    tpu.vector_store %arg10[%c0_128, %c704], %155 {strides = array<i32>} : memref<256x896xbf16, #tpu.memory_space<vmem>>, vector<256x32xbf16>,
    %c75 = arith.constant 75 : index
    %c0_129 = arith.constant 0 : index
    %157 = vector.load %arg9[%c75, %c0_129] : memref<336x32xf32, #tpu.memory_space<vmem>>, vector<256x32xf32>
    %158 = arith.truncf %157 : vector<256x32xf32> to vector<256x32xbf16>
    %c0_130 = arith.constant 0 : index
    %c736 = arith.constant 736 : index
    %159 = vector.load %arg10[%c0_130, %c736] : memref<256x896xbf16, #tpu.memory_space<vmem>>, vector<256x32xbf16>
    tpu.vector_store %arg10[%c0_130, %c736], %158 {strides = array<i32>} : memref<256x896xbf16, #tpu.memory_space<vmem>>, vector<256x32xbf16>,
    %c76 = arith.constant 76 : index
    %c0_131 = arith.constant 0 : index
    %160 = vector.load %arg9[%c76, %c0_131] : memref<336x32xf32, #tpu.memory_space<vmem>>, vector<256x32xf32>
    %161 = arith.truncf %160 : vector<256x32xf32> to vector<256x32xbf16>
    %c0_132 = arith.constant 0 : index
    %c768 = arith.constant 768 : index
    %162 = vector.load %arg10[%c0_132, %c768] : memref<256x896xbf16, #tpu.memory_space<vmem>>, vector<256x32xbf16>
    tpu.vector_store %arg10[%c0_132, %c768], %161 {strides = array<i32>} : memref<256x896xbf16, #tpu.memory_space<vmem>>, vector<256x32xbf16>,
    %c0_133 = arith.constant 0 : index
    %c0_134 = arith.constant 0 : index
    %163 = vector.load %arg10[%c0_133, %c0_134] : memref<256x896xbf16, #tpu.memory_space<vmem>>, vector<256x896xbf16>
    %c0_135 = arith.constant 0 : index
    %c0_136 = arith.constant 0 : index
    %164 = vector.load %arg4[%c0_135, %c0_136] : memref<896x64xbf16, #tpu.memory_space<vmem>>, vector<896x64xbf16>
    %cst_137 = arith.constant dense<0.000000e+00> : vector<256x64xf32>
    %165 = tpu.matmul %163, %164, %cst_137 {dimension_numbers = #tpu.dot_dimension_numbers<[1], [0], [0], [1], [0, 0, 1, 1], [], []>} : vector<256x896xbf16>, vector<896x64xbf16>, vector<256x64xf32> -> vector<256x64xf32>
    %c0_138 = arith.constant 0 : index
    %c0_139 = arith.constant 0 : index
    %166 = vector.load %arg5[%c0_138, %c0_139] : memref<1x64xf32, #tpu.memory_space<vmem>>, vector<1x64xf32>
    %167 = vector.broadcast %166 : vector<1x64xf32> to vector<256x64xf32>
    %168 = arith.addf %165, %167 : vector<256x64xf32>
    %cst_140 = arith.constant 0.000000e+00 : f32
    %169 = vector.broadcast %cst_140 : f32 to vector<256x64xf32>
    %170 = arith.maximumf %168, %169 : vector<256x64xf32>
    %c0_141 = arith.constant 0 : index
    %c0_142 = arith.constant 0 : index
    %171 = vector.load %arg11[%c0_141, %c0_142] : memref<256x64xf32, #tpu.memory_space<vmem>>, vector<256x64xf32>
    tpu.vector_store %arg11[%c0_141, %c0_142], %170 {strides = array<i32>} : memref<256x64xf32, #tpu.memory_space<vmem>>, vector<256x64xf32>,
    %c0_143 = arith.constant 0 : index
    %c0_144 = arith.constant 0 : index
    %172 = tpu.strided_load %arg11[%c0_143, %c0_144] {strides = array<i32: 2, 1>} : memref<256x64xf32, #tpu.memory_space<vmem>>, vector<126x64xf32>
    %c1_145 = arith.constant 1 : index
    %c0_146 = arith.constant 0 : index
    %173 = tpu.strided_load %arg11[%c1_145, %c0_146] {strides = array<i32: 2, 1>} : memref<256x64xf32, #tpu.memory_space<vmem>>, vector<126x64xf32>
    %174 = arith.maximumf %172, %173 : vector<126x64xf32>
    %c0_147 = arith.constant 0 : index
    %c0_148 = arith.constant 0 : index
    %175 = vector.load %arg12[%c0_147, %c0_148] : memref<128x64xf32, #tpu.memory_space<vmem>>, vector<126x64xf32>
    tpu.vector_store %arg12[%c0_147, %c0_148], %174 {strides = array<i32>} : memref<128x64xf32, #tpu.memory_space<vmem>>, vector<126x64xf32>,
    %c0_149 = arith.constant 0 : index
    %c0_150 = arith.constant 0 : index
    %176 = vector.load %arg12[%c0_149, %c0_150] : memref<128x64xf32, #tpu.memory_space<vmem>>, vector<9x64xf32>
    %c9 = arith.constant 9 : index
    %c0_151 = arith.constant 0 : index
    %177 = vector.load %arg12[%c9, %c0_151] : memref<128x64xf32, #tpu.memory_space<vmem>>, vector<9x64xf32>
    %178 = arith.maximumf %176, %177 : vector<9x64xf32>
    %c0_152 = arith.constant 0 : index
    %c0_153 = arith.constant 0 : index
    %c0_154 = arith.constant 0 : index
    %179 = vector.load %arg6[%c0_152, %c0_153, %c0_154] : memref<1x63x64xf32, #tpu.memory_space<vmem>>, vector<1x9x64xf32>
    %180 = vector.shape_cast %179 : vector<1x9x64xf32> to vector<9x64xf32>
    %181 = vector.shape_cast %178 : vector<9x64xf32> to vector<1x9x64xf32>
    tpu.vector_store %arg6[%c0_152, %c0_153, %c0_154], %181 {strides = array<i32>} : memref<1x63x64xf32, #tpu.memory_space<vmem>>, vector<1x9x64xf32>,
    %c18_155 = arith.constant 18 : index
    %c0_156 = arith.constant 0 : index
    %182 = vector.load %arg12[%c18_155, %c0_156] : memref<128x64xf32, #tpu.memory_space<vmem>>, vector<9x64xf32>
    %c27 = arith.constant 27 : index
    %c0_157 = arith.constant 0 : index
    %183 = vector.load %arg12[%c27, %c0_157] : memref<128x64xf32, #tpu.memory_space<vmem>>, vector<9x64xf32>
    %184 = arith.maximumf %182, %183 : vector<9x64xf32>
    %c0_158 = arith.constant 0 : index
    %c9_159 = arith.constant 9 : index
    %c0_160 = arith.constant 0 : index
    %185 = vector.load %arg6[%c0_158, %c9_159, %c0_160] : memref<1x63x64xf32, #tpu.memory_space<vmem>>, vector<1x9x64xf32>
    %186 = vector.shape_cast %185 : vector<1x9x64xf32> to vector<9x64xf32>
    %187 = vector.shape_cast %184 : vector<9x64xf32> to vector<1x9x64xf32>
    tpu.vector_store %arg6[%c0_158, %c9_159, %c0_160], %187 {strides = array<i32>} : memref<1x63x64xf32, #tpu.memory_space<vmem>>, vector<1x9x64xf32>,
    %c36_161 = arith.constant 36 : index
    %c0_162 = arith.constant 0 : index
    %188 = vector.load %arg12[%c36_161, %c0_162] : memref<128x64xf32, #tpu.memory_space<vmem>>, vector<9x64xf32>
    %c45 = arith.constant 45 : index
    %c0_163 = arith.constant 0 : index
    %189 = vector.load %arg12[%c45, %c0_163] : memref<128x64xf32, #tpu.memory_space<vmem>>, vector<9x64xf32>
    %190 = arith.maximumf %188, %189 : vector<9x64xf32>
    %c0_164 = arith.constant 0 : index
    %c18_165 = arith.constant 18 : index
    %c0_166 = arith.constant 0 : index
    %191 = vector.load %arg6[%c0_164, %c18_165, %c0_166] : memref<1x63x64xf32, #tpu.memory_space<vmem>>, vector<1x9x64xf32>
    %192 = vector.shape_cast %191 : vector<1x9x64xf32> to vector<9x64xf32>
    %193 = vector.shape_cast %190 : vector<9x64xf32> to vector<1x9x64xf32>
    tpu.vector_store %arg6[%c0_164, %c18_165, %c0_166], %193 {strides = array<i32>} : memref<1x63x64xf32, #tpu.memory_space<vmem>>, vector<1x9x64xf32>,
    %c54_167 = arith.constant 54 : index
    %c0_168 = arith.constant 0 : index
    %194 = vector.load %arg12[%c54_167, %c0_168] : memref<128x64xf32, #tpu.memory_space<vmem>>, vector<9x64xf32>
    %c63 = arith.constant 63 : index
    %c0_169 = arith.constant 0 : index
    %195 = vector.load %arg12[%c63, %c0_169] : memref<128x64xf32, #tpu.memory_space<vmem>>, vector<9x64xf32>
    %196 = arith.maximumf %194, %195 : vector<9x64xf32>
    %c0_170 = arith.constant 0 : index
    %c27_171 = arith.constant 27 : index
    %c0_172 = arith.constant 0 : index
    %197 = vector.load %arg6[%c0_170, %c27_171, %c0_172] : memref<1x63x64xf32, #tpu.memory_space<vmem>>, vector<1x9x64xf32>
    %198 = vector.shape_cast %197 : vector<1x9x64xf32> to vector<9x64xf32>
    %199 = vector.shape_cast %196 : vector<9x64xf32> to vector<1x9x64xf32>
    tpu.vector_store %arg6[%c0_170, %c27_171, %c0_172], %199 {strides = array<i32>} : memref<1x63x64xf32, #tpu.memory_space<vmem>>, vector<1x9x64xf32>,
    %c72_173 = arith.constant 72 : index
    %c0_174 = arith.constant 0 : index
    %200 = vector.load %arg12[%c72_173, %c0_174] : memref<128x64xf32, #tpu.memory_space<vmem>>, vector<9x64xf32>
    %c81 = arith.constant 81 : index
    %c0_175 = arith.constant 0 : index
    %201 = vector.load %arg12[%c81, %c0_175] : memref<128x64xf32, #tpu.memory_space<vmem>>, vector<9x64xf32>
    %202 = arith.maximumf %200, %201 : vector<9x64xf32>
    %c0_176 = arith.constant 0 : index
    %c36_177 = arith.constant 36 : index
    %c0_178 = arith.constant 0 : index
    %203 = vector.load %arg6[%c0_176, %c36_177, %c0_178] : memref<1x63x64xf32, #tpu.memory_space<vmem>>, vector<1x9x64xf32>
    %204 = vector.shape_cast %203 : vector<1x9x64xf32> to vector<9x64xf32>
    %205 = vector.shape_cast %202 : vector<9x64xf32> to vector<1x9x64xf32>
    tpu.vector_store %arg6[%c0_176, %c36_177, %c0_178], %205 {strides = array<i32>} : memref<1x63x64xf32, #tpu.memory_space<vmem>>, vector<1x9x64xf32>,
    %c90 = arith.constant 90 : index
    %c0_179 = arith.constant 0 : index
    %206 = vector.load %arg12[%c90, %c0_179] : memref<128x64xf32, #tpu.memory_space<vmem>>, vector<9x64xf32>
    %c99 = arith.constant 99 : index
    %c0_180 = arith.constant 0 : index
    %207 = vector.load %arg12[%c99, %c0_180] : memref<128x64xf32, #tpu.memory_space<vmem>>, vector<9x64xf32>
    %208 = arith.maximumf %206, %207 : vector<9x64xf32>
    %c0_181 = arith.constant 0 : index
    %c45_182 = arith.constant 45 : index
    %c0_183 = arith.constant 0 : index
    %209 = vector.load %arg6[%c0_181, %c45_182, %c0_183] : memref<1x63x64xf32, #tpu.memory_space<vmem>>, vector<1x9x64xf32>
    %210 = vector.shape_cast %209 : vector<1x9x64xf32> to vector<9x64xf32>
    %211 = vector.shape_cast %208 : vector<9x64xf32> to vector<1x9x64xf32>
    tpu.vector_store %arg6[%c0_181, %c45_182, %c0_183], %211 {strides = array<i32>} : memref<1x63x64xf32, #tpu.memory_space<vmem>>, vector<1x9x64xf32>,
    %c108 = arith.constant 108 : index
    %c0_184 = arith.constant 0 : index
    %212 = vector.load %arg12[%c108, %c0_184] : memref<128x64xf32, #tpu.memory_space<vmem>>, vector<9x64xf32>
    %c117 = arith.constant 117 : index
    %c0_185 = arith.constant 0 : index
    %213 = vector.load %arg12[%c117, %c0_185] : memref<128x64xf32, #tpu.memory_space<vmem>>, vector<9x64xf32>
    %214 = arith.maximumf %212, %213 : vector<9x64xf32>
    %c0_186 = arith.constant 0 : index
    %c54_187 = arith.constant 54 : index
    %c0_188 = arith.constant 0 : index
    %215 = vector.load %arg6[%c0_186, %c54_187, %c0_188] : memref<1x63x64xf32, #tpu.memory_space<vmem>>, vector<1x9x64xf32>
    %216 = vector.shape_cast %215 : vector<1x9x64xf32> to vector<9x64xf32>
    %217 = vector.shape_cast %214 : vector<9x64xf32> to vector<1x9x64xf32>
    tpu.vector_store %arg6[%c0_186, %c54_187, %c0_188], %217 {strides = array<i32>} : memref<1x63x64xf32, #tpu.memory_space<vmem>>, vector<1x9x64xf32>,
    return
  }
  func.func @transform_0(%arg0: i32) -> (i32, i32, i32) {
    %c0_i32 = arith.constant 0 : i32
    %c0_i32_0 = arith.constant 0 : i32
    %c0_i32_1 = arith.constant 0 : i32
    return %arg0, %c0_i32, %c0_i32_0 : i32, i32, i32
  }
  func.func @transform_1(%arg0: i32) -> (i32, i32) {
    %c0_i32 = arith.constant 0 : i32
    %c0_i32_0 = arith.constant 0 : i32
    %c0_i32_1 = arith.constant 0 : i32
    return %c0_i32, %c0_i32_0 : i32, i32
  }
  func.func @transform_2(%arg0: i32) -> (i32, i32) {
    %c0_i32 = arith.constant 0 : i32
    %c0_i32_0 = arith.constant 0 : i32
    %c0_i32_1 = arith.constant 0 : i32
    return %c0_i32, %c0_i32_0 : i32, i32
  }
  func.func @transform_3(%arg0: i32) -> (i32, i32) {
    %c0_i32 = arith.constant 0 : i32
    %c0_i32_0 = arith.constant 0 : i32
    %c0_i32_1 = arith.constant 0 : i32
    return %c0_i32, %c0_i32_0 : i32, i32
  }
  func.func @transform_4(%arg0: i32) -> (i32, i32) {
    %c0_i32 = arith.constant 0 : i32
    %c0_i32_0 = arith.constant 0 : i32
    %c0_i32_1 = arith.constant 0 : i32
    return %c0_i32, %c0_i32_0 : i32, i32
  }
  func.func @transform_5(%arg0: i32) -> (i32, i32, i32) {
    %c0_i32 = arith.constant 0 : i32
    %c0_i32_0 = arith.constant 0 : i32
    %c0_i32_1 = arith.constant 0 : i32
    return %arg0, %c0_i32, %c0_i32_0 : i32, i32, i32
  }
}

module attributes {stable_mosaic.version = 11 : i64} {
  func.func @_linear_kernel(%arg0: memref<2x4032xf32, #tpu.memory_space<vmem>>, %arg1: memref<4032x10xbf16, #tpu.memory_space<vmem>>, %arg2: memref<1x10xf32, #tpu.memory_space<vmem>>, %arg3: memref<2x10xf32, #tpu.memory_space<vmem>>) attributes {dimension_semantics = [], scalar_prefetch = 0 : i64, scratch_operands = 0 : i64, tpu.core_type = #tpu.core_type<tc>} {
    %c0 = arith.constant 0 : index
    %c0_0 = arith.constant 0 : index
    %0 = vector.load %arg0[%c0, %c0_0] : memref<2x4032xf32, #tpu.memory_space<vmem>>, vector<2x4032xf32>
    %1 = arith.truncf %0 : vector<2x4032xf32> to vector<2x4032xbf16>
    %c0_1 = arith.constant 0 : index
    %c0_2 = arith.constant 0 : index
    %2 = vector.load %arg1[%c0_1, %c0_2] : memref<4032x10xbf16, #tpu.memory_space<vmem>>, vector<4032x10xbf16>
    %cst = arith.constant dense<0.000000e+00> : vector<2x10xf32>
    %3 = tpu.matmul %1, %2, %cst {dimension_numbers = #tpu.dot_dimension_numbers<[1], [0], [0], [1], [0, 0, 1, 1], [], []>} : vector<2x4032xbf16>, vector<4032x10xbf16>, vector<2x10xf32> -> vector<2x10xf32>
    %c0_3 = arith.constant 0 : index
    %c0_4 = arith.constant 0 : index
    %4 = vector.load %arg2[%c0_3, %c0_4] : memref<1x10xf32, #tpu.memory_space<vmem>>, vector<1x10xf32>
    %5 = vector.broadcast %4 : vector<1x10xf32> to vector<2x10xf32>
    %6 = arith.addf %3, %5 : vector<2x10xf32>
    %c0_5 = arith.constant 0 : index
    %c0_6 = arith.constant 0 : index
    %7 = vector.load %arg3[%c0_5, %c0_6] : memref<2x10xf32, #tpu.memory_space<vmem>>, vector<2x10xf32>
    tpu.vector_store %arg3[%c0_5, %c0_6], %6 {strides = array<i32>} : memref<2x10xf32, #tpu.memory_space<vmem>>, vector<2x10xf32>,
    return
  }
}

</mosaic_0001>

<llo_original>
// kernel: simple_cnn_forward.3
$region0: #{simple_cnn_forward.3}
  #allocation0 [shape = 'u32[]', space=smem, size = 0x4, offset = 0x4, fixed_abs, tag = 'smem constant byte address 0x4 - core index']
  #allocation1 [shape = 'u32[72,128]{1,0:T(1,128)}', space=vmem, size = 0x9000, scoped, tag = 'internal scratch']
  %s0 = inlined_call_operand.vmem [shape: f32[2,4032], index: 0, kind: input, shape index: {}]
  %s1 = inlined_call_operand.vmem [shape: bf16[4032,10], index: 1, kind: input, shape index: {}]
  %s2 = inlined_call_operand.vmem [shape: f32[1,10], index: 2, kind: input, shape index: {}]
  %s3 = inlined_call_operand.hbm [shape: f32[2,10], index: 3, kind: output, shape index: {}]
  %s4 = sld [smem:[#allocation0]]
  $region22: #{simple_cnn_forward.3} parent=0
    _
  %s6 = ssub.s32 1, %s4
  %s7 = scalar_select 0, %s6, %s4
  $region1: #{simple_cnn_forward.3} parent=0
    #allocation2 [shape = 'u8[1024]{0}', space=vmem, size = 0x400, scoped, tag = 'output window, operand 0, single buffered']
    #allocation3 [shape = 's32[1]{0}', space=sflag, size = 0x4, scoped, tag = 'scoped memory for simple_cnn_forward.3']
    %8 = vsyncpa [#allocation3], 0
    // Predicated region
    $region2: #{simple_cnn_forward.3} parent=1 // pred_check
      _
    $region3: #{simple_cnn_forward.3} parent=1 // pred_check_branch
      %10 = sbr.rel (0) target = $region5
    $region4: #{simple_cnn_forward.3} parent=1 // pred_region
      _
    $region5: #{simple_cnn_forward.3} parent=1 // pred_fallthru
      _
    // Predicated region
    $region6: #{simple_cnn_forward.3} parent=1 // pred_check
      _
    $region7: #{simple_cnn_forward.3} parent=1 // pred_check_branch
      %12 = sbr.rel (0) target = $region9
    $region8: #{simple_cnn_forward.3} parent=1 // pred_region
      _
    $region9: #{simple_cnn_forward.3} parent=1 // pred_fallthru
      _
    // Predicated region
    $region10: #{simple_cnn_forward.3} parent=1 // pred_check
      _
    $region11: #{simple_cnn_forward.3} parent=1 // pred_check_branch
      %14 = sbr.rel (0) target = $region13
    $region12: #{simple_cnn_forward.3} parent=1 // pred_region
      _
    $region13: #{simple_cnn_forward.3} parent=1 // pred_fallthru
      _
    %v16 = vld [vmem:[%s0] sm:$0xff]
    %v17 = vld [vmem:[%s0 + $0x8] sm:$0xff]
    %v18 = vld [vmem:[%s0 + $0x10] sm:$0xff]
    %v19 = vld [vmem:[%s0 + $0x18] sm:$0xff]
    %v20 = vld [vmem:[%s0 + $0x20] sm:$0xff]
    %v21 = vld [vmem:[%s0 + $0x28] sm:$0xff]
    %v22 = vld [vmem:[%s0 + $0x30] sm:$0xff]
    %v23 = vld [vmem:[%s0 + $0x38] sm:$0xff]
    %32 = vst [vmem:[#allocation1] ss:$4 sm:$0xff] %v16
    %s33 = scalar_lea.vmem [#allocation1], 32
    %34 = vst [vmem:[%s33] ss:$4 sm:$0xff] %v17
    %v35 = vld.sshfl [vmem:[#allocation1] sm:$0xff pattern:$0x73625140]
    %v36 = vld.sshfl [vmem:[#allocation1 + $0x8] sm:$0xff pattern:$0x73625140]
    %v37 = vld.sshfl [vmem:[#allocation1 + $0x10] sm:$0xff pattern:$0x73625140]
    %v38 = vld.sshfl [vmem:[#allocation1 + $0x18] sm:$0xff pattern:$0x73625140]
    %v39 = vld.sshfl [vmem:[#allocation1 + $0x20] sm:$0xff pattern:$0x73625140]
    %v40 = vld.sshfl [vmem:[#allocation1 + $0x28] sm:$0xff pattern:$0x73625140]
    %v41 = vld.sshfl [vmem:[#allocation1 + $0x30] sm:$0xff pattern:$0x73625140]
    %v42 = vld.sshfl [vmem:[#allocation1 + $0x38] sm:$0xff pattern:$0x73625140]
    %43 = vst [vmem:[#allocation1] ss:$4 sm:$0xff] %v18
    %44 = vst [vmem:[%s33] ss:$4 sm:$0xff] %v19
    %v45 = vld.sshfl [vmem:[#allocation1] sm:$0xff pattern:$0x73625140]
    %v46 = vld.sshfl [vmem:[#allocation1 + $0x8] sm:$0xff pattern:$0x73625140]
    %v47 = vld.sshfl [vmem:[#allocation1 + $0x10] sm:$0xff pattern:$0x73625140]
    %v48 = vld.sshfl [vmem:[#allocation1 + $0x18] sm:$0xff pattern:$0x73625140]
    %v49 = vld.sshfl [vmem:[#allocation1 + $0x20] sm:$0xff pattern:$0x73625140]
    %v50 = vld.sshfl [vmem:[#allocation1 + $0x28] sm:$0xff pattern:$0x73625140]
    %v51 = vld.sshfl [vmem:[#allocation1 + $0x30] sm:$0xff pattern:$0x73625140]
    %v52 = vld.sshfl [vmem:[#allocation1 + $0x38] sm:$0xff pattern:$0x73625140]
    %53 = vst [vmem:[#allocation1] ss:$4 sm:$0xff] %v20
    %54 = vst [vmem:[%s33] ss:$4 sm:$0xff] %v21
    %v55 = vld.sshfl [vmem:[#allocation1] sm:$0xff pattern:$0x73625140]
    %v56 = vld.sshfl [vmem:[#allocation1 + $0x8] sm:$0xff pattern:$0x73625140]
    %v57 = vld.sshfl [vmem:[#allocation1 + $0x10] sm:$0xff pattern:$0x73625140]
    %v58 = vld.sshfl [vmem:[#allocation1 + $0x18] sm:$0xff pattern:$0x73625140]
    %v59 = vld.sshfl [vmem:[#allocation1 + $0x20] sm:$0xff pattern:$0x73625140]
    %v60 = vld.sshfl [vmem:[#allocation1 + $0x28] sm:$0xff pattern:$0x73625140]
    %v61 = vld.sshfl [vmem:[#allocation1 + $0x30] sm:$0xff pattern:$0x73625140]
    %v62 = vld.sshfl [vmem:[#allocation1 + $0x38] sm:$0xff pattern:$0x73625140]
    %63 = vst [vmem:[#allocation1] ss:$4 sm:$0xff] %v22
    %64 = vst [vmem:[%s33] ss:$4 sm:$0xff] %v23
    %v65 = vld.sshfl [vmem:[#allocation1] sm:$0xff pattern:$0x73625140]
    %v66 = vld.sshfl [vmem:[#allocation1 + $0x8] sm:$0xff pattern:$0x73625140]
    %v67 = vld.sshfl [vmem:[#allocation1 + $0x10] sm:$0xff pattern:$0x73625140]
    %v68 = vld.sshfl [vmem:[#allocation1 + $0x18] sm:$0xff pattern:$0x73625140]
    %v69 = vld.sshfl [vmem:[#allocation1 + $0x20] sm:$0xff pattern:$0x73625140]
    %v70 = vld.sshfl [vmem:[#allocation1 + $0x28] sm:$0xff pattern:$0x73625140]
    %v71 = vld.sshfl [vmem:[#allocation1 + $0x30] sm:$0xff pattern:$0x73625140]
    %v72 = vld.sshfl [vmem:[#allocation1 + $0x38] sm:$0xff pattern:$0x73625140]
    %v105 = vpack.c.bf16 %v35, %v35
    %v106 = vpack.c.bf16 %v36, %v36
    %v107 = vpack.c.bf16 %v37, %v37
    %v108 = vpack.c.bf16 %v38, %v38
    %v109 = vpack.c.bf16 %v39, %v39
    %v110 = vpack.c.bf16 %v40, %v40
    %v111 = vpack.c.bf16 %v41, %v41
    %v112 = vpack.c.bf16 %v42, %v42
    %v113 = vpack.c.bf16 %v45, %v45
    %v114 = vpack.c.bf16 %v46, %v46
    %v115 = vpack.c.bf16 %v47, %v47
    %v116 = vpack.c.bf16 %v48, %v48
    %v117 = vpack.c.bf16 %v49, %v49
    %v118 = vpack.c.bf16 %v50, %v50
    %v119 = vpack.c.bf16 %v51, %v51
    %v120 = vpack.c.bf16 %v52, %v52
    %v121 = vpack.c.bf16 %v55, %v55
    %v122 = vpack.c.bf16 %v56, %v56
    %v123 = vpack.c.bf16 %v57, %v57
    %v124 = vpack.c.bf16 %v58, %v58
    %v125 = vpack.c.bf16 %v59, %v59
    %v126 = vpack.c.bf16 %v60, %v60
    %v127 = vpack.c.bf16 %v61, %v61
    %v128 = vpack.c.bf16 %v62, %v62
    %v129 = vpack.c.bf16 %v65, %v65
    %v130 = vpack.c.bf16 %v66, %v66
    %v131 = vpack.c.bf16 %v67, %v67
    %v132 = vpack.c.bf16 %v68, %v68
    %v133 = vpack.c.bf16 %v69, %v69
    %v134 = vpack.c.bf16 %v70, %v70
    %v135 = vpack.c.bf16 %v71, %v71
    %v136 = vpack.c.bf16 %v72, %v72
    %v137 = vld [vmem:[%s1] sm:$0xf]
    %v138 = vld [vmem:[%s1 + $0x4] sm:$0xf]
    %v139 = vld [vmem:[%s1 + $0x8] sm:$0xf]
    %v140 = vld [vmem:[%s1 + $0xc] sm:$0xf]
    %v141 = vld [vmem:[%s1 + $0x10] sm:$0xf]
    %v142 = vld [vmem:[%s1 + $0x14] sm:$0xf]
    %v143 = vld [vmem:[%s1 + $0x18] sm:$0xf]
    %v144 = vld [vmem:[%s1 + $0x1c] sm:$0xf]
    %v145 = vld [vmem:[%s1 + $0x20] sm:$0xf]
    %v146 = vld [vmem:[%s1 + $0x24] sm:$0xf]
    %v147 = vld [vmem:[%s1 + $0x28] sm:$0xf]
    %v148 = vld [vmem:[%s1 + $0x2c] sm:$0xf]
    %v149 = vld [vmem:[%s1 + $0x30] sm:$0xf]
    %v150 = vld [vmem:[%s1 + $0x34] sm:$0xf]
    %v151 = vld [vmem:[%s1 + $0x38] sm:$0xf]
    %v152 = vld [vmem:[%s1 + $0x3c] sm:$0xf]
    %v153 = vld [vmem:[%s1 + $0x40] sm:$0xf]
    %v154 = vld [vmem:[%s1 + $0x44] sm:$0xf]
    %v155 = vld [vmem:[%s1 + $0x48] sm:$0xf]
    %v156 = vld [vmem:[%s1 + $0x4c] sm:$0xf]
    %v157 = vld [vmem:[%s1 + $0x50] sm:$0xf]
    %v158 = vld [vmem:[%s1 + $0x54] sm:$0xf]
    %v159 = vld [vmem:[%s1 + $0x58] sm:$0xf]
    %v160 = vld [vmem:[%s1 + $0x5c] sm:$0xf]
    %v161 = vld [vmem:[%s1 + $0x60] sm:$0xf]
    %v162 = vld [vmem:[%s1 + $0x64] sm:$0xf]
    %v163 = vld [vmem:[%s1 + $0x68] sm:$0xf]
    %v164 = vld [vmem:[%s1 + $0x6c] sm:$0xf]
    %v165 = vld [vmem:[%s1 + $0x70] sm:$0xf]
    %v166 = vld [vmem:[%s1 + $0x74] sm:$0xf]
    %v167 = vld [vmem:[%s1 + $0x78] sm:$0xf]
    %v168 = vld [vmem:[%s1 + $0x7c] sm:$0xf]
    %v169 = vld [vmem:[%s1 + $0x80] sm:$0xf]
    %v170 = vld [vmem:[%s1 + $0x84] sm:$0xf]
    %v171 = vld [vmem:[%s1 + $0x88] sm:$0xf]
    %v172 = vld [vmem:[%s1 + $0x8c] sm:$0xf]
    %v173 = vld [vmem:[%s1 + $0x90] sm:$0xf]
    %v174 = vld [vmem:[%s1 + $0x94] sm:$0xf]
    %v175 = vld [vmem:[%s1 + $0x98] sm:$0xf]
    %v176 = vld [vmem:[%s1 + $0x9c] sm:$0xf]
    %v177 = vld [vmem:[%s1 + $0xa0] sm:$0xf]
    %v178 = vld [vmem:[%s1 + $0xa4] sm:$0xf]
    %v179 = vld [vmem:[%s1 + $0xa8] sm:$0xf]
    %v180 = vld [vmem:[%s1 + $0xac] sm:$0xf]
    %v181 = vld [vmem:[%s1 + $0xb0] sm:$0xf]
    %v182 = vld [vmem:[%s1 + $0xb4] sm:$0xf]
    %v183 = vld [vmem:[%s1 + $0xb8] sm:$0xf]
    %v184 = vld [vmem:[%s1 + $0xbc] sm:$0xf]
    %v185 = vld [vmem:[%s1 + $0xc0] sm:$0xf]
    %v186 = vld [vmem:[%s1 + $0xc4] sm:$0xf]
    %v187 = vld [vmem:[%s1 + $0xc8] sm:$0xf]
    %v188 = vld [vmem:[%s1 + $0xcc] sm:$0xf]
    %v189 = vld [vmem:[%s1 + $0xd0] sm:$0xf]
    %v190 = vld [vmem:[%s1 + $0xd4] sm:$0xf]
    %v191 = vld [vmem:[%s1 + $0xd8] sm:$0xf]
    %v192 = vld [vmem:[%s1 + $0xdc] sm:$0xf]
    %v193 = vld [vmem:[%s1 + $0xe0] sm:$0xf]
    %v194 = vld [vmem:[%s1 + $0xe4] sm:$0xf]
    %v195 = vld [vmem:[%s1 + $0xe8] sm:$0xf]
    %v196 = vld [vmem:[%s1 + $0xec] sm:$0xf]
    %v197 = vld [vmem:[%s1 + $0xf0] sm:$0xf]
    %v198 = vld [vmem:[%s1 + $0xf4] sm:$0xf]
    %v199 = vld [vmem:[%s1 + $0xf8] sm:$0xf]
    %v200 = vld [vmem:[%s1 + $0xfc] sm:$0xf]
    %v201 = vld [vmem:[%s1 + $0x100] sm:$0xf]
    %v202 = vld [vmem:[%s1 + $0x104] sm:$0xf]
    %v203 = vld [vmem:[%s1 + $0x108] sm:$0xf]
    %v204 = vld [vmem:[%s1 + $0x10c] sm:$0xf]
    %v205 = vld [vmem:[%s1 + $0x110] sm:$0xf]
    %v206 = vld [vmem:[%s1 + $0x114] sm:$0xf]
    %v207 = vld [vmem:[%s1 + $0x118] sm:$0xf]
    %v208 = vld [vmem:[%s1 + $0x11c] sm:$0xf]
    %v209 = vld [vmem:[%s1 + $0x120] sm:$0xf]
    %v210 = vld [vmem:[%s1 + $0x124] sm:$0xf]
    %v211 = vld [vmem:[%s1 + $0x128] sm:$0xf]
    %v212 = vld [vmem:[%s1 + $0x12c] sm:$0xf]
    %v213 = vld [vmem:[%s1 + $0x130] sm:$0xf]
    %v214 = vld [vmem:[%s1 + $0x134] sm:$0xf]
    %v215 = vld [vmem:[%s1 + $0x138] sm:$0xf]
    %v216 = vld [vmem:[%s1 + $0x13c] sm:$0xf]
    %v217 = vld [vmem:[%s1 + $0x140] sm:$0xf]
    %v218 = vld [vmem:[%s1 + $0x144] sm:$0xf]
    %v219 = vld [vmem:[%s1 + $0x148] sm:$0xf]
    %v220 = vld [vmem:[%s1 + $0x14c] sm:$0xf]
    %v221 = vld [vmem:[%s1 + $0x150] sm:$0xf]
    %v222 = vld [vmem:[%s1 + $0x154] sm:$0xf]
    %v223 = vld [vmem:[%s1 + $0x158] sm:$0xf]
    %v224 = vld [vmem:[%s1 + $0x15c] sm:$0xf]
    %v225 = vld [vmem:[%s1 + $0x160] sm:$0xf]
    %v226 = vld [vmem:[%s1 + $0x164] sm:$0xf]
    %v227 = vld [vmem:[%s1 + $0x168] sm:$0xf]
    %v228 = vld [vmem:[%s1 + $0x16c] sm:$0xf]
    %v229 = vld [vmem:[%s1 + $0x170] sm:$0xf]
    %v230 = vld [vmem:[%s1 + $0x174] sm:$0xf]
    %v231 = vld [vmem:[%s1 + $0x178] sm:$0xf]
    %v232 = vld [vmem:[%s1 + $0x17c] sm:$0xf]
    %v233 = vld [vmem:[%s1 + $0x180] sm:$0xf]
    %v234 = vld [vmem:[%s1 + $0x184] sm:$0xf]
    %v235 = vld [vmem:[%s1 + $0x188] sm:$0xf]
    %v236 = vld [vmem:[%s1 + $0x18c] sm:$0xf]
    %v237 = vld [vmem:[%s1 + $0x190] sm:$0xf]
    %v238 = vld [vmem:[%s1 + $0x194] sm:$0xf]
    %v239 = vld [vmem:[%s1 + $0x198] sm:$0xf]
    %v240 = vld [vmem:[%s1 + $0x19c] sm:$0xf]
    %v241 = vld [vmem:[%s1 + $0x1a0] sm:$0xf]
    %v242 = vld [vmem:[%s1 + $0x1a4] sm:$0xf]
    %v243 = vld [vmem:[%s1 + $0x1a8] sm:$0xf]
    %v244 = vld [vmem:[%s1 + $0x1ac] sm:$0xf]
    %v245 = vld [vmem:[%s1 + $0x1b0] sm:$0xf]
    %v246 = vld [vmem:[%s1 + $0x1b4] sm:$0xf]
    %v247 = vld [vmem:[%s1 + $0x1b8] sm:$0xf]
    %v248 = vld [vmem:[%s1 + $0x1bc] sm:$0xf]
    %v249 = vld [vmem:[%s1 + $0x1c0] sm:$0xf]
    %v250 = vld [vmem:[%s1 + $0x1c4] sm:$0xf]
    %v251 = vld [vmem:[%s1 + $0x1c8] sm:$0xf]
    %v252 = vld [vmem:[%s1 + $0x1cc] sm:$0xf]
    %v253 = vld [vmem:[%s1 + $0x1d0] sm:$0xf]
    %v254 = vld [vmem:[%s1 + $0x1d4] sm:$0xf]
    %v255 = vld [vmem:[%s1 + $0x1d8] sm:$0xf]
    %v256 = vld [vmem:[%s1 + $0x1dc] sm:$0xf]
    %v257 = vld [vmem:[%s1 + $0x1e0] sm:$0xf]
    %v258 = vld [vmem:[%s1 + $0x1e4] sm:$0xf]
    %v259 = vld [vmem:[%s1 + $0x1e8] sm:$0xf]
    %v260 = vld [vmem:[%s1 + $0x1ec] sm:$0xf]
    %v261 = vld [vmem:[%s1 + $0x1f0] sm:$0xf]
    %v262 = vld [vmem:[%s1 + $0x1f4] sm:$0xf]
    %v263 = vld [vmem:[%s1 + $0x1f8] sm:$0xf]
    %v264 = vld [vmem:[%s1 + $0x1fc] sm:$0xf]
    %v265 = vld [vmem:[%s1 + $0x200] sm:$0xf]
    %v266 = vld [vmem:[%s1 + $0x204] sm:$0xf]
    %v267 = vld [vmem:[%s1 + $0x208] sm:$0xf]
    %v268 = vld [vmem:[%s1 + $0x20c] sm:$0xf]
    %v269 = vld [vmem:[%s1 + $0x210] sm:$0xf]
    %v270 = vld [vmem:[%s1 + $0x214] sm:$0xf]
    %v271 = vld [vmem:[%s1 + $0x218] sm:$0xf]
    %v272 = vld [vmem:[%s1 + $0x21c] sm:$0xf]
    %v273 = vld [vmem:[%s1 + $0x220] sm:$0xf]
    %v274 = vld [vmem:[%s1 + $0x224] sm:$0xf]
    %v275 = vld [vmem:[%s1 + $0x228] sm:$0xf]
    %v276 = vld [vmem:[%s1 + $0x22c] sm:$0xf]
    %v277 = vld [vmem:[%s1 + $0x230] sm:$0xf]
    %v278 = vld [vmem:[%s1 + $0x234] sm:$0xf]
    %v279 = vld [vmem:[%s1 + $0x238] sm:$0xf]
    %v280 = vld [vmem:[%s1 + $0x23c] sm:$0xf]
    %v281 = vld [vmem:[%s1 + $0x240] sm:$0xf]
    %v282 = vld [vmem:[%s1 + $0x244] sm:$0xf]
    %v283 = vld [vmem:[%s1 + $0x248] sm:$0xf]
    %v284 = vld [vmem:[%s1 + $0x24c] sm:$0xf]
    %v285 = vld [vmem:[%s1 + $0x250] sm:$0xf]
    %v286 = vld [vmem:[%s1 + $0x254] sm:$0xf]
    %v287 = vld [vmem:[%s1 + $0x258] sm:$0xf]
    %v288 = vld [vmem:[%s1 + $0x25c] sm:$0xf]
    %v289 = vld [vmem:[%s1 + $0x260] sm:$0xf]
    %v290 = vld [vmem:[%s1 + $0x264] sm:$0xf]
    %v291 = vld [vmem:[%s1 + $0x268] sm:$0xf]
    %v292 = vld [vmem:[%s1 + $0x26c] sm:$0xf]
    %v293 = vld [vmem:[%s1 + $0x270] sm:$0xf]
    %v294 = vld [vmem:[%s1 + $0x274] sm:$0xf]
    %v295 = vld [vmem:[%s1 + $0x278] sm:$0xf]
    %v296 = vld [vmem:[%s1 + $0x27c] sm:$0xf]
    %v297 = vld [vmem:[%s1 + $0x280] sm:$0xf]
    %v298 = vld [vmem:[%s1 + $0x284] sm:$0xf]
    %v299 = vld [vmem:[%s1 + $0x288] sm:$0xf]
    %v300 = vld [vmem:[%s1 + $0x28c] sm:$0xf]
    %v301 = vld [vmem:[%s1 + $0x290] sm:$0xf]
    %v302 = vld [vmem:[%s1 + $0x294] sm:$0xf]
    %v303 = vld [vmem:[%s1 + $0x298] sm:$0xf]
    %v304 = vld [vmem:[%s1 + $0x29c] sm:$0xf]
    %v305 = vld [vmem:[%s1 + $0x2a0] sm:$0xf]
    %v306 = vld [vmem:[%s1 + $0x2a4] sm:$0xf]
    %v307 = vld [vmem:[%s1 + $0x2a8] sm:$0xf]
    %v308 = vld [vmem:[%s1 + $0x2ac] sm:$0xf]
    %v309 = vld [vmem:[%s1 + $0x2b0] sm:$0xf]
    %v310 = vld [vmem:[%s1 + $0x2b4] sm:$0xf]
    %v311 = vld [vmem:[%s1 + $0x2b8] sm:$0xf]
    %v312 = vld [vmem:[%s1 + $0x2bc] sm:$0xf]
    %v313 = vld [vmem:[%s1 + $0x2c0] sm:$0xf]
    %v314 = vld [vmem:[%s1 + $0x2c4] sm:$0xf]
    %v315 = vld [vmem:[%s1 + $0x2c8] sm:$0xf]
    %v316 = vld [vmem:[%s1 + $0x2cc] sm:$0xf]
    %v317 = vld [vmem:[%s1 + $0x2d0] sm:$0xf]
    %v318 = vld [vmem:[%s1 + $0x2d4] sm:$0xf]
    %v319 = vld [vmem:[%s1 + $0x2d8] sm:$0xf]
    %v320 = vld [vmem:[%s1 + $0x2dc] sm:$0xf]
    %v321 = vld [vmem:[%s1 + $0x2e0] sm:$0xf]
    %v322 = vld [vmem:[%s1 + $0x2e4] sm:$0xf]
    %v323 = vld [vmem:[%s1 + $0x2e8] sm:$0xf]
    %v324 = vld [vmem:[%s1 + $0x2ec] sm:$0xf]
    %v325 = vld [vmem:[%s1 + $0x2f0] sm:$0xf]
    %v326 = vld [vmem:[%s1 + $0x2f4] sm:$0xf]
    %v327 = vld [vmem:[%s1 + $0x2f8] sm:$0xf]
    %v328 = vld [vmem:[%s1 + $0x2fc] sm:$0xf]
    %v329 = vld [vmem:[%s1 + $0x300] sm:$0xf]
    %v330 = vld [vmem:[%s1 + $0x304] sm:$0xf]
    %v331 = vld [vmem:[%s1 + $0x308] sm:$0xf]
    %v332 = vld [vmem:[%s1 + $0x30c] sm:$0xf]
    %v333 = vld [vmem:[%s1 + $0x310] sm:$0xf]
    %v334 = vld [vmem:[%s1 + $0x314] sm:$0xf]
    %v335 = vld [vmem:[%s1 + $0x318] sm:$0xf]
    %v336 = vld [vmem:[%s1 + $0x31c] sm:$0xf]
    %v337 = vld [vmem:[%s1 + $0x320] sm:$0xf]
    %v338 = vld [vmem:[%s1 + $0x324] sm:$0xf]
    %v339 = vld [vmem:[%s1 + $0x328] sm:$0xf]
    %v340 = vld [vmem:[%s1 + $0x32c] sm:$0xf]
    %v341 = vld [vmem:[%s1 + $0x330] sm:$0xf]
    %v342 = vld [vmem:[%s1 + $0x334] sm:$0xf]
    %v343 = vld [vmem:[%s1 + $0x338] sm:$0xf]
    %v344 = vld [vmem:[%s1 + $0x33c] sm:$0xf]
    %v345 = vld [vmem:[%s1 + $0x340] sm:$0xf]
    %v346 = vld [vmem:[%s1 + $0x344] sm:$0xf]
    %v347 = vld [vmem:[%s1 + $0x348] sm:$0xf]
    %v348 = vld [vmem:[%s1 + $0x34c] sm:$0xf]
    %v349 = vld [vmem:[%s1 + $0x350] sm:$0xf]
    %v350 = vld [vmem:[%s1 + $0x354] sm:$0xf]
    %v351 = vld [vmem:[%s1 + $0x358] sm:$0xf]
    %v352 = vld [vmem:[%s1 + $0x35c] sm:$0xf]
    %v353 = vld [vmem:[%s1 + $0x360] sm:$0xf]
    %v354 = vld [vmem:[%s1 + $0x364] sm:$0xf]
    %v355 = vld [vmem:[%s1 + $0x368] sm:$0xf]
    %v356 = vld [vmem:[%s1 + $0x36c] sm:$0xf]
    %v357 = vld [vmem:[%s1 + $0x370] sm:$0xf]
    %v358 = vld [vmem:[%s1 + $0x374] sm:$0xf]
    %v359 = vld [vmem:[%s1 + $0x378] sm:$0xf]
    %v360 = vld [vmem:[%s1 + $0x37c] sm:$0xf]
    %v361 = vld [vmem:[%s1 + $0x380] sm:$0xf]
    %v362 = vld [vmem:[%s1 + $0x384] sm:$0xf]
    %v363 = vld [vmem:[%s1 + $0x388] sm:$0xf]
    %v364 = vld [vmem:[%s1 + $0x38c] sm:$0xf]
    %v365 = vld [vmem:[%s1 + $0x390] sm:$0xf]
    %v366 = vld [vmem:[%s1 + $0x394] sm:$0xf]
    %v367 = vld [vmem:[%s1 + $0x398] sm:$0xf]
    %v368 = vld [vmem:[%s1 + $0x39c] sm:$0xf]
    %v369 = vld [vmem:[%s1 + $0x3a0] sm:$0xf]
    %v370 = vld [vmem:[%s1 + $0x3a4] sm:$0xf]
    %v371 = vld [vmem:[%s1 + $0x3a8] sm:$0xf]
    %v372 = vld [vmem:[%s1 + $0x3ac] sm:$0xf]
    %v373 = vld [vmem:[%s1 + $0x3b0] sm:$0xf]
    %v374 = vld [vmem:[%s1 + $0x3b4] sm:$0xf]
    %v375 = vld [vmem:[%s1 + $0x3b8] sm:$0xf]
    %v376 = vld [vmem:[%s1 + $0x3bc] sm:$0xf]
    %v377 = vld [vmem:[%s1 + $0x3c0] sm:$0xf]
    %v378 = vld [vmem:[%s1 + $0x3c4] sm:$0xf]
    %v379 = vld [vmem:[%s1 + $0x3c8] sm:$0xf]
    %v380 = vld [vmem:[%s1 + $0x3cc] sm:$0xf]
    %v381 = vld [vmem:[%s1 + $0x3d0] sm:$0xf]
    %v382 = vld [vmem:[%s1 + $0x3d4] sm:$0xf]
    %v383 = vld [vmem:[%s1 + $0x3d8] sm:$0xf]
    %v384 = vld [vmem:[%s1 + $0x3dc] sm:$0xf]
    %v385 = vld [vmem:[%s1 + $0x3e0] sm:$0xf]
    %v386 = vld [vmem:[%s1 + $0x3e4] sm:$0xf]
    %v387 = vld [vmem:[%s1 + $0x3e8] sm:$0xf]
    %v388 = vld [vmem:[%s1 + $0x3ec] sm:$0xf]
    %v389 = vld [vmem:[%s1 + $0x3f0] sm:$0xf]
    %v390 = vld [vmem:[%s1 + $0x3f4] sm:$0xf]
    %v391 = vld [vmem:[%s1 + $0x3f8] sm:$0xf]
    %v392 = vld [vmem:[%s1 + $0x3fc] sm:$0xf]
    %v393 = vld [vmem:[%s1 + $0x400] sm:$0xf]
    %v394 = vld [vmem:[%s1 + $0x404] sm:$0xf]
    %v395 = vld [vmem:[%s1 + $0x408] sm:$0xf]
    %v396 = vld [vmem:[%s1 + $0x40c] sm:$0xf]
    %v397 = vld [vmem:[%s1 + $0x410] sm:$0xf]
    %v398 = vld [vmem:[%s1 + $0x414] sm:$0xf]
    %v399 = vld [vmem:[%s1 + $0x418] sm:$0xf]
    %v400 = vld [vmem:[%s1 + $0x41c] sm:$0xf]
    %v401 = vld [vmem:[%s1 + $0x420] sm:$0xf]
    %v402 = vld [vmem:[%s1 + $0x424] sm:$0xf]
    %v403 = vld [vmem:[%s1 + $0x428] sm:$0xf]
    %v404 = vld [vmem:[%s1 + $0x42c] sm:$0xf]
    %v405 = vld [vmem:[%s1 + $0x430] sm:$0xf]
    %v406 = vld [vmem:[%s1 + $0x434] sm:$0xf]
    %v407 = vld [vmem:[%s1 + $0x438] sm:$0xf]
    %v408 = vld [vmem:[%s1 + $0x43c] sm:$0xf]
    %v409 = vld [vmem:[%s1 + $0x440] sm:$0xf]
    %v410 = vld [vmem:[%s1 + $0x444] sm:$0xf]
    %v411 = vld [vmem:[%s1 + $0x448] sm:$0xf]
    %v412 = vld [vmem:[%s1 + $0x44c] sm:$0xf]
    %v413 = vld [vmem:[%s1 + $0x450] sm:$0xf]
    %v414 = vld [vmem:[%s1 + $0x454] sm:$0xf]
    %v415 = vld [vmem:[%s1 + $0x458] sm:$0xf]
    %v416 = vld [vmem:[%s1 + $0x45c] sm:$0xf]
    %v417 = vld [vmem:[%s1 + $0x460] sm:$0xf]
    %v418 = vld [vmem:[%s1 + $0x464] sm:$0xf]
    %v419 = vld [vmem:[%s1 + $0x468] sm:$0xf]
    %v420 = vld [vmem:[%s1 + $0x46c] sm:$0xf]
    %v421 = vld [vmem:[%s1 + $0x470] sm:$0xf]
    %v422 = vld [vmem:[%s1 + $0x474] sm:$0xf]
    %v423 = vld [vmem:[%s1 + $0x478] sm:$0xf]
    %v424 = vld [vmem:[%s1 + $0x47c] sm:$0xf]
    %v425 = vld [vmem:[%s1 + $0x480] sm:$0xf]
    %v426 = vld [vmem:[%s1 + $0x484] sm:$0xf]
    %v427 = vld [vmem:[%s1 + $0x488] sm:$0xf]
    %v428 = vld [vmem:[%s1 + $0x48c] sm:$0xf]
    %v429 = vld [vmem:[%s1 + $0x490] sm:$0xf]
    %v430 = vld [vmem:[%s1 + $0x494] sm:$0xf]
    %v431 = vld [vmem:[%s1 + $0x498] sm:$0xf]
    %v432 = vld [vmem:[%s1 + $0x49c] sm:$0xf]
    %v433 = vld [vmem:[%s1 + $0x4a0] sm:$0xf]
    %v434 = vld [vmem:[%s1 + $0x4a4] sm:$0xf]
    %v435 = vld [vmem:[%s1 + $0x4a8] sm:$0xf]
    %v436 = vld [vmem:[%s1 + $0x4ac] sm:$0xf]
    %v437 = vld [vmem:[%s1 + $0x4b0] sm:$0xf]
    %v438 = vld [vmem:[%s1 + $0x4b4] sm:$0xf]
    %v439 = vld [vmem:[%s1 + $0x4b8] sm:$0xf]
    %v440 = vld [vmem:[%s1 + $0x4bc] sm:$0xf]
    %v441 = vld [vmem:[%s1 + $0x4c0] sm:$0xf]
    %v442 = vld [vmem:[%s1 + $0x4c4] sm:$0xf]
    %v443 = vld [vmem:[%s1 + $0x4c8] sm:$0xf]
    %v444 = vld [vmem:[%s1 + $0x4cc] sm:$0xf]
    %v445 = vld [vmem:[%s1 + $0x4d0] sm:$0xf]
    %v446 = vld [vmem:[%s1 + $0x4d4] sm:$0xf]
    %v447 = vld [vmem:[%s1 + $0x4d8] sm:$0xf]
    %v448 = vld [vmem:[%s1 + $0x4dc] sm:$0xf]
    %v449 = vld [vmem:[%s1 + $0x4e0] sm:$0xf]
    %v450 = vld [vmem:[%s1 + $0x4e4] sm:$0xf]
    %v451 = vld [vmem:[%s1 + $0x4e8] sm:$0xf]
    %v452 = vld [vmem:[%s1 + $0x4ec] sm:$0xf]
    %v453 = vld [vmem:[%s1 + $0x4f0] sm:$0xf]
    %v454 = vld [vmem:[%s1 + $0x4f4] sm:$0xf]
    %v455 = vld [vmem:[%s1 + $0x4f8] sm:$0xf]
    %v456 = vld [vmem:[%s1 + $0x4fc] sm:$0xf]
    %v457 = vld [vmem:[%s1 + $0x500] sm:$0xf]
    %v458 = vld [vmem:[%s1 + $0x504] sm:$0xf]
    %v459 = vld [vmem:[%s1 + $0x508] sm:$0xf]
    %v460 = vld [vmem:[%s1 + $0x50c] sm:$0xf]
    %v461 = vld [vmem:[%s1 + $0x510] sm:$0xf]
    %v462 = vld [vmem:[%s1 + $0x514] sm:$0xf]
    %v463 = vld [vmem:[%s1 + $0x518] sm:$0xf]
    %v464 = vld [vmem:[%s1 + $0x51c] sm:$0xf]
    %v465 = vld [vmem:[%s1 + $0x520] sm:$0xf]
    %v466 = vld [vmem:[%s1 + $0x524] sm:$0xf]
    %v467 = vld [vmem:[%s1 + $0x528] sm:$0xf]
    %v468 = vld [vmem:[%s1 + $0x52c] sm:$0xf]
    %v469 = vld [vmem:[%s1 + $0x530] sm:$0xf]
    %v470 = vld [vmem:[%s1 + $0x534] sm:$0xf]
    %v471 = vld [vmem:[%s1 + $0x538] sm:$0xf]
    %v472 = vld [vmem:[%s1 + $0x53c] sm:$0xf]
    %v473 = vld [vmem:[%s1 + $0x540] sm:$0xf]
    %v474 = vld [vmem:[%s1 + $0x544] sm:$0xf]
    %v475 = vld [vmem:[%s1 + $0x548] sm:$0xf]
    %v476 = vld [vmem:[%s1 + $0x54c] sm:$0xf]
    %v477 = vld [vmem:[%s1 + $0x550] sm:$0xf]
    %v478 = vld [vmem:[%s1 + $0x554] sm:$0xf]
    %v479 = vld [vmem:[%s1 + $0x558] sm:$0xf]
    %v480 = vld [vmem:[%s1 + $0x55c] sm:$0xf]
    %v481 = vld [vmem:[%s1 + $0x560] sm:$0xf]
    %v482 = vld [vmem:[%s1 + $0x564] sm:$0xf]
    %v483 = vld [vmem:[%s1 + $0x568] sm:$0xf]
    %v484 = vld [vmem:[%s1 + $0x56c] sm:$0xf]
    %v485 = vld [vmem:[%s1 + $0x570] sm:$0xf]
    %v486 = vld [vmem:[%s1 + $0x574] sm:$0xf]
    %v487 = vld [vmem:[%s1 + $0x578] sm:$0xf]
    %v488 = vld [vmem:[%s1 + $0x57c] sm:$0xf]
    %v489 = vld [vmem:[%s1 + $0x580] sm:$0xf]
    %v490 = vld [vmem:[%s1 + $0x584] sm:$0xf]
    %v491 = vld [vmem:[%s1 + $0x588] sm:$0xf]
    %v492 = vld [vmem:[%s1 + $0x58c] sm:$0xf]
    %v493 = vld [vmem:[%s1 + $0x590] sm:$0xf]
    %v494 = vld [vmem:[%s1 + $0x594] sm:$0xf]
    %v495 = vld [vmem:[%s1 + $0x598] sm:$0xf]
    %v496 = vld [vmem:[%s1 + $0x59c] sm:$0xf]
    %v497 = vld [vmem:[%s1 + $0x5a0] sm:$0xf]
    %v498 = vld [vmem:[%s1 + $0x5a4] sm:$0xf]
    %v499 = vld [vmem:[%s1 + $0x5a8] sm:$0xf]
    %v500 = vld [vmem:[%s1 + $0x5ac] sm:$0xf]
    %v501 = vld [vmem:[%s1 + $0x5b0] sm:$0xf]
    %v502 = vld [vmem:[%s1 + $0x5b4] sm:$0xf]
    %v503 = vld [vmem:[%s1 + $0x5b8] sm:$0xf]
    %v504 = vld [vmem:[%s1 + $0x5bc] sm:$0xf]
    %v505 = vld [vmem:[%s1 + $0x5c0] sm:$0xf]
    %v506 = vld [vmem:[%s1 + $0x5c4] sm:$0xf]
    %v507 = vld [vmem:[%s1 + $0x5c8] sm:$0xf]
    %v508 = vld [vmem:[%s1 + $0x5cc] sm:$0xf]
    %v509 = vld [vmem:[%s1 + $0x5d0] sm:$0xf]
    %v510 = vld [vmem:[%s1 + $0x5d4] sm:$0xf]
    %v511 = vld [vmem:[%s1 + $0x5d8] sm:$0xf]
    %v512 = vld [vmem:[%s1 + $0x5dc] sm:$0xf]
    %v513 = vld [vmem:[%s1 + $0x5e0] sm:$0xf]
    %v514 = vld [vmem:[%s1 + $0x5e4] sm:$0xf]
    %v515 = vld [vmem:[%s1 + $0x5e8] sm:$0xf]
    %v516 = vld [vmem:[%s1 + $0x5ec] sm:$0xf]
    %v517 = vld [vmem:[%s1 + $0x5f0] sm:$0xf]
    %v518 = vld [vmem:[%s1 + $0x5f4] sm:$0xf]
    %v519 = vld [vmem:[%s1 + $0x5f8] sm:$0xf]
    %v520 = vld [vmem:[%s1 + $0x5fc] sm:$0xf]
    %v521 = vld [vmem:[%s1 + $0x600] sm:$0xf]
    %v522 = vld [vmem:[%s1 + $0x604] sm:$0xf]
    %v523 = vld [vmem:[%s1 + $0x608] sm:$0xf]
    %v524 = vld [vmem:[%s1 + $0x60c] sm:$0xf]
    %v525 = vld [vmem:[%s1 + $0x610] sm:$0xf]
    %v526 = vld [vmem:[%s1 + $0x614] sm:$0xf]
    %v527 = vld [vmem:[%s1 + $0x618] sm:$0xf]
    %v528 = vld [vmem:[%s1 + $0x61c] sm:$0xf]
    %v529 = vld [vmem:[%s1 + $0x620] sm:$0xf]
    %v530 = vld [vmem:[%s1 + $0x624] sm:$0xf]
    %v531 = vld [vmem:[%s1 + $0x628] sm:$0xf]
    %v532 = vld [vmem:[%s1 + $0x62c] sm:$0xf]
    %v533 = vld [vmem:[%s1 + $0x630] sm:$0xf]
    %v534 = vld [vmem:[%s1 + $0x634] sm:$0xf]
    %v535 = vld [vmem:[%s1 + $0x638] sm:$0xf]
    %v536 = vld [vmem:[%s1 + $0x63c] sm:$0xf]
    %v537 = vld [vmem:[%s1 + $0x640] sm:$0xf]
    %v538 = vld [vmem:[%s1 + $0x644] sm:$0xf]
    %v539 = vld [vmem:[%s1 + $0x648] sm:$0xf]
    %v540 = vld [vmem:[%s1 + $0x64c] sm:$0xf]
    %v541 = vld [vmem:[%s1 + $0x650] sm:$0xf]
    %v542 = vld [vmem:[%s1 + $0x654] sm:$0xf]
    %v543 = vld [vmem:[%s1 + $0x658] sm:$0xf]
    %v544 = vld [vmem:[%s1 + $0x65c] sm:$0xf]
    %v545 = vld [vmem:[%s1 + $0x660] sm:$0xf]
    %v546 = vld [vmem:[%s1 + $0x664] sm:$0xf]
    %v547 = vld [vmem:[%s1 + $0x668] sm:$0xf]
    %v548 = vld [vmem:[%s1 + $0x66c] sm:$0xf]
    %v549 = vld [vmem:[%s1 + $0x670] sm:$0xf]
    %v550 = vld [vmem:[%s1 + $0x674] sm:$0xf]
    %v551 = vld [vmem:[%s1 + $0x678] sm:$0xf]
    %v552 = vld [vmem:[%s1 + $0x67c] sm:$0xf]
    %v553 = vld [vmem:[%s1 + $0x680] sm:$0xf]
    %v554 = vld [vmem:[%s1 + $0x684] sm:$0xf]
    %v555 = vld [vmem:[%s1 + $0x688] sm:$0xf]
    %v556 = vld [vmem:[%s1 + $0x68c] sm:$0xf]
    %v557 = vld [vmem:[%s1 + $0x690] sm:$0xf]
    %v558 = vld [vmem:[%s1 + $0x694] sm:$0xf]
    %v559 = vld [vmem:[%s1 + $0x698] sm:$0xf]
    %v560 = vld [vmem:[%s1 + $0x69c] sm:$0xf]
    %v561 = vld [vmem:[%s1 + $0x6a0] sm:$0xf]
    %v562 = vld [vmem:[%s1 + $0x6a4] sm:$0xf]
    %v563 = vld [vmem:[%s1 + $0x6a8] sm:$0xf]
    %v564 = vld [vmem:[%s1 + $0x6ac] sm:$0xf]
    %v565 = vld [vmem:[%s1 + $0x6b0] sm:$0xf]
    %v566 = vld [vmem:[%s1 + $0x6b4] sm:$0xf]
    %v567 = vld [vmem:[%s1 + $0x6b8] sm:$0xf]
    %v568 = vld [vmem:[%s1 + $0x6bc] sm:$0xf]
    %v569 = vld [vmem:[%s1 + $0x6c0] sm:$0xf]
    %v570 = vld [vmem:[%s1 + $0x6c4] sm:$0xf]
    %v571 = vld [vmem:[%s1 + $0x6c8] sm:$0xf]
    %v572 = vld [vmem:[%s1 + $0x6cc] sm:$0xf]
    %v573 = vld [vmem:[%s1 + $0x6d0] sm:$0xf]
    %v574 = vld [vmem:[%s1 + $0x6d4] sm:$0xf]
    %v575 = vld [vmem:[%s1 + $0x6d8] sm:$0xf]
    %v576 = vld [vmem:[%s1 + $0x6dc] sm:$0xf]
    %v577 = vld [vmem:[%s1 + $0x6e0] sm:$0xf]
    %v578 = vld [vmem:[%s1 + $0x6e4] sm:$0xf]
    %v579 = vld [vmem:[%s1 + $0x6e8] sm:$0xf]
    %v580 = vld [vmem:[%s1 + $0x6ec] sm:$0xf]
    %v581 = vld [vmem:[%s1 + $0x6f0] sm:$0xf]
    %v582 = vld [vmem:[%s1 + $0x6f4] sm:$0xf]
    %v583 = vld [vmem:[%s1 + $0x6f8] sm:$0xf]
    %v584 = vld [vmem:[%s1 + $0x6fc] sm:$0xf]
    %v585 = vld [vmem:[%s1 + $0x700] sm:$0xf]
    %v586 = vld [vmem:[%s1 + $0x704] sm:$0xf]
    %v587 = vld [vmem:[%s1 + $0x708] sm:$0xf]
    %v588 = vld [vmem:[%s1 + $0x70c] sm:$0xf]
    %v589 = vld [vmem:[%s1 + $0x710] sm:$0xf]
    %v590 = vld [vmem:[%s1 + $0x714] sm:$0xf]
    %v591 = vld [vmem:[%s1 + $0x718] sm:$0xf]
    %v592 = vld [vmem:[%s1 + $0x71c] sm:$0xf]
    %v593 = vld [vmem:[%s1 + $0x720] sm:$0xf]
    %v594 = vld [vmem:[%s1 + $0x724] sm:$0xf]
    %v595 = vld [vmem:[%s1 + $0x728] sm:$0xf]
    %v596 = vld [vmem:[%s1 + $0x72c] sm:$0xf]
    %v597 = vld [vmem:[%s1 + $0x730] sm:$0xf]
    %v598 = vld [vmem:[%s1 + $0x734] sm:$0xf]
    %v599 = vld [vmem:[%s1 + $0x738] sm:$0xf]
    %v600 = vld [vmem:[%s1 + $0x73c] sm:$0xf]
    %v601 = vld [vmem:[%s1 + $0x740] sm:$0xf]
    %v602 = vld [vmem:[%s1 + $0x744] sm:$0xf]
    %v603 = vld [vmem:[%s1 + $0x748] sm:$0xf]
    %v604 = vld [vmem:[%s1 + $0x74c] sm:$0xf]
    %v605 = vld [vmem:[%s1 + $0x750] sm:$0xf]
    %v606 = vld [vmem:[%s1 + $0x754] sm:$0xf]
    %v607 = vld [vmem:[%s1 + $0x758] sm:$0xf]
    %v608 = vld [vmem:[%s1 + $0x75c] sm:$0xf]
    %v609 = vld [vmem:[%s1 + $0x760] sm:$0xf]
    %v610 = vld [vmem:[%s1 + $0x764] sm:$0xf]
    %v611 = vld [vmem:[%s1 + $0x768] sm:$0xf]
    %v612 = vld [vmem:[%s1 + $0x76c] sm:$0xf]
    %v613 = vld [vmem:[%s1 + $0x770] sm:$0xf]
    %v614 = vld [vmem:[%s1 + $0x774] sm:$0xf]
    %v615 = vld [vmem:[%s1 + $0x778] sm:$0xf]
    %v616 = vld [vmem:[%s1 + $0x77c] sm:$0xf]
    %v617 = vld [vmem:[%s1 + $0x780] sm:$0xf]
    %v618 = vld [vmem:[%s1 + $0x784] sm:$0xf]
    %v619 = vld [vmem:[%s1 + $0x788] sm:$0xf]
    %v620 = vld [vmem:[%s1 + $0x78c] sm:$0xf]
    %v621 = vld [vmem:[%s1 + $0x790] sm:$0xf]
    %v622 = vld [vmem:[%s1 + $0x794] sm:$0xf]
    %v623 = vld [vmem:[%s1 + $0x798] sm:$0xf]
    %v624 = vld [vmem:[%s1 + $0x79c] sm:$0xf]
    %v625 = vld [vmem:[%s1 + $0x7a0] sm:$0xf]
    %v626 = vld [vmem:[%s1 + $0x7a4] sm:$0xf]
    %v627 = vld [vmem:[%s1 + $0x7a8] sm:$0xf]
    %v628 = vld [vmem:[%s1 + $0x7ac] sm:$0xf]
    %v629 = vld [vmem:[%s1 + $0x7b0] sm:$0xf]
    %v630 = vld [vmem:[%s1 + $0x7b4] sm:$0xf]
    %v631 = vld [vmem:[%s1 + $0x7b8] sm:$0xf]
    %v632 = vld [vmem:[%s1 + $0x7bc] sm:$0xf]
    %v633 = vld [vmem:[%s1 + $0x7c0] sm:$0xf]
    %v634 = vld [vmem:[%s1 + $0x7c4] sm:$0xf]
    %v635 = vld [vmem:[%s1 + $0x7c8] sm:$0xf]
    %v636 = vld [vmem:[%s1 + $0x7cc] sm:$0xf]
    %v637 = vld [vmem:[%s1 + $0x7d0] sm:$0xf]
    %v638 = vld [vmem:[%s1 + $0x7d4] sm:$0xf]
    %v639 = vld [vmem:[%s1 + $0x7d8] sm:$0xf]
    %v640 = vld [vmem:[%s1 + $0x7dc] sm:$0xf]
    %v641 = vld [vmem:[%s2] sm:$0x1]
    %v643 = vperm.slane %v641, 0
    %v1149 = vunpack.c.l.b16 %v137
    %v1150 = vunpack.c.l.b16 %v138
    %v1151 = vunpack.c.l.b16 %v139
    %v1152 = vunpack.c.l.b16 %v140
    %v1153 = vunpack.c.l.b16 %v141
    %v1154 = vunpack.c.l.b16 %v142
    %v1155 = vunpack.c.l.b16 %v143
    %v1156 = vunpack.c.l.b16 %v144
    %v1157 = vunpack.c.l.b16 %v145
    %v1158 = vunpack.c.l.b16 %v146
    %v1159 = vunpack.c.l.b16 %v147
    %v1160 = vunpack.c.l.b16 %v148
    %v1161 = vunpack.c.l.b16 %v149
    %v1162 = vunpack.c.l.b16 %v150
    %v1163 = vunpack.c.l.b16 %v151
    %v1164 = vunpack.c.l.b16 %v152
    %v1165 = vunpack.c.l.b16 %v153
    %v1166 = vunpack.c.l.b16 %v154
    %v1167 = vunpack.c.l.b16 %v155
    %v1168 = vunpack.c.l.b16 %v156
    %v1169 = vunpack.c.l.b16 %v157
    %v1170 = vunpack.c.l.b16 %v158
    %v1171 = vunpack.c.l.b16 %v159
    %v1172 = vunpack.c.l.b16 %v160
    %v1173 = vunpack.c.l.b16 %v161
    %v1174 = vunpack.c.l.b16 %v162
    %v1175 = vunpack.c.l.b16 %v163
    %v1176 = vunpack.c.l.b16 %v164
    %v1177 = vunpack.c.l.b16 %v165
    %v1178 = vunpack.c.l.b16 %v166
    %v1179 = vunpack.c.l.b16 %v167
    %v1180 = vunpack.c.l.b16 %v168
    %v1181 = vunpack.c.l.b16 %v169
    %v1182 = vunpack.c.l.b16 %v170
    %v1183 = vunpack.c.l.b16 %v171
    %v1184 = vunpack.c.l.b16 %v172
    %v1185 = vunpack.c.l.b16 %v173
    %v1186 = vunpack.c.l.b16 %v174
    %v1187 = vunpack.c.l.b16 %v175
    %v1188 = vunpack.c.l.b16 %v176
    %v1189 = vunpack.c.l.b16 %v177
    %v1190 = vunpack.c.l.b16 %v178
    %v1191 = vunpack.c.l.b16 %v179
    %v1192 = vunpack.c.l.b16 %v180
    %v1193 = vunpack.c.l.b16 %v181
    %v1194 = vunpack.c.l.b16 %v182
    %v1195 = vunpack.c.l.b16 %v183
    %v1196 = vunpack.c.l.b16 %v184
    %v1197 = vunpack.c.l.b16 %v185
    %v1198 = vunpack.c.l.b16 %v186
    %v1199 = vunpack.c.l.b16 %v187
    %v1200 = vunpack.c.l.b16 %v188
    %v1201 = vunpack.c.l.b16 %v189
    %v1202 = vunpack.c.l.b16 %v190
    %v1203 = vunpack.c.l.b16 %v191
    %v1204 = vunpack.c.l.b16 %v192
    %v1205 = vunpack.c.l.b16 %v193
    %v1206 = vunpack.c.l.b16 %v194
    %v1207 = vunpack.c.l.b16 %v195
    %v1208 = vunpack.c.l.b16 %v196
    %v1209 = vunpack.c.l.b16 %v197
    %v1210 = vunpack.c.l.b16 %v198
    %v1211 = vunpack.c.l.b16 %v199
    %v1212 = vunpack.c.l.b16 %v200
    %v1213 = vunpack.c.l.b16 %v201
    %v1214 = vunpack.c.l.b16 %v202
    %v1215 = vunpack.c.l.b16 %v203
    %v1216 = vunpack.c.l.b16 %v204
    %v1217 = vunpack.c.l.b16 %v205
    %v1218 = vunpack.c.l.b16 %v206
    %v1219 = vunpack.c.l.b16 %v207
    %v1220 = vunpack.c.l.b16 %v208
    %v1221 = vunpack.c.l.b16 %v209
    %v1222 = vunpack.c.l.b16 %v210
    %v1223 = vunpack.c.l.b16 %v211
    %v1224 = vunpack.c.l.b16 %v212
    %v1225 = vunpack.c.l.b16 %v213
    %v1226 = vunpack.c.l.b16 %v214
    %v1227 = vunpack.c.l.b16 %v215
    %v1228 = vunpack.c.l.b16 %v216
    %v1229 = vunpack.c.l.b16 %v217
    %v1230 = vunpack.c.l.b16 %v218
    %v1231 = vunpack.c.l.b16 %v219
    %v1232 = vunpack.c.l.b16 %v220
    %v1233 = vunpack.c.l.b16 %v221
    %v1234 = vunpack.c.l.b16 %v222
    %v1235 = vunpack.c.l.b16 %v223
    %v1236 = vunpack.c.l.b16 %v224
    %v1237 = vunpack.c.l.b16 %v225
    %v1238 = vunpack.c.l.b16 %v226
    %v1239 = vunpack.c.l.b16 %v227
    %v1240 = vunpack.c.l.b16 %v228
    %v1241 = vunpack.c.l.b16 %v229
    %v1242 = vunpack.c.l.b16 %v230
    %v1243 = vunpack.c.l.b16 %v231
    %v1244 = vunpack.c.l.b16 %v232
    %v1245 = vunpack.c.l.b16 %v233
    %v1246 = vunpack.c.l.b16 %v234
    %v1247 = vunpack.c.l.b16 %v235
    %v1248 = vunpack.c.l.b16 %v236
    %v1249 = vunpack.c.l.b16 %v237
    %v1250 = vunpack.c.l.b16 %v238
    %v1251 = vunpack.c.l.b16 %v239
    %v1252 = vunpack.c.l.b16 %v240
    %v1253 = vunpack.c.l.b16 %v241
    %v1254 = vunpack.c.l.b16 %v242
    %v1255 = vunpack.c.l.b16 %v243
    %v1256 = vunpack.c.l.b16 %v244
    %v1257 = vunpack.c.l.b16 %v245
    %v1258 = vunpack.c.l.b16 %v246
    %v1259 = vunpack.c.l.b16 %v247
    %v1260 = vunpack.c.l.b16 %v248
    %v1261 = vunpack.c.l.b16 %v249
    %v1262 = vunpack.c.l.b16 %v250
    %v1263 = vunpack.c.l.b16 %v251
    %v1264 = vunpack.c.l.b16 %v252
    %v1265 = vunpack.c.l.b16 %v253
    %v1266 = vunpack.c.l.b16 %v254
    %v1267 = vunpack.c.l.b16 %v255
    %v1268 = vunpack.c.l.b16 %v256
    %v1269 = vunpack.c.l.b16 %v257
    %v1270 = vunpack.c.l.b16 %v258
    %v1271 = vunpack.c.l.b16 %v259
    %v1272 = vunpack.c.l.b16 %v260
    %v1273 = vunpack.c.l.b16 %v261
    %v1274 = vunpack.c.l.b16 %v262
    %v1275 = vunpack.c.l.b16 %v263
    %v1276 = vunpack.c.l.b16 %v264
    %v1277 = vunpack.c.l.b16 %v265
    %v1278 = vunpack.c.l.b16 %v266
    %v1279 = vunpack.c.l.b16 %v267
    %v1280 = vunpack.c.l.b16 %v268
    %v1281 = vunpack.c.l.b16 %v269
    %v1282 = vunpack.c.l.b16 %v270
    %v1283 = vunpack.c.l.b16 %v271
    %v1284 = vunpack.c.l.b16 %v272
    %v1285 = vunpack.c.l.b16 %v273
    %v1286 = vunpack.c.l.b16 %v274
    %v1287 = vunpack.c.l.b16 %v275
    %v1288 = vunpack.c.l.b16 %v276
    %v1289 = vunpack.c.l.b16 %v277
    %v1290 = vunpack.c.l.b16 %v278
    %v1291 = vunpack.c.l.b16 %v279
    %v1292 = vunpack.c.l.b16 %v280
    %v1293 = vunpack.c.l.b16 %v281
    %v1294 = vunpack.c.l.b16 %v282
    %v1295 = vunpack.c.l.b16 %v283
    %v1296 = vunpack.c.l.b16 %v284
    %v1297 = vunpack.c.l.b16 %v285
    %v1298 = vunpack.c.l.b16 %v286
    %v1299 = vunpack.c.l.b16 %v287
    %v1300 = vunpack.c.l.b16 %v288
    %v1301 = vunpack.c.l.b16 %v289
    %v1302 = vunpack.c.l.b16 %v290
    %v1303 = vunpack.c.l.b16 %v291
    %v1304 = vunpack.c.l.b16 %v292
    %v1305 = vunpack.c.l.b16 %v293
    %v1306 = vunpack.c.l.b16 %v294
    %v1307 = vunpack.c.l.b16 %v295
    %v1308 = vunpack.c.l.b16 %v296
    %v1309 = vunpack.c.l.b16 %v297
    %v1310 = vunpack.c.l.b16 %v298
    %v1311 = vunpack.c.l.b16 %v299
    %v1312 = vunpack.c.l.b16 %v300
    %v1313 = vunpack.c.l.b16 %v301
    %v1314 = vunpack.c.l.b16 %v302
    %v1315 = vunpack.c.l.b16 %v303
    %v1316 = vunpack.c.l.b16 %v304
    %v1317 = vunpack.c.l.b16 %v305
    %v1318 = vunpack.c.l.b16 %v306
    %v1319 = vunpack.c.l.b16 %v307
    %v1320 = vunpack.c.l.b16 %v308
    %v1321 = vunpack.c.l.b16 %v309
    %v1322 = vunpack.c.l.b16 %v310
    %v1323 = vunpack.c.l.b16 %v311
    %v1324 = vunpack.c.l.b16 %v312
    %v1325 = vunpack.c.l.b16 %v313
    %v1326 = vunpack.c.l.b16 %v314
    %v1327 = vunpack.c.l.b16 %v315
    %v1328 = vunpack.c.l.b16 %v316
    %v1329 = vunpack.c.l.b16 %v317
    %v1330 = vunpack.c.l.b16 %v318
    %v1331 = vunpack.c.l.b16 %v319
    %v1332 = vunpack.c.l.b16 %v320
    %v1333 = vunpack.c.l.b16 %v321
    %v1334 = vunpack.c.l.b16 %v322
    %v1335 = vunpack.c.l.b16 %v323
    %v1336 = vunpack.c.l.b16 %v324
    %v1337 = vunpack.c.l.b16 %v325
    %v1338 = vunpack.c.l.b16 %v326
    %v1339 = vunpack.c.l.b16 %v327
    %v1340 = vunpack.c.l.b16 %v328
    %v1341 = vunpack.c.l.b16 %v329
    %v1342 = vunpack.c.l.b16 %v330
    %v1343 = vunpack.c.l.b16 %v331
    %v1344 = vunpack.c.l.b16 %v332
    %v1345 = vunpack.c.l.b16 %v333
    %v1346 = vunpack.c.l.b16 %v334
    %v1347 = vunpack.c.l.b16 %v335
    %v1348 = vunpack.c.l.b16 %v336
    %v1349 = vunpack.c.l.b16 %v337
    %v1350 = vunpack.c.l.b16 %v338
    %v1351 = vunpack.c.l.b16 %v339
    %v1352 = vunpack.c.l.b16 %v340
    %v1353 = vunpack.c.l.b16 %v341
    %v1354 = vunpack.c.l.b16 %v342
    %v1355 = vunpack.c.l.b16 %v343
    %v1356 = vunpack.c.l.b16 %v344
    %v1357 = vunpack.c.l.b16 %v345
    %v1358 = vunpack.c.l.b16 %v346
    %v1359 = vunpack.c.l.b16 %v347
    %v1360 = vunpack.c.l.b16 %v348
    %v1361 = vunpack.c.l.b16 %v349
    %v1362 = vunpack.c.l.b16 %v350
    %v1363 = vunpack.c.l.b16 %v351
    %v1364 = vunpack.c.l.b16 %v352
    %v1365 = vunpack.c.l.b16 %v353
    %v1366 = vunpack.c.l.b16 %v354
    %v1367 = vunpack.c.l.b16 %v355
    %v1368 = vunpack.c.l.b16 %v356
    %v1369 = vunpack.c.l.b16 %v357
    %v1370 = vunpack.c.l.b16 %v358
    %v1371 = vunpack.c.l.b16 %v359
    %v1372 = vunpack.c.l.b16 %v360
    %v1373 = vunpack.c.l.b16 %v361
    %v1374 = vunpack.c.l.b16 %v362
    %v1375 = vunpack.c.l.b16 %v363
    %v1376 = vunpack.c.l.b16 %v364
    %v1377 = vunpack.c.l.b16 %v365
    %v1378 = vunpack.c.l.b16 %v366
    %v1379 = vunpack.c.l.b16 %v367
    %v1380 = vunpack.c.l.b16 %v368
    %v1381 = vunpack.c.l.b16 %v369
    %v1382 = vunpack.c.l.b16 %v370
    %v1383 = vunpack.c.l.b16 %v371
    %v1384 = vunpack.c.l.b16 %v372
    %v1385 = vunpack.c.l.b16 %v373
    %v1386 = vunpack.c.l.b16 %v374
    %v1387 = vunpack.c.l.b16 %v375
    %v1388 = vunpack.c.l.b16 %v376
    %v1389 = vunpack.c.l.b16 %v377
    %v1390 = vunpack.c.l.b16 %v378
    %v1391 = vunpack.c.l.b16 %v379
    %v1392 = vunpack.c.l.b16 %v380
    %v1393 = vunpack.c.l.b16 %v381
    %v1394 = vunpack.c.l.b16 %v382
    %v1395 = vunpack.c.l.b16 %v383
    %v1396 = vunpack.c.l.b16 %v384
    %v1397 = vunpack.c.l.b16 %v385
    %v1398 = vunpack.c.l.b16 %v386
    %v1399 = vunpack.c.l.b16 %v387
    %v1400 = vunpack.c.l.b16 %v388
    %v1401 = vunpack.c.l.b16 %v389
    %v1402 = vunpack.c.l.b16 %v390
    %v1403 = vunpack.c.l.b16 %v391
    %v1404 = vunpack.c.l.b16 %v392
    %v1405 = vunpack.c.l.b16 %v393
    %v1406 = vunpack.c.l.b16 %v394
    %v1407 = vunpack.c.l.b16 %v395
    %v1408 = vunpack.c.l.b16 %v396
    %v1409 = vunpack.c.l.b16 %v397
    %v1410 = vunpack.c.l.b16 %v398
    %v1411 = vunpack.c.l.b16 %v399
    %v1412 = vunpack.c.l.b16 %v400
    %v1413 = vunpack.c.l.b16 %v401
    %v1414 = vunpack.c.l.b16 %v402
    %v1415 = vunpack.c.l.b16 %v403
    %v1416 = vunpack.c.l.b16 %v404
    %v1417 = vunpack.c.l.b16 %v405
    %v1418 = vunpack.c.l.b16 %v406
    %v1419 = vunpack.c.l.b16 %v407
    %v1420 = vunpack.c.l.b16 %v408
    %v1421 = vunpack.c.l.b16 %v409
    %v1422 = vunpack.c.l.b16 %v410
    %v1423 = vunpack.c.l.b16 %v411
    %v1424 = vunpack.c.l.b16 %v412
    %v1425 = vunpack.c.l.b16 %v413
    %v1426 = vunpack.c.l.b16 %v414
    %v1427 = vunpack.c.l.b16 %v415
    %v1428 = vunpack.c.l.b16 %v416
    %v1429 = vunpack.c.l.b16 %v417
    %v1430 = vunpack.c.l.b16 %v418
    %v1431 = vunpack.c.l.b16 %v419
    %v1432 = vunpack.c.l.b16 %v420
    %v1433 = vunpack.c.l.b16 %v421
    %v1434 = vunpack.c.l.b16 %v422
    %v1435 = vunpack.c.l.b16 %v423
    %v1436 = vunpack.c.l.b16 %v424
    %v1437 = vunpack.c.l.b16 %v425
    %v1438 = vunpack.c.l.b16 %v426
    %v1439 = vunpack.c.l.b16 %v427
    %v1440 = vunpack.c.l.b16 %v428
    %v1441 = vunpack.c.l.b16 %v429
    %v1442 = vunpack.c.l.b16 %v430
    %v1443 = vunpack.c.l.b16 %v431
    %v1444 = vunpack.c.l.b16 %v432
    %v1445 = vunpack.c.l.b16 %v433
    %v1446 = vunpack.c.l.b16 %v434
    %v1447 = vunpack.c.l.b16 %v435
    %v1448 = vunpack.c.l.b16 %v436
    %v1449 = vunpack.c.l.b16 %v437
    %v1450 = vunpack.c.l.b16 %v438
    %v1451 = vunpack.c.l.b16 %v439
    %v1452 = vunpack.c.l.b16 %v440
    %v1453 = vunpack.c.l.b16 %v441
    %v1454 = vunpack.c.l.b16 %v442
    %v1455 = vunpack.c.l.b16 %v443
    %v1456 = vunpack.c.l.b16 %v444
    %v1457 = vunpack.c.l.b16 %v445
    %v1458 = vunpack.c.l.b16 %v446
    %v1459 = vunpack.c.l.b16 %v447
    %v1460 = vunpack.c.l.b16 %v448
    %v1461 = vunpack.c.l.b16 %v449
    %v1462 = vunpack.c.l.b16 %v450
    %v1463 = vunpack.c.l.b16 %v451
    %v1464 = vunpack.c.l.b16 %v452
    %v1465 = vunpack.c.l.b16 %v453
    %v1466 = vunpack.c.l.b16 %v454
    %v1467 = vunpack.c.l.b16 %v455
    %v1468 = vunpack.c.l.b16 %v456
    %v1469 = vunpack.c.l.b16 %v457
    %v1470 = vunpack.c.l.b16 %v458
    %v1471 = vunpack.c.l.b16 %v459
    %v1472 = vunpack.c.l.b16 %v460
    %v1473 = vunpack.c.l.b16 %v461
    %v1474 = vunpack.c.l.b16 %v462
    %v1475 = vunpack.c.l.b16 %v463
    %v1476 = vunpack.c.l.b16 %v464
    %v1477 = vunpack.c.l.b16 %v465
    %v1478 = vunpack.c.l.b16 %v466
    %v1479 = vunpack.c.l.b16 %v467
    %v1480 = vunpack.c.l.b16 %v468
    %v1481 = vunpack.c.l.b16 %v469
    %v1482 = vunpack.c.l.b16 %v470
    %v1483 = vunpack.c.l.b16 %v471
    %v1484 = vunpack.c.l.b16 %v472
    %v1485 = vunpack.c.l.b16 %v473
    %v1486 = vunpack.c.l.b16 %v474
    %v1487 = vunpack.c.l.b16 %v475
    %v1488 = vunpack.c.l.b16 %v476
    %v1489 = vunpack.c.l.b16 %v477
    %v1490 = vunpack.c.l.b16 %v478
    %v1491 = vunpack.c.l.b16 %v479
    %v1492 = vunpack.c.l.b16 %v480
    %v1493 = vunpack.c.l.b16 %v481
    %v1494 = vunpack.c.l.b16 %v482
    %v1495 = vunpack.c.l.b16 %v483
    %v1496 = vunpack.c.l.b16 %v484
    %v1497 = vunpack.c.l.b16 %v485
    %v1498 = vunpack.c.l.b16 %v486
    %v1499 = vunpack.c.l.b16 %v487
    %v1500 = vunpack.c.l.b16 %v488
    %v1501 = vunpack.c.l.b16 %v489
    %v1502 = vunpack.c.l.b16 %v490
    %v1503 = vunpack.c.l.b16 %v491
    %v1504 = vunpack.c.l.b16 %v492
    %v1505 = vunpack.c.l.b16 %v493
    %v1506 = vunpack.c.l.b16 %v494
    %v1507 = vunpack.c.l.b16 %v495
    %v1508 = vunpack.c.l.b16 %v496
    %v1509 = vunpack.c.l.b16 %v497
    %v1510 = vunpack.c.l.b16 %v498
    %v1511 = vunpack.c.l.b16 %v499
    %v1512 = vunpack.c.l.b16 %v500
    %v1513 = vunpack.c.l.b16 %v501
    %v1514 = vunpack.c.l.b16 %v502
    %v1515 = vunpack.c.l.b16 %v503
    %v1516 = vunpack.c.l.b16 %v504
    %v1517 = vunpack.c.l.b16 %v505
    %v1518 = vunpack.c.l.b16 %v506
    %v1519 = vunpack.c.l.b16 %v507
    %v1520 = vunpack.c.l.b16 %v508
    %v1521 = vunpack.c.l.b16 %v509
    %v1522 = vunpack.c.l.b16 %v510
    %v1523 = vunpack.c.l.b16 %v511
    %v1524 = vunpack.c.l.b16 %v512
    %v1525 = vunpack.c.l.b16 %v513
    %v1526 = vunpack.c.l.b16 %v514
    %v1527 = vunpack.c.l.b16 %v515
    %v1528 = vunpack.c.l.b16 %v516
    %v1529 = vunpack.c.l.b16 %v517
    %v1530 = vunpack.c.l.b16 %v518
    %v1531 = vunpack.c.l.b16 %v519
    %v1532 = vunpack.c.l.b16 %v520
    %v1533 = vunpack.c.l.b16 %v521
    %v1534 = vunpack.c.l.b16 %v522
    %v1535 = vunpack.c.l.b16 %v523
    %v1536 = vunpack.c.l.b16 %v524
    %v1537 = vunpack.c.l.b16 %v525
    %v1538 = vunpack.c.l.b16 %v526
    %v1539 = vunpack.c.l.b16 %v527
    %v1540 = vunpack.c.l.b16 %v528
    %v1541 = vunpack.c.l.b16 %v529
    %v1542 = vunpack.c.l.b16 %v530
    %v1543 = vunpack.c.l.b16 %v531
    %v1544 = vunpack.c.l.b16 %v532
    %v1545 = vunpack.c.l.b16 %v533
    %v1546 = vunpack.c.l.b16 %v534
    %v1547 = vunpack.c.l.b16 %v535
    %v1548 = vunpack.c.l.b16 %v536
    %v1549 = vunpack.c.l.b16 %v537
    %v1550 = vunpack.c.l.b16 %v538
    %v1551 = vunpack.c.l.b16 %v539
    %v1552 = vunpack.c.l.b16 %v540
    %v1553 = vunpack.c.l.b16 %v541
    %v1554 = vunpack.c.l.b16 %v542
    %v1555 = vunpack.c.l.b16 %v543
    %v1556 = vunpack.c.l.b16 %v544
    %v1557 = vunpack.c.l.b16 %v545
    %v1558 = vunpack.c.l.b16 %v546
    %v1559 = vunpack.c.l.b16 %v547
    %v1560 = vunpack.c.l.b16 %v548
    %v1561 = vunpack.c.l.b16 %v549
    %v1562 = vunpack.c.l.b16 %v550
    %v1563 = vunpack.c.l.b16 %v551
    %v1564 = vunpack.c.l.b16 %v552
    %v1565 = vunpack.c.l.b16 %v553
    %v1566 = vunpack.c.l.b16 %v554
    %v1567 = vunpack.c.l.b16 %v555
    %v1568 = vunpack.c.l.b16 %v556
    %v1569 = vunpack.c.l.b16 %v557
    %v1570 = vunpack.c.l.b16 %v558
    %v1571 = vunpack.c.l.b16 %v559
    %v1572 = vunpack.c.l.b16 %v560
    %v1573 = vunpack.c.l.b16 %v561
    %v1574 = vunpack.c.l.b16 %v562
    %v1575 = vunpack.c.l.b16 %v563
    %v1576 = vunpack.c.l.b16 %v564
    %v1577 = vunpack.c.l.b16 %v565
    %v1578 = vunpack.c.l.b16 %v566
    %v1579 = vunpack.c.l.b16 %v567
    %v1580 = vunpack.c.l.b16 %v568
    %v1581 = vunpack.c.l.b16 %v569
    %v1582 = vunpack.c.l.b16 %v570
    %v1583 = vunpack.c.l.b16 %v571
    %v1584 = vunpack.c.l.b16 %v572
    %v1585 = vunpack.c.l.b16 %v573
    %v1586 = vunpack.c.l.b16 %v574
    %v1587 = vunpack.c.l.b16 %v575
    %v1588 = vunpack.c.l.b16 %v576
    %v1589 = vunpack.c.l.b16 %v577
    %v1590 = vunpack.c.l.b16 %v578
    %v1591 = vunpack.c.l.b16 %v579
    %v1592 = vunpack.c.l.b16 %v580
    %v1593 = vunpack.c.l.b16 %v581
    %v1594 = vunpack.c.l.b16 %v582
    %v1595 = vunpack.c.l.b16 %v583
    %v1596 = vunpack.c.l.b16 %v584
    %v1597 = vunpack.c.l.b16 %v585
    %v1598 = vunpack.c.l.b16 %v586
    %v1599 = vunpack.c.l.b16 %v587
    %v1600 = vunpack.c.l.b16 %v588
    %v1601 = vunpack.c.l.b16 %v589
    %v1602 = vunpack.c.l.b16 %v590
    %v1603 = vunpack.c.l.b16 %v591
    %v1604 = vunpack.c.l.b16 %v592
    %v1605 = vunpack.c.l.b16 %v593
    %v1606 = vunpack.c.l.b16 %v594
    %v1607 = vunpack.c.l.b16 %v595
    %v1608 = vunpack.c.l.b16 %v596
    %v1609 = vunpack.c.l.b16 %v597
    %v1610 = vunpack.c.l.b16 %v598
    %v1611 = vunpack.c.l.b16 %v599
    %v1612 = vunpack.c.l.b16 %v600
    %v1613 = vunpack.c.l.b16 %v601
    %v1614 = vunpack.c.l.b16 %v602
    %v1615 = vunpack.c.l.b16 %v603
    %v1616 = vunpack.c.l.b16 %v604
    %v1617 = vunpack.c.l.b16 %v605
    %v1618 = vunpack.c.l.b16 %v606
    %v1619 = vunpack.c.l.b16 %v607
    %v1620 = vunpack.c.l.b16 %v608
    %v1621 = vunpack.c.l.b16 %v609
    %v1622 = vunpack.c.l.b16 %v610
    %v1623 = vunpack.c.l.b16 %v611
    %v1624 = vunpack.c.l.b16 %v612
    %v1625 = vunpack.c.l.b16 %v613
    %v1626 = vunpack.c.l.b16 %v614
    %v1627 = vunpack.c.l.b16 %v615
    %v1628 = vunpack.c.l.b16 %v616
    %v1629 = vunpack.c.l.b16 %v617
    %v1630 = vunpack.c.l.b16 %v618
    %v1631 = vunpack.c.l.b16 %v619
    %v1632 = vunpack.c.l.b16 %v620
    %v1633 = vunpack.c.l.b16 %v621
    %v1634 = vunpack.c.l.b16 %v622
    %v1635 = vunpack.c.l.b16 %v623
    %v1636 = vunpack.c.l.b16 %v624
    %v1637 = vunpack.c.l.b16 %v625
    %v1638 = vunpack.c.l.b16 %v626
    %v1639 = vunpack.c.l.b16 %v627
    %v1640 = vunpack.c.l.b16 %v628
    %v1641 = vunpack.c.l.b16 %v629
    %v1642 = vunpack.c.l.b16 %v630
    %v1643 = vunpack.c.l.b16 %v631
    %v1644 = vunpack.c.l.b16 %v632
    %v1645 = vunpack.c.l.b16 %v633
    %v1646 = vunpack.c.l.b16 %v634
    %v1647 = vunpack.c.l.b16 %v635
    %v1648 = vunpack.c.l.b16 %v636
    %v1649 = vunpack.c.l.b16 %v637
    %v1650 = vunpack.c.l.b16 %v638
    %v1651 = vunpack.c.l.b16 %v639
    %v1652 = vunpack.c.l.b16 %v640
    %v1653 = vpack.c.b16 %v1150, %v1149
    %v1654 = vpack.c.b16 %v1152, %v1151
    %v1655 = vpack.c.b16 %v1154, %v1153
    %v1656 = vpack.c.b16 %v1156, %v1155
    %v1657 = vpack.c.b16 %v1158, %v1157
    %v1658 = vpack.c.b16 %v1160, %v1159
    %v1659 = vpack.c.b16 %v1162, %v1161
    %v1660 = vpack.c.b16 %v1164, %v1163
    %v1661 = vpack.c.b16 %v1166, %v1165
    %v1662 = vpack.c.b16 %v1168, %v1167
    %v1663 = vpack.c.b16 %v1170, %v1169
    %v1664 = vpack.c.b16 %v1172, %v1171
    %v1665 = vpack.c.b16 %v1174, %v1173
    %v1666 = vpack.c.b16 %v1176, %v1175
    %v1667 = vpack.c.b16 %v1178, %v1177
    %v1668 = vpack.c.b16 %v1180, %v1179
    %v1669 = vpack.c.b16 %v1182, %v1181
    %v1670 = vpack.c.b16 %v1184, %v1183
    %v1671 = vpack.c.b16 %v1186, %v1185
    %v1672 = vpack.c.b16 %v1188, %v1187
    %v1673 = vpack.c.b16 %v1190, %v1189
    %v1674 = vpack.c.b16 %v1192, %v1191
    %v1675 = vpack.c.b16 %v1194, %v1193
    %v1676 = vpack.c.b16 %v1196, %v1195
    %v1677 = vpack.c.b16 %v1198, %v1197
    %v1678 = vpack.c.b16 %v1200, %v1199
    %v1679 = vpack.c.b16 %v1202, %v1201
    %v1680 = vpack.c.b16 %v1204, %v1203
    %v1681 = vpack.c.b16 %v1206, %v1205
    %v1682 = vpack.c.b16 %v1208, %v1207
    %v1683 = vpack.c.b16 %v1210, %v1209
    %v1684 = vpack.c.b16 %v1212, %v1211
    %v1685 = vpack.c.b16 %v1214, %v1213
    %v1686 = vpack.c.b16 %v1216, %v1215
    %v1687 = vpack.c.b16 %v1218, %v1217
    %v1688 = vpack.c.b16 %v1220, %v1219
    %v1689 = vpack.c.b16 %v1222, %v1221
    %v1690 = vpack.c.b16 %v1224, %v1223
    %v1691 = vpack.c.b16 %v1226, %v1225
    %v1692 = vpack.c.b16 %v1228, %v1227
    %v1693 = vpack.c.b16 %v1230, %v1229
    %v1694 = vpack.c.b16 %v1232, %v1231
    %v1695 = vpack.c.b16 %v1234, %v1233
    %v1696 = vpack.c.b16 %v1236, %v1235
    %v1697 = vpack.c.b16 %v1238, %v1237
    %v1698 = vpack.c.b16 %v1240, %v1239
    %v1699 = vpack.c.b16 %v1242, %v1241
    %v1700 = vpack.c.b16 %v1244, %v1243
    %v1701 = vpack.c.b16 %v1246, %v1245
    %v1702 = vpack.c.b16 %v1248, %v1247
    %v1703 = vpack.c.b16 %v1250, %v1249
    %v1704 = vpack.c.b16 %v1252, %v1251
    %v1705 = vpack.c.b16 %v1254, %v1253
    %v1706 = vpack.c.b16 %v1256, %v1255
    %v1707 = vpack.c.b16 %v1258, %v1257
    %v1708 = vpack.c.b16 %v1260, %v1259
    %v1709 = vpack.c.b16 %v1262, %v1261
    %v1710 = vpack.c.b16 %v1264, %v1263
    %v1711 = vpack.c.b16 %v1266, %v1265
    %v1712 = vpack.c.b16 %v1268, %v1267
    %v1713 = vpack.c.b16 %v1270, %v1269
    %v1714 = vpack.c.b16 %v1272, %v1271
    %v1715 = vpack.c.b16 %v1274, %v1273
    %v1716 = vpack.c.b16 %v1276, %v1275
    %v1717 = vpack.c.b16 %v1278, %v1277
    %v1718 = vpack.c.b16 %v1280, %v1279
    %v1719 = vpack.c.b16 %v1282, %v1281
    %v1720 = vpack.c.b16 %v1284, %v1283
    %v1721 = vpack.c.b16 %v1286, %v1285
    %v1722 = vpack.c.b16 %v1288, %v1287
    %v1723 = vpack.c.b16 %v1290, %v1289
    %v1724 = vpack.c.b16 %v1292, %v1291
    %v1725 = vpack.c.b16 %v1294, %v1293
    %v1726 = vpack.c.b16 %v1296, %v1295
    %v1727 = vpack.c.b16 %v1298, %v1297
    %v1728 = vpack.c.b16 %v1300, %v1299
    %v1729 = vpack.c.b16 %v1302, %v1301
    %v1730 = vpack.c.b16 %v1304, %v1303
    %v1731 = vpack.c.b16 %v1306, %v1305
    %v1732 = vpack.c.b16 %v1308, %v1307
    %v1733 = vpack.c.b16 %v1310, %v1309
    %v1734 = vpack.c.b16 %v1312, %v1311
    %v1735 = vpack.c.b16 %v1314, %v1313
    %v1736 = vpack.c.b16 %v1316, %v1315
    %v1737 = vpack.c.b16 %v1318, %v1317
    %v1738 = vpack.c.b16 %v1320, %v1319
    %v1739 = vpack.c.b16 %v1322, %v1321
    %v1740 = vpack.c.b16 %v1324, %v1323
    %v1741 = vpack.c.b16 %v1326, %v1325
    %v1742 = vpack.c.b16 %v1328, %v1327
    %v1743 = vpack.c.b16 %v1330, %v1329
    %v1744 = vpack.c.b16 %v1332, %v1331
    %v1745 = vpack.c.b16 %v1334, %v1333
    %v1746 = vpack.c.b16 %v1336, %v1335
    %v1747 = vpack.c.b16 %v1338, %v1337
    %v1748 = vpack.c.b16 %v1340, %v1339
    %v1749 = vpack.c.b16 %v1342, %v1341
    %v1750 = vpack.c.b16 %v1344, %v1343
    %v1751 = vpack.c.b16 %v1346, %v1345
    %v1752 = vpack.c.b16 %v1348, %v1347
    %v1753 = vpack.c.b16 %v1350, %v1349
    %v1754 = vpack.c.b16 %v1352, %v1351
    %v1755 = vpack.c.b16 %v1354, %v1353
    %v1756 = vpack.c.b16 %v1356, %v1355
    %v1757 = vpack.c.b16 %v1358, %v1357
    %v1758 = vpack.c.b16 %v1360, %v1359
    %v1759 = vpack.c.b16 %v1362, %v1361
    %v1760 = vpack.c.b16 %v1364, %v1363
    %v1761 = vpack.c.b16 %v1366, %v1365
    %v1762 = vpack.c.b16 %v1368, %v1367
    %v1763 = vpack.c.b16 %v1370, %v1369
    %v1764 = vpack.c.b16 %v1372, %v1371
    %v1765 = vpack.c.b16 %v1374, %v1373
    %v1766 = vpack.c.b16 %v1376, %v1375
    %v1767 = vpack.c.b16 %v1378, %v1377
    %v1768 = vpack.c.b16 %v1380, %v1379
    %v1769 = vpack.c.b16 %v1382, %v1381
    %v1770 = vpack.c.b16 %v1384, %v1383
    %v1771 = vpack.c.b16 %v1386, %v1385
    %v1772 = vpack.c.b16 %v1388, %v1387
    %v1773 = vpack.c.b16 %v1390, %v1389
    %v1774 = vpack.c.b16 %v1392, %v1391
    %v1775 = vpack.c.b16 %v1394, %v1393
    %v1776 = vpack.c.b16 %v1396, %v1395
    %v1777 = vpack.c.b16 %v1398, %v1397
    %v1778 = vpack.c.b16 %v1400, %v1399
    %v1779 = vpack.c.b16 %v1402, %v1401
    %v1780 = vpack.c.b16 %v1404, %v1403
    %v1781 = vpack.c.b16 %v1406, %v1405
    %v1782 = vpack.c.b16 %v1408, %v1407
    %v1783 = vpack.c.b16 %v1410, %v1409
    %v1784 = vpack.c.b16 %v1412, %v1411
    %v1785 = vpack.c.b16 %v1414, %v1413
    %v1786 = vpack.c.b16 %v1416, %v1415
    %v1787 = vpack.c.b16 %v1418, %v1417
    %v1788 = vpack.c.b16 %v1420, %v1419
    %v1789 = vpack.c.b16 %v1422, %v1421
    %v1790 = vpack.c.b16 %v1424, %v1423
    %v1791 = vpack.c.b16 %v1426, %v1425
    %v1792 = vpack.c.b16 %v1428, %v1427
    %v1793 = vpack.c.b16 %v1430, %v1429
    %v1794 = vpack.c.b16 %v1432, %v1431
    %v1795 = vpack.c.b16 %v1434, %v1433
    %v1796 = vpack.c.b16 %v1436, %v1435
    %v1797 = vpack.c.b16 %v1438, %v1437
    %v1798 = vpack.c.b16 %v1440, %v1439
    %v1799 = vpack.c.b16 %v1442, %v1441
    %v1800 = vpack.c.b16 %v1444, %v1443
    %v1801 = vpack.c.b16 %v1446, %v1445
    %v1802 = vpack.c.b16 %v1448, %v1447
    %v1803 = vpack.c.b16 %v1450, %v1449
    %v1804 = vpack.c.b16 %v1452, %v1451
    %v1805 = vpack.c.b16 %v1454, %v1453
    %v1806 = vpack.c.b16 %v1456, %v1455
    %v1807 = vpack.c.b16 %v1458, %v1457
    %v1808 = vpack.c.b16 %v1460, %v1459
    %v1809 = vpack.c.b16 %v1462, %v1461
    %v1810 = vpack.c.b16 %v1464, %v1463
    %v1811 = vpack.c.b16 %v1466, %v1465
    %v1812 = vpack.c.b16 %v1468, %v1467
    %v1813 = vpack.c.b16 %v1470, %v1469
    %v1814 = vpack.c.b16 %v1472, %v1471
    %v1815 = vpack.c.b16 %v1474, %v1473
    %v1816 = vpack.c.b16 %v1476, %v1475
    %v1817 = vpack.c.b16 %v1478, %v1477
    %v1818 = vpack.c.b16 %v1480, %v1479
    %v1819 = vpack.c.b16 %v1482, %v1481
    %v1820 = vpack.c.b16 %v1484, %v1483
    %v1821 = vpack.c.b16 %v1486, %v1485
    %v1822 = vpack.c.b16 %v1488, %v1487
    %v1823 = vpack.c.b16 %v1490, %v1489
    %v1824 = vpack.c.b16 %v1492, %v1491
    %v1825 = vpack.c.b16 %v1494, %v1493
    %v1826 = vpack.c.b16 %v1496, %v1495
    %v1827 = vpack.c.b16 %v1498, %v1497
    %v1828 = vpack.c.b16 %v1500, %v1499
    %v1829 = vpack.c.b16 %v1502, %v1501
    %v1830 = vpack.c.b16 %v1504, %v1503
    %v1831 = vpack.c.b16 %v1506, %v1505
    %v1832 = vpack.c.b16 %v1508, %v1507
    %v1833 = vpack.c.b16 %v1510, %v1509
    %v1834 = vpack.c.b16 %v1512, %v1511
    %v1835 = vpack.c.b16 %v1514, %v1513
    %v1836 = vpack.c.b16 %v1516, %v1515
    %v1837 = vpack.c.b16 %v1518, %v1517
    %v1838 = vpack.c.b16 %v1520, %v1519
    %v1839 = vpack.c.b16 %v1522, %v1521
    %v1840 = vpack.c.b16 %v1524, %v1523
    %v1841 = vpack.c.b16 %v1526, %v1525
    %v1842 = vpack.c.b16 %v1528, %v1527
    %v1843 = vpack.c.b16 %v1530, %v1529
    %v1844 = vpack.c.b16 %v1532, %v1531
    %v1845 = vpack.c.b16 %v1534, %v1533
    %v1846 = vpack.c.b16 %v1536, %v1535
    %v1847 = vpack.c.b16 %v1538, %v1537
    %v1848 = vpack.c.b16 %v1540, %v1539
    %v1849 = vpack.c.b16 %v1542, %v1541
    %v1850 = vpack.c.b16 %v1544, %v1543
    %v1851 = vpack.c.b16 %v1546, %v1545
    %v1852 = vpack.c.b16 %v1548, %v1547
    %v1853 = vpack.c.b16 %v1550, %v1549
    %v1854 = vpack.c.b16 %v1552, %v1551
    %v1855 = vpack.c.b16 %v1554, %v1553
    %v1856 = vpack.c.b16 %v1556, %v1555
    %v1857 = vpack.c.b16 %v1558, %v1557
    %v1858 = vpack.c.b16 %v1560, %v1559
    %v1859 = vpack.c.b16 %v1562, %v1561
    %v1860 = vpack.c.b16 %v1564, %v1563
    %v1861 = vpack.c.b16 %v1566, %v1565
    %v1862 = vpack.c.b16 %v1568, %v1567
    %v1863 = vpack.c.b16 %v1570, %v1569
    %v1864 = vpack.c.b16 %v1572, %v1571
    %v1865 = vpack.c.b16 %v1574, %v1573
    %v1866 = vpack.c.b16 %v1576, %v1575
    %v1867 = vpack.c.b16 %v1578, %v1577
    %v1868 = vpack.c.b16 %v1580, %v1579
    %v1869 = vpack.c.b16 %v1582, %v1581
    %v1870 = vpack.c.b16 %v1584, %v1583
    %v1871 = vpack.c.b16 %v1586, %v1585
    %v1872 = vpack.c.b16 %v1588, %v1587
    %v1873 = vpack.c.b16 %v1590, %v1589
    %v1874 = vpack.c.b16 %v1592, %v1591
    %v1875 = vpack.c.b16 %v1594, %v1593
    %v1876 = vpack.c.b16 %v1596, %v1595
    %v1877 = vpack.c.b16 %v1598, %v1597
    %v1878 = vpack.c.b16 %v1600, %v1599
    %v1879 = vpack.c.b16 %v1602, %v1601
    %v1880 = vpack.c.b16 %v1604, %v1603
    %v1881 = vpack.c.b16 %v1606, %v1605
    %v1882 = vpack.c.b16 %v1608, %v1607
    %v1883 = vpack.c.b16 %v1610, %v1609
    %v1884 = vpack.c.b16 %v1612, %v1611
    %v1885 = vpack.c.b16 %v1614, %v1613
    %v1886 = vpack.c.b16 %v1616, %v1615
    %v1887 = vpack.c.b16 %v1618, %v1617
    %v1888 = vpack.c.b16 %v1620, %v1619
    %v1889 = vpack.c.b16 %v1622, %v1621
    %v1890 = vpack.c.b16 %v1624, %v1623
    %v1891 = vpack.c.b16 %v1626, %v1625
    %v1892 = vpack.c.b16 %v1628, %v1627
    %v1893 = vpack.c.b16 %v1630, %v1629
    %v1894 = vpack.c.b16 %v1632, %v1631
    %v1895 = vpack.c.b16 %v1634, %v1633
    %v1896 = vpack.c.b16 %v1636, %v1635
    %v1897 = vpack.c.b16 %v1638, %v1637
    %v1898 = vpack.c.b16 %v1640, %v1639
    %v1899 = vpack.c.b16 %v1642, %v1641
    %v1900 = vpack.c.b16 %v1644, %v1643
    %v1901 = vpack.c.b16 %v1646, %v1645
    %v1902 = vpack.c.b16 %v1648, %v1647
    %v1903 = vpack.c.b16 %v1650, %v1649
    %v1904 = vpack.c.b16 %v1652, %v1651
    %vm2157 = vcmask 523264
    %v2159 = vsel %vm2157, %v136, 0
    %2161 = vmatpush.bf16.msra.mxu0 %v1660
    %2162 = vmatpush.bf16.msra.mxu0 %v1659
    %2163 = vmatpush.bf16.msra.mxu0 %v1658
    %2164 = vmatpush.bf16.msra.mxu0 %v1657
    %2165 = vmatpush.bf16.msra.mxu0 %v1656
    %2166 = vmatpush.bf16.msra.mxu0 %v1655
    %2167 = vmatpush.bf16.msra.mxu0 %v1654
    %2168 = vmatpush.bf16.msra.mxu0 %v1653
    %2169 = vmatmul.bf16.gmra.mxu0 %v105
    %v2170 = vpop.f32.mrf.mxu0
    %v2171 = vadd.f32 %v643, %v2170
    %v2172 = vpop.f32.mrf.mxu0
    %2173 = vdwg.mxu0
    %2174 = vmatpush.bf16.msra.mxu0 %v1668
    %2175 = vmatpush.bf16.msra.mxu0 %v1667
    %2176 = vmatpush.bf16.msra.mxu0 %v1666
    %2177 = vmatpush.bf16.msra.mxu0 %v1665
    %2178 = vmatpush.bf16.msra.mxu0 %v1664
    %2179 = vmatpush.bf16.msra.mxu0 %v1663
    %2180 = vmatpush.bf16.msra.mxu0 %v1662
    %2181 = vmatpush.bf16.msra.mxu0 %v1661
    %2182 = vmatmul.bf16.gmra.mxu0 %v106
    %v2183 = vpop.f32.mrf.mxu0
    %v2184 = vadd.f32 %v2171, %v2183
    %v2185 = vpop.f32.mrf.mxu0
    %2186 = vdwg.mxu0
    %2187 = vmatpush.bf16.msra.mxu0 %v1676
    %2188 = vmatpush.bf16.msra.mxu0 %v1675
    %2189 = vmatpush.bf16.msra.mxu0 %v1674
    %2190 = vmatpush.bf16.msra.mxu0 %v1673
    %2191 = vmatpush.bf16.msra.mxu0 %v1672
    %2192 = vmatpush.bf16.msra.mxu0 %v1671
    %2193 = vmatpush.bf16.msra.mxu0 %v1670
    %2194 = vmatpush.bf16.msra.mxu0 %v1669
    %2195 = vmatmul.bf16.gmra.mxu0 %v107
    %v2196 = vpop.f32.mrf.mxu0
    %v2197 = vadd.f32 %v2184, %v2196
    %v2198 = vpop.f32.mrf.mxu0
    %2199 = vdwg.mxu0
    %2200 = vmatpush.bf16.msra.mxu0 %v1684
    %2201 = vmatpush.bf16.msra.mxu0 %v1683
    %2202 = vmatpush.bf16.msra.mxu0 %v1682
    %2203 = vmatpush.bf16.msra.mxu0 %v1681
    %2204 = vmatpush.bf16.msra.mxu0 %v1680
    %2205 = vmatpush.bf16.msra.mxu0 %v1679
    %2206 = vmatpush.bf16.msra.mxu0 %v1678
    %2207 = vmatpush.bf16.msra.mxu0 %v1677
    %2208 = vmatmul.bf16.gmra.mxu0 %v108
    %v2209 = vpop.f32.mrf.mxu0
    %v2210 = vadd.f32 %v2197, %v2209
    %v2211 = vpop.f32.mrf.mxu0
    %2212 = vdwg.mxu0
    %2213 = vmatpush.bf16.msra.mxu0 %v1692
    %2214 = vmatpush.bf16.msra.mxu0 %v1691
    %2215 = vmatpush.bf16.msra.mxu0 %v1690
    %2216 = vmatpush.bf16.msra.mxu0 %v1689
    %2217 = vmatpush.bf16.msra.mxu0 %v1688
    %2218 = vmatpush.bf16.msra.mxu0 %v1687
    %2219 = vmatpush.bf16.msra.mxu0 %v1686
    %2220 = vmatpush.bf16.msra.mxu0 %v1685
    %2221 = vmatmul.bf16.gmra.mxu0 %v109
    %v2222 = vpop.f32.mrf.mxu0
    %v2223 = vadd.f32 %v2210, %v2222
    %v2224 = vpop.f32.mrf.mxu0
    %2225 = vdwg.mxu0
    %2226 = vmatpush.bf16.msra.mxu0 %v1700
    %2227 = vmatpush.bf16.msra.mxu0 %v1699
    %2228 = vmatpush.bf16.msra.mxu0 %v1698
    %2229 = vmatpush.bf16.msra.mxu0 %v1697
    %2230 = vmatpush.bf16.msra.mxu0 %v1696
    %2231 = vmatpush.bf16.msra.mxu0 %v1695
    %2232 = vmatpush.bf16.msra.mxu0 %v1694
    %2233 = vmatpush.bf16.msra.mxu0 %v1693
    %2234 = vmatmul.bf16.gmra.mxu0 %v110
    %v2235 = vpop.f32.mrf.mxu0
    %v2236 = vadd.f32 %v2223, %v2235
    %v2237 = vpop.f32.mrf.mxu0
    %2238 = vdwg.mxu0
    %2239 = vmatpush.bf16.msra.mxu0 %v1708
    %2240 = vmatpush.bf16.msra.mxu0 %v1707
    %2241 = vmatpush.bf16.msra.mxu0 %v1706
    %2242 = vmatpush.bf16.msra.mxu0 %v1705
    %2243 = vmatpush.bf16.msra.mxu0 %v1704
    %2244 = vmatpush.bf16.msra.mxu0 %v1703
    %2245 = vmatpush.bf16.msra.mxu0 %v1702
    %2246 = vmatpush.bf16.msra.mxu0 %v1701
    %2247 = vmatmul.bf16.gmra.mxu0 %v111
    %v2248 = vpop.f32.mrf.mxu0
    %v2249 = vadd.f32 %v2236, %v2248
    %v2250 = vpop.f32.mrf.mxu0
    %2251 = vdwg.mxu0
    %2252 = vmatpush.bf16.msra.mxu0 %v1716
    %2253 = vmatpush.bf16.msra.mxu0 %v1715
    %2254 = vmatpush.bf16.msra.mxu0 %v1714
    %2255 = vmatpush.bf16.msra.mxu0 %v1713
    %2256 = vmatpush.bf16.msra.mxu0 %v1712
    %2257 = vmatpush.bf16.msra.mxu0 %v1711
    %2258 = vmatpush.bf16.msra.mxu0 %v1710
    %2259 = vmatpush.bf16.msra.mxu0 %v1709
    %2260 = vmatmul.bf16.gmra.mxu0 %v112
    %v2261 = vpop.f32.mrf.mxu0
    %v2262 = vadd.f32 %v2249, %v2261
    %v2263 = vpop.f32.mrf.mxu0
    %2264 = vdwg.mxu0
    %2265 = vmatpush.bf16.msra.mxu0 %v1724
    %2266 = vmatpush.bf16.msra.mxu0 %v1723
    %2267 = vmatpush.bf16.msra.mxu0 %v1722
    %2268 = vmatpush.bf16.msra.mxu0 %v1721
    %2269 = vmatpush.bf16.msra.mxu0 %v1720
    %2270 = vmatpush.bf16.msra.mxu0 %v1719
    %2271 = vmatpush.bf16.msra.mxu0 %v1718
    %2272 = vmatpush.bf16.msra.mxu0 %v1717
    %2273 = vmatmul.bf16.gmra.mxu0 %v113
    %v2274 = vpop.f32.mrf.mxu0
    %v2275 = vadd.f32 %v2262, %v2274
    %v2276 = vpop.f32.mrf.mxu0
    %2277 = vdwg.mxu0
    %2278 = vmatpush.bf16.msra.mxu0 %v1732
    %2279 = vmatpush.bf16.msra.mxu0 %v1731
    %2280 = vmatpush.bf16.msra.mxu0 %v1730
    %2281 = vmatpush.bf16.msra.mxu0 %v1729
    %2282 = vmatpush.bf16.msra.mxu0 %v1728
    %2283 = vmatpush.bf16.msra.mxu0 %v1727
    %2284 = vmatpush.bf16.msra.mxu0 %v1726
    %2285 = vmatpush.bf16.msra.mxu0 %v1725
    %2286 = vmatmul.bf16.gmra.mxu0 %v114
    %v2287 = vpop.f32.mrf.mxu0
    %v2288 = vadd.f32 %v2275, %v2287
    %v2289 = vpop.f32.mrf.mxu0
    %2290 = vdwg.mxu0
    %2291 = vmatpush.bf16.msra.mxu0 %v1740
    %2292 = vmatpush.bf16.msra.mxu0 %v1739
    %2293 = vmatpush.bf16.msra.mxu0 %v1738
    %2294 = vmatpush.bf16.msra.mxu0 %v1737
    %2295 = vmatpush.bf16.msra.mxu0 %v1736
    %2296 = vmatpush.bf16.msra.mxu0 %v1735
    %2297 = vmatpush.bf16.msra.mxu0 %v1734
    %2298 = vmatpush.bf16.msra.mxu0 %v1733
    %2299 = vmatmul.bf16.gmra.mxu0 %v115
    %v2300 = vpop.f32.mrf.mxu0
    %v2301 = vadd.f32 %v2288, %v2300
    %v2302 = vpop.f32.mrf.mxu0
    %2303 = vdwg.mxu0
    %2304 = vmatpush.bf16.msra.mxu0 %v1748
    %2305 = vmatpush.bf16.msra.mxu0 %v1747
    %2306 = vmatpush.bf16.msra.mxu0 %v1746
    %2307 = vmatpush.bf16.msra.mxu0 %v1745
    %2308 = vmatpush.bf16.msra.mxu0 %v1744
    %2309 = vmatpush.bf16.msra.mxu0 %v1743
    %2310 = vmatpush.bf16.msra.mxu0 %v1742
    %2311 = vmatpush.bf16.msra.mxu0 %v1741
    %2312 = vmatmul.bf16.gmra.mxu0 %v116
    %v2313 = vpop.f32.mrf.mxu0
    %v2314 = vadd.f32 %v2301, %v2313
    %v2315 = vpop.f32.mrf.mxu0
    %2316 = vdwg.mxu0
    %2317 = vmatpush.bf16.msra.mxu0 %v1756
    %2318 = vmatpush.bf16.msra.mxu0 %v1755
    %2319 = vmatpush.bf16.msra.mxu0 %v1754
    %2320 = vmatpush.bf16.msra.mxu0 %v1753
    %2321 = vmatpush.bf16.msra.mxu0 %v1752
    %2322 = vmatpush.bf16.msra.mxu0 %v1751
    %2323 = vmatpush.bf16.msra.mxu0 %v1750
    %2324 = vmatpush.bf16.msra.mxu0 %v1749
    %2325 = vmatmul.bf16.gmra.mxu0 %v117
    %v2326 = vpop.f32.mrf.mxu0
    %v2327 = vadd.f32 %v2314, %v2326
    %v2328 = vpop.f32.mrf.mxu0
    %2329 = vdwg.mxu0
    %2330 = vmatpush.bf16.msra.mxu0 %v1764
    %2331 = vmatpush.bf16.msra.mxu0 %v1763
    %2332 = vmatpush.bf16.msra.mxu0 %v1762
    %2333 = vmatpush.bf16.msra.mxu0 %v1761
    %2334 = vmatpush.bf16.msra.mxu0 %v1760
    %2335 = vmatpush.bf16.msra.mxu0 %v1759
    %2336 = vmatpush.bf16.msra.mxu0 %v1758
    %2337 = vmatpush.bf16.msra.mxu0 %v1757
    %2338 = vmatmul.bf16.gmra.mxu0 %v118
    %v2339 = vpop.f32.mrf.mxu0
    %v2340 = vadd.f32 %v2327, %v2339
    %v2341 = vpop.f32.mrf.mxu0
    %2342 = vdwg.mxu0
    %2343 = vmatpush.bf16.msra.mxu0 %v1772
    %2344 = vmatpush.bf16.msra.mxu0 %v1771
    %2345 = vmatpush.bf16.msra.mxu0 %v1770
    %2346 = vmatpush.bf16.msra.mxu0 %v1769
    %2347 = vmatpush.bf16.msra.mxu0 %v1768
    %2348 = vmatpush.bf16.msra.mxu0 %v1767
    %2349 = vmatpush.bf16.msra.mxu0 %v1766
    %2350 = vmatpush.bf16.msra.mxu0 %v1765
    %2351 = vmatmul.bf16.gmra.mxu0 %v119
    %v2352 = vpop.f32.mrf.mxu0
    %v2353 = vadd.f32 %v2340, %v2352
    %v2354 = vpop.f32.mrf.mxu0
    %2355 = vdwg.mxu0
    %2356 = vmatpush.bf16.msra.mxu0 %v1780
    %2357 = vmatpush.bf16.msra.mxu0 %v1779
    %2358 = vmatpush.bf16.msra.mxu0 %v1778
    %2359 = vmatpush.bf16.msra.mxu0 %v1777
    %2360 = vmatpush.bf16.msra.mxu0 %v1776
    %2361 = vmatpush.bf16.msra.mxu0 %v1775
    %2362 = vmatpush.bf16.msra.mxu0 %v1774
    %2363 = vmatpush.bf16.msra.mxu0 %v1773
    %2364 = vmatmul.bf16.gmra.mxu0 %v120
    %v2365 = vpop.f32.mrf.mxu0
    %v2366 = vadd.f32 %v2353, %v2365
    %v2367 = vpop.f32.mrf.mxu0
    %2368 = vdwg.mxu0
    %2369 = vmatpush.bf16.msra.mxu0 %v1788
    %2370 = vmatpush.bf16.msra.mxu0 %v1787
    %2371 = vmatpush.bf16.msra.mxu0 %v1786
    %2372 = vmatpush.bf16.msra.mxu0 %v1785
    %2373 = vmatpush.bf16.msra.mxu0 %v1784
    %2374 = vmatpush.bf16.msra.mxu0 %v1783
    %2375 = vmatpush.bf16.msra.mxu0 %v1782
    %2376 = vmatpush.bf16.msra.mxu0 %v1781
    %2377 = vmatmul.bf16.gmra.mxu0 %v121
    %v2378 = vpop.f32.mrf.mxu0
    %v2379 = vadd.f32 %v2366, %v2378
    %v2380 = vpop.f32.mrf.mxu0
    %2381 = vdwg.mxu0
    %2382 = vmatpush.bf16.msra.mxu0 %v1796
    %2383 = vmatpush.bf16.msra.mxu0 %v1795
    %2384 = vmatpush.bf16.msra.mxu0 %v1794
    %2385 = vmatpush.bf16.msra.mxu0 %v1793
    %2386 = vmatpush.bf16.msra.mxu0 %v1792
    %2387 = vmatpush.bf16.msra.mxu0 %v1791
    %2388 = vmatpush.bf16.msra.mxu0 %v1790
    %2389 = vmatpush.bf16.msra.mxu0 %v1789
    %2390 = vmatmul.bf16.gmra.mxu0 %v122
    %v2391 = vpop.f32.mrf.mxu0
    %v2392 = vadd.f32 %v2379, %v2391
    %v2393 = vpop.f32.mrf.mxu0
    %2394 = vdwg.mxu0
    %2395 = vmatpush.bf16.msra.mxu0 %v1804
    %2396 = vmatpush.bf16.msra.mxu0 %v1803
    %2397 = vmatpush.bf16.msra.mxu0 %v1802
    %2398 = vmatpush.bf16.msra.mxu0 %v1801
    %2399 = vmatpush.bf16.msra.mxu0 %v1800
    %2400 = vmatpush.bf16.msra.mxu0 %v1799
    %2401 = vmatpush.bf16.msra.mxu0 %v1798
    %2402 = vmatpush.bf16.msra.mxu0 %v1797
    %2403 = vmatmul.bf16.gmra.mxu0 %v123
    %v2404 = vpop.f32.mrf.mxu0
    %v2405 = vadd.f32 %v2392, %v2404
    %v2406 = vpop.f32.mrf.mxu0
    %2407 = vdwg.mxu0
    %2408 = vmatpush.bf16.msra.mxu0 %v1812
    %2409 = vmatpush.bf16.msra.mxu0 %v1811
    %2410 = vmatpush.bf16.msra.mxu0 %v1810
    %2411 = vmatpush.bf16.msra.mxu0 %v1809
    %2412 = vmatpush.bf16.msra.mxu0 %v1808
    %2413 = vmatpush.bf16.msra.mxu0 %v1807
    %2414 = vmatpush.bf16.msra.mxu0 %v1806
    %2415 = vmatpush.bf16.msra.mxu0 %v1805
    %2416 = vmatmul.bf16.gmra.mxu0 %v124
    %v2417 = vpop.f32.mrf.mxu0
    %v2418 = vadd.f32 %v2405, %v2417
    %v2419 = vpop.f32.mrf.mxu0
    %2420 = vdwg.mxu0
    %2421 = vmatpush.bf16.msra.mxu0 %v1820
    %2422 = vmatpush.bf16.msra.mxu0 %v1819
    %2423 = vmatpush.bf16.msra.mxu0 %v1818
    %2424 = vmatpush.bf16.msra.mxu0 %v1817
    %2425 = vmatpush.bf16.msra.mxu0 %v1816
    %2426 = vmatpush.bf16.msra.mxu0 %v1815
    %2427 = vmatpush.bf16.msra.mxu0 %v1814
    %2428 = vmatpush.bf16.msra.mxu0 %v1813
    %2429 = vmatmul.bf16.gmra.mxu0 %v125
    %v2430 = vpop.f32.mrf.mxu0
    %v2431 = vadd.f32 %v2418, %v2430
    %v2432 = vpop.f32.mrf.mxu0
    %2433 = vdwg.mxu0
    %2434 = vmatpush.bf16.msra.mxu0 %v1828
    %2435 = vmatpush.bf16.msra.mxu0 %v1827
    %2436 = vmatpush.bf16.msra.mxu0 %v1826
    %2437 = vmatpush.bf16.msra.mxu0 %v1825
    %2438 = vmatpush.bf16.msra.mxu0 %v1824
    %2439 = vmatpush.bf16.msra.mxu0 %v1823
    %2440 = vmatpush.bf16.msra.mxu0 %v1822
    %2441 = vmatpush.bf16.msra.mxu0 %v1821
    %2442 = vmatmul.bf16.gmra.mxu0 %v126
    %v2443 = vpop.f32.mrf.mxu0
    %v2444 = vadd.f32 %v2431, %v2443
    %v2445 = vpop.f32.mrf.mxu0
    %2446 = vdwg.mxu0
    %2447 = vmatpush.bf16.msra.mxu0 %v1836
    %2448 = vmatpush.bf16.msra.mxu0 %v1835
    %2449 = vmatpush.bf16.msra.mxu0 %v1834
    %2450 = vmatpush.bf16.msra.mxu0 %v1833
    %2451 = vmatpush.bf16.msra.mxu0 %v1832
    %2452 = vmatpush.bf16.msra.mxu0 %v1831
    %2453 = vmatpush.bf16.msra.mxu0 %v1830
    %2454 = vmatpush.bf16.msra.mxu0 %v1829
    %2455 = vmatmul.bf16.gmra.mxu0 %v127
    %v2456 = vpop.f32.mrf.mxu0
    %v2457 = vadd.f32 %v2444, %v2456
    %v2458 = vpop.f32.mrf.mxu0
    %2459 = vdwg.mxu0
    %2460 = vmatpush.bf16.msra.mxu0 %v1844
    %2461 = vmatpush.bf16.msra.mxu0 %v1843
    %2462 = vmatpush.bf16.msra.mxu0 %v1842
    %2463 = vmatpush.bf16.msra.mxu0 %v1841
    %2464 = vmatpush.bf16.msra.mxu0 %v1840
    %2465 = vmatpush.bf16.msra.mxu0 %v1839
    %2466 = vmatpush.bf16.msra.mxu0 %v1838
    %2467 = vmatpush.bf16.msra.mxu0 %v1837
    %2468 = vmatmul.bf16.gmra.mxu0 %v128
    %v2469 = vpop.f32.mrf.mxu0
    %v2470 = vadd.f32 %v2457, %v2469
    %v2471 = vpop.f32.mrf.mxu0
    %2472 = vdwg.mxu0
    %2473 = vmatpush.bf16.msra.mxu0 %v1852
    %2474 = vmatpush.bf16.msra.mxu0 %v1851
    %2475 = vmatpush.bf16.msra.mxu0 %v1850
    %2476 = vmatpush.bf16.msra.mxu0 %v1849
    %2477 = vmatpush.bf16.msra.mxu0 %v1848
    %2478 = vmatpush.bf16.msra.mxu0 %v1847
    %2479 = vmatpush.bf16.msra.mxu0 %v1846
    %2480 = vmatpush.bf16.msra.mxu0 %v1845
    %2481 = vmatmul.bf16.gmra.mxu0 %v129
    %v2482 = vpop.f32.mrf.mxu0
    %v2483 = vadd.f32 %v2470, %v2482
    %v2484 = vpop.f32.mrf.mxu0
    %2485 = vdwg.mxu0
    %2486 = vmatpush.bf16.msra.mxu0 %v1860
    %2487 = vmatpush.bf16.msra.mxu0 %v1859
    %2488 = vmatpush.bf16.msra.mxu0 %v1858
    %2489 = vmatpush.bf16.msra.mxu0 %v1857
    %2490 = vmatpush.bf16.msra.mxu0 %v1856
    %2491 = vmatpush.bf16.msra.mxu0 %v1855
    %2492 = vmatpush.bf16.msra.mxu0 %v1854
    %2493 = vmatpush.bf16.msra.mxu0 %v1853
    %2494 = vmatmul.bf16.gmra.mxu0 %v130
    %v2495 = vpop.f32.mrf.mxu0
    %v2496 = vadd.f32 %v2483, %v2495
    %v2497 = vpop.f32.mrf.mxu0
    %2498 = vdwg.mxu0
    %2499 = vmatpush.bf16.msra.mxu0 %v1868
    %2500 = vmatpush.bf16.msra.mxu0 %v1867
    %2501 = vmatpush.bf16.msra.mxu0 %v1866
    %2502 = vmatpush.bf16.msra.mxu0 %v1865
    %2503 = vmatpush.bf16.msra.mxu0 %v1864
    %2504 = vmatpush.bf16.msra.mxu0 %v1863
    %2505 = vmatpush.bf16.msra.mxu0 %v1862
    %2506 = vmatpush.bf16.msra.mxu0 %v1861
    %2507 = vmatmul.bf16.gmra.mxu0 %v131
    %v2508 = vpop.f32.mrf.mxu0
    %v2509 = vadd.f32 %v2496, %v2508
    %v2510 = vpop.f32.mrf.mxu0
    %2511 = vdwg.mxu0
    %2512 = vmatpush.bf16.msra.mxu0 %v1876
    %2513 = vmatpush.bf16.msra.mxu0 %v1875
    %2514 = vmatpush.bf16.msra.mxu0 %v1874
    %2515 = vmatpush.bf16.msra.mxu0 %v1873
    %2516 = vmatpush.bf16.msra.mxu0 %v1872
    %2517 = vmatpush.bf16.msra.mxu0 %v1871
    %2518 = vmatpush.bf16.msra.mxu0 %v1870
    %2519 = vmatpush.bf16.msra.mxu0 %v1869
    %2520 = vmatmul.bf16.gmra.mxu0 %v132
    %v2521 = vpop.f32.mrf.mxu0
    %v2522 = vadd.f32 %v2509, %v2521
    %v2523 = vpop.f32.mrf.mxu0
    %2524 = vdwg.mxu0
    %2525 = vmatpush.bf16.msra.mxu0 %v1884
    %2526 = vmatpush.bf16.msra.mxu0 %v1883
    %2527 = vmatpush.bf16.msra.mxu0 %v1882
    %2528 = vmatpush.bf16.msra.mxu0 %v1881
    %2529 = vmatpush.bf16.msra.mxu0 %v1880
    %2530 = vmatpush.bf16.msra.mxu0 %v1879
    %2531 = vmatpush.bf16.msra.mxu0 %v1878
    %2532 = vmatpush.bf16.msra.mxu0 %v1877
    %2533 = vmatmul.bf16.gmra.mxu0 %v133
    %v2534 = vpop.f32.mrf.mxu0
    %v2535 = vadd.f32 %v2522, %v2534
    %v2536 = vpop.f32.mrf.mxu0
    %2537 = vdwg.mxu0
    %2538 = vmatpush.bf16.msra.mxu0 %v1892
    %2539 = vmatpush.bf16.msra.mxu0 %v1891
    %2540 = vmatpush.bf16.msra.mxu0 %v1890
    %2541 = vmatpush.bf16.msra.mxu0 %v1889
    %2542 = vmatpush.bf16.msra.mxu0 %v1888
    %2543 = vmatpush.bf16.msra.mxu0 %v1887
    %2544 = vmatpush.bf16.msra.mxu0 %v1886
    %2545 = vmatpush.bf16.msra.mxu0 %v1885
    %2546 = vmatmul.bf16.gmra.mxu0 %v134
    %v2547 = vpop.f32.mrf.mxu0
    %v2548 = vadd.f32 %v2535, %v2547
    %v2549 = vpop.f32.mrf.mxu0
    %2550 = vdwg.mxu0
    %2551 = vmatpush.bf16.msra.mxu0 %v1900
    %2552 = vmatpush.bf16.msra.mxu0 %v1899
    %2553 = vmatpush.bf16.msra.mxu0 %v1898
    %2554 = vmatpush.bf16.msra.mxu0 %v1897
    %2555 = vmatpush.bf16.msra.mxu0 %v1896
    %2556 = vmatpush.bf16.msra.mxu0 %v1895
    %2557 = vmatpush.bf16.msra.mxu0 %v1894
    %2558 = vmatpush.bf16.msra.mxu0 %v1893
    %2559 = vmatmul.bf16.gmra.mxu0 %v135
    %v2560 = vpop.f32.mrf.mxu0
    %v2561 = vadd.f32 %v2548, %v2560
    %v2562 = vpop.f32.mrf.mxu0
    %2563 = vdwg.mxu0
    %2564 = vmatpush.bf16.msra.mxu0 0
    %2565 = vmatpush.bf16.msra.mxu0 0
    %2566 = vmatpush.bf16.msra.mxu0 0
    %2567 = vmatpush.bf16.msra.mxu0 0
    %2568 = vmatpush.bf16.msra.mxu0 %v1904
    %2569 = vmatpush.bf16.msra.mxu0 %v1903
    %2570 = vmatpush.bf16.msra.mxu0 %v1902
    %2571 = vmatpush.bf16.msra.mxu0 %v1901
    %2572 = vmatmul.bf16.gmra.mxu0 %v2159
    %v2573 = vpop.f32.mrf.mxu0
    %v2574 = vadd.f32 %v2561, %v2573
    %v2575 = vpop.f32.mrf.mxu0
    %2576 = vdwg.mxu0
    %vm2577 = vcmask 74752
    %2578 = vst.msk [vmem:[#allocation2] sm:$0x3] %vm2577, %v2574
    // Predicated region
    $region14: #{simple_cnn_forward.3} parent=1 // pred_check
      _
    $region15: #{simple_cnn_forward.3} parent=1 // pred_check_branch
      %2580 = sbr.rel (0) target = $region17
    $region16: #{simple_cnn_forward.3} parent=1 // pred_region
      %2582 = vsyncadd [#allocation3], 0
      %s2584 = sshll.u32 [#allocation2], 4
      %s2585 = int_to_ptr.vmem [resolvable:$true] %s2584
      %s2586 = sshll.u32 %s3, 4
      %s2587 = int_to_ptr.hbm [resolvable:$true] %s2586
      %2589 = dma.vmem_to_hbm [thread:$0]  %s2585, 32, %s2587, [#allocation3]
    $region17: #{simple_cnn_forward.3} parent=1 // pred_fallthru
      _
    // Predicated region
    $region18: #{simple_cnn_forward.3} parent=1 // pred_check
      _
    $region19: #{simple_cnn_forward.3} parent=1 // pred_check_branch
      %2591 = sbr.rel (0) target = $region21
    $region20: #{simple_cnn_forward.3} parent=1 // pred_region
      %2593 = dma.done [#allocation3], 32
    $region21: #{simple_cnn_forward.3} parent=1 // pred_fallthru
      _
    %2594 = vsyncpa [#allocation3], 1

// kernel: simple_cnn_forward.2
$region0: #{simple_cnn_forward.2}
  #allocation0 [shape = 'u32[]', space=smem, size = 0x4, offset = 0x4, fixed_abs, tag = 'smem constant byte address 0x4 - core index']
  #allocation1 [shape = 'u32[72,128]{1,0:T(1,128)}', space=vmem, size = 0x9000, scoped, tag = 'internal scratch']
  #allocation2 [shape = 'f32[896,32]{1,0:T(8,128)}', space=vmem, size = 0x70000, scoped, tag = 'scratch operand']
  #allocation3 [shape = 'f32[448,32]{1,0:T(8,128)}', space=vmem, size = 0x38000, scoped, tag = 'scratch operand']
  #allocation4 [shape = 'f32[336,32]{1,0:T(8,128)}', space=vmem, size = 0x2a000, scoped, tag = 'scratch operand']
  #allocation5 [shape = 'bf16[256,896]{1,0:T(8,128)(2,1)}', space=vmem, size = 0x70000, scoped, tag = 'scratch operand']
  #allocation6 [shape = 'f32[256,64]{1,0:T(8,128)}', space=vmem, size = 0x20000, scoped, tag = 'scratch operand']
  #allocation7 [shape = 'f32[128,64]{1,0:T(8,128)}', space=vmem, size = 0x10000, scoped, tag = 'scratch operand']
  %s0 = inlined_call_operand.vmem [shape: bf16[2,896,128], index: 0, kind: input, shape index: {}]
  %s1 = inlined_call_operand.vmem [shape: bf16[128,32], index: 1, kind: input, shape index: {}]
  %s2 = inlined_call_operand.vmem [shape: f32[1,32], index: 2, kind: input, shape index: {}]
  %s3 = inlined_call_operand.vmem [shape: bf16[896,64], index: 3, kind: input, shape index: {}]
  %s4 = inlined_call_operand.vmem [shape: f32[1,64], index: 4, kind: input, shape index: {}]
  %s5 = inlined_call_operand.vmem [shape: f32[2,63,64], index: 5, kind: output, shape index: {}]
  %s6 = sld [smem:[#allocation0]]
  $region53: #{simple_cnn_forward.2} parent=0
    _
  %s8 = ssub.s32 1, %s6
  %s9 = scalar_select 0, %s8, %s6
  loop: start=0, step=1, limit=4
  $region2: #{simple_cnn_forward.2} parent=0 // loop_pre_header
    _
  $region3: #{simple_cnn_forward.2} parent=0 // loop_header
    %s11 = sphi 0, %s15
    %p12 = scmp.ge.s32.totalorder %s11, 4
    %s21 = sphi 0, %s23
    %s24 = sphi 0, %s21
    %s25 = sphi 0, %s24
    %s41 = sphi 0, %s25
    %s45 = sphi 0, %s45
    %s47 = sphi 0, %s45
    %s48 = sphi 0, %s47
    %s62 = sphi 0, %s48
    %s66 = sphi 0, %s66
    %s68 = sphi 0, %s66
    %s69 = sphi 0, %s68
    %s83 = sphi 0, %s69
    %s87 = sphi 0, %s87
    %s89 = sphi 0, %s87
    %s90 = sphi 0, %s89
    %s104 = sphi 0, %s90
    %s108 = sphi 0, %s108
    %s110 = sphi 0, %s108
    %s111 = sphi 0, %s110
    %s125 = sphi 0, %s111
    %s131 = sphi 0, %s133
    %s134 = sphi 0, %s131
    %s135 = sphi 0, %s134
    %s151 = sphi 0, %s135
  $region4: #{simple_cnn_forward.2} parent=0 // loop_header_branch
    %14 = sbr.rel (%p12) target = $region8
  $region5: #{simple_cnn_forward.2} parent=0 // loop_body
    %s16 = ssub.s32 %s11, 1
    %s17 = ssub.s32 %s11, 2
    %s18 = sadd.s32 %s11, 1
    %s19 = ssub.s32 %s11, %s18
    %p20 = scmp.eq.s32.totalorder %s19, 0
    %s22 = sadd.s32 %s21, 1
    %s23 = scalar_select %p20, %s21, %s22
    %p26 = pneg %p20
    %p27 = scmp.eq.s32.totalorder %s11, 1
    %p28 = por %p26, %p27
    %p29 = scmp.ne.s32.totalorder %s21, %s24
    %p30 = scmp.eq.s32.totalorder %s11, 0
    %p31 = por %p29, %p30
    %p32 = scmp.ne.s32.totalorder %s21, %s24
    %p33 = scmp.eq.s32.totalorder %s16, 1
    %p34 = por %p32, %p33
    %p35 = scmp.ne.s32.totalorder %s24, %s25
    %p36 = scmp.eq.s32.totalorder %s16, 0
    %p37 = por %p35, %p36
    %p38 = scmp.ne.s32.totalorder %s24, %s25
    %p39 = scmp.eq.s32.totalorder %s17, 1
    %p40 = por %p38, %p39
    %p42 = scmp.ne.s32.totalorder %s25, %s41
    %p43 = scmp.eq.s32.totalorder %s17, 0
    %p44 = por %p42, %p43
    %s46 = sadd.s32 %s45, 1
    %p49 = scmp.eq.s32.totalorder %s11, 1
    %p50 = scmp.ne.s32.totalorder %s45, %s47
    %p51 = scmp.eq.s32.totalorder %s11, 0
    %p52 = por %p50, %p51
    %p53 = scmp.ne.s32.totalorder %s45, %s47
    %p54 = scmp.eq.s32.totalorder %s16, 1
    %p55 = por %p53, %p54
    %p56 = scmp.ne.s32.totalorder %s47, %s48
    %p57 = scmp.eq.s32.totalorder %s16, 0
    %p58 = por %p56, %p57
    %p59 = scmp.ne.s32.totalorder %s47, %s48
    %p60 = scmp.eq.s32.totalorder %s17, 1
    %p61 = por %p59, %p60
    %p63 = scmp.ne.s32.totalorder %s48, %s62
    %p64 = scmp.eq.s32.totalorder %s17, 0
    %p65 = por %p63, %p64
    %s67 = sadd.s32 %s66, 1
    %p70 = scmp.eq.s32.totalorder %s11, 1
    %p71 = scmp.ne.s32.totalorder %s66, %s68
    %p72 = scmp.eq.s32.totalorder %s11, 0
    %p73 = por %p71, %p72
    %p74 = scmp.ne.s32.totalorder %s66, %s68
    %p75 = scmp.eq.s32.totalorder %s16, 1
    %p76 = por %p74, %p75
    %p77 = scmp.ne.s32.totalorder %s68, %s69
    %p78 = scmp.eq.s32.totalorder %s16, 0
    %p79 = por %p77, %p78
    %p80 = scmp.ne.s32.totalorder %s68, %s69
    %p81 = scmp.eq.s32.totalorder %s17, 1
    %p82 = por %p80, %p81
    %p84 = scmp.ne.s32.totalorder %s69, %s83
    %p85 = scmp.eq.s32.totalorder %s17, 0
    %p86 = por %p84, %p85
    %s88 = sadd.s32 %s87, 1
    %p91 = scmp.eq.s32.totalorder %s11, 1
    %p92 = scmp.ne.s32.totalorder %s87, %s89
    %p93 = scmp.eq.s32.totalorder %s11, 0
    %p94 = por %p92, %p93
    %p95 = scmp.ne.s32.totalorder %s87, %s89
    %p96 = scmp.eq.s32.totalorder %s16, 1
    %p97 = por %p95, %p96
    %p98 = scmp.ne.s32.totalorder %s89, %s90
    %p99 = scmp.eq.s32.totalorder %s16, 0
    %p100 = por %p98, %p99
    %p101 = scmp.ne.s32.totalorder %s89, %s90
    %p102 = scmp.eq.s32.totalorder %s17, 1
    %p103 = por %p101, %p102
    %p105 = scmp.ne.s32.totalorder %s90, %s104
    %p106 = scmp.eq.s32.totalorder %s17, 0
    %p107 = por %p105, %p106
    %s109 = sadd.s32 %s108, 1
    %p112 = scmp.eq.s32.totalorder %s11, 1
    %p113 = scmp.ne.s32.totalorder %s108, %s110
    %p114 = scmp.eq.s32.totalorder %s11, 0
    %p115 = por %p113, %p114
    %p116 = scmp.ne.s32.totalorder %s108, %s110
    %p117 = scmp.eq.s32.totalorder %s16, 1
    %p118 = por %p116, %p117
    %p119 = scmp.ne.s32.totalorder %s110, %s111
    %p120 = scmp.eq.s32.totalorder %s16, 0
    %p121 = por %p119, %p120
    %p122 = scmp.ne.s32.totalorder %s110, %s111
    %p123 = scmp.eq.s32.totalorder %s17, 1
    %p124 = por %p122, %p123
    %p126 = scmp.ne.s32.totalorder %s111, %s125
    %p127 = scmp.eq.s32.totalorder %s17, 0
    %p128 = por %p126, %p127
    %s129 = ssub.s32 %s11, %s18
    %p130 = scmp.eq.s32.totalorder %s129, 0
    %s132 = sadd.s32 %s131, 1
    %s133 = scalar_select %p130, %s131, %s132
    %p136 = pneg %p130
    %p137 = scmp.eq.s32.totalorder %s11, 1
    %p138 = por %p136, %p137
    %p139 = scmp.ne.s32.totalorder %s131, %s134
    %p140 = scmp.eq.s32.totalorder %s11, 0
    %p141 = por %p139, %p140
    %p142 = scmp.ne.s32.totalorder %s131, %s134
    %p143 = scmp.eq.s32.totalorder %s16, 1
    %p144 = por %p142, %p143
    %p145 = scmp.ne.s32.totalorder %s134, %s135
    %p146 = scmp.eq.s32.totalorder %s16, 0
    %p147 = por %p145, %p146
    %p148 = scmp.ne.s32.totalorder %s134, %s135
    %p149 = scmp.eq.s32.totalorder %s17, 1
    %p150 = por %p148, %p149
    %p152 = scmp.ne.s32.totalorder %s135, %s151
    %p153 = scmp.eq.s32.totalorder %s17, 0
    %p154 = por %p152, %p153
    %p155 = scmp.le.s32.totalorder 1, %s11
    %p156 = scmp.lt.s32.totalorder %s11, 3
    %p157 = pnand %p155, %p156
    %p158 = pneg %p157
    // Predicated region
    $region9: #{simple_cnn_forward.2} parent=5 // pred_check
      _
    $region10: #{simple_cnn_forward.2} parent=5 // pred_check_branch
      %160 = sbr.rel (%p157) target = $region12
    $region11: #{simple_cnn_forward.2} parent=5 // pred_region
      %s161 = ssub.s32 %s11, 1
      // Predicated region
      $region13: #{simple_cnn_forward.2} parent=11 // pred_check
        %p162 = pneg %p58
      $region14: #{simple_cnn_forward.2} parent=11 // pred_check_branch
        %164 = sbr.rel (%p162) target = $region16
      $region15: #{simple_cnn_forward.2} parent=11 // pred_region
        _
      $region16: #{simple_cnn_forward.2} parent=11 // pred_fallthru
        _
      // Predicated region
      $region17: #{simple_cnn_forward.2} parent=11 // pred_check
        %p165 = pneg %p79
      $region18: #{simple_cnn_forward.2} parent=11 // pred_check_branch
        %167 = sbr.rel (%p165) target = $region20
      $region19: #{simple_cnn_forward.2} parent=11 // pred_region
        _
      $region20: #{simple_cnn_forward.2} parent=11 // pred_fallthru
        _
      // Predicated region
      $region21: #{simple_cnn_forward.2} parent=11 // pred_check
        %p168 = pneg %p100
      $region22: #{simple_cnn_forward.2} parent=11 // pred_check_branch
        %170 = sbr.rel (%p168) target = $region24
      $region23: #{simple_cnn_forward.2} parent=11 // pred_region
        _
      $region24: #{simple_cnn_forward.2} parent=11 // pred_fallthru
        _
      // Predicated region
      $region25: #{simple_cnn_forward.2} parent=11 // pred_check
        %p171 = pneg %p121
      $region26: #{simple_cnn_forward.2} parent=11 // pred_check_branch
        %173 = sbr.rel (%p171) target = $region28
      $region27: #{simple_cnn_forward.2} parent=11 // pred_region
        _
      $region28: #{simple_cnn_forward.2} parent=11 // pred_fallthru
        _
    $region12: #{simple_cnn_forward.2} parent=5 // pred_fallthru
      _
    %p174 = scmp.lt.s32.totalorder %s11, 2
    // Predicated region
    $region29: #{simple_cnn_forward.2} parent=5 // pred_check
      %p175 = pneg %p174
    $region30: #{simple_cnn_forward.2} parent=5 // pred_check_branch
      %177 = sbr.rel (%p175) target = $region32
    $region31: #{simple_cnn_forward.2} parent=5 // pred_region
      // Predicated region
      $region33: #{simple_cnn_forward.2} parent=31 // pred_check
        %p178 = pneg %p31
      $region34: #{simple_cnn_forward.2} parent=31 // pred_check_branch
        %180 = sbr.rel (%p178) target = $region36
      $region35: #{simple_cnn_forward.2} parent=31 // pred_region
        %p181 = scmp.lt.s32.totalorder %s11, 1
        %s182 = scalar_select %p181, %s11, 1
        %s183 = smul.addr %s182, 112
        %s184 = smul.addr %s183, 4
        %s185 = scalar_lea.vmem %s0, %s184
      $region36: #{simple_cnn_forward.2} parent=31 // pred_fallthru
        _
    $region32: #{simple_cnn_forward.2} parent=5 // pred_fallthru
      _
    %p186 = scmp.le.s32.totalorder 1, %s11
    %p187 = scmp.lt.s32.totalorder %s11, 3
    %p188 = pnand %p186, %p187
    %p189 = pneg %p188
    // Predicated region
    $region37: #{simple_cnn_forward.2} parent=5 // pred_check
      _
    $region38: #{simple_cnn_forward.2} parent=5 // pred_check_branch
      %191 = sbr.rel (%p188) target = $region40
    $region39: #{simple_cnn_forward.2} parent=5 // pred_region
      %s192 = ssub.s32 %s11, 1
      %p193 = scmp.lt.s32.totalorder %s16, 1
      %s194 = scalar_select %p193, %s16, 1
      %s195 = smul.addr %s194, 112
      %s196 = smul.addr %s195, 4
      %s197 = scalar_lea.vmem %s0, %s196
      %p198 = pneg %p37
      %p199 = pneg %p34
      %p200 = pneg %p58
      %p201 = pneg %p55
      %p202 = pneg %p79
      %p203 = pneg %p76
      %p204 = pneg %p100
      %p205 = pneg %p97
      %p206 = pneg %p121
      %p207 = pneg %p118
      %p208 = pneg %p147
      %p209 = pneg %p144
      %p210 = scmp.lt.s32.totalorder %s16, 1
      %s211 = scalar_select %p210, %s16, 1
      %s212 = smul.addr %s211, 8
      %s213 = smul.addr %s212, 8
      %s214 = scalar_lea.vmem %s5, %s213
      %p215 = scmp.lt.s32.totalorder %s16, 1
      %s216 = scalar_select %p215, %s16, 1
      %s217 = smul.addr %s216, 112
      %s218 = smul.addr %s217, 4
      %s219 = scalar_lea.vmem %s0, %s218
      %p220 = scmp.lt.s32.totalorder %s16, 1
      %s221 = scalar_select %p220, %s16, 1
      %s222 = smul.addr %s221, 8
      %s223 = smul.addr %s222, 8
      %s224 = scalar_lea.vmem %s5, %s223
      %v226 = vld [vmem:[%s219] sm:$0xf]
      %v227 = vld [vmem:[%s219 + $0x4] sm:$0xf]
      %v228 = vld [vmem:[%s219 + $0x8] sm:$0xf]
      %v229 = vld [vmem:[%s219 + $0xc] sm:$0xf]
      %v230 = vld [vmem:[%s219 + $0x10] sm:$0xf]
      %v231 = vld [vmem:[%s219 + $0x14] sm:$0xf]
      %v232 = vld [vmem:[%s219 + $0x18] sm:$0xf]
      %v233 = vld [vmem:[%s219 + $0x1c] sm:$0xf]
      %v234 = vld [vmem:[%s219 + $0x20] sm:$0xf]
      %v235 = vld [vmem:[%s219 + $0x24] sm:$0xf]
      %v236 = vld [vmem:[%s219 + $0x28] sm:$0xf]
      %v237 = vld [vmem:[%s219 + $0x2c] sm:$0xf]
      %v238 = vld [vmem:[%s219 + $0x30] sm:$0xf]
      %v239 = vld [vmem:[%s219 + $0x34] sm:$0xf]
      %v240 = vld [vmem:[%s219 + $0x38] sm:$0xf]
      %v241 = vld [vmem:[%s219 + $0x3c] sm:$0xf]
      %v242 = vld [vmem:[%s219 + $0x40] sm:$0xf]
      %v243 = vld [vmem:[%s219 + $0x44] sm:$0xf]
      %v244 = vld [vmem:[%s219 + $0x48] sm:$0xf]
      %v245 = vld [vmem:[%s219 + $0x4c] sm:$0xf]
      %v246 = vld [vmem:[%s219 + $0x50] sm:$0xf]
      %v247 = vld [vmem:[%s219 + $0x54] sm:$0xf]
      %v248 = vld [vmem:[%s219 + $0x58] sm:$0xf]
      %v249 = vld [vmem:[%s219 + $0x5c] sm:$0xf]
      %v250 = vld [vmem:[%s219 + $0x60] sm:$0xf]
      %v251 = vld [vmem:[%s219 + $0x64] sm:$0xf]
      %v252 = vld [vmem:[%s219 + $0x68] sm:$0xf]
      %v253 = vld [vmem:[%s219 + $0x6c] sm:$0xf]
      %v254 = vld [vmem:[%s219 + $0x70] sm:$0xf]
      %v255 = vld [vmem:[%s219 + $0x74] sm:$0xf]
      %v256 = vld [vmem:[%s219 + $0x78] sm:$0xf]
      %v257 = vld [vmem:[%s219 + $0x7c] sm:$0xf]
      %v258 = vld [vmem:[%s219 + $0x80] sm:$0xf]
      %v259 = vld [vmem:[%s219 + $0x84] sm:$0xf]
      %v260 = vld [vmem:[%s219 + $0x88] sm:$0xf]
      %v261 = vld [vmem:[%s219 + $0x8c] sm:$0xf]
      %v262 = vld [vmem:[%s219 + $0x90] sm:$0xf]
      %v263 = vld [vmem:[%s219 + $0x94] sm:$0xf]
      %v264 = vld [vmem:[%s219 + $0x98] sm:$0xf]
      %v265 = vld [vmem:[%s219 + $0x9c] sm:$0xf]
      %v266 = vld [vmem:[%s219 + $0xa0] sm:$0xf]
      %v267 = vld [vmem:[%s219 + $0xa4] sm:$0xf]
      %v268 = vld [vmem:[%s219 + $0xa8] sm:$0xf]
      %v269 = vld [vmem:[%s219 + $0xac] sm:$0xf]
      %v270 = vld [vmem:[%s219 + $0xb0] sm:$0xf]
      %v271 = vld [vmem:[%s219 + $0xb4] sm:$0xf]
      %v272 = vld [vmem:[%s219 + $0xb8] sm:$0xf]
      %v273 = vld [vmem:[%s219 + $0xbc] sm:$0xf]
      %v274 = vld [vmem:[%s219 + $0xc0] sm:$0xf]
      %v275 = vld [vmem:[%s219 + $0xc4] sm:$0xf]
      %v276 = vld [vmem:[%s219 + $0xc8] sm:$0xf]
      %v277 = vld [vmem:[%s219 + $0xcc] sm:$0xf]
      %v278 = vld [vmem:[%s219 + $0xd0] sm:$0xf]
      %v279 = vld [vmem:[%s219 + $0xd4] sm:$0xf]
      %v280 = vld [vmem:[%s219 + $0xd8] sm:$0xf]
      %v281 = vld [vmem:[%s219 + $0xdc] sm:$0xf]
      %v282 = vld [vmem:[%s219 + $0xe0] sm:$0xf]
      %v283 = vld [vmem:[%s219 + $0xe4] sm:$0xf]
      %v284 = vld [vmem:[%s219 + $0xe8] sm:$0xf]
      %v285 = vld [vmem:[%s219 + $0xec] sm:$0xf]
      %v286 = vld [vmem:[%s219 + $0xf0] sm:$0xf]
      %v287 = vld [vmem:[%s219 + $0xf4] sm:$0xf]
      %v288 = vld [vmem:[%s219 + $0xf8] sm:$0xf]
      %v289 = vld [vmem:[%s219 + $0xfc] sm:$0xf]
      %v290 = vld [vmem:[%s219 + $0x100] sm:$0xf]
      %v291 = vld [vmem:[%s219 + $0x104] sm:$0xf]
      %v292 = vld [vmem:[%s219 + $0x108] sm:$0xf]
      %v293 = vld [vmem:[%s219 + $0x10c] sm:$0xf]
      %v294 = vld [vmem:[%s219 + $0x110] sm:$0xf]
      %v295 = vld [vmem:[%s219 + $0x114] sm:$0xf]
      %v296 = vld [vmem:[%s219 + $0x118] sm:$0xf]
      %v297 = vld [vmem:[%s219 + $0x11c] sm:$0xf]
      %v298 = vld [vmem:[%s219 + $0x120] sm:$0xf]
      %v299 = vld [vmem:[%s219 + $0x124] sm:$0xf]
      %v300 = vld [vmem:[%s219 + $0x128] sm:$0xf]
      %v301 = vld [vmem:[%s219 + $0x12c] sm:$0xf]
      %v302 = vld [vmem:[%s219 + $0x130] sm:$0xf]
      %v303 = vld [vmem:[%s219 + $0x134] sm:$0xf]
      %v304 = vld [vmem:[%s219 + $0x138] sm:$0xf]
      %v305 = vld [vmem:[%s219 + $0x13c] sm:$0xf]
      %v306 = vld [vmem:[%s219 + $0x140] sm:$0xf]
      %v307 = vld [vmem:[%s219 + $0x144] sm:$0xf]
      %v308 = vld [vmem:[%s219 + $0x148] sm:$0xf]
      %v309 = vld [vmem:[%s219 + $0x14c] sm:$0xf]
      %v310 = vld [vmem:[%s219 + $0x150] sm:$0xf]
      %v311 = vld [vmem:[%s219 + $0x154] sm:$0xf]
      %v312 = vld [vmem:[%s219 + $0x158] sm:$0xf]
      %v313 = vld [vmem:[%s219 + $0x15c] sm:$0xf]
      %v314 = vld [vmem:[%s219 + $0x160] sm:$0xf]
      %v315 = vld [vmem:[%s219 + $0x164] sm:$0xf]
      %v316 = vld [vmem:[%s219 + $0x168] sm:$0xf]
      %v317 = vld [vmem:[%s219 + $0x16c] sm:$0xf]
      %v318 = vld [vmem:[%s219 + $0x170] sm:$0xf]
      %v319 = vld [vmem:[%s219 + $0x174] sm:$0xf]
      %v320 = vld [vmem:[%s219 + $0x178] sm:$0xf]
      %v321 = vld [vmem:[%s219 + $0x17c] sm:$0xf]
      %v322 = vld [vmem:[%s219 + $0x180] sm:$0xf]
      %v323 = vld [vmem:[%s219 + $0x184] sm:$0xf]
      %v324 = vld [vmem:[%s219 + $0x188] sm:$0xf]
      %v325 = vld [vmem:[%s219 + $0x18c] sm:$0xf]
      %v326 = vld [vmem:[%s219 + $0x190] sm:$0xf]
      %v327 = vld [vmem:[%s219 + $0x194] sm:$0xf]
      %v328 = vld [vmem:[%s219 + $0x198] sm:$0xf]
      %v329 = vld [vmem:[%s219 + $0x19c] sm:$0xf]
      %v330 = vld [vmem:[%s219 + $0x1a0] sm:$0xf]
      %v331 = vld [vmem:[%s219 + $0x1a4] sm:$0xf]
      %v332 = vld [vmem:[%s219 + $0x1a8] sm:$0xf]
      %v333 = vld [vmem:[%s219 + $0x1ac] sm:$0xf]
      %v334 = vld [vmem:[%s219 + $0x1b0] sm:$0xf]
      %v335 = vld [vmem:[%s219 + $0x1b4] sm:$0xf]
      %v336 = vld [vmem:[%s219 + $0x1b8] sm:$0xf]
      %v337 = vld [vmem:[%s219 + $0x1bc] sm:$0xf]
      %v338 = vld [vmem:[%s1] sm:$0xf]
      %v339 = vld [vmem:[%s1 + $0x4] sm:$0xf]
      %v340 = vld [vmem:[%s1 + $0x8] sm:$0xf]
      %v341 = vld [vmem:[%s1 + $0xc] sm:$0xf]
      %v342 = vld [vmem:[%s1 + $0x10] sm:$0xf]
      %v343 = vld [vmem:[%s1 + $0x14] sm:$0xf]
      %v344 = vld [vmem:[%s1 + $0x18] sm:$0xf]
      %v345 = vld [vmem:[%s1 + $0x1c] sm:$0xf]
      %v346 = vld [vmem:[%s1 + $0x20] sm:$0xf]
      %v347 = vld [vmem:[%s1 + $0x24] sm:$0xf]
      %v348 = vld [vmem:[%s1 + $0x28] sm:$0xf]
      %v349 = vld [vmem:[%s1 + $0x2c] sm:$0xf]
      %v350 = vld [vmem:[%s1 + $0x30] sm:$0xf]
      %v351 = vld [vmem:[%s1 + $0x34] sm:$0xf]
      %v352 = vld [vmem:[%s1 + $0x38] sm:$0xf]
      %v353 = vld [vmem:[%s1 + $0x3c] sm:$0xf]
      %v354 = vld [vmem:[%s2] sm:$0x1]
      %v356 = vperm.slane %v354, 0
      %v470 = vunpack.c.l.b16 %v226
      %v471 = vunpack.c.l.b16 %v227
      %v472 = vunpack.c.l.b16 %v228
      %v473 = vunpack.c.l.b16 %v229
      %v474 = vunpack.c.l.b16 %v230
      %v475 = vunpack.c.l.b16 %v231
      %v476 = vunpack.c.l.b16 %v232
      %v477 = vunpack.c.l.b16 %v233
      %v478 = vunpack.c.l.b16 %v234
      %v479 = vunpack.c.l.b16 %v235
      %v480 = vunpack.c.l.b16 %v236
      %v481 = vunpack.c.l.b16 %v237
      %v482 = vunpack.c.l.b16 %v238
      %v483 = vunpack.c.l.b16 %v239
      %v484 = vunpack.c.l.b16 %v240
      %v485 = vunpack.c.l.b16 %v241
      %v486 = vunpack.c.l.b16 %v242
      %v487 = vunpack.c.l.b16 %v243
      %v488 = vunpack.c.l.b16 %v244
      %v489 = vunpack.c.l.b16 %v245
      %v490 = vunpack.c.l.b16 %v246
      %v491 = vunpack.c.l.b16 %v247
      %v492 = vunpack.c.l.b16 %v248
      %v493 = vunpack.c.l.b16 %v249
      %v494 = vunpack.c.l.b16 %v250
      %v495 = vunpack.c.l.b16 %v251
      %v496 = vunpack.c.l.b16 %v252
      %v497 = vunpack.c.l.b16 %v253
      %v498 = vunpack.c.l.b16 %v254
      %v499 = vunpack.c.l.b16 %v255
      %v500 = vunpack.c.l.b16 %v256
      %v501 = vunpack.c.l.b16 %v257
      %v502 = vunpack.c.l.b16 %v258
      %v503 = vunpack.c.l.b16 %v259
      %v504 = vunpack.c.l.b16 %v260
      %v505 = vunpack.c.l.b16 %v261
      %v506 = vunpack.c.l.b16 %v262
      %v507 = vunpack.c.l.b16 %v263
      %v508 = vunpack.c.l.b16 %v264
      %v509 = vunpack.c.l.b16 %v265
      %v510 = vunpack.c.l.b16 %v266
      %v511 = vunpack.c.l.b16 %v267
      %v512 = vunpack.c.l.b16 %v268
      %v513 = vunpack.c.l.b16 %v269
      %v514 = vunpack.c.l.b16 %v270
      %v515 = vunpack.c.l.b16 %v271
      %v516 = vunpack.c.l.b16 %v272
      %v517 = vunpack.c.l.b16 %v273
      %v518 = vunpack.c.l.b16 %v274
      %v519 = vunpack.c.l.b16 %v275
      %v520 = vunpack.c.l.b16 %v276
      %v521 = vunpack.c.l.b16 %v277
      %v522 = vunpack.c.l.b16 %v278
      %v523 = vunpack.c.l.b16 %v279
      %v524 = vunpack.c.l.b16 %v280
      %v525 = vunpack.c.l.b16 %v281
      %v526 = vunpack.c.l.b16 %v282
      %v527 = vunpack.c.l.b16 %v283
      %v528 = vunpack.c.l.b16 %v284
      %v529 = vunpack.c.l.b16 %v285
      %v530 = vunpack.c.l.b16 %v286
      %v531 = vunpack.c.l.b16 %v287
      %v532 = vunpack.c.l.b16 %v288
      %v533 = vunpack.c.l.b16 %v289
      %v534 = vunpack.c.l.b16 %v290
      %v535 = vunpack.c.l.b16 %v291
      %v536 = vunpack.c.l.b16 %v292
      %v537 = vunpack.c.l.b16 %v293
      %v538 = vunpack.c.l.b16 %v294
      %v539 = vunpack.c.l.b16 %v295
      %v540 = vunpack.c.l.b16 %v296
      %v541 = vunpack.c.l.b16 %v297
      %v542 = vunpack.c.l.b16 %v298
      %v543 = vunpack.c.l.b16 %v299
      %v544 = vunpack.c.l.b16 %v300
      %v545 = vunpack.c.l.b16 %v301
      %v546 = vunpack.c.l.b16 %v302
      %v547 = vunpack.c.l.b16 %v303
      %v548 = vunpack.c.l.b16 %v304
      %v549 = vunpack.c.l.b16 %v305
      %v550 = vunpack.c.l.b16 %v306
      %v551 = vunpack.c.l.b16 %v307
      %v552 = vunpack.c.l.b16 %v308
      %v553 = vunpack.c.l.b16 %v309
      %v554 = vunpack.c.l.b16 %v310
      %v555 = vunpack.c.l.b16 %v311
      %v556 = vunpack.c.l.b16 %v312
      %v557 = vunpack.c.l.b16 %v313
      %v558 = vunpack.c.l.b16 %v314
      %v559 = vunpack.c.l.b16 %v315
      %v560 = vunpack.c.l.b16 %v316
      %v561 = vunpack.c.l.b16 %v317
      %v562 = vunpack.c.l.b16 %v318
      %v563 = vunpack.c.l.b16 %v319
      %v564 = vunpack.c.l.b16 %v320
      %v565 = vunpack.c.l.b16 %v321
      %v566 = vunpack.c.l.b16 %v322
      %v567 = vunpack.c.l.b16 %v323
      %v568 = vunpack.c.l.b16 %v324
      %v569 = vunpack.c.l.b16 %v325
      %v570 = vunpack.c.l.b16 %v326
      %v571 = vunpack.c.l.b16 %v327
      %v572 = vunpack.c.l.b16 %v328
      %v573 = vunpack.c.l.b16 %v329
      %v574 = vunpack.c.l.b16 %v330
      %v575 = vunpack.c.l.b16 %v331
      %v576 = vunpack.c.l.b16 %v332
      %v577 = vunpack.c.l.b16 %v333
      %v578 = vunpack.c.l.b16 %v334
      %v579 = vunpack.c.l.b16 %v335
      %v580 = vunpack.c.l.b16 %v336
      %v581 = vunpack.c.l.b16 %v337
      %v582 = vpack.c.b16 %v471, %v470
      %v583 = vpack.c.b16 %v473, %v472
      %v584 = vpack.c.b16 %v475, %v474
      %v585 = vpack.c.b16 %v477, %v476
      %v586 = vpack.c.b16 %v479, %v478
      %v587 = vpack.c.b16 %v481, %v480
      %v588 = vpack.c.b16 %v483, %v482
      %v589 = vpack.c.b16 %v485, %v484
      %v590 = vpack.c.b16 %v487, %v486
      %v591 = vpack.c.b16 %v489, %v488
      %v592 = vpack.c.b16 %v491, %v490
      %v593 = vpack.c.b16 %v493, %v492
      %v594 = vpack.c.b16 %v495, %v494
      %v595 = vpack.c.b16 %v497, %v496
      %v596 = vpack.c.b16 %v499, %v498
      %v597 = vpack.c.b16 %v501, %v500
      %v598 = vpack.c.b16 %v503, %v502
      %v599 = vpack.c.b16 %v505, %v504
      %v600 = vpack.c.b16 %v507, %v506
      %v601 = vpack.c.b16 %v509, %v508
      %v602 = vpack.c.b16 %v511, %v510
      %v603 = vpack.c.b16 %v513, %v512
      %v604 = vpack.c.b16 %v515, %v514
      %v605 = vpack.c.b16 %v517, %v516
      %v606 = vpack.c.b16 %v519, %v518
      %v607 = vpack.c.b16 %v521, %v520
      %v608 = vpack.c.b16 %v523, %v522
      %v609 = vpack.c.b16 %v525, %v524
      %v610 = vpack.c.b16 %v527, %v526
      %v611 = vpack.c.b16 %v529, %v528
      %v612 = vpack.c.b16 %v531, %v530
      %v613 = vpack.c.b16 %v533, %v532
      %v614 = vpack.c.b16 %v535, %v534
      %v615 = vpack.c.b16 %v537, %v536
      %v616 = vpack.c.b16 %v539, %v538
      %v617 = vpack.c.b16 %v541, %v540
      %v618 = vpack.c.b16 %v543, %v542
      %v619 = vpack.c.b16 %v545, %v544
      %v620 = vpack.c.b16 %v547, %v546
      %v621 = vpack.c.b16 %v549, %v548
      %v622 = vpack.c.b16 %v551, %v550
      %v623 = vpack.c.b16 %v553, %v552
      %v624 = vpack.c.b16 %v555, %v554
      %v625 = vpack.c.b16 %v557, %v556
      %v626 = vpack.c.b16 %v559, %v558
      %v627 = vpack.c.b16 %v561, %v560
      %v628 = vpack.c.b16 %v563, %v562
      %v629 = vpack.c.b16 %v565, %v564
      %v630 = vpack.c.b16 %v567, %v566
      %v631 = vpack.c.b16 %v569, %v568
      %v632 = vpack.c.b16 %v571, %v570
      %v633 = vpack.c.b16 %v573, %v572
      %v634 = vpack.c.b16 %v575, %v574
      %v635 = vpack.c.b16 %v577, %v576
      %v636 = vpack.c.b16 %v579, %v578
      %v637 = vpack.c.b16 %v581, %v580
      %v710 = vunpack.c.l.b16 %v338
      %v711 = vunpack.c.l.b16 %v339
      %v712 = vunpack.c.l.b16 %v340
      %v713 = vunpack.c.l.b16 %v341
      %v714 = vunpack.c.l.b16 %v342
      %v715 = vunpack.c.l.b16 %v343
      %v716 = vunpack.c.l.b16 %v344
      %v717 = vunpack.c.l.b16 %v345
      %v718 = vunpack.c.l.b16 %v346
      %v719 = vunpack.c.l.b16 %v347
      %v720 = vunpack.c.l.b16 %v348
      %v721 = vunpack.c.l.b16 %v349
      %v722 = vunpack.c.l.b16 %v350
      %v723 = vunpack.c.l.b16 %v351
      %v724 = vunpack.c.l.b16 %v352
      %v725 = vunpack.c.l.b16 %v353
      %v726 = vpack.c.b16 %v711, %v710
      %v727 = vpack.c.b16 %v713, %v712
      %v728 = vpack.c.b16 %v715, %v714
      %v729 = vpack.c.b16 %v717, %v716
      %v730 = vpack.c.b16 %v719, %v718
      %v731 = vpack.c.b16 %v721, %v720
      %v732 = vpack.c.b16 %v723, %v722
      %v733 = vpack.c.b16 %v725, %v724
      %742 = vmatpush.bf16.msra.mxu0 %v733
      %743 = vmatpush.bf16.msra.mxu0 %v732
      %744 = vmatpush.bf16.msra.mxu0 %v731
      %745 = vmatpush.bf16.msra.mxu0 %v730
      %746 = vmatpush.bf16.msra.mxu0 %v729
      %747 = vmatpush.bf16.msra.mxu0 %v728
      %748 = vmatpush.bf16.msra.mxu0 %v727
      %749 = vmatpush.bf16.msra.mxu0 %v726
      %750 = vmatmul.bf16.gmra.mxu0 %v582
      %v751 = vpop.f32.mrf.mxu0
      %v752 = vadd.f32 %v356, %v751
      %v753 = vpop.f32.mrf.mxu0
      %v754 = vadd.f32 %v356, %v753
      %755 = vmatmul.bf16.gmra.mxu0 %v583
      %v756 = vpop.f32.mrf.mxu0
      %v757 = vadd.f32 %v356, %v756
      %v758 = vpop.f32.mrf.mxu0
      %v759 = vadd.f32 %v356, %v758
      %760 = vmatmul.bf16.gmra.mxu0 %v584
      %v761 = vpop.f32.mrf.mxu0
      %v762 = vadd.f32 %v356, %v761
      %v763 = vpop.f32.mrf.mxu0
      %v764 = vadd.f32 %v356, %v763
      %765 = vmatmul.bf16.gmra.mxu0 %v585
      %v766 = vpop.f32.mrf.mxu0
      %v767 = vadd.f32 %v356, %v766
      %v768 = vpop.f32.mrf.mxu0
      %v769 = vadd.f32 %v356, %v768
      %770 = vmatmul.bf16.gmra.mxu0 %v586
      %v771 = vpop.f32.mrf.mxu0
      %v772 = vadd.f32 %v356, %v771
      %v773 = vpop.f32.mrf.mxu0
      %v774 = vadd.f32 %v356, %v773
      %775 = vmatmul.bf16.gmra.mxu0 %v587
      %v776 = vpop.f32.mrf.mxu0
      %v777 = vadd.f32 %v356, %v776
      %v778 = vpop.f32.mrf.mxu0
      %v779 = vadd.f32 %v356, %v778
      %780 = vmatmul.bf16.gmra.mxu0 %v588
      %v781 = vpop.f32.mrf.mxu0
      %v782 = vadd.f32 %v356, %v781
      %v783 = vpop.f32.mrf.mxu0
      %v784 = vadd.f32 %v356, %v783
      %785 = vmatmul.bf16.gmra.mxu0 %v589
      %v786 = vpop.f32.mrf.mxu0
      %v787 = vadd.f32 %v356, %v786
      %v788 = vpop.f32.mrf.mxu0
      %v789 = vadd.f32 %v356, %v788
      %790 = vmatmul.bf16.gmra.mxu0 %v590
      %v791 = vpop.f32.mrf.mxu0
      %v792 = vadd.f32 %v356, %v791
      %v793 = vpop.f32.mrf.mxu0
      %v794 = vadd.f32 %v356, %v793
      %795 = vmatmul.bf16.gmra.mxu0 %v591
      %v796 = vpop.f32.mrf.mxu0
      %v797 = vadd.f32 %v356, %v796
      %v798 = vpop.f32.mrf.mxu0
      %v799 = vadd.f32 %v356, %v798
      %800 = vmatmul.bf16.gmra.mxu0 %v592
      %v801 = vpop.f32.mrf.mxu0
      %v802 = vadd.f32 %v356, %v801
      %v803 = vpop.f32.mrf.mxu0
      %v804 = vadd.f32 %v356, %v803
      %805 = vmatmul.bf16.gmra.mxu0 %v593
      %v806 = vpop.f32.mrf.mxu0
      %v807 = vadd.f32 %v356, %v806
      %v808 = vpop.f32.mrf.mxu0
      %v809 = vadd.f32 %v356, %v808
      %810 = vmatmul.bf16.gmra.mxu0 %v594
      %v811 = vpop.f32.mrf.mxu0
      %v812 = vadd.f32 %v356, %v811
      %v813 = vpop.f32.mrf.mxu0
      %v814 = vadd.f32 %v356, %v813
      %815 = vmatmul.bf16.gmra.mxu0 %v595
      %v816 = vpop.f32.mrf.mxu0
      %v817 = vadd.f32 %v356, %v816
      %v818 = vpop.f32.mrf.mxu0
      %v819 = vadd.f32 %v356, %v818
      %820 = vmatmul.bf16.gmra.mxu0 %v596
      %v821 = vpop.f32.mrf.mxu0
      %v822 = vadd.f32 %v356, %v821
      %v823 = vpop.f32.mrf.mxu0
      %v824 = vadd.f32 %v356, %v823
      %825 = vmatmul.bf16.gmra.mxu0 %v597
      %v826 = vpop.f32.mrf.mxu0
      %v827 = vadd.f32 %v356, %v826
      %v828 = vpop.f32.mrf.mxu0
      %v829 = vadd.f32 %v356, %v828
      %830 = vmatmul.bf16.gmra.mxu0 %v598
      %v831 = vpop.f32.mrf.mxu0
      %v832 = vadd.f32 %v356, %v831
      %v833 = vpop.f32.mrf.mxu0
      %v834 = vadd.f32 %v356, %v833
      %835 = vmatmul.bf16.gmra.mxu0 %v599
      %v836 = vpop.f32.mrf.mxu0
      %v837 = vadd.f32 %v356, %v836
      %v838 = vpop.f32.mrf.mxu0
      %v839 = vadd.f32 %v356, %v838
      %840 = vmatmul.bf16.gmra.mxu0 %v600
      %v841 = vpop.f32.mrf.mxu0
      %v842 = vadd.f32 %v356, %v841
      %v843 = vpop.f32.mrf.mxu0
      %v844 = vadd.f32 %v356, %v843
      %845 = vmatmul.bf16.gmra.mxu0 %v601
      %v846 = vpop.f32.mrf.mxu0
      %v847 = vadd.f32 %v356, %v846
      %v848 = vpop.f32.mrf.mxu0
      %v849 = vadd.f32 %v356, %v848
      %850 = vmatmul.bf16.gmra.mxu0 %v602
      %v851 = vpop.f32.mrf.mxu0
      %v852 = vadd.f32 %v356, %v851
      %v853 = vpop.f32.mrf.mxu0
      %v854 = vadd.f32 %v356, %v853
      %855 = vmatmul.bf16.gmra.mxu0 %v603
      %v856 = vpop.f32.mrf.mxu0
      %v857 = vadd.f32 %v356, %v856
      %v858 = vpop.f32.mrf.mxu0
      %v859 = vadd.f32 %v356, %v858
      %860 = vmatmul.bf16.gmra.mxu0 %v604
      %v861 = vpop.f32.mrf.mxu0
      %v862 = vadd.f32 %v356, %v861
      %v863 = vpop.f32.mrf.mxu0
      %v864 = vadd.f32 %v356, %v863
      %865 = vmatmul.bf16.gmra.mxu0 %v605
      %v866 = vpop.f32.mrf.mxu0
      %v867 = vadd.f32 %v356, %v866
      %v868 = vpop.f32.mrf.mxu0
      %v869 = vadd.f32 %v356, %v868
      %870 = vmatmul.bf16.gmra.mxu0 %v606
      %v871 = vpop.f32.mrf.mxu0
      %v872 = vadd.f32 %v356, %v871
      %v873 = vpop.f32.mrf.mxu0
      %v874 = vadd.f32 %v356, %v873
      %875 = vmatmul.bf16.gmra.mxu0 %v607
      %v876 = vpop.f32.mrf.mxu0
      %v877 = vadd.f32 %v356, %v876
      %v878 = vpop.f32.mrf.mxu0
      %v879 = vadd.f32 %v356, %v878
      %880 = vmatmul.bf16.gmra.mxu0 %v608
      %v881 = vpop.f32.mrf.mxu0
      %v882 = vadd.f32 %v356, %v881
      %v883 = vpop.f32.mrf.mxu0
      %v884 = vadd.f32 %v356, %v883
      %885 = vmatmul.bf16.gmra.mxu0 %v609
      %v886 = vpop.f32.mrf.mxu0
      %v887 = vadd.f32 %v356, %v886
      %v888 = vpop.f32.mrf.mxu0
      %v889 = vadd.f32 %v356, %v888
      %890 = vmatmul.bf16.gmra.mxu0 %v610
      %v891 = vpop.f32.mrf.mxu0
      %v892 = vadd.f32 %v356, %v891
      %v893 = vpop.f32.mrf.mxu0
      %v894 = vadd.f32 %v356, %v893
      %895 = vmatmul.bf16.gmra.mxu0 %v611
      %v896 = vpop.f32.mrf.mxu0
      %v897 = vadd.f32 %v356, %v896
      %v898 = vpop.f32.mrf.mxu0
      %v899 = vadd.f32 %v356, %v898
      %900 = vmatmul.bf16.gmra.mxu0 %v612
      %v901 = vpop.f32.mrf.mxu0
      %v902 = vadd.f32 %v356, %v901
      %v903 = vpop.f32.mrf.mxu0
      %v904 = vadd.f32 %v356, %v903
      %905 = vmatmul.bf16.gmra.mxu0 %v613
      %v906 = vpop.f32.mrf.mxu0
      %v907 = vadd.f32 %v356, %v906
      %v908 = vpop.f32.mrf.mxu0
      %v909 = vadd.f32 %v356, %v908
      %910 = vmatmul.bf16.gmra.mxu0 %v614
      %v911 = vpop.f32.mrf.mxu0
      %v912 = vadd.f32 %v356, %v911
      %v913 = vpop.f32.mrf.mxu0
      %v914 = vadd.f32 %v356, %v913
      %915 = vmatmul.bf16.gmra.mxu0 %v615
      %v916 = vpop.f32.mrf.mxu0
      %v917 = vadd.f32 %v356, %v916
      %v918 = vpop.f32.mrf.mxu0
      %v919 = vadd.f32 %v356, %v918
      %920 = vmatmul.bf16.gmra.mxu0 %v616
      %v921 = vpop.f32.mrf.mxu0
      %v922 = vadd.f32 %v356, %v921
      %v923 = vpop.f32.mrf.mxu0
      %v924 = vadd.f32 %v356, %v923
      %925 = vmatmul.bf16.gmra.mxu0 %v617
      %v926 = vpop.f32.mrf.mxu0
      %v927 = vadd.f32 %v356, %v926
      %v928 = vpop.f32.mrf.mxu0
      %v929 = vadd.f32 %v356, %v928
      %930 = vmatmul.bf16.gmra.mxu0 %v618
      %v931 = vpop.f32.mrf.mxu0
      %v932 = vadd.f32 %v356, %v931
      %v933 = vpop.f32.mrf.mxu0
      %v934 = vadd.f32 %v356, %v933
      %935 = vmatmul.bf16.gmra.mxu0 %v619
      %v936 = vpop.f32.mrf.mxu0
      %v937 = vadd.f32 %v356, %v936
      %v938 = vpop.f32.mrf.mxu0
      %v939 = vadd.f32 %v356, %v938
      %940 = vmatmul.bf16.gmra.mxu0 %v620
      %v941 = vpop.f32.mrf.mxu0
      %v942 = vadd.f32 %v356, %v941
      %v943 = vpop.f32.mrf.mxu0
      %v944 = vadd.f32 %v356, %v943
      %945 = vmatmul.bf16.gmra.mxu0 %v621
      %v946 = vpop.f32.mrf.mxu0
      %v947 = vadd.f32 %v356, %v946
      %v948 = vpop.f32.mrf.mxu0
      %v949 = vadd.f32 %v356, %v948
      %950 = vmatmul.bf16.gmra.mxu0 %v622
      %v951 = vpop.f32.mrf.mxu0
      %v952 = vadd.f32 %v356, %v951
      %v953 = vpop.f32.mrf.mxu0
      %v954 = vadd.f32 %v356, %v953
      %955 = vmatmul.bf16.gmra.mxu0 %v623
      %v956 = vpop.f32.mrf.mxu0
      %v957 = vadd.f32 %v356, %v956
      %v958 = vpop.f32.mrf.mxu0
      %v959 = vadd.f32 %v356, %v958
      %960 = vmatmul.bf16.gmra.mxu0 %v624
      %v961 = vpop.f32.mrf.mxu0
      %v962 = vadd.f32 %v356, %v961
      %v963 = vpop.f32.mrf.mxu0
      %v964 = vadd.f32 %v356, %v963
      %965 = vmatmul.bf16.gmra.mxu0 %v625
      %v966 = vpop.f32.mrf.mxu0
      %v967 = vadd.f32 %v356, %v966
      %v968 = vpop.f32.mrf.mxu0
      %v969 = vadd.f32 %v356, %v968
      %970 = vmatmul.bf16.gmra.mxu0 %v626
      %v971 = vpop.f32.mrf.mxu0
      %v972 = vadd.f32 %v356, %v971
      %v973 = vpop.f32.mrf.mxu0
      %v974 = vadd.f32 %v356, %v973
      %975 = vmatmul.bf16.gmra.mxu0 %v627
      %v976 = vpop.f32.mrf.mxu0
      %v977 = vadd.f32 %v356, %v976
      %v978 = vpop.f32.mrf.mxu0
      %v979 = vadd.f32 %v356, %v978
      %980 = vmatmul.bf16.gmra.mxu0 %v628
      %v981 = vpop.f32.mrf.mxu0
      %v982 = vadd.f32 %v356, %v981
      %v983 = vpop.f32.mrf.mxu0
      %v984 = vadd.f32 %v356, %v983
      %985 = vmatmul.bf16.gmra.mxu0 %v629
      %v986 = vpop.f32.mrf.mxu0
      %v987 = vadd.f32 %v356, %v986
      %v988 = vpop.f32.mrf.mxu0
      %v989 = vadd.f32 %v356, %v988
      %990 = vmatmul.bf16.gmra.mxu0 %v630
      %v991 = vpop.f32.mrf.mxu0
      %v992 = vadd.f32 %v356, %v991
      %v993 = vpop.f32.mrf.mxu0
      %v994 = vadd.f32 %v356, %v993
      %995 = vmatmul.bf16.gmra.mxu0 %v631
      %v996 = vpop.f32.mrf.mxu0
      %v997 = vadd.f32 %v356, %v996
      %v998 = vpop.f32.mrf.mxu0
      %v999 = vadd.f32 %v356, %v998
      %1000 = vmatmul.bf16.gmra.mxu0 %v632
      %v1001 = vpop.f32.mrf.mxu0
      %v1002 = vadd.f32 %v356, %v1001
      %v1003 = vpop.f32.mrf.mxu0
      %v1004 = vadd.f32 %v356, %v1003
      %1005 = vmatmul.bf16.gmra.mxu0 %v633
      %v1006 = vpop.f32.mrf.mxu0
      %v1007 = vadd.f32 %v356, %v1006
      %v1008 = vpop.f32.mrf.mxu0
      %v1009 = vadd.f32 %v356, %v1008
      %1010 = vmatmul.bf16.gmra.mxu0 %v634
      %v1011 = vpop.f32.mrf.mxu0
      %v1012 = vadd.f32 %v356, %v1011
      %v1013 = vpop.f32.mrf.mxu0
      %v1014 = vadd.f32 %v356, %v1013
      %1015 = vmatmul.bf16.gmra.mxu0 %v635
      %v1016 = vpop.f32.mrf.mxu0
      %v1017 = vadd.f32 %v356, %v1016
      %v1018 = vpop.f32.mrf.mxu0
      %v1019 = vadd.f32 %v356, %v1018
      %1020 = vmatmul.bf16.gmra.mxu0 %v636
      %v1021 = vpop.f32.mrf.mxu0
      %v1022 = vadd.f32 %v356, %v1021
      %v1023 = vpop.f32.mrf.mxu0
      %v1024 = vadd.f32 %v356, %v1023
      %1025 = vmatmul.bf16.gmra.mxu0 %v637
      %v1026 = vpop.f32.mrf.mxu0
      %v1027 = vadd.f32 %v356, %v1026
      %v1028 = vpop.f32.mrf.mxu0
      %v1029 = vadd.f32 %v356, %v1028
      %1030 = vdwg.mxu0
      %v1031 = vmax.f32 %v752, 0.0
      %v1032 = vmax.f32 %v754, 0.0
      %v1033 = vmax.f32 %v757, 0.0
      %v1034 = vmax.f32 %v759, 0.0
      %v1035 = vmax.f32 %v762, 0.0
      %v1036 = vmax.f32 %v764, 0.0
      %v1037 = vmax.f32 %v767, 0.0
      %v1038 = vmax.f32 %v769, 0.0
      %v1039 = vmax.f32 %v772, 0.0
      %v1040 = vmax.f32 %v774, 0.0
      %v1041 = vmax.f32 %v777, 0.0
      %v1042 = vmax.f32 %v779, 0.0
      %v1043 = vmax.f32 %v782, 0.0
      %v1044 = vmax.f32 %v784, 0.0
      %v1045 = vmax.f32 %v787, 0.0
      %v1046 = vmax.f32 %v789, 0.0
      %v1047 = vmax.f32 %v792, 0.0
      %v1048 = vmax.f32 %v794, 0.0
      %v1049 = vmax.f32 %v797, 0.0
      %v1050 = vmax.f32 %v799, 0.0
      %v1051 = vmax.f32 %v802, 0.0
      %v1052 = vmax.f32 %v804, 0.0
      %v1053 = vmax.f32 %v807, 0.0
      %v1054 = vmax.f32 %v809, 0.0
      %v1055 = vmax.f32 %v812, 0.0
      %v1056 = vmax.f32 %v814, 0.0
      %v1057 = vmax.f32 %v817, 0.0
      %v1058 = vmax.f32 %v819, 0.0
      %v1059 = vmax.f32 %v822, 0.0
      %v1060 = vmax.f32 %v824, 0.0
      %v1061 = vmax.f32 %v827, 0.0
      %v1062 = vmax.f32 %v829, 0.0
      %v1063 = vmax.f32 %v832, 0.0
      %v1064 = vmax.f32 %v834, 0.0
      %v1065 = vmax.f32 %v837, 0.0
      %v1066 = vmax.f32 %v839, 0.0
      %v1067 = vmax.f32 %v842, 0.0
      %v1068 = vmax.f32 %v844, 0.0
      %v1069 = vmax.f32 %v847, 0.0
      %v1070 = vmax.f32 %v849, 0.0
      %v1071 = vmax.f32 %v852, 0.0
      %v1072 = vmax.f32 %v854, 0.0
      %v1073 = vmax.f32 %v857, 0.0
      %v1074 = vmax.f32 %v859, 0.0
      %v1075 = vmax.f32 %v862, 0.0
      %v1076 = vmax.f32 %v864, 0.0
      %v1077 = vmax.f32 %v867, 0.0
      %v1078 = vmax.f32 %v869, 0.0
      %v1079 = vmax.f32 %v872, 0.0
      %v1080 = vmax.f32 %v874, 0.0
      %v1081 = vmax.f32 %v877, 0.0
      %v1082 = vmax.f32 %v879, 0.0
      %v1083 = vmax.f32 %v882, 0.0
      %v1084 = vmax.f32 %v884, 0.0
      %v1085 = vmax.f32 %v887, 0.0
      %v1086 = vmax.f32 %v889, 0.0
      %v1087 = vmax.f32 %v892, 0.0
      %v1088 = vmax.f32 %v894, 0.0
      %v1089 = vmax.f32 %v897, 0.0
      %v1090 = vmax.f32 %v899, 0.0
      %v1091 = vmax.f32 %v902, 0.0
      %v1092 = vmax.f32 %v904, 0.0
      %v1093 = vmax.f32 %v907, 0.0
      %v1094 = vmax.f32 %v909, 0.0
      %v1095 = vmax.f32 %v912, 0.0
      %v1096 = vmax.f32 %v914, 0.0
      %v1097 = vmax.f32 %v917, 0.0
      %v1098 = vmax.f32 %v919, 0.0
      %v1099 = vmax.f32 %v922, 0.0
      %v1100 = vmax.f32 %v924, 0.0
      %v1101 = vmax.f32 %v927, 0.0
      %v1102 = vmax.f32 %v929, 0.0
      %v1103 = vmax.f32 %v932, 0.0
      %v1104 = vmax.f32 %v934, 0.0
      %v1105 = vmax.f32 %v937, 0.0
      %v1106 = vmax.f32 %v939, 0.0
      %v1107 = vmax.f32 %v942, 0.0
      %v1108 = vmax.f32 %v944, 0.0
      %v1109 = vmax.f32 %v947, 0.0
      %v1110 = vmax.f32 %v949, 0.0
      %v1111 = vmax.f32 %v952, 0.0
      %v1112 = vmax.f32 %v954, 0.0
      %v1113 = vmax.f32 %v957, 0.0
      %v1114 = vmax.f32 %v959, 0.0
      %v1115 = vmax.f32 %v962, 0.0
      %v1116 = vmax.f32 %v964, 0.0
      %v1117 = vmax.f32 %v967, 0.0
      %v1118 = vmax.f32 %v969, 0.0
      %v1119 = vmax.f32 %v972, 0.0
      %v1120 = vmax.f32 %v974, 0.0
      %v1121 = vmax.f32 %v977, 0.0
      %v1122 = vmax.f32 %v979, 0.0
      %v1123 = vmax.f32 %v982, 0.0
      %v1124 = vmax.f32 %v984, 0.0
      %v1125 = vmax.f32 %v987, 0.0
      %v1126 = vmax.f32 %v989, 0.0
      %v1127 = vmax.f32 %v992, 0.0
      %v1128 = vmax.f32 %v994, 0.0
      %v1129 = vmax.f32 %v997, 0.0
      %v1130 = vmax.f32 %v999, 0.0
      %v1131 = vmax.f32 %v1002, 0.0
      %v1132 = vmax.f32 %v1004, 0.0
      %v1133 = vmax.f32 %v1007, 0.0
      %v1134 = vmax.f32 %v1009, 0.0
      %v1135 = vmax.f32 %v1012, 0.0
      %v1136 = vmax.f32 %v1014, 0.0
      %v1137 = vmax.f32 %v1017, 0.0
      %v1138 = vmax.f32 %v1019, 0.0
      %v1139 = vmax.f32 %v1022, 0.0
      %v1140 = vmax.f32 %v1024, 0.0
      %v1141 = vmax.f32 %v1027, 0.0
      %v1142 = vmax.f32 %v1029, 0.0
      %vm1143 = vcmask 261120
      %1144 = vst.msk [vmem:[#allocation2] sm:$0xff] %vm1143, %v1031
      %1145 = vst.msk [vmem:[#allocation2 + $0x8] sm:$0xff] %vm1143, %v1032
      %1146 = vst.msk [vmem:[#allocation2 + $0x10] sm:$0xff] %vm1143, %v1033
      %1147 = vst.msk [vmem:[#allocation2 + $0x18] sm:$0xff] %vm1143, %v1034
      %1148 = vst.msk [vmem:[#allocation2 + $0x20] sm:$0xff] %vm1143, %v1035
      %1149 = vst.msk [vmem:[#allocation2 + $0x28] sm:$0xff] %vm1143, %v1036
      %1150 = vst.msk [vmem:[#allocation2 + $0x30] sm:$0xff] %vm1143, %v1037
      %1151 = vst.msk [vmem:[#allocation2 + $0x38] sm:$0xff] %vm1143, %v1038
      %1152 = vst.msk [vmem:[#allocation2 + $0x40] sm:$0xff] %vm1143, %v1039
      %1153 = vst.msk [vmem:[#allocation2 + $0x48] sm:$0xff] %vm1143, %v1040
      %1154 = vst.msk [vmem:[#allocation2 + $0x50] sm:$0xff] %vm1143, %v1041
      %1155 = vst.msk [vmem:[#allocation2 + $0x58] sm:$0xff] %vm1143, %v1042
      %1156 = vst.msk [vmem:[#allocation2 + $0x60] sm:$0xff] %vm1143, %v1043
      %1157 = vst.msk [vmem:[#allocation2 + $0x68] sm:$0xff] %vm1143, %v1044
      %1158 = vst.msk [vmem:[#allocation2 + $0x70] sm:$0xff] %vm1143, %v1045
      %1159 = vst.msk [vmem:[#allocation2 + $0x78] sm:$0xff] %vm1143, %v1046
      %1160 = vst.msk [vmem:[#allocation2 + $0x80] sm:$0xff] %vm1143, %v1047
      %1161 = vst.msk [vmem:[#allocation2 + $0x88] sm:$0xff] %vm1143, %v1048
      %1162 = vst.msk [vmem:[#allocation2 + $0x90] sm:$0xff] %vm1143, %v1049
      %1163 = vst.msk [vmem:[#allocation2 + $0x98] sm:$0xff] %vm1143, %v1050
      %1164 = vst.msk [vmem:[#allocation2 + $0xa0] sm:$0xff] %vm1143, %v1051
      %1165 = vst.msk [vmem:[#allocation2 + $0xa8] sm:$0xff] %vm1143, %v1052
      %1166 = vst.msk [vmem:[#allocation2 + $0xb0] sm:$0xff] %vm1143, %v1053
      %1167 = vst.msk [vmem:[#allocation2 + $0xb8] sm:$0xff] %vm1143, %v1054
      %1168 = vst.msk [vmem:[#allocation2 + $0xc0] sm:$0xff] %vm1143, %v1055
      %1169 = vst.msk [vmem:[#allocation2 + $0xc8] sm:$0xff] %vm1143, %v1056
      %1170 = vst.msk [vmem:[#allocation2 + $0xd0] sm:$0xff] %vm1143, %v1057
      %1171 = vst.msk [vmem:[#allocation2 + $0xd8] sm:$0xff] %vm1143, %v1058
      %1172 = vst.msk [vmem:[#allocation2 + $0xe0] sm:$0xff] %vm1143, %v1059
      %1173 = vst.msk [vmem:[#allocation2 + $0xe8] sm:$0xff] %vm1143, %v1060
      %1174 = vst.msk [vmem:[#allocation2 + $0xf0] sm:$0xff] %vm1143, %v1061
      %1175 = vst.msk [vmem:[#allocation2 + $0xf8] sm:$0xff] %vm1143, %v1062
      %1176 = vst.msk [vmem:[#allocation2 + $0x100] sm:$0xff] %vm1143, %v1063
      %1177 = vst.msk [vmem:[#allocation2 + $0x108] sm:$0xff] %vm1143, %v1064
      %1178 = vst.msk [vmem:[#allocation2 + $0x110] sm:$0xff] %vm1143, %v1065
      %1179 = vst.msk [vmem:[#allocation2 + $0x118] sm:$0xff] %vm1143, %v1066
      %1180 = vst.msk [vmem:[#allocation2 + $0x120] sm:$0xff] %vm1143, %v1067
      %1181 = vst.msk [vmem:[#allocation2 + $0x128] sm:$0xff] %vm1143, %v1068
      %1182 = vst.msk [vmem:[#allocation2 + $0x130] sm:$0xff] %vm1143, %v1069
      %1183 = vst.msk [vmem:[#allocation2 + $0x138] sm:$0xff] %vm1143, %v1070
      %1184 = vst.msk [vmem:[#allocation2 + $0x140] sm:$0xff] %vm1143, %v1071
      %1185 = vst.msk [vmem:[#allocation2 + $0x148] sm:$0xff] %vm1143, %v1072
      %1186 = vst.msk [vmem:[#allocation2 + $0x150] sm:$0xff] %vm1143, %v1073
      %1187 = vst.msk [vmem:[#allocation2 + $0x158] sm:$0xff] %vm1143, %v1074
      %1188 = vst.msk [vmem:[#allocation2 + $0x160] sm:$0xff] %vm1143, %v1075
      %1189 = vst.msk [vmem:[#allocation2 + $0x168] sm:$0xff] %vm1143, %v1076
      %1190 = vst.msk [vmem:[#allocation2 + $0x170] sm:$0xff] %vm1143, %v1077
      %1191 = vst.msk [vmem:[#allocation2 + $0x178] sm:$0xff] %vm1143, %v1078
      %1192 = vst.msk [vmem:[#allocation2 + $0x180] sm:$0xff] %vm1143, %v1079
      %1193 = vst.msk [vmem:[#allocation2 + $0x188] sm:$0xff] %vm1143, %v1080
      %1194 = vst.msk [vmem:[#allocation2 + $0x190] sm:$0xff] %vm1143, %v1081
      %1195 = vst.msk [vmem:[#allocation2 + $0x198] sm:$0xff] %vm1143, %v1082
      %1196 = vst.msk [vmem:[#allocation2 + $0x1a0] sm:$0xff] %vm1143, %v1083
      %1197 = vst.msk [vmem:[#allocation2 + $0x1a8] sm:$0xff] %vm1143, %v1084
      %1198 = vst.msk [vmem:[#allocation2 + $0x1b0] sm:$0xff] %vm1143, %v1085
      %1199 = vst.msk [vmem:[#allocation2 + $0x1b8] sm:$0xff] %vm1143, %v1086
      %1200 = vst.msk [vmem:[#allocation2 + $0x1c0] sm:$0xff] %vm1143, %v1087
      %1201 = vst.msk [vmem:[#allocation2 + $0x1c8] sm:$0xff] %vm1143, %v1088
      %1202 = vst.msk [vmem:[#allocation2 + $0x1d0] sm:$0xff] %vm1143, %v1089
      %1203 = vst.msk [vmem:[#allocation2 + $0x1d8] sm:$0xff] %vm1143, %v1090
      %1204 = vst.msk [vmem:[#allocation2 + $0x1e0] sm:$0xff] %vm1143, %v1091
      %1205 = vst.msk [vmem:[#allocation2 + $0x1e8] sm:$0xff] %vm1143, %v1092
      %1206 = vst.msk [vmem:[#allocation2 + $0x1f0] sm:$0xff] %vm1143, %v1093
      %1207 = vst.msk [vmem:[#allocation2 + $0x1f8] sm:$0xff] %vm1143, %v1094
      %1208 = vst.msk [vmem:[#allocation2 + $0x200] sm:$0xff] %vm1143, %v1095
      %1209 = vst.msk [vmem:[#allocation2 + $0x208] sm:$0xff] %vm1143, %v1096
      %1210 = vst.msk [vmem:[#allocation2 + $0x210] sm:$0xff] %vm1143, %v1097
      %1211 = vst.msk [vmem:[#allocation2 + $0x218] sm:$0xff] %vm1143, %v1098
      %1212 = vst.msk [vmem:[#allocation2 + $0x220] sm:$0xff] %vm1143, %v1099
      %1213 = vst.msk [vmem:[#allocation2 + $0x228] sm:$0xff] %vm1143, %v1100
      %1214 = vst.msk [vmem:[#allocation2 + $0x230] sm:$0xff] %vm1143, %v1101
      %1215 = vst.msk [vmem:[#allocation2 + $0x238] sm:$0xff] %vm1143, %v1102
      %1216 = vst.msk [vmem:[#allocation2 + $0x240] sm:$0xff] %vm1143, %v1103
      %1217 = vst.msk [vmem:[#allocation2 + $0x248] sm:$0xff] %vm1143, %v1104
      %1218 = vst.msk [vmem:[#allocation2 + $0x250] sm:$0xff] %vm1143, %v1105
      %1219 = vst.msk [vmem:[#allocation2 + $0x258] sm:$0xff] %vm1143, %v1106
      %1220 = vst.msk [vmem:[#allocation2 + $0x260] sm:$0xff] %vm1143, %v1107
      %1221 = vst.msk [vmem:[#allocation2 + $0x268] sm:$0xff] %vm1143, %v1108
      %1222 = vst.msk [vmem:[#allocation2 + $0x270] sm:$0xff] %vm1143, %v1109
      %1223 = vst.msk [vmem:[#allocation2 + $0x278] sm:$0xff] %vm1143, %v1110
      %1224 = vst.msk [vmem:[#allocation2 + $0x280] sm:$0xff] %vm1143, %v1111
      %1225 = vst.msk [vmem:[#allocation2 + $0x288] sm:$0xff] %vm1143, %v1112
      %1226 = vst.msk [vmem:[#allocation2 + $0x290] sm:$0xff] %vm1143, %v1113
      %1227 = vst.msk [vmem:[#allocation2 + $0x298] sm:$0xff] %vm1143, %v1114
      %1228 = vst.msk [vmem:[#allocation2 + $0x2a0] sm:$0xff] %vm1143, %v1115
      %1229 = vst.msk [vmem:[#allocation2 + $0x2a8] sm:$0xff] %vm1143, %v1116
      %1230 = vst.msk [vmem:[#allocation2 + $0x2b0] sm:$0xff] %vm1143, %v1117
      %1231 = vst.msk [vmem:[#allocation2 + $0x2b8] sm:$0xff] %vm1143, %v1118
      %1232 = vst.msk [vmem:[#allocation2 + $0x2c0] sm:$0xff] %vm1143, %v1119
      %1233 = vst.msk [vmem:[#allocation2 + $0x2c8] sm:$0xff] %vm1143, %v1120
      %1234 = vst.msk [vmem:[#allocation2 + $0x2d0] sm:$0xff] %vm1143, %v1121
      %1235 = vst.msk [vmem:[#allocation2 + $0x2d8] sm:$0xff] %vm1143, %v1122
      %1236 = vst.msk [vmem:[#allocation2 + $0x2e0] sm:$0xff] %vm1143, %v1123
      %1237 = vst.msk [vmem:[#allocation2 + $0x2e8] sm:$0xff] %vm1143, %v1124
      %1238 = vst.msk [vmem:[#allocation2 + $0x2f0] sm:$0xff] %vm1143, %v1125
      %1239 = vst.msk [vmem:[#allocation2 + $0x2f8] sm:$0xff] %vm1143, %v1126
      %1240 = vst.msk [vmem:[#allocation2 + $0x300] sm:$0xff] %vm1143, %v1127
      %1241 = vst.msk [vmem:[#allocation2 + $0x308] sm:$0xff] %vm1143, %v1128
      %1242 = vst.msk [vmem:[#allocation2 + $0x310] sm:$0xff] %vm1143, %v1129
      %1243 = vst.msk [vmem:[#allocation2 + $0x318] sm:$0xff] %vm1143, %v1130
      %1244 = vst.msk [vmem:[#allocation2 + $0x320] sm:$0xff] %vm1143, %v1131
      %1245 = vst.msk [vmem:[#allocation2 + $0x328] sm:$0xff] %vm1143, %v1132
      %1246 = vst.msk [vmem:[#allocation2 + $0x330] sm:$0xff] %vm1143, %v1133
      %1247 = vst.msk [vmem:[#allocation2 + $0x338] sm:$0xff] %vm1143, %v1134
      %1248 = vst.msk [vmem:[#allocation2 + $0x340] sm:$0xff] %vm1143, %v1135
      %1249 = vst.msk [vmem:[#allocation2 + $0x348] sm:$0xff] %vm1143, %v1136
      %1250 = vst.msk [vmem:[#allocation2 + $0x350] sm:$0xff] %vm1143, %v1137
      %1251 = vst.msk [vmem:[#allocation2 + $0x358] sm:$0xff] %vm1143, %v1138
      %1252 = vst.msk [vmem:[#allocation2 + $0x360] sm:$0xff] %vm1143, %v1139
      %1253 = vst.msk [vmem:[#allocation2 + $0x368] sm:$0xff] %vm1143, %v1140
      %1254 = vst.msk [vmem:[#allocation2 + $0x370] sm:$0xff] %vm1143, %v1141
      %1255 = vst.msk [vmem:[#allocation2 + $0x378] sm:$0xff] %vm1143, %v1142
      %v1256 = vld [vmem:[#allocation2] ss:$2 sm:$0xff]
      %s1257 = scalar_lea.vmem [#allocation2], 16
      %v1258 = vld [vmem:[%s1257] ss:$2 sm:$0xff]
      %s1259 = scalar_lea.vmem [#allocation2], 32
      %v1260 = vld [vmem:[%s1259] ss:$2 sm:$0xff]
      %s1261 = scalar_lea.vmem [#allocation2], 48
      %v1262 = vld [vmem:[%s1261] ss:$2 sm:$0xff]
      %s1263 = scalar_lea.vmem [#allocation2], 64
      %v1264 = vld [vmem:[%s1263] ss:$2 sm:$0xff]
      %s1265 = scalar_lea.vmem [#allocation2], 80
      %v1266 = vld [vmem:[%s1265] ss:$2 sm:$0xff]
      %s1267 = scalar_lea.vmem [#allocation2], 96
      %v1268 = vld [vmem:[%s1267] ss:$2 sm:$0xff]
      %s1269 = scalar_lea.vmem [#allocation2], 112
      %v1270 = vld [vmem:[%s1269] ss:$2 sm:$0xff]
      %s1271 = scalar_lea.vmem [#allocation2], 128
      %v1272 = vld [vmem:[%s1271] ss:$2 sm:$0xff]
      %s1273 = scalar_lea.vmem [#allocation2], 144
      %v1274 = vld [vmem:[%s1273] ss:$2 sm:$0xff]
      %s1275 = scalar_lea.vmem [#allocation2], 160
      %v1276 = vld [vmem:[%s1275] ss:$2 sm:$0xff]
      %s1277 = scalar_lea.vmem [#allocation2], 176
      %v1278 = vld [vmem:[%s1277] ss:$2 sm:$0xff]
      %s1279 = scalar_lea.vmem [#allocation2], 192
      %v1280 = vld [vmem:[%s1279] ss:$2 sm:$0xff]
      %s1281 = scalar_lea.vmem [#allocation2], 208
      %v1282 = vld [vmem:[%s1281] ss:$2 sm:$0xff]
      %s1283 = scalar_lea.vmem [#allocation2], 224
      %v1284 = vld [vmem:[%s1283] ss:$2 sm:$0xff]
      %s1285 = scalar_lea.vmem [#allocation2], 240
      %v1286 = vld [vmem:[%s1285] ss:$2 sm:$0xff]
      %s1287 = scalar_lea.vmem [#allocation2], 256
      %v1288 = vld [vmem:[%s1287] ss:$2 sm:$0xff]
      %s1289 = scalar_lea.vmem [#allocation2], 272
      %v1290 = vld [vmem:[%s1289] ss:$2 sm:$0xff]
      %s1291 = scalar_lea.vmem [#allocation2], 288
      %v1292 = vld [vmem:[%s1291] ss:$2 sm:$0xff]
      %s1293 = scalar_lea.vmem [#allocation2], 304
      %v1294 = vld [vmem:[%s1293] ss:$2 sm:$0xff]
      %s1295 = scalar_lea.vmem [#allocation2], 320
      %v1296 = vld [vmem:[%s1295] ss:$2 sm:$0xff]
      %s1297 = scalar_lea.vmem [#allocation2], 336
      %v1298 = vld [vmem:[%s1297] ss:$2 sm:$0xff]
      %s1299 = scalar_lea.vmem [#allocation2], 352
      %v1300 = vld [vmem:[%s1299] ss:$2 sm:$0xff]
      %s1301 = scalar_lea.vmem [#allocation2], 368
      %v1302 = vld [vmem:[%s1301] ss:$2 sm:$0xff]
      %s1303 = scalar_lea.vmem [#allocation2], 384
      %v1304 = vld [vmem:[%s1303] ss:$2 sm:$0xff]
      %s1305 = scalar_lea.vmem [#allocation2], 400
      %v1306 = vld [vmem:[%s1305] ss:$2 sm:$0xff]
      %s1307 = scalar_lea.vmem [#allocation2], 416
      %v1308 = vld [vmem:[%s1307] ss:$2 sm:$0xff]
      %s1309 = scalar_lea.vmem [#allocation2], 432
      %v1310 = vld [vmem:[%s1309] ss:$2 sm:$0xff]
      %s1311 = scalar_lea.vmem [#allocation2], 448
      %v1312 = vld [vmem:[%s1311] ss:$2 sm:$0xff]
      %s1313 = scalar_lea.vmem [#allocation2], 464
      %v1314 = vld [vmem:[%s1313] ss:$2 sm:$0xff]
      %s1315 = scalar_lea.vmem [#allocation2], 480
      %v1316 = vld [vmem:[%s1315] ss:$2 sm:$0xff]
      %s1317 = scalar_lea.vmem [#allocation2], 496
      %v1318 = vld [vmem:[%s1317] ss:$2 sm:$0xff]
      %s1319 = scalar_lea.vmem [#allocation2], 512
      %v1320 = vld [vmem:[%s1319] ss:$2 sm:$0xff]
      %s1321 = scalar_lea.vmem [#allocation2], 528
      %v1322 = vld [vmem:[%s1321] ss:$2 sm:$0xff]
      %s1323 = scalar_lea.vmem [#allocation2], 544
      %v1324 = vld [vmem:[%s1323] ss:$2 sm:$0xff]
      %s1325 = scalar_lea.vmem [#allocation2], 560
      %v1326 = vld [vmem:[%s1325] ss:$2 sm:$0xff]
      %s1327 = scalar_lea.vmem [#allocation2], 576
      %v1328 = vld [vmem:[%s1327] ss:$2 sm:$0xff]
      %s1329 = scalar_lea.vmem [#allocation2], 592
      %v1330 = vld [vmem:[%s1329] ss:$2 sm:$0xff]
      %s1331 = scalar_lea.vmem [#allocation2], 608
      %v1332 = vld [vmem:[%s1331] ss:$2 sm:$0xff]
      %s1333 = scalar_lea.vmem [#allocation2], 624
      %v1334 = vld [vmem:[%s1333] ss:$2 sm:$0xff]
      %s1335 = scalar_lea.vmem [#allocation2], 640
      %v1336 = vld [vmem:[%s1335] ss:$2 sm:$0xff]
      %s1337 = scalar_lea.vmem [#allocation2], 656
      %v1338 = vld [vmem:[%s1337] ss:$2 sm:$0xff]
      %s1339 = scalar_lea.vmem [#allocation2], 672
      %v1340 = vld [vmem:[%s1339] ss:$2 sm:$0xff]
      %s1341 = scalar_lea.vmem [#allocation2], 688
      %v1342 = vld [vmem:[%s1341] ss:$2 sm:$0xff]
      %s1343 = scalar_lea.vmem [#allocation2], 704
      %v1344 = vld [vmem:[%s1343] ss:$2 sm:$0xff]
      %s1345 = scalar_lea.vmem [#allocation2], 720
      %v1346 = vld [vmem:[%s1345] ss:$2 sm:$0xff]
      %s1347 = scalar_lea.vmem [#allocation2], 736
      %v1348 = vld [vmem:[%s1347] ss:$2 sm:$0xff]
      %s1349 = scalar_lea.vmem [#allocation2], 752
      %v1350 = vld [vmem:[%s1349] ss:$2 sm:$0xff]
      %s1351 = scalar_lea.vmem [#allocation2], 768
      %v1352 = vld [vmem:[%s1351] ss:$2 sm:$0xff]
      %s1353 = scalar_lea.vmem [#allocation2], 784
      %v1354 = vld [vmem:[%s1353] ss:$2 sm:$0xff]
      %s1355 = scalar_lea.vmem [#allocation2], 800
      %v1356 = vld [vmem:[%s1355] ss:$2 sm:$0xff]
      %s1357 = scalar_lea.vmem [#allocation2], 816
      %v1358 = vld [vmem:[%s1357] ss:$2 sm:$0xff]
      %s1359 = scalar_lea.vmem [#allocation2], 832
      %v1360 = vld [vmem:[%s1359] ss:$2 sm:$0xff]
      %s1361 = scalar_lea.vmem [#allocation2], 848
      %v1362 = vld [vmem:[%s1361] ss:$2 sm:$0xff]
      %s1363 = scalar_lea.vmem [#allocation2], 864
      %v1364 = vld [vmem:[%s1363] ss:$2 sm:$0xff]
      %s1365 = scalar_lea.vmem [#allocation2], 880
      %v1366 = vld [vmem:[%s1365] ss:$2 sm:$0xff]
      %s1367 = scalar_lea.vmem [#allocation2], 1
      %v1368 = vld [vmem:[%s1367] ss:$2 sm:$0xff]
      %s1369 = scalar_lea.vmem [#allocation2], 17
      %v1370 = vld [vmem:[%s1369] ss:$2 sm:$0xff]
      %s1371 = scalar_lea.vmem [#allocation2], 33
      %v1372 = vld [vmem:[%s1371] ss:$2 sm:$0xff]
      %s1373 = scalar_lea.vmem [#allocation2], 49
      %v1374 = vld [vmem:[%s1373] ss:$2 sm:$0xff]
      %s1375 = scalar_lea.vmem [#allocation2], 65
      %v1376 = vld [vmem:[%s1375] ss:$2 sm:$0xff]
      %s1377 = scalar_lea.vmem [#allocation2], 81
      %v1378 = vld [vmem:[%s1377] ss:$2 sm:$0xff]
      %s1379 = scalar_lea.vmem [#allocation2], 97
      %v1380 = vld [vmem:[%s1379] ss:$2 sm:$0xff]
      %s1381 = scalar_lea.vmem [#allocation2], 113
      %v1382 = vld [vmem:[%s1381] ss:$2 sm:$0xff]
      %s1383 = scalar_lea.vmem [#allocation2], 129
      %v1384 = vld [vmem:[%s1383] ss:$2 sm:$0xff]
      %s1385 = scalar_lea.vmem [#allocation2], 145
      %v1386 = vld [vmem:[%s1385] ss:$2 sm:$0xff]
      %s1387 = scalar_lea.vmem [#allocation2], 161
      %v1388 = vld [vmem:[%s1387] ss:$2 sm:$0xff]
      %s1389 = scalar_lea.vmem [#allocation2], 177
      %v1390 = vld [vmem:[%s1389] ss:$2 sm:$0xff]
      %s1391 = scalar_lea.vmem [#allocation2], 193
      %v1392 = vld [vmem:[%s1391] ss:$2 sm:$0xff]
      %s1393 = scalar_lea.vmem [#allocation2], 209
      %v1394 = vld [vmem:[%s1393] ss:$2 sm:$0xff]
      %s1395 = scalar_lea.vmem [#allocation2], 225
      %v1396 = vld [vmem:[%s1395] ss:$2 sm:$0xff]
      %s1397 = scalar_lea.vmem [#allocation2], 241
      %v1398 = vld [vmem:[%s1397] ss:$2 sm:$0xff]
      %s1399 = scalar_lea.vmem [#allocation2], 257
      %v1400 = vld [vmem:[%s1399] ss:$2 sm:$0xff]
      %s1401 = scalar_lea.vmem [#allocation2], 273
      %v1402 = vld [vmem:[%s1401] ss:$2 sm:$0xff]
      %s1403 = scalar_lea.vmem [#allocation2], 289
      %v1404 = vld [vmem:[%s1403] ss:$2 sm:$0xff]
      %s1405 = scalar_lea.vmem [#allocation2], 305
      %v1406 = vld [vmem:[%s1405] ss:$2 sm:$0xff]
      %s1407 = scalar_lea.vmem [#allocation2], 321
      %v1408 = vld [vmem:[%s1407] ss:$2 sm:$0xff]
      %s1409 = scalar_lea.vmem [#allocation2], 337
      %v1410 = vld [vmem:[%s1409] ss:$2 sm:$0xff]
      %s1411 = scalar_lea.vmem [#allocation2], 353
      %v1412 = vld [vmem:[%s1411] ss:$2 sm:$0xff]
      %s1413 = scalar_lea.vmem [#allocation2], 369
      %v1414 = vld [vmem:[%s1413] ss:$2 sm:$0xff]
      %s1415 = scalar_lea.vmem [#allocation2], 385
      %v1416 = vld [vmem:[%s1415] ss:$2 sm:$0xff]
      %s1417 = scalar_lea.vmem [#allocation2], 401
      %v1418 = vld [vmem:[%s1417] ss:$2 sm:$0xff]
      %s1419 = scalar_lea.vmem [#allocation2], 417
      %v1420 = vld [vmem:[%s1419] ss:$2 sm:$0xff]
      %s1421 = scalar_lea.vmem [#allocation2], 433
      %v1422 = vld [vmem:[%s1421] ss:$2 sm:$0xff]
      %s1423 = scalar_lea.vmem [#allocation2], 449
      %v1424 = vld [vmem:[%s1423] ss:$2 sm:$0xff]
      %s1425 = scalar_lea.vmem [#allocation2], 465
      %v1426 = vld [vmem:[%s1425] ss:$2 sm:$0xff]
      %s1427 = scalar_lea.vmem [#allocation2], 481
      %v1428 = vld [vmem:[%s1427] ss:$2 sm:$0xff]
      %s1429 = scalar_lea.vmem [#allocation2], 497
      %v1430 = vld [vmem:[%s1429] ss:$2 sm:$0xff]
      %s1431 = scalar_lea.vmem [#allocation2], 513
      %v1432 = vld [vmem:[%s1431] ss:$2 sm:$0xff]
      %s1433 = scalar_lea.vmem [#allocation2], 529
      %v1434 = vld [vmem:[%s1433] ss:$2 sm:$0xff]
      %s1435 = scalar_lea.vmem [#allocation2], 545
      %v1436 = vld [vmem:[%s1435] ss:$2 sm:$0xff]
      %s1437 = scalar_lea.vmem [#allocation2], 561
      %v1438 = vld [vmem:[%s1437] ss:$2 sm:$0xff]
      %s1439 = scalar_lea.vmem [#allocation2], 577
      %v1440 = vld [vmem:[%s1439] ss:$2 sm:$0xff]
      %s1441 = scalar_lea.vmem [#allocation2], 593
      %v1442 = vld [vmem:[%s1441] ss:$2 sm:$0xff]
      %s1443 = scalar_lea.vmem [#allocation2], 609
      %v1444 = vld [vmem:[%s1443] ss:$2 sm:$0xff]
      %s1445 = scalar_lea.vmem [#allocation2], 625
      %v1446 = vld [vmem:[%s1445] ss:$2 sm:$0xff]
      %s1447 = scalar_lea.vmem [#allocation2], 641
      %v1448 = vld [vmem:[%s1447] ss:$2 sm:$0xff]
      %s1449 = scalar_lea.vmem [#allocation2], 657
      %v1450 = vld [vmem:[%s1449] ss:$2 sm:$0xff]
      %s1451 = scalar_lea.vmem [#allocation2], 673
      %v1452 = vld [vmem:[%s1451] ss:$2 sm:$0xff]
      %s1453 = scalar_lea.vmem [#allocation2], 689
      %v1454 = vld [vmem:[%s1453] ss:$2 sm:$0xff]
      %s1455 = scalar_lea.vmem [#allocation2], 705
      %v1456 = vld [vmem:[%s1455] ss:$2 sm:$0xff]
      %s1457 = scalar_lea.vmem [#allocation2], 721
      %v1458 = vld [vmem:[%s1457] ss:$2 sm:$0xff]
      %s1459 = scalar_lea.vmem [#allocation2], 737
      %v1460 = vld [vmem:[%s1459] ss:$2 sm:$0xff]
      %s1461 = scalar_lea.vmem [#allocation2], 753
      %v1462 = vld [vmem:[%s1461] ss:$2 sm:$0xff]
      %s1463 = scalar_lea.vmem [#allocation2], 769
      %v1464 = vld [vmem:[%s1463] ss:$2 sm:$0xff]
      %s1465 = scalar_lea.vmem [#allocation2], 785
      %v1466 = vld [vmem:[%s1465] ss:$2 sm:$0xff]
      %s1467 = scalar_lea.vmem [#allocation2], 801
      %v1468 = vld [vmem:[%s1467] ss:$2 sm:$0xff]
      %s1469 = scalar_lea.vmem [#allocation2], 817
      %v1470 = vld [vmem:[%s1469] ss:$2 sm:$0xff]
      %s1471 = scalar_lea.vmem [#allocation2], 833
      %v1472 = vld [vmem:[%s1471] ss:$2 sm:$0xff]
      %s1473 = scalar_lea.vmem [#allocation2], 849
      %v1474 = vld [vmem:[%s1473] ss:$2 sm:$0xff]
      %s1475 = scalar_lea.vmem [#allocation2], 865
      %v1476 = vld [vmem:[%s1475] ss:$2 sm:$0xff]
      %s1477 = scalar_lea.vmem [#allocation2], 881
      %v1478 = vld [vmem:[%s1477] ss:$2 sm:$0xff]
      %v1479 = vmax.f32 %v1256, %v1368
      %v1480 = vmax.f32 %v1258, %v1370
      %v1481 = vmax.f32 %v1260, %v1372
      %v1482 = vmax.f32 %v1262, %v1374
      %v1483 = vmax.f32 %v1264, %v1376
      %v1484 = vmax.f32 %v1266, %v1378
      %v1485 = vmax.f32 %v1268, %v1380
      %v1486 = vmax.f32 %v1270, %v1382
      %v1487 = vmax.f32 %v1272, %v1384
      %v1488 = vmax.f32 %v1274, %v1386
      %v1489 = vmax.f32 %v1276, %v1388
      %v1490 = vmax.f32 %v1278, %v1390
      %v1491 = vmax.f32 %v1280, %v1392
      %v1492 = vmax.f32 %v1282, %v1394
      %v1493 = vmax.f32 %v1284, %v1396
      %v1494 = vmax.f32 %v1286, %v1398
      %v1495 = vmax.f32 %v1288, %v1400
      %v1496 = vmax.f32 %v1290, %v1402
      %v1497 = vmax.f32 %v1292, %v1404
      %v1498 = vmax.f32 %v1294, %v1406
      %v1499 = vmax.f32 %v1296, %v1408
      %v1500 = vmax.f32 %v1298, %v1410
      %v1501 = vmax.f32 %v1300, %v1412
      %v1502 = vmax.f32 %v1302, %v1414
      %v1503 = vmax.f32 %v1304, %v1416
      %v1504 = vmax.f32 %v1306, %v1418
      %v1505 = vmax.f32 %v1308, %v1420
      %v1506 = vmax.f32 %v1310, %v1422
      %v1507 = vmax.f32 %v1312, %v1424
      %v1508 = vmax.f32 %v1314, %v1426
      %v1509 = vmax.f32 %v1316, %v1428
      %v1510 = vmax.f32 %v1318, %v1430
      %v1511 = vmax.f32 %v1320, %v1432
      %v1512 = vmax.f32 %v1322, %v1434
      %v1513 = vmax.f32 %v1324, %v1436
      %v1514 = vmax.f32 %v1326, %v1438
      %v1515 = vmax.f32 %v1328, %v1440
      %v1516 = vmax.f32 %v1330, %v1442
      %v1517 = vmax.f32 %v1332, %v1444
      %v1518 = vmax.f32 %v1334, %v1446
      %v1519 = vmax.f32 %v1336, %v1448
      %v1520 = vmax.f32 %v1338, %v1450
      %v1521 = vmax.f32 %v1340, %v1452
      %v1522 = vmax.f32 %v1342, %v1454
      %v1523 = vmax.f32 %v1344, %v1456
      %v1524 = vmax.f32 %v1346, %v1458
      %v1525 = vmax.f32 %v1348, %v1460
      %v1526 = vmax.f32 %v1350, %v1462
      %v1527 = vmax.f32 %v1352, %v1464
      %v1528 = vmax.f32 %v1354, %v1466
      %v1529 = vmax.f32 %v1356, %v1468
      %v1530 = vmax.f32 %v1358, %v1470
      %v1531 = vmax.f32 %v1360, %v1472
      %v1532 = vmax.f32 %v1362, %v1474
      %v1533 = vmax.f32 %v1364, %v1476
      %v1534 = vmax.f32 %v1366, %v1478
      %1535 = vst.msk [vmem:[#allocation3] sm:$0xff] %vm1143, %v1479
      %1536 = vst.msk [vmem:[#allocation3 + $0x8] sm:$0xff] %vm1143, %v1480
      %1537 = vst.msk [vmem:[#allocation3 + $0x10] sm:$0xff] %vm1143, %v1481
      %1538 = vst.msk [vmem:[#allocation3 + $0x18] sm:$0xff] %vm1143, %v1482
      %1539 = vst.msk [vmem:[#allocation3 + $0x20] sm:$0xff] %vm1143, %v1483
      %1540 = vst.msk [vmem:[#allocation3 + $0x28] sm:$0xff] %vm1143, %v1484
      %1541 = vst.msk [vmem:[#allocation3 + $0x30] sm:$0xff] %vm1143, %v1485
      %1542 = vst.msk [vmem:[#allocation3 + $0x38] sm:$0xff] %vm1143, %v1486
      %1543 = vst.msk [vmem:[#allocation3 + $0x40] sm:$0xff] %vm1143, %v1487
      %1544 = vst.msk [vmem:[#allocation3 + $0x48] sm:$0xff] %vm1143, %v1488
      %1545 = vst.msk [vmem:[#allocation3 + $0x50] sm:$0xff] %vm1143, %v1489
      %1546 = vst.msk [vmem:[#allocation3 + $0x58] sm:$0xff] %vm1143, %v1490
      %1547 = vst.msk [vmem:[#allocation3 + $0x60] sm:$0xff] %vm1143, %v1491
      %1548 = vst.msk [vmem:[#allocation3 + $0x68] sm:$0xff] %vm1143, %v1492
      %1549 = vst.msk [vmem:[#allocation3 + $0x70] sm:$0xff] %vm1143, %v1493
      %1550 = vst.msk [vmem:[#allocation3 + $0x78] sm:$0xff] %vm1143, %v1494
      %1551 = vst.msk [vmem:[#allocation3 + $0x80] sm:$0xff] %vm1143, %v1495
      %1552 = vst.msk [vmem:[#allocation3 + $0x88] sm:$0xff] %vm1143, %v1496
      %1553 = vst.msk [vmem:[#allocation3 + $0x90] sm:$0xff] %vm1143, %v1497
      %1554 = vst.msk [vmem:[#allocation3 + $0x98] sm:$0xff] %vm1143, %v1498
      %1555 = vst.msk [vmem:[#allocation3 + $0xa0] sm:$0xff] %vm1143, %v1499
      %1556 = vst.msk [vmem:[#allocation3 + $0xa8] sm:$0xff] %vm1143, %v1500
      %1557 = vst.msk [vmem:[#allocation3 + $0xb0] sm:$0xff] %vm1143, %v1501
      %1558 = vst.msk [vmem:[#allocation3 + $0xb8] sm:$0xff] %vm1143, %v1502
      %1559 = vst.msk [vmem:[#allocation3 + $0xc0] sm:$0xff] %vm1143, %v1503
      %1560 = vst.msk [vmem:[#allocation3 + $0xc8] sm:$0xff] %vm1143, %v1504
      %1561 = vst.msk [vmem:[#allocation3 + $0xd0] sm:$0xff] %vm1143, %v1505
      %1562 = vst.msk [vmem:[#allocation3 + $0xd8] sm:$0xff] %vm1143, %v1506
      %1563 = vst.msk [vmem:[#allocation3 + $0xe0] sm:$0xff] %vm1143, %v1507
      %1564 = vst.msk [vmem:[#allocation3 + $0xe8] sm:$0xff] %vm1143, %v1508
      %1565 = vst.msk [vmem:[#allocation3 + $0xf0] sm:$0xff] %vm1143, %v1509
      %1566 = vst.msk [vmem:[#allocation3 + $0xf8] sm:$0xff] %vm1143, %v1510
      %1567 = vst.msk [vmem:[#allocation3 + $0x100] sm:$0xff] %vm1143, %v1511
      %1568 = vst.msk [vmem:[#allocation3 + $0x108] sm:$0xff] %vm1143, %v1512
      %1569 = vst.msk [vmem:[#allocation3 + $0x110] sm:$0xff] %vm1143, %v1513
      %1570 = vst.msk [vmem:[#allocation3 + $0x118] sm:$0xff] %vm1143, %v1514
      %1571 = vst.msk [vmem:[#allocation3 + $0x120] sm:$0xff] %vm1143, %v1515
      %1572 = vst.msk [vmem:[#allocation3 + $0x128] sm:$0xff] %vm1143, %v1516
      %1573 = vst.msk [vmem:[#allocation3 + $0x130] sm:$0xff] %vm1143, %v1517
      %1574 = vst.msk [vmem:[#allocation3 + $0x138] sm:$0xff] %vm1143, %v1518
      %1575 = vst.msk [vmem:[#allocation3 + $0x140] sm:$0xff] %vm1143, %v1519
      %1576 = vst.msk [vmem:[#allocation3 + $0x148] sm:$0xff] %vm1143, %v1520
      %1577 = vst.msk [vmem:[#allocation3 + $0x150] sm:$0xff] %vm1143, %v1521
      %1578 = vst.msk [vmem:[#allocation3 + $0x158] sm:$0xff] %vm1143, %v1522
      %1579 = vst.msk [vmem:[#allocation3 + $0x160] sm:$0xff] %vm1143, %v1523
      %1580 = vst.msk [vmem:[#allocation3 + $0x168] sm:$0xff] %vm1143, %v1524
      %1581 = vst.msk [vmem:[#allocation3 + $0x170] sm:$0xff] %vm1143, %v1525
      %1582 = vst.msk [vmem:[#allocation3 + $0x178] sm:$0xff] %vm1143, %v1526
      %1583 = vst.msk [vmem:[#allocation3 + $0x180] sm:$0xff] %vm1143, %v1527
      %1584 = vst.msk [vmem:[#allocation3 + $0x188] sm:$0xff] %vm1143, %v1528
      %1585 = vst.msk [vmem:[#allocation3 + $0x190] sm:$0xff] %vm1143, %v1529
      %1586 = vst.msk [vmem:[#allocation3 + $0x198] sm:$0xff] %vm1143, %v1530
      %1587 = vst.msk [vmem:[#allocation3 + $0x1a0] sm:$0xff] %vm1143, %v1531
      %1588 = vst.msk [vmem:[#allocation3 + $0x1a8] sm:$0xff] %vm1143, %v1532
      %1589 = vst.msk [vmem:[#allocation3 + $0x1b0] sm:$0xff] %vm1143, %v1533
      %1590 = vst.msk [vmem:[#allocation3 + $0x1b8] sm:$0xff] %vm1143, %v1534
      %1591 = vst.msk [vmem:[#allocation4] sm:$0xff] %vm1143, 0.0
      %1592 = vst.msk [vmem:[#allocation4 + $0x8] sm:$0xff] %vm1143, 0.0
      %1593 = vst.msk [vmem:[#allocation4 + $0x10] sm:$0xff] %vm1143, 0.0
      %1594 = vst.msk [vmem:[#allocation4 + $0x18] sm:$0xff] %vm1143, 0.0
      %1595 = vst.msk [vmem:[#allocation4 + $0x20] sm:$0xff] %vm1143, 0.0
      %1596 = vst.msk [vmem:[#allocation4 + $0x28] sm:$0xff] %vm1143, 0.0
      %1597 = vst.msk [vmem:[#allocation4 + $0x30] sm:$0xff] %vm1143, 0.0
      %1598 = vst.msk [vmem:[#allocation4 + $0x38] sm:$0xff] %vm1143, 0.0
      %1599 = vst.msk [vmem:[#allocation4 + $0x40] sm:$0xff] %vm1143, 0.0
      %1600 = vst.msk [vmem:[#allocation4 + $0x48] sm:$0xff] %vm1143, 0.0
      %1601 = vst.msk [vmem:[#allocation4 + $0x50] sm:$0xff] %vm1143, 0.0
      %1602 = vst.msk [vmem:[#allocation4 + $0x58] sm:$0xff] %vm1143, 0.0
      %1603 = vst.msk [vmem:[#allocation4 + $0x60] sm:$0xff] %vm1143, 0.0
      %1604 = vst.msk [vmem:[#allocation4 + $0x68] sm:$0xff] %vm1143, 0.0
      %1605 = vst.msk [vmem:[#allocation4 + $0x70] sm:$0xff] %vm1143, 0.0
      %1606 = vst.msk [vmem:[#allocation4 + $0x78] sm:$0xff] %vm1143, 0.0
      %1607 = vst.msk [vmem:[#allocation4 + $0x80] sm:$0xff] %vm1143, 0.0
      %1608 = vst.msk [vmem:[#allocation4 + $0x88] sm:$0xff] %vm1143, 0.0
      %1609 = vst.msk [vmem:[#allocation4 + $0x90] sm:$0xff] %vm1143, 0.0
      %1610 = vst.msk [vmem:[#allocation4 + $0x98] sm:$0xff] %vm1143, 0.0
      %1611 = vst.msk [vmem:[#allocation4 + $0xa0] sm:$0xff] %vm1143, 0.0
      %1612 = vst.msk [vmem:[#allocation4 + $0xa8] sm:$0xff] %vm1143, 0.0
      %1613 = vst.msk [vmem:[#allocation4 + $0xb0] sm:$0xff] %vm1143, 0.0
      %1614 = vst.msk [vmem:[#allocation4 + $0xb8] sm:$0xff] %vm1143, 0.0
      %1615 = vst.msk [vmem:[#allocation4 + $0xc0] sm:$0xff] %vm1143, 0.0
      %1616 = vst.msk [vmem:[#allocation4 + $0xc8] sm:$0xff] %vm1143, 0.0
      %1617 = vst.msk [vmem:[#allocation4 + $0xd0] sm:$0xff] %vm1143, 0.0
      %1618 = vst.msk [vmem:[#allocation4 + $0xd8] sm:$0xff] %vm1143, 0.0
      %1619 = vst.msk [vmem:[#allocation4 + $0xe0] sm:$0xff] %vm1143, 0.0
      %1620 = vst.msk [vmem:[#allocation4 + $0xe8] sm:$0xff] %vm1143, 0.0
      %1621 = vst.msk [vmem:[#allocation4 + $0xf0] sm:$0xff] %vm1143, 0.0
      %1622 = vst.msk [vmem:[#allocation4 + $0xf8] sm:$0xff] %vm1143, 0.0
      %1623 = vst.msk [vmem:[#allocation4 + $0x100] sm:$0xff] %vm1143, 0.0
      %1624 = vst.msk [vmem:[#allocation4 + $0x108] sm:$0xff] %vm1143, 0.0
      %1625 = vst.msk [vmem:[#allocation4 + $0x110] sm:$0xff] %vm1143, 0.0
      %1626 = vst.msk [vmem:[#allocation4 + $0x118] sm:$0xff] %vm1143, 0.0
      %1627 = vst.msk [vmem:[#allocation4 + $0x120] sm:$0xff] %vm1143, 0.0
      %1628 = vst.msk [vmem:[#allocation4 + $0x128] sm:$0xff] %vm1143, 0.0
      %1629 = vst.msk [vmem:[#allocation4 + $0x130] sm:$0xff] %vm1143, 0.0
      %1630 = vst.msk [vmem:[#allocation4 + $0x138] sm:$0xff] %vm1143, 0.0
      %1631 = vst.msk [vmem:[#allocation4 + $0x140] sm:$0xff] %vm1143, 0.0
      %1632 = vst.msk [vmem:[#allocation4 + $0x148] sm:$0xff] %vm1143, 0.0
      %v1633 = vld [vmem:[#allocation3] sm:$0xff]
      %v1634 = vld [vmem:[#allocation3 + $0x8] sm:$0xff]
      %v1635 = vld [vmem:[#allocation3 + $0x10] sm:$0xff]
      %v1636 = vld [vmem:[#allocation3 + $0x18] sm:$0xff]
      %v1637 = vmax.f32 %v1633, %v1635
      %v1638 = vmax.f32 %v1634, %v1636
      %1639 = vst.msk [vmem:[#allocation4 + $0x26] sm:$0xff] %vm1143, %v1637
      %vm1640 = vcmask 259072
      %1641 = vst.msk [vmem:[#allocation4 + $0x2e] sm:$0x3f] %vm1640, %v1638
      %v1642 = vld [vmem:[#allocation3 + $0x20] sm:$0xff]
      %v1643 = vld [vmem:[#allocation3 + $0x28] sm:$0xff]
      %v1644 = vld [vmem:[#allocation3 + $0x30] sm:$0xff]
      %v1645 = vld [vmem:[#allocation3 + $0x38] sm:$0xff]
      %v1646 = vmax.f32 %v1642, %v1644
      %v1647 = vmax.f32 %v1643, %v1645
      %1648 = vst.msk [vmem:[#allocation4 + $0x38] sm:$0xff] %vm1143, %v1646
      %1649 = vst.msk [vmem:[#allocation4 + $0x40] sm:$0x3f] %vm1640, %v1647
      %v1650 = vld [vmem:[#allocation3 + $0x40] sm:$0xff]
      %v1651 = vld [vmem:[#allocation3 + $0x48] sm:$0xff]
      %v1652 = vld [vmem:[#allocation3 + $0x50] sm:$0xff]
      %v1653 = vld [vmem:[#allocation3 + $0x58] sm:$0xff]
      %v1654 = vmax.f32 %v1650, %v1652
      %v1655 = vmax.f32 %v1651, %v1653
      %1656 = vst.msk [vmem:[#allocation4 + $0x4a] sm:$0xff] %vm1143, %v1654
      %1657 = vst.msk [vmem:[#allocation4 + $0x52] sm:$0x3f] %vm1640, %v1655
      %v1658 = vld [vmem:[#allocation3 + $0x60] sm:$0xff]
      %v1659 = vld [vmem:[#allocation3 + $0x68] sm:$0xff]
      %v1660 = vld [vmem:[#allocation3 + $0x70] sm:$0xff]
      %v1661 = vld [vmem:[#allocation3 + $0x78] sm:$0xff]
      %v1662 = vmax.f32 %v1658, %v1660
      %v1663 = vmax.f32 %v1659, %v1661
      %1664 = vst.msk [vmem:[#allocation4 + $0x5c] sm:$0xff] %vm1143, %v1662
      %1665 = vst.msk [vmem:[#allocation4 + $0x64] sm:$0x3f] %vm1640, %v1663
      %v1666 = vld [vmem:[#allocation3 + $0x80] sm:$0xff]
      %v1667 = vld [vmem:[#allocation3 + $0x88] sm:$0xff]
      %v1668 = vld [vmem:[#allocation3 + $0x90] sm:$0xff]
      %v1669 = vld [vmem:[#allocation3 + $0x98] sm:$0xff]
      %v1670 = vmax.f32 %v1666, %v1668
      %v1671 = vmax.f32 %v1667, %v1669
      %1672 = vst.msk [vmem:[#allocation4 + $0x6e] sm:$0xff] %vm1143, %v1670
      %1673 = vst.msk [vmem:[#allocation4 + $0x76] sm:$0x3f] %vm1640, %v1671
      %v1674 = vld [vmem:[#allocation3 + $0xa0] sm:$0xff]
      %v1675 = vld [vmem:[#allocation3 + $0xa8] sm:$0xff]
      %v1676 = vld [vmem:[#allocation3 + $0xb0] sm:$0xff]
      %v1677 = vld [vmem:[#allocation3 + $0xb8] sm:$0xff]
      %v1678 = vmax.f32 %v1674, %v1676
      %v1679 = vmax.f32 %v1675, %v1677
      %1680 = vst.msk [vmem:[#allocation4 + $0x80] sm:$0xff] %vm1143, %v1678
      %1681 = vst.msk [vmem:[#allocation4 + $0x88] sm:$0x3f] %vm1640, %v1679
      %v1682 = vld [vmem:[#allocation3 + $0xc0] sm:$0xff]
      %v1683 = vld [vmem:[#allocation3 + $0xc8] sm:$0xff]
      %v1684 = vld [vmem:[#allocation3 + $0xd0] sm:$0xff]
      %v1685 = vld [vmem:[#allocation3 + $0xd8] sm:$0xff]
      %v1686 = vmax.f32 %v1682, %v1684
      %v1687 = vmax.f32 %v1683, %v1685
      %1688 = vst.msk [vmem:[#allocation4 + $0x92] sm:$0xff] %vm1143, %v1686
      %1689 = vst.msk [vmem:[#allocation4 + $0x9a] sm:$0x3f] %vm1640, %v1687
      %v1690 = vld [vmem:[#allocation3 + $0xe0] sm:$0xff]
      %v1691 = vld [vmem:[#allocation3 + $0xe8] sm:$0xff]
      %v1692 = vld [vmem:[#allocation3 + $0xf0] sm:$0xff]
      %v1693 = vld [vmem:[#allocation3 + $0xf8] sm:$0xff]
      %v1694 = vmax.f32 %v1690, %v1692
      %v1695 = vmax.f32 %v1691, %v1693
      %1696 = vst.msk [vmem:[#allocation4 + $0xa4] sm:$0xff] %vm1143, %v1694
      %1697 = vst.msk [vmem:[#allocation4 + $0xac] sm:$0x3f] %vm1640, %v1695
      %v1698 = vld [vmem:[#allocation3 + $0x100] sm:$0xff]
      %v1699 = vld [vmem:[#allocation3 + $0x108] sm:$0xff]
      %v1700 = vld [vmem:[#allocation3 + $0x110] sm:$0xff]
      %v1701 = vld [vmem:[#allocation3 + $0x118] sm:$0xff]
      %v1702 = vmax.f32 %v1698, %v1700
      %v1703 = vmax.f32 %v1699, %v1701
      %1704 = vst.msk [vmem:[#allocation4 + $0xb6] sm:$0xff] %vm1143, %v1702
      %1705 = vst.msk [vmem:[#allocation4 + $0xbe] sm:$0x3f] %vm1640, %v1703
      %v1706 = vld [vmem:[#allocation3 + $0x120] sm:$0xff]
      %v1707 = vld [vmem:[#allocation3 + $0x128] sm:$0xff]
      %v1708 = vld [vmem:[#allocation3 + $0x130] sm:$0xff]
      %v1709 = vld [vmem:[#allocation3 + $0x138] sm:$0xff]
      %v1710 = vmax.f32 %v1706, %v1708
      %v1711 = vmax.f32 %v1707, %v1709
      %1712 = vst.msk [vmem:[#allocation4 + $0xc8] sm:$0xff] %vm1143, %v1710
      %1713 = vst.msk [vmem:[#allocation4 + $0xd0] sm:$0x3f] %vm1640, %v1711
      %v1714 = vld [vmem:[#allocation3 + $0x140] sm:$0xff]
      %v1715 = vld [vmem:[#allocation3 + $0x148] sm:$0xff]
      %v1716 = vld [vmem:[#allocation3 + $0x150] sm:$0xff]
      %v1717 = vld [vmem:[#allocation3 + $0x158] sm:$0xff]
      %v1718 = vmax.f32 %v1714, %v1716
      %v1719 = vmax.f32 %v1715, %v1717
      %1720 = vst.msk [vmem:[#allocation4 + $0xda] sm:$0xff] %vm1143, %v1718
      %1721 = vst.msk [vmem:[#allocation4 + $0xe2] sm:$0x3f] %vm1640, %v1719
      %v1722 = vld [vmem:[#allocation3 + $0x160] sm:$0xff]
      %v1723 = vld [vmem:[#allocation3 + $0x168] sm:$0xff]
      %v1724 = vld [vmem:[#allocation3 + $0x170] sm:$0xff]
      %v1725 = vld [vmem:[#allocation3 + $0x178] sm:$0xff]
      %v1726 = vmax.f32 %v1722, %v1724
      %v1727 = vmax.f32 %v1723, %v1725
      %1728 = vst.msk [vmem:[#allocation4 + $0xec] sm:$0xff] %vm1143, %v1726
      %1729 = vst.msk [vmem:[#allocation4 + $0xf4] sm:$0x3f] %vm1640, %v1727
      %v1730 = vld [vmem:[#allocation3 + $0x180] sm:$0xff]
      %v1731 = vld [vmem:[#allocation3 + $0x188] sm:$0xff]
      %v1732 = vld [vmem:[#allocation3 + $0x190] sm:$0xff]
      %v1733 = vld [vmem:[#allocation3 + $0x198] sm:$0xff]
      %v1734 = vmax.f32 %v1730, %v1732
      %v1735 = vmax.f32 %v1731, %v1733
      %1736 = vst.msk [vmem:[#allocation4 + $0xfe] sm:$0xff] %vm1143, %v1734
      %1737 = vst.msk [vmem:[#allocation4 + $0x106] sm:$0x3f] %vm1640, %v1735
      %v1738 = vld [vmem:[#allocation3 + $0x1a0] sm:$0xff]
      %v1739 = vld [vmem:[#allocation3 + $0x1a8] sm:$0xff]
      %v1740 = vld [vmem:[#allocation3 + $0x1b0] sm:$0xff]
      %v1741 = vld [vmem:[#allocation3 + $0x1b8] sm:$0xff]
      %v1742 = vmax.f32 %v1738, %v1740
      %v1743 = vmax.f32 %v1739, %v1741
      %1744 = vst.msk [vmem:[#allocation4 + $0x110] sm:$0xff] %vm1143, %v1742
      %1745 = vst.msk [vmem:[#allocation4 + $0x118] sm:$0x3f] %vm1640, %v1743
      %vm1746 = vcmask 1043712
      %1747 = vst.msk [vmem:[#allocation5 + $0x18] sm:$0xf] %vm1746, 0
      %1748 = vst.msk [vmem:[#allocation5 + $0x34] sm:$0xf] %vm1746, 0
      %1749 = vst.msk [vmem:[#allocation5 + $0x50] sm:$0xf] %vm1746, 0
      %1750 = vst.msk [vmem:[#allocation5 + $0x6c] sm:$0xf] %vm1746, 0
      %1751 = vst.msk [vmem:[#allocation5 + $0x88] sm:$0xf] %vm1746, 0
      %1752 = vst.msk [vmem:[#allocation5 + $0xa4] sm:$0xf] %vm1746, 0
      %1753 = vst.msk [vmem:[#allocation5 + $0xc0] sm:$0xf] %vm1746, 0
      %1754 = vst.msk [vmem:[#allocation5 + $0xdc] sm:$0xf] %vm1746, 0
      %1755 = vst.msk [vmem:[#allocation5 + $0xf8] sm:$0xf] %vm1746, 0
      %1756 = vst.msk [vmem:[#allocation5 + $0x114] sm:$0xf] %vm1746, 0
      %1757 = vst.msk [vmem:[#allocation5 + $0x130] sm:$0xf] %vm1746, 0
      %1758 = vst.msk [vmem:[#allocation5 + $0x14c] sm:$0xf] %vm1746, 0
      %1759 = vst.msk [vmem:[#allocation5 + $0x168] sm:$0xf] %vm1746, 0
      %1760 = vst.msk [vmem:[#allocation5 + $0x184] sm:$0xf] %vm1746, 0
      %1761 = vst.msk [vmem:[#allocation5 + $0x1a0] sm:$0xf] %vm1746, 0
      %1762 = vst.msk [vmem:[#allocation5 + $0x1bc] sm:$0xf] %vm1746, 0
      %1763 = vst.msk [vmem:[#allocation5 + $0x1d8] sm:$0xf] %vm1746, 0
      %1764 = vst.msk [vmem:[#allocation5 + $0x1f4] sm:$0xf] %vm1746, 0
      %1765 = vst.msk [vmem:[#allocation5 + $0x210] sm:$0xf] %vm1746, 0
      %1766 = vst.msk [vmem:[#allocation5 + $0x22c] sm:$0xf] %vm1746, 0
      %1767 = vst.msk [vmem:[#allocation5 + $0x248] sm:$0xf] %vm1746, 0
      %1768 = vst.msk [vmem:[#allocation5 + $0x264] sm:$0xf] %vm1746, 0
      %1769 = vst.msk [vmem:[#allocation5 + $0x280] sm:$0xf] %vm1746, 0
      %1770 = vst.msk [vmem:[#allocation5 + $0x29c] sm:$0xf] %vm1746, 0
      %1771 = vst.msk [vmem:[#allocation5 + $0x2b8] sm:$0xf] %vm1746, 0
      %1772 = vst.msk [vmem:[#allocation5 + $0x2d4] sm:$0xf] %vm1746, 0
      %1773 = vst.msk [vmem:[#allocation5 + $0x2f0] sm:$0xf] %vm1746, 0
      %1774 = vst.msk [vmem:[#allocation5 + $0x30c] sm:$0xf] %vm1746, 0
      %1775 = vst.msk [vmem:[#allocation5 + $0x328] sm:$0xf] %vm1746, 0
      %1776 = vst.msk [vmem:[#allocation5 + $0x344] sm:$0xf] %vm1746, 0
      %1777 = vst.msk [vmem:[#allocation5 + $0x360] sm:$0xf] %vm1746, 0
      %1778 = vst.msk [vmem:[#allocation5 + $0x37c] sm:$0xf] %vm1746, 0
      %v1779 = vld [vmem:[#allocation4] sm:$0xff]
      %v1780 = vld [vmem:[#allocation4 + $0x8] sm:$0xff]
      %v1781 = vld [vmem:[#allocation4 + $0x10] sm:$0xff]
      %v1782 = vld [vmem:[#allocation4 + $0x18] sm:$0xff]
      %v1783 = vld [vmem:[#allocation4 + $0x20] sm:$0xff]
      %v1784 = vld [vmem:[#allocation4 + $0x28] sm:$0xff]
      %v1785 = vld [vmem:[#allocation4 + $0x30] sm:$0xff]
      %v1786 = vld [vmem:[#allocation4 + $0x38] sm:$0xff]
      %v1787 = vld [vmem:[#allocation4 + $0x40] sm:$0xff]
      %v1788 = vld [vmem:[#allocation4 + $0x48] sm:$0xff]
      %v1789 = vld [vmem:[#allocation4 + $0x50] sm:$0xff]
      %v1790 = vld [vmem:[#allocation4 + $0x58] sm:$0xff]
      %v1791 = vld [vmem:[#allocation4 + $0x60] sm:$0xff]
      %v1792 = vld [vmem:[#allocation4 + $0x68] sm:$0xff]
      %v1793 = vld [vmem:[#allocation4 + $0x70] sm:$0xff]
      %v1794 = vld [vmem:[#allocation4 + $0x78] sm:$0xff]
      %v1795 = vld [vmem:[#allocation4 + $0x80] sm:$0xff]
      %v1796 = vld [vmem:[#allocation4 + $0x88] sm:$0xff]
      %v1797 = vld [vmem:[#allocation4 + $0x90] sm:$0xff]
      %v1798 = vld [vmem:[#allocation4 + $0x98] sm:$0xff]
      %v1799 = vld [vmem:[#allocation4 + $0xa0] sm:$0xff]
      %v1800 = vld [vmem:[#allocation4 + $0xa8] sm:$0xff]
      %v1801 = vld [vmem:[#allocation4 + $0xb0] sm:$0xff]
      %v1802 = vld [vmem:[#allocation4 + $0xb8] sm:$0xff]
      %v1803 = vld [vmem:[#allocation4 + $0xc0] sm:$0xff]
      %v1804 = vld [vmem:[#allocation4 + $0xc8] sm:$0xff]
      %v1805 = vld [vmem:[#allocation4 + $0xd0] sm:$0xff]
      %v1806 = vld [vmem:[#allocation4 + $0xd8] sm:$0xff]
      %v1807 = vld [vmem:[#allocation4 + $0xe0] sm:$0xff]
      %v1808 = vld [vmem:[#allocation4 + $0xe8] sm:$0xff]
      %v1809 = vld [vmem:[#allocation4 + $0xf0] sm:$0xff]
      %v1810 = vld [vmem:[#allocation4 + $0xf8] sm:$0xff]
      %v1811 = vpack.c.bf16 %v1779, %v1779
      %v1812 = vpack.c.bf16 %v1780, %v1780
      %v1813 = vpack.c.bf16 %v1781, %v1781
      %v1814 = vpack.c.bf16 %v1782, %v1782
      %v1815 = vpack.c.bf16 %v1783, %v1783
      %v1816 = vpack.c.bf16 %v1784, %v1784
      %v1817 = vpack.c.bf16 %v1785, %v1785
      %v1818 = vpack.c.bf16 %v1786, %v1786
      %v1819 = vpack.c.bf16 %v1787, %v1787
      %v1820 = vpack.c.bf16 %v1788, %v1788
      %v1821 = vpack.c.bf16 %v1789, %v1789
      %v1822 = vpack.c.bf16 %v1790, %v1790
      %v1823 = vpack.c.bf16 %v1791, %v1791
      %v1824 = vpack.c.bf16 %v1792, %v1792
      %v1825 = vpack.c.bf16 %v1793, %v1793
      %v1826 = vpack.c.bf16 %v1794, %v1794
      %v1827 = vpack.c.bf16 %v1795, %v1795
      %v1828 = vpack.c.bf16 %v1796, %v1796
      %v1829 = vpack.c.bf16 %v1797, %v1797
      %v1830 = vpack.c.bf16 %v1798, %v1798
      %v1831 = vpack.c.bf16 %v1799, %v1799
      %v1832 = vpack.c.bf16 %v1800, %v1800
      %v1833 = vpack.c.bf16 %v1801, %v1801
      %v1834 = vpack.c.bf16 %v1802, %v1802
      %v1835 = vpack.c.bf16 %v1803, %v1803
      %v1836 = vpack.c.bf16 %v1804, %v1804
      %v1837 = vpack.c.bf16 %v1805, %v1805
      %v1838 = vpack.c.bf16 %v1806, %v1806
      %v1839 = vpack.c.bf16 %v1807, %v1807
      %v1840 = vpack.c.bf16 %v1808, %v1808
      %v1841 = vpack.c.bf16 %v1809, %v1809
      %v1842 = vpack.c.bf16 %v1810, %v1810
      %vm1843 = vcmask 257024
      %1844 = vst.msk [vmem:[#allocation5] sm:$0xf] %vm1843, %v1811
      %1845 = vst.msk [vmem:[#allocation5 + $0x1c] sm:$0xf] %vm1843, %v1812
      %1846 = vst.msk [vmem:[#allocation5 + $0x38] sm:$0xf] %vm1843, %v1813
      %1847 = vst.msk [vmem:[#allocation5 + $0x54] sm:$0xf] %vm1843, %v1814
      %1848 = vst.msk [vmem:[#allocation5 + $0x70] sm:$0xf] %vm1843, %v1815
      %1849 = vst.msk [vmem:[#allocation5 + $0x8c] sm:$0xf] %vm1843, %v1816
      %1850 = vst.msk [vmem:[#allocation5 + $0xa8] sm:$0xf] %vm1843, %v1817
      %1851 = vst.msk [vmem:[#allocation5 + $0xc4] sm:$0xf] %vm1843, %v1818
      %1852 = vst.msk [vmem:[#allocation5 + $0xe0] sm:$0xf] %vm1843, %v1819
      %1853 = vst.msk [vmem:[#allocation5 + $0xfc] sm:$0xf] %vm1843, %v1820
      %1854 = vst.msk [vmem:[#allocation5 + $0x118] sm:$0xf] %vm1843, %v1821
      %1855 = vst.msk [vmem:[#allocation5 + $0x134] sm:$0xf] %vm1843, %v1822
      %1856 = vst.msk [vmem:[#allocation5 + $0x150] sm:$0xf] %vm1843, %v1823
      %1857 = vst.msk [vmem:[#allocation5 + $0x16c] sm:$0xf] %vm1843, %v1824
      %1858 = vst.msk [vmem:[#allocation5 + $0x188] sm:$0xf] %vm1843, %v1825
      %1859 = vst.msk [vmem:[#allocation5 + $0x1a4] sm:$0xf] %vm1843, %v1826
      %1860 = vst.msk [vmem:[#allocation5 + $0x1c0] sm:$0xf] %vm1843, %v1827
      %1861 = vst.msk [vmem:[#allocation5 + $0x1dc] sm:$0xf] %vm1843, %v1828
      %1862 = vst.msk [vmem:[#allocation5 + $0x1f8] sm:$0xf] %vm1843, %v1829
      %1863 = vst.msk [vmem:[#allocation5 + $0x214] sm:$0xf] %vm1843, %v1830
      %1864 = vst.msk [vmem:[#allocation5 + $0x230] sm:$0xf] %vm1843, %v1831
      %1865 = vst.msk [vmem:[#allocation5 + $0x24c] sm:$0xf] %vm1843, %v1832
      %1866 = vst.msk [vmem:[#allocation5 + $0x268] sm:$0xf] %vm1843, %v1833
      %1867 = vst.msk [vmem:[#allocation5 + $0x284] sm:$0xf] %vm1843, %v1834
      %1868 = vst.msk [vmem:[#allocation5 + $0x2a0] sm:$0xf] %vm1843, %v1835
      %1869 = vst.msk [vmem:[#allocation5 + $0x2bc] sm:$0xf] %vm1843, %v1836
      %1870 = vst.msk [vmem:[#allocation5 + $0x2d8] sm:$0xf] %vm1843, %v1837
      %1871 = vst.msk [vmem:[#allocation5 + $0x2f4] sm:$0xf] %vm1843, %v1838
      %1872 = vst.msk [vmem:[#allocation5 + $0x310] sm:$0xf] %vm1843, %v1839
      %1873 = vst.msk [vmem:[#allocation5 + $0x32c] sm:$0xf] %vm1843, %v1840
      %1874 = vst.msk [vmem:[#allocation5 + $0x348] sm:$0xf] %vm1843, %v1841
      %1875 = vst.msk [vmem:[#allocation5 + $0x364] sm:$0xf] %vm1843, %v1842
      %v1876 = vld [vmem:[#allocation4 + $0x1] sm:$0xff]
      %v1877 = vld [vmem:[#allocation4 + $0x9] sm:$0xff]
      %v1878 = vld [vmem:[#allocation4 + $0x11] sm:$0xff]
      %v1879 = vld [vmem:[#allocation4 + $0x19] sm:$0xff]
      %v1880 = vld [vmem:[#allocation4 + $0x21] sm:$0xff]
      %v1881 = vld [vmem:[#allocation4 + $0x29] sm:$0xff]
      %v1882 = vld [vmem:[#allocation4 + $0x31] sm:$0xff]
      %v1883 = vld [vmem:[#allocation4 + $0x39] sm:$0xff]
      %v1884 = vld [vmem:[#allocation4 + $0x41] sm:$0xff]
      %v1885 = vld [vmem:[#allocation4 + $0x49] sm:$0xff]
      %v1886 = vld [vmem:[#allocation4 + $0x51] sm:$0xff]
      %v1887 = vld [vmem:[#allocation4 + $0x59] sm:$0xff]
      %v1888 = vld [vmem:[#allocation4 + $0x61] sm:$0xff]
      %v1889 = vld [vmem:[#allocation4 + $0x69] sm:$0xff]
      %v1890 = vld [vmem:[#allocation4 + $0x71] sm:$0xff]
      %v1891 = vld [vmem:[#allocation4 + $0x79] sm:$0xff]
      %v1892 = vld [vmem:[#allocation4 + $0x81] sm:$0xff]
      %v1893 = vld [vmem:[#allocation4 + $0x89] sm:$0xff]
      %v1894 = vld [vmem:[#allocation4 + $0x91] sm:$0xff]
      %v1895 = vld [vmem:[#allocation4 + $0x99] sm:$0xff]
      %v1896 = vld [vmem:[#allocation4 + $0xa1] sm:$0xff]
      %v1897 = vld [vmem:[#allocation4 + $0xa9] sm:$0xff]
      %v1898 = vld [vmem:[#allocation4 + $0xb1] sm:$0xff]
      %v1899 = vld [vmem:[#allocation4 + $0xb9] sm:$0xff]
      %v1900 = vld [vmem:[#allocation4 + $0xc1] sm:$0xff]
      %v1901 = vld [vmem:[#allocation4 + $0xc9] sm:$0xff]
      %v1902 = vld [vmem:[#allocation4 + $0xd1] sm:$0xff]
      %v1903 = vld [vmem:[#allocation4 + $0xd9] sm:$0xff]
      %v1904 = vld [vmem:[#allocation4 + $0xe1] sm:$0xff]
      %v1905 = vld [vmem:[#allocation4 + $0xe9] sm:$0xff]
      %v1906 = vld [vmem:[#allocation4 + $0xf1] sm:$0xff]
      %v1907 = vld [vmem:[#allocation4 + $0xf9] sm:$0xff]
      %v1908 = vpack.c.bf16 %v1876, %v1876
      %v1909 = vpack.c.bf16 %v1877, %v1877
      %v1910 = vpack.c.bf16 %v1878, %v1878
      %v1911 = vpack.c.bf16 %v1879, %v1879
      %v1912 = vpack.c.bf16 %v1880, %v1880
      %v1913 = vpack.c.bf16 %v1881, %v1881
      %v1914 = vpack.c.bf16 %v1882, %v1882
      %v1915 = vpack.c.bf16 %v1883, %v1883
      %v1916 = vpack.c.bf16 %v1884, %v1884
      %v1917 = vpack.c.bf16 %v1885, %v1885
      %v1918 = vpack.c.bf16 %v1886, %v1886
      %v1919 = vpack.c.bf16 %v1887, %v1887
      %v1920 = vpack.c.bf16 %v1888, %v1888
      %v1921 = vpack.c.bf16 %v1889, %v1889
      %v1922 = vpack.c.bf16 %v1890, %v1890
      %v1923 = vpack.c.bf16 %v1891, %v1891
      %v1924 = vpack.c.bf16 %v1892, %v1892
      %v1925 = vpack.c.bf16 %v1893, %v1893
      %v1926 = vpack.c.bf16 %v1894, %v1894
      %v1927 = vpack.c.bf16 %v1895, %v1895
      %v1928 = vpack.c.bf16 %v1896, %v1896
      %v1929 = vpack.c.bf16 %v1897, %v1897
      %v1930 = vpack.c.bf16 %v1898, %v1898
      %v1931 = vpack.c.bf16 %v1899, %v1899
      %v1932 = vpack.c.bf16 %v1900, %v1900
      %v1933 = vpack.c.bf16 %v1901, %v1901
      %v1934 = vpack.c.bf16 %v1902, %v1902
      %v1935 = vpack.c.bf16 %v1903, %v1903
      %v1936 = vpack.c.bf16 %v1904, %v1904
      %v1937 = vpack.c.bf16 %v1905, %v1905
      %v1938 = vpack.c.bf16 %v1906, %v1906
      %v1939 = vpack.c.bf16 %v1907, %v1907
      %1972 = vrot.lane.b32.xlu0 %v1908, 32
      %v1973 = vpop.permute.xlu0 %1972
      %1974 = vrot.lane.b32.xlu0 %v1909, 32
      %v1975 = vpop.permute.xlu0 %1974
      %1976 = vrot.lane.b32.xlu0 %v1910, 32
      %v1977 = vpop.permute.xlu0 %1976
      %1978 = vrot.lane.b32.xlu0 %v1911, 32
      %v1979 = vpop.permute.xlu0 %1978
      %1980 = vrot.lane.b32.xlu0 %v1912, 32
      %v1981 = vpop.permute.xlu0 %1980
      %1982 = vrot.lane.b32.xlu0 %v1913, 32
      %v1983 = vpop.permute.xlu0 %1982
      %1984 = vrot.lane.b32.xlu0 %v1914, 32
      %v1985 = vpop.permute.xlu0 %1984
      %1986 = vrot.lane.b32.xlu0 %v1915, 32
      %v1987 = vpop.permute.xlu0 %1986
      %1988 = vrot.lane.b32.xlu0 %v1916, 32
      %v1989 = vpop.permute.xlu0 %1988
      %1990 = vrot.lane.b32.xlu0 %v1917, 32
      %v1991 = vpop.permute.xlu0 %1990
      %1992 = vrot.lane.b32.xlu0 %v1918, 32
      %v1993 = vpop.permute.xlu0 %1992
      %1994 = vrot.lane.b32.xlu0 %v1919, 32
      %v1995 = vpop.permute.xlu0 %1994
      %1996 = vrot.lane.b32.xlu0 %v1920, 32
      %v1997 = vpop.permute.xlu0 %1996
      %1998 = vrot.lane.b32.xlu0 %v1921, 32
      %v1999 = vpop.permute.xlu0 %1998
      %2000 = vrot.lane.b32.xlu0 %v1922, 32
      %v2001 = vpop.permute.xlu0 %2000
      %2002 = vrot.lane.b32.xlu0 %v1923, 32
      %v2003 = vpop.permute.xlu0 %2002
      %2004 = vrot.lane.b32.xlu0 %v1924, 32
      %v2005 = vpop.permute.xlu0 %2004
      %2006 = vrot.lane.b32.xlu0 %v1925, 32
      %v2007 = vpop.permute.xlu0 %2006
      %2008 = vrot.lane.b32.xlu0 %v1926, 32
      %v2009 = vpop.permute.xlu0 %2008
      %2010 = vrot.lane.b32.xlu0 %v1927, 32
      %v2011 = vpop.permute.xlu0 %2010
      %2012 = vrot.lane.b32.xlu0 %v1928, 32
      %v2013 = vpop.permute.xlu0 %2012
      %2014 = vrot.lane.b32.xlu0 %v1929, 32
      %v2015 = vpop.permute.xlu0 %2014
      %2016 = vrot.lane.b32.xlu0 %v1930, 32
      %v2017 = vpop.permute.xlu0 %2016
      %2018 = vrot.lane.b32.xlu0 %v1931, 32
      %v2019 = vpop.permute.xlu0 %2018
      %2020 = vrot.lane.b32.xlu0 %v1932, 32
      %v2021 = vpop.permute.xlu0 %2020
      %2022 = vrot.lane.b32.xlu0 %v1933, 32
      %v2023 = vpop.permute.xlu0 %2022
      %2024 = vrot.lane.b32.xlu0 %v1934, 32
      %v2025 = vpop.permute.xlu0 %2024
      %2026 = vrot.lane.b32.xlu0 %v1935, 32
      %v2027 = vpop.permute.xlu0 %2026
      %2028 = vrot.lane.b32.xlu0 %v1936, 32
      %v2029 = vpop.permute.xlu0 %2028
      %2030 = vrot.lane.b32.xlu0 %v1937, 32
      %v2031 = vpop.permute.xlu0 %2030
      %2032 = vrot.lane.b32.xlu0 %v1938, 32
      %v2033 = vpop.permute.xlu0 %2032
      %2034 = vrot.lane.b32.xlu0 %v1939, 32
      %v2035 = vpop.permute.xlu0 %2034
      %vm2068 = vcmask 519424
      %2069 = vst.msk [vmem:[#allocation5] sm:$0xf] %vm2068, %v1973
      %2070 = vst.msk [vmem:[#allocation5 + $0x1c] sm:$0xf] %vm2068, %v1975
      %2071 = vst.msk [vmem:[#allocation5 + $0x38] sm:$0xf] %vm2068, %v1977
      %2072 = vst.msk [vmem:[#allocation5 + $0x54] sm:$0xf] %vm2068, %v1979
      %2073 = vst.msk [vmem:[#allocation5 + $0x70] sm:$0xf] %vm2068, %v1981
      %2074 = vst.msk [vmem:[#allocation5 + $0x8c] sm:$0xf] %vm2068, %v1983
      %2075 = vst.msk [vmem:[#allocation5 + $0xa8] sm:$0xf] %vm2068, %v1985
      %2076 = vst.msk [vmem:[#allocation5 + $0xc4] sm:$0xf] %vm2068, %v1987
      %2077 = vst.msk [vmem:[#allocation5 + $0xe0] sm:$0xf] %vm2068, %v1989
      %2078 = vst.msk [vmem:[#allocation5 + $0xfc] sm:$0xf] %vm2068, %v1991
      %2079 = vst.msk [vmem:[#allocation5 + $0x118] sm:$0xf] %vm2068, %v1993
      %2080 = vst.msk [vmem:[#allocation5 + $0x134] sm:$0xf] %vm2068, %v1995
      %2081 = vst.msk [vmem:[#allocation5 + $0x150] sm:$0xf] %vm2068, %v1997
      %2082 = vst.msk [vmem:[#allocation5 + $0x16c] sm:$0xf] %vm2068, %v1999
      %2083 = vst.msk [vmem:[#allocation5 + $0x188] sm:$0xf] %vm2068, %v2001
      %2084 = vst.msk [vmem:[#allocation5 + $0x1a4] sm:$0xf] %vm2068, %v2003
      %2085 = vst.msk [vmem:[#allocation5 + $0x1c0] sm:$0xf] %vm2068, %v2005
      %2086 = vst.msk [vmem:[#allocation5 + $0x1dc] sm:$0xf] %vm2068, %v2007
      %2087 = vst.msk [vmem:[#allocation5 + $0x1f8] sm:$0xf] %vm2068, %v2009
      %2088 = vst.msk [vmem:[#allocation5 + $0x214] sm:$0xf] %vm2068, %v2011
      %2089 = vst.msk [vmem:[#allocation5 + $0x230] sm:$0xf] %vm2068, %v2013
      %2090 = vst.msk [vmem:[#allocation5 + $0x24c] sm:$0xf] %vm2068, %v2015
      %2091 = vst.msk [vmem:[#allocation5 + $0x268] sm:$0xf] %vm2068, %v2017
      %2092 = vst.msk [vmem:[#allocation5 + $0x284] sm:$0xf] %vm2068, %v2019
      %2093 = vst.msk [vmem:[#allocation5 + $0x2a0] sm:$0xf] %vm2068, %v2021
      %2094 = vst.msk [vmem:[#allocation5 + $0x2bc] sm:$0xf] %vm2068, %v2023
      %2095 = vst.msk [vmem:[#allocation5 + $0x2d8] sm:$0xf] %vm2068, %v2025
      %2096 = vst.msk [vmem:[#allocation5 + $0x2f4] sm:$0xf] %vm2068, %v2027
      %2097 = vst.msk [vmem:[#allocation5 + $0x310] sm:$0xf] %vm2068, %v2029
      %2098 = vst.msk [vmem:[#allocation5 + $0x32c] sm:$0xf] %vm2068, %v2031
      %2099 = vst.msk [vmem:[#allocation5 + $0x348] sm:$0xf] %vm2068, %v2033
      %2100 = vst.msk [vmem:[#allocation5 + $0x364] sm:$0xf] %vm2068, %v2035
      %v2101 = vld [vmem:[#allocation4 + $0x2] sm:$0xff]
      %v2102 = vld [vmem:[#allocation4 + $0xa] sm:$0xff]
      %v2103 = vld [vmem:[#allocation4 + $0x12] sm:$0xff]
      %v2104 = vld [vmem:[#allocation4 + $0x1a] sm:$0xff]
      %v2105 = vld [vmem:[#allocation4 + $0x22] sm:$0xff]
      %v2106 = vld [vmem:[#allocation4 + $0x2a] sm:$0xff]
      %v2107 = vld [vmem:[#allocation4 + $0x32] sm:$0xff]
      %v2108 = vld [vmem:[#allocation4 + $0x3a] sm:$0xff]
      %v2109 = vld [vmem:[#allocation4 + $0x42] sm:$0xff]
      %v2110 = vld [vmem:[#allocation4 + $0x4a] sm:$0xff]
      %v2111 = vld [vmem:[#allocation4 + $0x52] sm:$0xff]
      %v2112 = vld [vmem:[#allocation4 + $0x5a] sm:$0xff]
      %v2113 = vld [vmem:[#allocation4 + $0x62] sm:$0xff]
      %v2114 = vld [vmem:[#allocation4 + $0x6a] sm:$0xff]
      %v2115 = vld [vmem:[#allocation4 + $0x72] sm:$0xff]
      %v2116 = vld [vmem:[#allocation4 + $0x7a] sm:$0xff]
      %v2117 = vld [vmem:[#allocation4 + $0x82] sm:$0xff]
      %v2118 = vld [vmem:[#allocation4 + $0x8a] sm:$0xff]
      %v2119 = vld [vmem:[#allocation4 + $0x92] sm:$0xff]
      %v2120 = vld [vmem:[#allocation4 + $0x9a] sm:$0xff]
      %v2121 = vld [vmem:[#allocation4 + $0xa2] sm:$0xff]
      %v2122 = vld [vmem:[#allocation4 + $0xaa] sm:$0xff]
      %v2123 = vld [vmem:[#allocation4 + $0xb2] sm:$0xff]
      %v2124 = vld [vmem:[#allocation4 + $0xba] sm:$0xff]
      %v2125 = vld [vmem:[#allocation4 + $0xc2] sm:$0xff]
      %v2126 = vld [vmem:[#allocation4 + $0xca] sm:$0xff]
      %v2127 = vld [vmem:[#allocation4 + $0xd2] sm:$0xff]
      %v2128 = vld [vmem:[#allocation4 + $0xda] sm:$0xff]
      %v2129 = vld [vmem:[#allocation4 + $0xe2] sm:$0xff]
      %v2130 = vld [vmem:[#allocation4 + $0xea] sm:$0xff]
      %v2131 = vld [vmem:[#allocation4 + $0xf2] sm:$0xff]
      %v2132 = vld [vmem:[#allocation4 + $0xfa] sm:$0xff]
      %v2133 = vpack.c.bf16 %v2101, %v2101
      %v2134 = vpack.c.bf16 %v2102, %v2102
      %v2135 = vpack.c.bf16 %v2103, %v2103
      %v2136 = vpack.c.bf16 %v2104, %v2104
      %v2137 = vpack.c.bf16 %v2105, %v2105
      %v2138 = vpack.c.bf16 %v2106, %v2106
      %v2139 = vpack.c.bf16 %v2107, %v2107
      %v2140 = vpack.c.bf16 %v2108, %v2108
      %v2141 = vpack.c.bf16 %v2109, %v2109
      %v2142 = vpack.c.bf16 %v2110, %v2110
      %v2143 = vpack.c.bf16 %v2111, %v2111
      %v2144 = vpack.c.bf16 %v2112, %v2112
      %v2145 = vpack.c.bf16 %v2113, %v2113
      %v2146 = vpack.c.bf16 %v2114, %v2114
      %v2147 = vpack.c.bf16 %v2115, %v2115
      %v2148 = vpack.c.bf16 %v2116, %v2116
      %v2149 = vpack.c.bf16 %v2117, %v2117
      %v2150 = vpack.c.bf16 %v2118, %v2118
      %v2151 = vpack.c.bf16 %v2119, %v2119
      %v2152 = vpack.c.bf16 %v2120, %v2120
      %v2153 = vpack.c.bf16 %v2121, %v2121
      %v2154 = vpack.c.bf16 %v2122, %v2122
      %v2155 = vpack.c.bf16 %v2123, %v2123
      %v2156 = vpack.c.bf16 %v2124, %v2124
      %v2157 = vpack.c.bf16 %v2125, %v2125
      %v2158 = vpack.c.bf16 %v2126, %v2126
      %v2159 = vpack.c.bf16 %v2127, %v2127
      %v2160 = vpack.c.bf16 %v2128, %v2128
      %v2161 = vpack.c.bf16 %v2129, %v2129
      %v2162 = vpack.c.bf16 %v2130, %v2130
      %v2163 = vpack.c.bf16 %v2131, %v2131
      %v2164 = vpack.c.bf16 %v2132, %v2132
      %2197 = vrot.lane.b32.xlu0 %v2133, 64
      %v2198 = vpop.permute.xlu0 %2197
      %2199 = vrot.lane.b32.xlu0 %v2134, 64
      %v2200 = vpop.permute.xlu0 %2199
      %2201 = vrot.lane.b32.xlu0 %v2135, 64
      %v2202 = vpop.permute.xlu0 %2201
      %2203 = vrot.lane.b32.xlu0 %v2136, 64
      %v2204 = vpop.permute.xlu0 %2203
      %2205 = vrot.lane.b32.xlu0 %v2137, 64
      %v2206 = vpop.permute.xlu0 %2205
      %2207 = vrot.lane.b32.xlu0 %v2138, 64
      %v2208 = vpop.permute.xlu0 %2207
      %2209 = vrot.lane.b32.xlu0 %v2139, 64
      %v2210 = vpop.permute.xlu0 %2209
      %2211 = vrot.lane.b32.xlu0 %v2140, 64
      %v2212 = vpop.permute.xlu0 %2211
      %2213 = vrot.lane.b32.xlu0 %v2141, 64
      %v2214 = vpop.permute.xlu0 %2213
      %2215 = vrot.lane.b32.xlu0 %v2142, 64
      %v2216 = vpop.permute.xlu0 %2215
      %2217 = vrot.lane.b32.xlu0 %v2143, 64
      %v2218 = vpop.permute.xlu0 %2217
      %2219 = vrot.lane.b32.xlu0 %v2144, 64
      %v2220 = vpop.permute.xlu0 %2219
      %2221 = vrot.lane.b32.xlu0 %v2145, 64
      %v2222 = vpop.permute.xlu0 %2221
      %2223 = vrot.lane.b32.xlu0 %v2146, 64
      %v2224 = vpop.permute.xlu0 %2223
      %2225 = vrot.lane.b32.xlu0 %v2147, 64
      %v2226 = vpop.permute.xlu0 %2225
      %2227 = vrot.lane.b32.xlu0 %v2148, 64
      %v2228 = vpop.permute.xlu0 %2227
      %2229 = vrot.lane.b32.xlu0 %v2149, 64
      %v2230 = vpop.permute.xlu0 %2229
      %2231 = vrot.lane.b32.xlu0 %v2150, 64
      %v2232 = vpop.permute.xlu0 %2231
      %2233 = vrot.lane.b32.xlu0 %v2151, 64
      %v2234 = vpop.permute.xlu0 %2233
      %2235 = vrot.lane.b32.xlu0 %v2152, 64
      %v2236 = vpop.permute.xlu0 %2235
      %2237 = vrot.lane.b32.xlu0 %v2153, 64
      %v2238 = vpop.permute.xlu0 %2237
      %2239 = vrot.lane.b32.xlu0 %v2154, 64
      %v2240 = vpop.permute.xlu0 %2239
      %2241 = vrot.lane.b32.xlu0 %v2155, 64
      %v2242 = vpop.permute.xlu0 %2241
      %2243 = vrot.lane.b32.xlu0 %v2156, 64
      %v2244 = vpop.permute.xlu0 %2243
      %2245 = vrot.lane.b32.xlu0 %v2157, 64
      %v2246 = vpop.permute.xlu0 %2245
      %2247 = vrot.lane.b32.xlu0 %v2158, 64
      %v2248 = vpop.permute.xlu0 %2247
      %2249 = vrot.lane.b32.xlu0 %v2159, 64
      %v2250 = vpop.permute.xlu0 %2249
      %2251 = vrot.lane.b32.xlu0 %v2160, 64
      %v2252 = vpop.permute.xlu0 %2251
      %2253 = vrot.lane.b32.xlu0 %v2161, 64
      %v2254 = vpop.permute.xlu0 %2253
      %2255 = vrot.lane.b32.xlu0 %v2162, 64
      %v2256 = vpop.permute.xlu0 %2255
      %2257 = vrot.lane.b32.xlu0 %v2163, 64
      %v2258 = vpop.permute.xlu0 %2257
      %2259 = vrot.lane.b32.xlu0 %v2164, 64
      %v2260 = vpop.permute.xlu0 %2259
      %vm2293 = vcmask 781824
      %2294 = vst.msk [vmem:[#allocation5] sm:$0xf] %vm2293, %v2198
      %2295 = vst.msk [vmem:[#allocation5 + $0x1c] sm:$0xf] %vm2293, %v2200
      %2296 = vst.msk [vmem:[#allocation5 + $0x38] sm:$0xf] %vm2293, %v2202
      %2297 = vst.msk [vmem:[#allocation5 + $0x54] sm:$0xf] %vm2293, %v2204
      %2298 = vst.msk [vmem:[#allocation5 + $0x70] sm:$0xf] %vm2293, %v2206
      %2299 = vst.msk [vmem:[#allocation5 + $0x8c] sm:$0xf] %vm2293, %v2208
      %2300 = vst.msk [vmem:[#allocation5 + $0xa8] sm:$0xf] %vm2293, %v2210
      %2301 = vst.msk [vmem:[#allocation5 + $0xc4] sm:$0xf] %vm2293, %v2212
      %2302 = vst.msk [vmem:[#allocation5 + $0xe0] sm:$0xf] %vm2293, %v2214
      %2303 = vst.msk [vmem:[#allocation5 + $0xfc] sm:$0xf] %vm2293, %v2216
      %2304 = vst.msk [vmem:[#allocation5 + $0x118] sm:$0xf] %vm2293, %v2218
      %2305 = vst.msk [vmem:[#allocation5 + $0x134] sm:$0xf] %vm2293, %v2220
      %2306 = vst.msk [vmem:[#allocation5 + $0x150] sm:$0xf] %vm2293, %v2222
      %2307 = vst.msk [vmem:[#allocation5 + $0x16c] sm:$0xf] %vm2293, %v2224
      %2308 = vst.msk [vmem:[#allocation5 + $0x188] sm:$0xf] %vm2293, %v2226
      %2309 = vst.msk [vmem:[#allocation5 + $0x1a4] sm:$0xf] %vm2293, %v2228
      %2310 = vst.msk [vmem:[#allocation5 + $0x1c0] sm:$0xf] %vm2293, %v2230
      %2311 = vst.msk [vmem:[#allocation5 + $0x1dc] sm:$0xf] %vm2293, %v2232
      %2312 = vst.msk [vmem:[#allocation5 + $0x1f8] sm:$0xf] %vm2293, %v2234
      %2313 = vst.msk [vmem:[#allocation5 + $0x214] sm:$0xf] %vm2293, %v2236
      %2314 = vst.msk [vmem:[#allocation5 + $0x230] sm:$0xf] %vm2293, %v2238
      %2315 = vst.msk [vmem:[#allocation5 + $0x24c] sm:$0xf] %vm2293, %v2240
      %2316 = vst.msk [vmem:[#allocation5 + $0x268] sm:$0xf] %vm2293, %v2242
      %2317 = vst.msk [vmem:[#allocation5 + $0x284] sm:$0xf] %vm2293, %v2244
      %2318 = vst.msk [vmem:[#allocation5 + $0x2a0] sm:$0xf] %vm2293, %v2246
      %2319 = vst.msk [vmem:[#allocation5 + $0x2bc] sm:$0xf] %vm2293, %v2248
      %2320 = vst.msk [vmem:[#allocation5 + $0x2d8] sm:$0xf] %vm2293, %v2250
      %2321 = vst.msk [vmem:[#allocation5 + $0x2f4] sm:$0xf] %vm2293, %v2252
      %2322 = vst.msk [vmem:[#allocation5 + $0x310] sm:$0xf] %vm2293, %v2254
      %2323 = vst.msk [vmem:[#allocation5 + $0x32c] sm:$0xf] %vm2293, %v2256
      %2324 = vst.msk [vmem:[#allocation5 + $0x348] sm:$0xf] %vm2293, %v2258
      %2325 = vst.msk [vmem:[#allocation5 + $0x364] sm:$0xf] %vm2293, %v2260
      %v2326 = vld [vmem:[#allocation4 + $0x3] sm:$0xff]
      %v2327 = vld [vmem:[#allocation4 + $0xb] sm:$0xff]
      %v2328 = vld [vmem:[#allocation4 + $0x13] sm:$0xff]
      %v2329 = vld [vmem:[#allocation4 + $0x1b] sm:$0xff]
      %v2330 = vld [vmem:[#allocation4 + $0x23] sm:$0xff]
      %v2331 = vld [vmem:[#allocation4 + $0x2b] sm:$0xff]
      %v2332 = vld [vmem:[#allocation4 + $0x33] sm:$0xff]
      %v2333 = vld [vmem:[#allocation4 + $0x3b] sm:$0xff]
      %v2334 = vld [vmem:[#allocation4 + $0x43] sm:$0xff]
      %v2335 = vld [vmem:[#allocation4 + $0x4b] sm:$0xff]
      %v2336 = vld [vmem:[#allocation4 + $0x53] sm:$0xff]
      %v2337 = vld [vmem:[#allocation4 + $0x5b] sm:$0xff]
      %v2338 = vld [vmem:[#allocation4 + $0x63] sm:$0xff]
      %v2339 = vld [vmem:[#allocation4 + $0x6b] sm:$0xff]
      %v2340 = vld [vmem:[#allocation4 + $0x73] sm:$0xff]
      %v2341 = vld [vmem:[#allocation4 + $0x7b] sm:$0xff]
      %v2342 = vld [vmem:[#allocation4 + $0x83] sm:$0xff]
      %v2343 = vld [vmem:[#allocation4 + $0x8b] sm:$0xff]
      %v2344 = vld [vmem:[#allocation4 + $0x93] sm:$0xff]
      %v2345 = vld [vmem:[#allocation4 + $0x9b] sm:$0xff]
      %v2346 = vld [vmem:[#allocation4 + $0xa3] sm:$0xff]
      %v2347 = vld [vmem:[#allocation4 + $0xab] sm:$0xff]
      %v2348 = vld [vmem:[#allocation4 + $0xb3] sm:$0xff]
      %v2349 = vld [vmem:[#allocation4 + $0xbb] sm:$0xff]
      %v2350 = vld [vmem:[#allocation4 + $0xc3] sm:$0xff]
      %v2351 = vld [vmem:[#allocation4 + $0xcb] sm:$0xff]
      %v2352 = vld [vmem:[#allocation4 + $0xd3] sm:$0xff]
      %v2353 = vld [vmem:[#allocation4 + $0xdb] sm:$0xff]
      %v2354 = vld [vmem:[#allocation4 + $0xe3] sm:$0xff]
      %v2355 = vld [vmem:[#allocation4 + $0xeb] sm:$0xff]
      %v2356 = vld [vmem:[#allocation4 + $0xf3] sm:$0xff]
      %v2357 = vld [vmem:[#allocation4 + $0xfb] sm:$0xff]
      %v2358 = vpack.c.bf16 %v2326, %v2326
      %v2359 = vpack.c.bf16 %v2327, %v2327
      %v2360 = vpack.c.bf16 %v2328, %v2328
      %v2361 = vpack.c.bf16 %v2329, %v2329
      %v2362 = vpack.c.bf16 %v2330, %v2330
      %v2363 = vpack.c.bf16 %v2331, %v2331
      %v2364 = vpack.c.bf16 %v2332, %v2332
      %v2365 = vpack.c.bf16 %v2333, %v2333
      %v2366 = vpack.c.bf16 %v2334, %v2334
      %v2367 = vpack.c.bf16 %v2335, %v2335
      %v2368 = vpack.c.bf16 %v2336, %v2336
      %v2369 = vpack.c.bf16 %v2337, %v2337
      %v2370 = vpack.c.bf16 %v2338, %v2338
      %v2371 = vpack.c.bf16 %v2339, %v2339
      %v2372 = vpack.c.bf16 %v2340, %v2340
      %v2373 = vpack.c.bf16 %v2341, %v2341
      %v2374 = vpack.c.bf16 %v2342, %v2342
      %v2375 = vpack.c.bf16 %v2343, %v2343
      %v2376 = vpack.c.bf16 %v2344, %v2344
      %v2377 = vpack.c.bf16 %v2345, %v2345
      %v2378 = vpack.c.bf16 %v2346, %v2346
      %v2379 = vpack.c.bf16 %v2347, %v2347
      %v2380 = vpack.c.bf16 %v2348, %v2348
      %v2381 = vpack.c.bf16 %v2349, %v2349
      %v2382 = vpack.c.bf16 %v2350, %v2350
      %v2383 = vpack.c.bf16 %v2351, %v2351
      %v2384 = vpack.c.bf16 %v2352, %v2352
      %v2385 = vpack.c.bf16 %v2353, %v2353
      %v2386 = vpack.c.bf16 %v2354, %v2354
      %v2387 = vpack.c.bf16 %v2355, %v2355
      %v2388 = vpack.c.bf16 %v2356, %v2356
      %v2389 = vpack.c.bf16 %v2357, %v2357
      %2422 = vrot.lane.b32.xlu0 %v2358, 96
      %v2423 = vpop.permute.xlu0 %2422
      %2424 = vrot.lane.b32.xlu0 %v2359, 96
      %v2425 = vpop.permute.xlu0 %2424
      %2426 = vrot.lane.b32.xlu0 %v2360, 96
      %v2427 = vpop.permute.xlu0 %2426
      %2428 = vrot.lane.b32.xlu0 %v2361, 96
      %v2429 = vpop.permute.xlu0 %2428
      %2430 = vrot.lane.b32.xlu0 %v2362, 96
      %v2431 = vpop.permute.xlu0 %2430
      %2432 = vrot.lane.b32.xlu0 %v2363, 96
      %v2433 = vpop.permute.xlu0 %2432
      %2434 = vrot.lane.b32.xlu0 %v2364, 96
      %v2435 = vpop.permute.xlu0 %2434
      %2436 = vrot.lane.b32.xlu0 %v2365, 96
      %v2437 = vpop.permute.xlu0 %2436
      %2438 = vrot.lane.b32.xlu0 %v2366, 96
      %v2439 = vpop.permute.xlu0 %2438
      %2440 = vrot.lane.b32.xlu0 %v2367, 96
      %v2441 = vpop.permute.xlu0 %2440
      %2442 = vrot.lane.b32.xlu0 %v2368, 96
      %v2443 = vpop.permute.xlu0 %2442
      %2444 = vrot.lane.b32.xlu0 %v2369, 96
      %v2445 = vpop.permute.xlu0 %2444
      %2446 = vrot.lane.b32.xlu0 %v2370, 96
      %v2447 = vpop.permute.xlu0 %2446
      %2448 = vrot.lane.b32.xlu0 %v2371, 96
      %v2449 = vpop.permute.xlu0 %2448
      %2450 = vrot.lane.b32.xlu0 %v2372, 96
      %v2451 = vpop.permute.xlu0 %2450
      %2452 = vrot.lane.b32.xlu0 %v2373, 96
      %v2453 = vpop.permute.xlu0 %2452
      %2454 = vrot.lane.b32.xlu0 %v2374, 96
      %v2455 = vpop.permute.xlu0 %2454
      %2456 = vrot.lane.b32.xlu0 %v2375, 96
      %v2457 = vpop.permute.xlu0 %2456
      %2458 = vrot.lane.b32.xlu0 %v2376, 96
      %v2459 = vpop.permute.xlu0 %2458
      %2460 = vrot.lane.b32.xlu0 %v2377, 96
      %v2461 = vpop.permute.xlu0 %2460
      %2462 = vrot.lane.b32.xlu0 %v2378, 96
      %v2463 = vpop.permute.xlu0 %2462
      %2464 = vrot.lane.b32.xlu0 %v2379, 96
      %v2465 = vpop.permute.xlu0 %2464
      %2466 = vrot.lane.b32.xlu0 %v2380, 96
      %v2467 = vpop.permute.xlu0 %2466
      %2468 = vrot.lane.b32.xlu0 %v2381, 96
      %v2469 = vpop.permute.xlu0 %2468
      %2470 = vrot.lane.b32.xlu0 %v2382, 96
      %v2471 = vpop.permute.xlu0 %2470
      %2472 = vrot.lane.b32.xlu0 %v2383, 96
      %v2473 = vpop.permute.xlu0 %2472
      %2474 = vrot.lane.b32.xlu0 %v2384, 96
      %v2475 = vpop.permute.xlu0 %2474
      %2476 = vrot.lane.b32.xlu0 %v2385, 96
      %v2477 = vpop.permute.xlu0 %2476
      %2478 = vrot.lane.b32.xlu0 %v2386, 96
      %v2479 = vpop.permute.xlu0 %2478
      %2480 = vrot.lane.b32.xlu0 %v2387, 96
      %v2481 = vpop.permute.xlu0 %2480
      %2482 = vrot.lane.b32.xlu0 %v2388, 96
      %v2483 = vpop.permute.xlu0 %2482
      %2484 = vrot.lane.b32.xlu0 %v2389, 96
      %v2485 = vpop.permute.xlu0 %2484
      %vm2518 = vcmask 1044224
      %2519 = vst.msk [vmem:[#allocation5] sm:$0xf] %vm2518, %v2423
      %2520 = vst.msk [vmem:[#allocation5 + $0x1c] sm:$0xf] %vm2518, %v2425
      %2521 = vst.msk [vmem:[#allocation5 + $0x38] sm:$0xf] %vm2518, %v2427
      %2522 = vst.msk [vmem:[#allocation5 + $0x54] sm:$0xf] %vm2518, %v2429
      %2523 = vst.msk [vmem:[#allocation5 + $0x70] sm:$0xf] %vm2518, %v2431
      %2524 = vst.msk [vmem:[#allocation5 + $0x8c] sm:$0xf] %vm2518, %v2433
      %2525 = vst.msk [vmem:[#allocation5 + $0xa8] sm:$0xf] %vm2518, %v2435
      %2526 = vst.msk [vmem:[#allocation5 + $0xc4] sm:$0xf] %vm2518, %v2437
      %2527 = vst.msk [vmem:[#allocation5 + $0xe0] sm:$0xf] %vm2518, %v2439
      %2528 = vst.msk [vmem:[#allocation5 + $0xfc] sm:$0xf] %vm2518, %v2441
      %2529 = vst.msk [vmem:[#allocation5 + $0x118] sm:$0xf] %vm2518, %v2443
      %2530 = vst.msk [vmem:[#allocation5 + $0x134] sm:$0xf] %vm2518, %v2445
      %2531 = vst.msk [vmem:[#allocation5 + $0x150] sm:$0xf] %vm2518, %v2447
      %2532 = vst.msk [vmem:[#allocation5 + $0x16c] sm:$0xf] %vm2518, %v2449
      %2533 = vst.msk [vmem:[#allocation5 + $0x188] sm:$0xf] %vm2518, %v2451
      %2534 = vst.msk [vmem:[#allocation5 + $0x1a4] sm:$0xf] %vm2518, %v2453
      %2535 = vst.msk [vmem:[#allocation5 + $0x1c0] sm:$0xf] %vm2518, %v2455
      %2536 = vst.msk [vmem:[#allocation5 + $0x1dc] sm:$0xf] %vm2518, %v2457
      %2537 = vst.msk [vmem:[#allocation5 + $0x1f8] sm:$0xf] %vm2518, %v2459
      %2538 = vst.msk [vmem:[#allocation5 + $0x214] sm:$0xf] %vm2518, %v2461
      %2539 = vst.msk [vmem:[#allocation5 + $0x230] sm:$0xf] %vm2518, %v2463
      %2540 = vst.msk [vmem:[#allocation5 + $0x24c] sm:$0xf] %vm2518, %v2465
      %2541 = vst.msk [vmem:[#allocation5 + $0x268] sm:$0xf] %vm2518, %v2467
      %2542 = vst.msk [vmem:[#allocation5 + $0x284] sm:$0xf] %vm2518, %v2469
      %2543 = vst.msk [vmem:[#allocation5 + $0x2a0] sm:$0xf] %vm2518, %v2471
      %2544 = vst.msk [vmem:[#allocation5 + $0x2bc] sm:$0xf] %vm2518, %v2473
      %2545 = vst.msk [vmem:[#allocation5 + $0x2d8] sm:$0xf] %vm2518, %v2475
      %2546 = vst.msk [vmem:[#allocation5 + $0x2f4] sm:$0xf] %vm2518, %v2477
      %2547 = vst.msk [vmem:[#allocation5 + $0x310] sm:$0xf] %vm2518, %v2479
      %2548 = vst.msk [vmem:[#allocation5 + $0x32c] sm:$0xf] %vm2518, %v2481
      %2549 = vst.msk [vmem:[#allocation5 + $0x348] sm:$0xf] %vm2518, %v2483
      %2550 = vst.msk [vmem:[#allocation5 + $0x364] sm:$0xf] %vm2518, %v2485
      %v2551 = vld [vmem:[#allocation4 + $0x4] sm:$0xff]
      %v2552 = vld [vmem:[#allocation4 + $0xc] sm:$0xff]
      %v2553 = vld [vmem:[#allocation4 + $0x14] sm:$0xff]
      %v2554 = vld [vmem:[#allocation4 + $0x1c] sm:$0xff]
      %v2555 = vld [vmem:[#allocation4 + $0x24] sm:$0xff]
      %v2556 = vld [vmem:[#allocation4 + $0x2c] sm:$0xff]
      %v2557 = vld [vmem:[#allocation4 + $0x34] sm:$0xff]
      %v2558 = vld [vmem:[#allocation4 + $0x3c] sm:$0xff]
      %v2559 = vld [vmem:[#allocation4 + $0x44] sm:$0xff]
      %v2560 = vld [vmem:[#allocation4 + $0x4c] sm:$0xff]
      %v2561 = vld [vmem:[#allocation4 + $0x54] sm:$0xff]
      %v2562 = vld [vmem:[#allocation4 + $0x5c] sm:$0xff]
      %v2563 = vld [vmem:[#allocation4 + $0x64] sm:$0xff]
      %v2564 = vld [vmem:[#allocation4 + $0x6c] sm:$0xff]
      %v2565 = vld [vmem:[#allocation4 + $0x74] sm:$0xff]
      %v2566 = vld [vmem:[#allocation4 + $0x7c] sm:$0xff]
      %v2567 = vld [vmem:[#allocation4 + $0x84] sm:$0xff]
      %v2568 = vld [vmem:[#allocation4 + $0x8c] sm:$0xff]
      %v2569 = vld [vmem:[#allocation4 + $0x94] sm:$0xff]
      %v2570 = vld [vmem:[#allocation4 + $0x9c] sm:$0xff]
      %v2571 = vld [vmem:[#allocation4 + $0xa4] sm:$0xff]
      %v2572 = vld [vmem:[#allocation4 + $0xac] sm:$0xff]
      %v2573 = vld [vmem:[#allocation4 + $0xb4] sm:$0xff]
      %v2574 = vld [vmem:[#allocation4 + $0xbc] sm:$0xff]
      %v2575 = vld [vmem:[#allocation4 + $0xc4] sm:$0xff]
      %v2576 = vld [vmem:[#allocation4 + $0xcc] sm:$0xff]
      %v2577 = vld [vmem:[#allocation4 + $0xd4] sm:$0xff]
      %v2578 = vld [vmem:[#allocation4 + $0xdc] sm:$0xff]
      %v2579 = vld [vmem:[#allocation4 + $0xe4] sm:$0xff]
      %v2580 = vld [vmem:[#allocation4 + $0xec] sm:$0xff]
      %v2581 = vld [vmem:[#allocation4 + $0xf4] sm:$0xff]
      %v2582 = vld [vmem:[#allocation4 + $0xfc] sm:$0xff]
      %v2583 = vpack.c.bf16 %v2551, %v2551
      %v2584 = vpack.c.bf16 %v2552, %v2552
      %v2585 = vpack.c.bf16 %v2553, %v2553
      %v2586 = vpack.c.bf16 %v2554, %v2554
      %v2587 = vpack.c.bf16 %v2555, %v2555
      %v2588 = vpack.c.bf16 %v2556, %v2556
      %v2589 = vpack.c.bf16 %v2557, %v2557
      %v2590 = vpack.c.bf16 %v2558, %v2558
      %v2591 = vpack.c.bf16 %v2559, %v2559
      %v2592 = vpack.c.bf16 %v2560, %v2560
      %v2593 = vpack.c.bf16 %v2561, %v2561
      %v2594 = vpack.c.bf16 %v2562, %v2562
      %v2595 = vpack.c.bf16 %v2563, %v2563
      %v2596 = vpack.c.bf16 %v2564, %v2564
      %v2597 = vpack.c.bf16 %v2565, %v2565
      %v2598 = vpack.c.bf16 %v2566, %v2566
      %v2599 = vpack.c.bf16 %v2567, %v2567
      %v2600 = vpack.c.bf16 %v2568, %v2568
      %v2601 = vpack.c.bf16 %v2569, %v2569
      %v2602 = vpack.c.bf16 %v2570, %v2570
      %v2603 = vpack.c.bf16 %v2571, %v2571
      %v2604 = vpack.c.bf16 %v2572, %v2572
      %v2605 = vpack.c.bf16 %v2573, %v2573
      %v2606 = vpack.c.bf16 %v2574, %v2574
      %v2607 = vpack.c.bf16 %v2575, %v2575
      %v2608 = vpack.c.bf16 %v2576, %v2576
      %v2609 = vpack.c.bf16 %v2577, %v2577
      %v2610 = vpack.c.bf16 %v2578, %v2578
      %v2611 = vpack.c.bf16 %v2579, %v2579
      %v2612 = vpack.c.bf16 %v2580, %v2580
      %v2613 = vpack.c.bf16 %v2581, %v2581
      %v2614 = vpack.c.bf16 %v2582, %v2582
      %2615 = vst.msk [vmem:[#allocation5 + $0x4] sm:$0xf] %vm1843, %v2583
      %2616 = vst.msk [vmem:[#allocation5 + $0x20] sm:$0xf] %vm1843, %v2584
      %2617 = vst.msk [vmem:[#allocation5 + $0x3c] sm:$0xf] %vm1843, %v2585
      %2618 = vst.msk [vmem:[#allocation5 + $0x58] sm:$0xf] %vm1843, %v2586
      %2619 = vst.msk [vmem:[#allocation5 + $0x74] sm:$0xf] %vm1843, %v2587
      %2620 = vst.msk [vmem:[#allocation5 + $0x90] sm:$0xf] %vm1843, %v2588
      %2621 = vst.msk [vmem:[#allocation5 + $0xac] sm:$0xf] %vm1843, %v2589
      %2622 = vst.msk [vmem:[#allocation5 + $0xc8] sm:$0xf] %vm1843, %v2590
      %2623 = vst.msk [vmem:[#allocation5 + $0xe4] sm:$0xf] %vm1843, %v2591
      %2624 = vst.msk [vmem:[#allocation5 + $0x100] sm:$0xf] %vm1843, %v2592
      %2625 = vst.msk [vmem:[#allocation5 + $0x11c] sm:$0xf] %vm1843, %v2593
      %2626 = vst.msk [vmem:[#allocation5 + $0x138] sm:$0xf] %vm1843, %v2594
      %2627 = vst.msk [vmem:[#allocation5 + $0x154] sm:$0xf] %vm1843, %v2595
      %2628 = vst.msk [vmem:[#allocation5 + $0x170] sm:$0xf] %vm1843, %v2596
      %2629 = vst.msk [vmem:[#allocation5 + $0x18c] sm:$0xf] %vm1843, %v2597
      %2630 = vst.msk [vmem:[#allocation5 + $0x1a8] sm:$0xf] %vm1843, %v2598
      %2631 = vst.msk [vmem:[#allocation5 + $0x1c4] sm:$0xf] %vm1843, %v2599
      %2632 = vst.msk [vmem:[#allocation5 + $0x1e0] sm:$0xf] %vm1843, %v2600
      %2633 = vst.msk [vmem:[#allocation5 + $0x1fc] sm:$0xf] %vm1843, %v2601
      %2634 = vst.msk [vmem:[#allocation5 + $0x218] sm:$0xf] %vm1843, %v2602
      %2635 = vst.msk [vmem:[#allocation5 + $0x234] sm:$0xf] %vm1843, %v2603
      %2636 = vst.msk [vmem:[#allocation5 + $0x250] sm:$0xf] %vm1843, %v2604
      %2637 = vst.msk [vmem:[#allocation5 + $0x26c] sm:$0xf] %vm1843, %v2605
      %2638 = vst.msk [vmem:[#allocation5 + $0x288] sm:$0xf] %vm1843, %v2606
      %2639 = vst.msk [vmem:[#allocation5 + $0x2a4] sm:$0xf] %vm1843, %v2607
      %2640 = vst.msk [vmem:[#allocation5 + $0x2c0] sm:$0xf] %vm1843, %v2608
      %2641 = vst.msk [vmem:[#allocation5 + $0x2dc] sm:$0xf] %vm1843, %v2609
      %2642 = vst.msk [vmem:[#allocation5 + $0x2f8] sm:$0xf] %vm1843, %v2610
      %2643 = vst.msk [vmem:[#allocation5 + $0x314] sm:$0xf] %vm1843, %v2611
      %2644 = vst.msk [vmem:[#allocation5 + $0x330] sm:$0xf] %vm1843, %v2612
      %2645 = vst.msk [vmem:[#allocation5 + $0x34c] sm:$0xf] %vm1843, %v2613
      %2646 = vst.msk [vmem:[#allocation5 + $0x368] sm:$0xf] %vm1843, %v2614
      %v2647 = vld [vmem:[#allocation4 + $0x12] sm:$0xff]
      %v2648 = vld [vmem:[#allocation4 + $0x1a] sm:$0xff]
      %v2649 = vld [vmem:[#allocation4 + $0x22] sm:$0xff]
      %v2650 = vld [vmem:[#allocation4 + $0x2a] sm:$0xff]
      %v2651 = vld [vmem:[#allocation4 + $0x32] sm:$0xff]
      %v2652 = vld [vmem:[#allocation4 + $0x3a] sm:$0xff]
      %v2653 = vld [vmem:[#allocation4 + $0x42] sm:$0xff]
      %v2654 = vld [vmem:[#allocation4 + $0x4a] sm:$0xff]
      %v2655 = vld [vmem:[#allocation4 + $0x52] sm:$0xff]
      %v2656 = vld [vmem:[#allocation4 + $0x5a] sm:$0xff]
      %v2657 = vld [vmem:[#allocation4 + $0x62] sm:$0xff]
      %v2658 = vld [vmem:[#allocation4 + $0x6a] sm:$0xff]
      %v2659 = vld [vmem:[#allocation4 + $0x72] sm:$0xff]
      %v2660 = vld [vmem:[#allocation4 + $0x7a] sm:$0xff]
      %v2661 = vld [vmem:[#allocation4 + $0x82] sm:$0xff]
      %v2662 = vld [vmem:[#allocation4 + $0x8a] sm:$0xff]
      %v2663 = vld [vmem:[#allocation4 + $0x92] sm:$0xff]
      %v2664 = vld [vmem:[#allocation4 + $0x9a] sm:$0xff]
      %v2665 = vld [vmem:[#allocation4 + $0xa2] sm:$0xff]
      %v2666 = vld [vmem:[#allocation4 + $0xaa] sm:$0xff]
      %v2667 = vld [vmem:[#allocation4 + $0xb2] sm:$0xff]
      %v2668 = vld [vmem:[#allocation4 + $0xba] sm:$0xff]
      %v2669 = vld [vmem:[#allocation4 + $0xc2] sm:$0xff]
      %v2670 = vld [vmem:[#allocation4 + $0xca] sm:$0xff]
      %v2671 = vld [vmem:[#allocation4 + $0xd2] sm:$0xff]
      %v2672 = vld [vmem:[#allocation4 + $0xda] sm:$0xff]
      %v2673 = vld [vmem:[#allocation4 + $0xe2] sm:$0xff]
      %v2674 = vld [vmem:[#allocation4 + $0xea] sm:$0xff]
      %v2675 = vld [vmem:[#allocation4 + $0xf2] sm:$0xff]
      %v2676 = vld [vmem:[#allocation4 + $0xfa] sm:$0xff]
      %v2677 = vld [vmem:[#allocation4 + $0x102] sm:$0xff]
      %v2678 = vld [vmem:[#allocation4 + $0x10a] sm:$0xff]
      %v2679 = vpack.c.bf16 %v2647, %v2647
      %v2680 = vpack.c.bf16 %v2648, %v2648
      %v2681 = vpack.c.bf16 %v2649, %v2649
      %v2682 = vpack.c.bf16 %v2650, %v2650
      %v2683 = vpack.c.bf16 %v2651, %v2651
      %v2684 = vpack.c.bf16 %v2652, %v2652
      %v2685 = vpack.c.bf16 %v2653, %v2653
      %v2686 = vpack.c.bf16 %v2654, %v2654
      %v2687 = vpack.c.bf16 %v2655, %v2655
      %v2688 = vpack.c.bf16 %v2656, %v2656
      %v2689 = vpack.c.bf16 %v2657, %v2657
      %v2690 = vpack.c.bf16 %v2658, %v2658
      %v2691 = vpack.c.bf16 %v2659, %v2659
      %v2692 = vpack.c.bf16 %v2660, %v2660
      %v2693 = vpack.c.bf16 %v2661, %v2661
      %v2694 = vpack.c.bf16 %v2662, %v2662
      %v2695 = vpack.c.bf16 %v2663, %v2663
      %v2696 = vpack.c.bf16 %v2664, %v2664
      %v2697 = vpack.c.bf16 %v2665, %v2665
      %v2698 = vpack.c.bf16 %v2666, %v2666
      %v2699 = vpack.c.bf16 %v2667, %v2667
      %v2700 = vpack.c.bf16 %v2668, %v2668
      %v2701 = vpack.c.bf16 %v2669, %v2669
      %v2702 = vpack.c.bf16 %v2670, %v2670
      %v2703 = vpack.c.bf16 %v2671, %v2671
      %v2704 = vpack.c.bf16 %v2672, %v2672
      %v2705 = vpack.c.bf16 %v2673, %v2673
      %v2706 = vpack.c.bf16 %v2674, %v2674
      %v2707 = vpack.c.bf16 %v2675, %v2675
      %v2708 = vpack.c.bf16 %v2676, %v2676
      %v2709 = vpack.c.bf16 %v2677, %v2677
      %v2710 = vpack.c.bf16 %v2678, %v2678
      %2743 = vrot.lane.b32.xlu0 %v2679, 32
      %v2744 = vpop.permute.xlu0 %2743
      %2745 = vrot.lane.b32.xlu0 %v2680, 32
      %v2746 = vpop.permute.xlu0 %2745
      %2747 = vrot.lane.b32.xlu0 %v2681, 32
      %v2748 = vpop.permute.xlu0 %2747
      %2749 = vrot.lane.b32.xlu0 %v2682, 32
      %v2750 = vpop.permute.xlu0 %2749
      %2751 = vrot.lane.b32.xlu0 %v2683, 32
      %v2752 = vpop.permute.xlu0 %2751
      %2753 = vrot.lane.b32.xlu0 %v2684, 32
      %v2754 = vpop.permute.xlu0 %2753
      %2755 = vrot.lane.b32.xlu0 %v2685, 32
      %v2756 = vpop.permute.xlu0 %2755
      %2757 = vrot.lane.b32.xlu0 %v2686, 32
      %v2758 = vpop.permute.xlu0 %2757
      %2759 = vrot.lane.b32.xlu0 %v2687, 32
      %v2760 = vpop.permute.xlu0 %2759
      %2761 = vrot.lane.b32.xlu0 %v2688, 32
      %v2762 = vpop.permute.xlu0 %2761
      %2763 = vrot.lane.b32.xlu0 %v2689, 32
      %v2764 = vpop.permute.xlu0 %2763
      %2765 = vrot.lane.b32.xlu0 %v2690, 32
      %v2766 = vpop.permute.xlu0 %2765
      %2767 = vrot.lane.b32.xlu0 %v2691, 32
      %v2768 = vpop.permute.xlu0 %2767
      %2769 = vrot.lane.b32.xlu0 %v2692, 32
      %v2770 = vpop.permute.xlu0 %2769
      %2771 = vrot.lane.b32.xlu0 %v2693, 32
      %v2772 = vpop.permute.xlu0 %2771
      %2773 = vrot.lane.b32.xlu0 %v2694, 32
      %v2774 = vpop.permute.xlu0 %2773
      %2775 = vrot.lane.b32.xlu0 %v2695, 32
      %v2776 = vpop.permute.xlu0 %2775
      %2777 = vrot.lane.b32.xlu0 %v2696, 32
      %v2778 = vpop.permute.xlu0 %2777
      %2779 = vrot.lane.b32.xlu0 %v2697, 32
      %v2780 = vpop.permute.xlu0 %2779
      %2781 = vrot.lane.b32.xlu0 %v2698, 32
      %v2782 = vpop.permute.xlu0 %2781
      %2783 = vrot.lane.b32.xlu0 %v2699, 32
      %v2784 = vpop.permute.xlu0 %2783
      %2785 = vrot.lane.b32.xlu0 %v2700, 32
      %v2786 = vpop.permute.xlu0 %2785
      %2787 = vrot.lane.b32.xlu0 %v2701, 32
      %v2788 = vpop.permute.xlu0 %2787
      %2789 = vrot.lane.b32.xlu0 %v2702, 32
      %v2790 = vpop.permute.xlu0 %2789
      %2791 = vrot.lane.b32.xlu0 %v2703, 32
      %v2792 = vpop.permute.xlu0 %2791
      %2793 = vrot.lane.b32.xlu0 %v2704, 32
      %v2794 = vpop.permute.xlu0 %2793
      %2795 = vrot.lane.b32.xlu0 %v2705, 32
      %v2796 = vpop.permute.xlu0 %2795
      %2797 = vrot.lane.b32.xlu0 %v2706, 32
      %v2798 = vpop.permute.xlu0 %2797
      %2799 = vrot.lane.b32.xlu0 %v2707, 32
      %v2800 = vpop.permute.xlu0 %2799
      %2801 = vrot.lane.b32.xlu0 %v2708, 32
      %v2802 = vpop.permute.xlu0 %2801
      %2803 = vrot.lane.b32.xlu0 %v2709, 32
      %v2804 = vpop.permute.xlu0 %2803
      %2805 = vrot.lane.b32.xlu0 %v2710, 32
      %v2806 = vpop.permute.xlu0 %2805
      %2839 = vst.msk [vmem:[#allocation5 + $0x4] sm:$0xf] %vm2068, %v2744
      %2840 = vst.msk [vmem:[#allocation5 + $0x20] sm:$0xf] %vm2068, %v2746
      %2841 = vst.msk [vmem:[#allocation5 + $0x3c] sm:$0xf] %vm2068, %v2748
      %2842 = vst.msk [vmem:[#allocation5 + $0x58] sm:$0xf] %vm2068, %v2750
      %2843 = vst.msk [vmem:[#allocation5 + $0x74] sm:$0xf] %vm2068, %v2752
      %2844 = vst.msk [vmem:[#allocation5 + $0x90] sm:$0xf] %vm2068, %v2754
      %2845 = vst.msk [vmem:[#allocation5 + $0xac] sm:$0xf] %vm2068, %v2756
      %2846 = vst.msk [vmem:[#allocation5 + $0xc8] sm:$0xf] %vm2068, %v2758
      %2847 = vst.msk [vmem:[#allocation5 + $0xe4] sm:$0xf] %vm2068, %v2760
      %2848 = vst.msk [vmem:[#allocation5 + $0x100] sm:$0xf] %vm2068, %v2762
      %2849 = vst.msk [vmem:[#allocation5 + $0x11c] sm:$0xf] %vm2068, %v2764
      %2850 = vst.msk [vmem:[#allocation5 + $0x138] sm:$0xf] %vm2068, %v2766
      %2851 = vst.msk [vmem:[#allocation5 + $0x154] sm:$0xf] %vm2068, %v2768
      %2852 = vst.msk [vmem:[#allocation5 + $0x170] sm:$0xf] %vm2068, %v2770
      %2853 = vst.msk [vmem:[#allocation5 + $0x18c] sm:$0xf] %vm2068, %v2772
      %2854 = vst.msk [vmem:[#allocation5 + $0x1a8] sm:$0xf] %vm2068, %v2774
      %2855 = vst.msk [vmem:[#allocation5 + $0x1c4] sm:$0xf] %vm2068, %v2776
      %2856 = vst.msk [vmem:[#allocation5 + $0x1e0] sm:$0xf] %vm2068, %v2778
      %2857 = vst.msk [vmem:[#allocation5 + $0x1fc] sm:$0xf] %vm2068, %v2780
      %2858 = vst.msk [vmem:[#allocation5 + $0x218] sm:$0xf] %vm2068, %v2782
      %2859 = vst.msk [vmem:[#allocation5 + $0x234] sm:$0xf] %vm2068, %v2784
      %2860 = vst.msk [vmem:[#allocation5 + $0x250] sm:$0xf] %vm2068, %v2786
      %2861 = vst.msk [vmem:[#allocation5 + $0x26c] sm:$0xf] %vm2068, %v2788
      %2862 = vst.msk [vmem:[#allocation5 + $0x288] sm:$0xf] %vm2068, %v2790
      %2863 = vst.msk [vmem:[#allocation5 + $0x2a4] sm:$0xf] %vm2068, %v2792
      %2864 = vst.msk [vmem:[#allocation5 + $0x2c0] sm:$0xf] %vm2068, %v2794
      %2865 = vst.msk [vmem:[#allocation5 + $0x2dc] sm:$0xf] %vm2068, %v2796
      %2866 = vst.msk [vmem:[#allocation5 + $0x2f8] sm:$0xf] %vm2068, %v2798
      %2867 = vst.msk [vmem:[#allocation5 + $0x314] sm:$0xf] %vm2068, %v2800
      %2868 = vst.msk [vmem:[#allocation5 + $0x330] sm:$0xf] %vm2068, %v2802
      %2869 = vst.msk [vmem:[#allocation5 + $0x34c] sm:$0xf] %vm2068, %v2804
      %2870 = vst.msk [vmem:[#allocation5 + $0x368] sm:$0xf] %vm2068, %v2806
      %v2871 = vld [vmem:[#allocation4 + $0x13] sm:$0xff]
      %v2872 = vld [vmem:[#allocation4 + $0x1b] sm:$0xff]
      %v2873 = vld [vmem:[#allocation4 + $0x23] sm:$0xff]
      %v2874 = vld [vmem:[#allocation4 + $0x2b] sm:$0xff]
      %v2875 = vld [vmem:[#allocation4 + $0x33] sm:$0xff]
      %v2876 = vld [vmem:[#allocation4 + $0x3b] sm:$0xff]
      %v2877 = vld [vmem:[#allocation4 + $0x43] sm:$0xff]
      %v2878 = vld [vmem:[#allocation4 + $0x4b] sm:$0xff]
      %v2879 = vld [vmem:[#allocation4 + $0x53] sm:$0xff]
      %v2880 = vld [vmem:[#allocation4 + $0x5b] sm:$0xff]
      %v2881 = vld [vmem:[#allocation4 + $0x63] sm:$0xff]
      %v2882 = vld [vmem:[#allocation4 + $0x6b] sm:$0xff]
      %v2883 = vld [vmem:[#allocation4 + $0x73] sm:$0xff]
      %v2884 = vld [vmem:[#allocation4 + $0x7b] sm:$0xff]
      %v2885 = vld [vmem:[#allocation4 + $0x83] sm:$0xff]
      %v2886 = vld [vmem:[#allocation4 + $0x8b] sm:$0xff]
      %v2887 = vld [vmem:[#allocation4 + $0x93] sm:$0xff]
      %v2888 = vld [vmem:[#allocation4 + $0x9b] sm:$0xff]
      %v2889 = vld [vmem:[#allocation4 + $0xa3] sm:$0xff]
      %v2890 = vld [vmem:[#allocation4 + $0xab] sm:$0xff]
      %v2891 = vld [vmem:[#allocation4 + $0xb3] sm:$0xff]
      %v2892 = vld [vmem:[#allocation4 + $0xbb] sm:$0xff]
      %v2893 = vld [vmem:[#allocation4 + $0xc3] sm:$0xff]
      %v2894 = vld [vmem:[#allocation4 + $0xcb] sm:$0xff]
      %v2895 = vld [vmem:[#allocation4 + $0xd3] sm:$0xff]
      %v2896 = vld [vmem:[#allocation4 + $0xdb] sm:$0xff]
      %v2897 = vld [vmem:[#allocation4 + $0xe3] sm:$0xff]
      %v2898 = vld [vmem:[#allocation4 + $0xeb] sm:$0xff]
      %v2899 = vld [vmem:[#allocation4 + $0xf3] sm:$0xff]
      %v2900 = vld [vmem:[#allocation4 + $0xfb] sm:$0xff]
      %v2901 = vld [vmem:[#allocation4 + $0x103] sm:$0xff]
      %v2902 = vld [vmem:[#allocation4 + $0x10b] sm:$0xff]
      %v2903 = vpack.c.bf16 %v2871, %v2871
      %v2904 = vpack.c.bf16 %v2872, %v2872
      %v2905 = vpack.c.bf16 %v2873, %v2873
      %v2906 = vpack.c.bf16 %v2874, %v2874
      %v2907 = vpack.c.bf16 %v2875, %v2875
      %v2908 = vpack.c.bf16 %v2876, %v2876
      %v2909 = vpack.c.bf16 %v2877, %v2877
      %v2910 = vpack.c.bf16 %v2878, %v2878
      %v2911 = vpack.c.bf16 %v2879, %v2879
      %v2912 = vpack.c.bf16 %v2880, %v2880
      %v2913 = vpack.c.bf16 %v2881, %v2881
      %v2914 = vpack.c.bf16 %v2882, %v2882
      %v2915 = vpack.c.bf16 %v2883, %v2883
      %v2916 = vpack.c.bf16 %v2884, %v2884
      %v2917 = vpack.c.bf16 %v2885, %v2885
      %v2918 = vpack.c.bf16 %v2886, %v2886
      %v2919 = vpack.c.bf16 %v2887, %v2887
      %v2920 = vpack.c.bf16 %v2888, %v2888
      %v2921 = vpack.c.bf16 %v2889, %v2889
      %v2922 = vpack.c.bf16 %v2890, %v2890
      %v2923 = vpack.c.bf16 %v2891, %v2891
      %v2924 = vpack.c.bf16 %v2892, %v2892
      %v2925 = vpack.c.bf16 %v2893, %v2893
      %v2926 = vpack.c.bf16 %v2894, %v2894
      %v2927 = vpack.c.bf16 %v2895, %v2895
      %v2928 = vpack.c.bf16 %v2896, %v2896
      %v2929 = vpack.c.bf16 %v2897, %v2897
      %v2930 = vpack.c.bf16 %v2898, %v2898
      %v2931 = vpack.c.bf16 %v2899, %v2899
      %v2932 = vpack.c.bf16 %v2900, %v2900
      %v2933 = vpack.c.bf16 %v2901, %v2901
      %v2934 = vpack.c.bf16 %v2902, %v2902
      %2967 = vrot.lane.b32.xlu0 %v2903, 64
      %v2968 = vpop.permute.xlu0 %2967
      %2969 = vrot.lane.b32.xlu0 %v2904, 64
      %v2970 = vpop.permute.xlu0 %2969
      %2971 = vrot.lane.b32.xlu0 %v2905, 64
      %v2972 = vpop.permute.xlu0 %2971
      %2973 = vrot.lane.b32.xlu0 %v2906, 64
      %v2974 = vpop.permute.xlu0 %2973
      %2975 = vrot.lane.b32.xlu0 %v2907, 64
      %v2976 = vpop.permute.xlu0 %2975
      %2977 = vrot.lane.b32.xlu0 %v2908, 64
      %v2978 = vpop.permute.xlu0 %2977
      %2979 = vrot.lane.b32.xlu0 %v2909, 64
      %v2980 = vpop.permute.xlu0 %2979
      %2981 = vrot.lane.b32.xlu0 %v2910, 64
      %v2982 = vpop.permute.xlu0 %2981
      %2983 = vrot.lane.b32.xlu0 %v2911, 64
      %v2984 = vpop.permute.xlu0 %2983
      %2985 = vrot.lane.b32.xlu0 %v2912, 64
      %v2986 = vpop.permute.xlu0 %2985
      %2987 = vrot.lane.b32.xlu0 %v2913, 64
      %v2988 = vpop.permute.xlu0 %2987
      %2989 = vrot.lane.b32.xlu0 %v2914, 64
      %v2990 = vpop.permute.xlu0 %2989
      %2991 = vrot.lane.b32.xlu0 %v2915, 64
      %v2992 = vpop.permute.xlu0 %2991
      %2993 = vrot.lane.b32.xlu0 %v2916, 64
      %v2994 = vpop.permute.xlu0 %2993
      %2995 = vrot.lane.b32.xlu0 %v2917, 64
      %v2996 = vpop.permute.xlu0 %2995
      %2997 = vrot.lane.b32.xlu0 %v2918, 64
      %v2998 = vpop.permute.xlu0 %2997
      %2999 = vrot.lane.b32.xlu0 %v2919, 64
      %v3000 = vpop.permute.xlu0 %2999
      %3001 = vrot.lane.b32.xlu0 %v2920, 64
      %v3002 = vpop.permute.xlu0 %3001
      %3003 = vrot.lane.b32.xlu0 %v2921, 64
      %v3004 = vpop.permute.xlu0 %3003
      %3005 = vrot.lane.b32.xlu0 %v2922, 64
      %v3006 = vpop.permute.xlu0 %3005
      %3007 = vrot.lane.b32.xlu0 %v2923, 64
      %v3008 = vpop.permute.xlu0 %3007
      %3009 = vrot.lane.b32.xlu0 %v2924, 64
      %v3010 = vpop.permute.xlu0 %3009
      %3011 = vrot.lane.b32.xlu0 %v2925, 64
      %v3012 = vpop.permute.xlu0 %3011
      %3013 = vrot.lane.b32.xlu0 %v2926, 64
      %v3014 = vpop.permute.xlu0 %3013
      %3015 = vrot.lane.b32.xlu0 %v2927, 64
      %v3016 = vpop.permute.xlu0 %3015
      %3017 = vrot.lane.b32.xlu0 %v2928, 64
      %v3018 = vpop.permute.xlu0 %3017
      %3019 = vrot.lane.b32.xlu0 %v2929, 64
      %v3020 = vpop.permute.xlu0 %3019
      %3021 = vrot.lane.b32.xlu0 %v2930, 64
      %v3022 = vpop.permute.xlu0 %3021
      %3023 = vrot.lane.b32.xlu0 %v2931, 64
      %v3024 = vpop.permute.xlu0 %3023
      %3025 = vrot.lane.b32.xlu0 %v2932, 64
      %v3026 = vpop.permute.xlu0 %3025
      %3027 = vrot.lane.b32.xlu0 %v2933, 64
      %v3028 = vpop.permute.xlu0 %3027
      %3029 = vrot.lane.b32.xlu0 %v2934, 64
      %v3030 = vpop.permute.xlu0 %3029
      %3063 = vst.msk [vmem:[#allocation5 + $0x4] sm:$0xf] %vm2293, %v2968
      %3064 = vst.msk [vmem:[#allocation5 + $0x20] sm:$0xf] %vm2293, %v2970
      %3065 = vst.msk [vmem:[#allocation5 + $0x3c] sm:$0xf] %vm2293, %v2972
      %3066 = vst.msk [vmem:[#allocation5 + $0x58] sm:$0xf] %vm2293, %v2974
      %3067 = vst.msk [vmem:[#allocation5 + $0x74] sm:$0xf] %vm2293, %v2976
      %3068 = vst.msk [vmem:[#allocation5 + $0x90] sm:$0xf] %vm2293, %v2978
      %3069 = vst.msk [vmem:[#allocation5 + $0xac] sm:$0xf] %vm2293, %v2980
      %3070 = vst.msk [vmem:[#allocation5 + $0xc8] sm:$0xf] %vm2293, %v2982
      %3071 = vst.msk [vmem:[#allocation5 + $0xe4] sm:$0xf] %vm2293, %v2984
      %3072 = vst.msk [vmem:[#allocation5 + $0x100] sm:$0xf] %vm2293, %v2986
      %3073 = vst.msk [vmem:[#allocation5 + $0x11c] sm:$0xf] %vm2293, %v2988
      %3074 = vst.msk [vmem:[#allocation5 + $0x138] sm:$0xf] %vm2293, %v2990
      %3075 = vst.msk [vmem:[#allocation5 + $0x154] sm:$0xf] %vm2293, %v2992
      %3076 = vst.msk [vmem:[#allocation5 + $0x170] sm:$0xf] %vm2293, %v2994
      %3077 = vst.msk [vmem:[#allocation5 + $0x18c] sm:$0xf] %vm2293, %v2996
      %3078 = vst.msk [vmem:[#allocation5 + $0x1a8] sm:$0xf] %vm2293, %v2998
      %3079 = vst.msk [vmem:[#allocation5 + $0x1c4] sm:$0xf] %vm2293, %v3000
      %3080 = vst.msk [vmem:[#allocation5 + $0x1e0] sm:$0xf] %vm2293, %v3002
      %3081 = vst.msk [vmem:[#allocation5 + $0x1fc] sm:$0xf] %vm2293, %v3004
      %3082 = vst.msk [vmem:[#allocation5 + $0x218] sm:$0xf] %vm2293, %v3006
      %3083 = vst.msk [vmem:[#allocation5 + $0x234] sm:$0xf] %vm2293, %v3008
      %3084 = vst.msk [vmem:[#allocation5 + $0x250] sm:$0xf] %vm2293, %v3010
      %3085 = vst.msk [vmem:[#allocation5 + $0x26c] sm:$0xf] %vm2293, %v3012
      %3086 = vst.msk [vmem:[#allocation5 + $0x288] sm:$0xf] %vm2293, %v3014
      %3087 = vst.msk [vmem:[#allocation5 + $0x2a4] sm:$0xf] %vm2293, %v3016
      %3088 = vst.msk [vmem:[#allocation5 + $0x2c0] sm:$0xf] %vm2293, %v3018
      %3089 = vst.msk [vmem:[#allocation5 + $0x2dc] sm:$0xf] %vm2293, %v3020
      %3090 = vst.msk [vmem:[#allocation5 + $0x2f8] sm:$0xf] %vm2293, %v3022
      %3091 = vst.msk [vmem:[#allocation5 + $0x314] sm:$0xf] %vm2293, %v3024
      %3092 = vst.msk [vmem:[#allocation5 + $0x330] sm:$0xf] %vm2293, %v3026
      %3093 = vst.msk [vmem:[#allocation5 + $0x34c] sm:$0xf] %vm2293, %v3028
      %3094 = vst.msk [vmem:[#allocation5 + $0x368] sm:$0xf] %vm2293, %v3030
      %v3095 = vld [vmem:[#allocation4 + $0x14] sm:$0xff]
      %v3096 = vld [vmem:[#allocation4 + $0x1c] sm:$0xff]
      %v3097 = vld [vmem:[#allocation4 + $0x24] sm:$0xff]
      %v3098 = vld [vmem:[#allocation4 + $0x2c] sm:$0xff]
      %v3099 = vld [vmem:[#allocation4 + $0x34] sm:$0xff]
      %v3100 = vld [vmem:[#allocation4 + $0x3c] sm:$0xff]
      %v3101 = vld [vmem:[#allocation4 + $0x44] sm:$0xff]
      %v3102 = vld [vmem:[#allocation4 + $0x4c] sm:$0xff]
      %v3103 = vld [vmem:[#allocation4 + $0x54] sm:$0xff]
      %v3104 = vld [vmem:[#allocation4 + $0x5c] sm:$0xff]
      %v3105 = vld [vmem:[#allocation4 + $0x64] sm:$0xff]
      %v3106 = vld [vmem:[#allocation4 + $0x6c] sm:$0xff]
      %v3107 = vld [vmem:[#allocation4 + $0x74] sm:$0xff]
      %v3108 = vld [vmem:[#allocation4 + $0x7c] sm:$0xff]
      %v3109 = vld [vmem:[#allocation4 + $0x84] sm:$0xff]
      %v3110 = vld [vmem:[#allocation4 + $0x8c] sm:$0xff]
      %v3111 = vld [vmem:[#allocation4 + $0x94] sm:$0xff]
      %v3112 = vld [vmem:[#allocation4 + $0x9c] sm:$0xff]
      %v3113 = vld [vmem:[#allocation4 + $0xa4] sm:$0xff]
      %v3114 = vld [vmem:[#allocation4 + $0xac] sm:$0xff]
      %v3115 = vld [vmem:[#allocation4 + $0xb4] sm:$0xff]
      %v3116 = vld [vmem:[#allocation4 + $0xbc] sm:$0xff]
      %v3117 = vld [vmem:[#allocation4 + $0xc4] sm:$0xff]
      %v3118 = vld [vmem:[#allocation4 + $0xcc] sm:$0xff]
      %v3119 = vld [vmem:[#allocation4 + $0xd4] sm:$0xff]
      %v3120 = vld [vmem:[#allocation4 + $0xdc] sm:$0xff]
      %v3121 = vld [vmem:[#allocation4 + $0xe4] sm:$0xff]
      %v3122 = vld [vmem:[#allocation4 + $0xec] sm:$0xff]
      %v3123 = vld [vmem:[#allocation4 + $0xf4] sm:$0xff]
      %v3124 = vld [vmem:[#allocation4 + $0xfc] sm:$0xff]
      %v3125 = vld [vmem:[#allocation4 + $0x104] sm:$0xff]
      %v3126 = vld [vmem:[#allocation4 + $0x10c] sm:$0xff]
      %v3127 = vpack.c.bf16 %v3095, %v3095
      %v3128 = vpack.c.bf16 %v3096, %v3096
      %v3129 = vpack.c.bf16 %v3097, %v3097
      %v3130 = vpack.c.bf16 %v3098, %v3098
      %v3131 = vpack.c.bf16 %v3099, %v3099
      %v3132 = vpack.c.bf16 %v3100, %v3100
      %v3133 = vpack.c.bf16 %v3101, %v3101
      %v3134 = vpack.c.bf16 %v3102, %v3102
      %v3135 = vpack.c.bf16 %v3103, %v3103
      %v3136 = vpack.c.bf16 %v3104, %v3104
      %v3137 = vpack.c.bf16 %v3105, %v3105
      %v3138 = vpack.c.bf16 %v3106, %v3106
      %v3139 = vpack.c.bf16 %v3107, %v3107
      %v3140 = vpack.c.bf16 %v3108, %v3108
      %v3141 = vpack.c.bf16 %v3109, %v3109
      %v3142 = vpack.c.bf16 %v3110, %v3110
      %v3143 = vpack.c.bf16 %v3111, %v3111
      %v3144 = vpack.c.bf16 %v3112, %v3112
      %v3145 = vpack.c.bf16 %v3113, %v3113
      %v3146 = vpack.c.bf16 %v3114, %v3114
      %v3147 = vpack.c.bf16 %v3115, %v3115
      %v3148 = vpack.c.bf16 %v3116, %v3116
      %v3149 = vpack.c.bf16 %v3117, %v3117
      %v3150 = vpack.c.bf16 %v3118, %v3118
      %v3151 = vpack.c.bf16 %v3119, %v3119
      %v3152 = vpack.c.bf16 %v3120, %v3120
      %v3153 = vpack.c.bf16 %v3121, %v3121
      %v3154 = vpack.c.bf16 %v3122, %v3122
      %v3155 = vpack.c.bf16 %v3123, %v3123
      %v3156 = vpack.c.bf16 %v3124, %v3124
      %v3157 = vpack.c.bf16 %v3125, %v3125
      %v3158 = vpack.c.bf16 %v3126, %v3126
      %3191 = vrot.lane.b32.xlu0 %v3127, 96
      %v3192 = vpop.permute.xlu0 %3191
      %3193 = vrot.lane.b32.xlu0 %v3128, 96
      %v3194 = vpop.permute.xlu0 %3193
      %3195 = vrot.lane.b32.xlu0 %v3129, 96
      %v3196 = vpop.permute.xlu0 %3195
      %3197 = vrot.lane.b32.xlu0 %v3130, 96
      %v3198 = vpop.permute.xlu0 %3197
      %3199 = vrot.lane.b32.xlu0 %v3131, 96
      %v3200 = vpop.permute.xlu0 %3199
      %3201 = vrot.lane.b32.xlu0 %v3132, 96
      %v3202 = vpop.permute.xlu0 %3201
      %3203 = vrot.lane.b32.xlu0 %v3133, 96
      %v3204 = vpop.permute.xlu0 %3203
      %3205 = vrot.lane.b32.xlu0 %v3134, 96
      %v3206 = vpop.permute.xlu0 %3205
      %3207 = vrot.lane.b32.xlu0 %v3135, 96
      %v3208 = vpop.permute.xlu0 %3207
      %3209 = vrot.lane.b32.xlu0 %v3136, 96
      %v3210 = vpop.permute.xlu0 %3209
      %3211 = vrot.lane.b32.xlu0 %v3137, 96
      %v3212 = vpop.permute.xlu0 %3211
      %3213 = vrot.lane.b32.xlu0 %v3138, 96
      %v3214 = vpop.permute.xlu0 %3213
      %3215 = vrot.lane.b32.xlu0 %v3139, 96
      %v3216 = vpop.permute.xlu0 %3215
      %3217 = vrot.lane.b32.xlu0 %v3140, 96
      %v3218 = vpop.permute.xlu0 %3217
      %3219 = vrot.lane.b32.xlu0 %v3141, 96
      %v3220 = vpop.permute.xlu0 %3219
      %3221 = vrot.lane.b32.xlu0 %v3142, 96
      %v3222 = vpop.permute.xlu0 %3221
      %3223 = vrot.lane.b32.xlu0 %v3143, 96
      %v3224 = vpop.permute.xlu0 %3223
      %3225 = vrot.lane.b32.xlu0 %v3144, 96
      %v3226 = vpop.permute.xlu0 %3225
      %3227 = vrot.lane.b32.xlu0 %v3145, 96
      %v3228 = vpop.permute.xlu0 %3227
      %3229 = vrot.lane.b32.xlu0 %v3146, 96
      %v3230 = vpop.permute.xlu0 %3229
      %3231 = vrot.lane.b32.xlu0 %v3147, 96
      %v3232 = vpop.permute.xlu0 %3231
      %3233 = vrot.lane.b32.xlu0 %v3148, 96
      %v3234 = vpop.permute.xlu0 %3233
      %3235 = vrot.lane.b32.xlu0 %v3149, 96
      %v3236 = vpop.permute.xlu0 %3235
      %3237 = vrot.lane.b32.xlu0 %v3150, 96
      %v3238 = vpop.permute.xlu0 %3237
      %3239 = vrot.lane.b32.xlu0 %v3151, 96
      %v3240 = vpop.permute.xlu0 %3239
      %3241 = vrot.lane.b32.xlu0 %v3152, 96
      %v3242 = vpop.permute.xlu0 %3241
      %3243 = vrot.lane.b32.xlu0 %v3153, 96
      %v3244 = vpop.permute.xlu0 %3243
      %3245 = vrot.lane.b32.xlu0 %v3154, 96
      %v3246 = vpop.permute.xlu0 %3245
      %3247 = vrot.lane.b32.xlu0 %v3155, 96
      %v3248 = vpop.permute.xlu0 %3247
      %3249 = vrot.lane.b32.xlu0 %v3156, 96
      %v3250 = vpop.permute.xlu0 %3249
      %3251 = vrot.lane.b32.xlu0 %v3157, 96
      %v3252 = vpop.permute.xlu0 %3251
      %3253 = vrot.lane.b32.xlu0 %v3158, 96
      %v3254 = vpop.permute.xlu0 %3253
      %3287 = vst.msk [vmem:[#allocation5 + $0x4] sm:$0xf] %vm2518, %v3192
      %3288 = vst.msk [vmem:[#allocation5 + $0x20] sm:$0xf] %vm2518, %v3194
      %3289 = vst.msk [vmem:[#allocation5 + $0x3c] sm:$0xf] %vm2518, %v3196
      %3290 = vst.msk [vmem:[#allocation5 + $0x58] sm:$0xf] %vm2518, %v3198
      %3291 = vst.msk [vmem:[#allocation5 + $0x74] sm:$0xf] %vm2518, %v3200
      %3292 = vst.msk [vmem:[#allocation5 + $0x90] sm:$0xf] %vm2518, %v3202
      %3293 = vst.msk [vmem:[#allocation5 + $0xac] sm:$0xf] %vm2518, %v3204
      %3294 = vst.msk [vmem:[#allocation5 + $0xc8] sm:$0xf] %vm2518, %v3206
      %3295 = vst.msk [vmem:[#allocation5 + $0xe4] sm:$0xf] %vm2518, %v3208
      %3296 = vst.msk [vmem:[#allocation5 + $0x100] sm:$0xf] %vm2518, %v3210
      %3297 = vst.msk [vmem:[#allocation5 + $0x11c] sm:$0xf] %vm2518, %v3212
      %3298 = vst.msk [vmem:[#allocation5 + $0x138] sm:$0xf] %vm2518, %v3214
      %3299 = vst.msk [vmem:[#allocation5 + $0x154] sm:$0xf] %vm2518, %v3216
      %3300 = vst.msk [vmem:[#allocation5 + $0x170] sm:$0xf] %vm2518, %v3218
      %3301 = vst.msk [vmem:[#allocation5 + $0x18c] sm:$0xf] %vm2518, %v3220
      %3302 = vst.msk [vmem:[#allocation5 + $0x1a8] sm:$0xf] %vm2518, %v3222
      %3303 = vst.msk [vmem:[#allocation5 + $0x1c4] sm:$0xf] %vm2518, %v3224
      %3304 = vst.msk [vmem:[#allocation5 + $0x1e0] sm:$0xf] %vm2518, %v3226
      %3305 = vst.msk [vmem:[#allocation5 + $0x1fc] sm:$0xf] %vm2518, %v3228
      %3306 = vst.msk [vmem:[#allocation5 + $0x218] sm:$0xf] %vm2518, %v3230
      %3307 = vst.msk [vmem:[#allocation5 + $0x234] sm:$0xf] %vm2518, %v3232
      %3308 = vst.msk [vmem:[#allocation5 + $0x250] sm:$0xf] %vm2518, %v3234
      %3309 = vst.msk [vmem:[#allocation5 + $0x26c] sm:$0xf] %vm2518, %v3236
      %3310 = vst.msk [vmem:[#allocation5 + $0x288] sm:$0xf] %vm2518, %v3238
      %3311 = vst.msk [vmem:[#allocation5 + $0x2a4] sm:$0xf] %vm2518, %v3240
      %3312 = vst.msk [vmem:[#allocation5 + $0x2c0] sm:$0xf] %vm2518, %v3242
      %3313 = vst.msk [vmem:[#allocation5 + $0x2dc] sm:$0xf] %vm2518, %v3244
      %3314 = vst.msk [vmem:[#allocation5 + $0x2f8] sm:$0xf] %vm2518, %v3246
      %3315 = vst.msk [vmem:[#allocation5 + $0x314] sm:$0xf] %vm2518, %v3248
      %3316 = vst.msk [vmem:[#allocation5 + $0x330] sm:$0xf] %vm2518, %v3250
      %3317 = vst.msk [vmem:[#allocation5 + $0x34c] sm:$0xf] %vm2518, %v3252
      %3318 = vst.msk [vmem:[#allocation5 + $0x368] sm:$0xf] %vm2518, %v3254
      %v3319 = vld [vmem:[#allocation4 + $0x15] sm:$0xff]
      %v3320 = vld [vmem:[#allocation4 + $0x1d] sm:$0xff]
      %v3321 = vld [vmem:[#allocation4 + $0x25] sm:$0xff]
      %v3322 = vld [vmem:[#allocation4 + $0x2d] sm:$0xff]
      %v3323 = vld [vmem:[#allocation4 + $0x35] sm:$0xff]
      %v3324 = vld [vmem:[#allocation4 + $0x3d] sm:$0xff]
      %v3325 = vld [vmem:[#allocation4 + $0x45] sm:$0xff]
      %v3326 = vld [vmem:[#allocation4 + $0x4d] sm:$0xff]
      %v3327 = vld [vmem:[#allocation4 + $0x55] sm:$0xff]
      %v3328 = vld [vmem:[#allocation4 + $0x5d] sm:$0xff]
      %v3329 = vld [vmem:[#allocation4 + $0x65] sm:$0xff]
      %v3330 = vld [vmem:[#allocation4 + $0x6d] sm:$0xff]
      %v3331 = vld [vmem:[#allocation4 + $0x75] sm:$0xff]
      %v3332 = vld [vmem:[#allocation4 + $0x7d] sm:$0xff]
      %v3333 = vld [vmem:[#allocation4 + $0x85] sm:$0xff]
      %v3334 = vld [vmem:[#allocation4 + $0x8d] sm:$0xff]
      %v3335 = vld [vmem:[#allocation4 + $0x95] sm:$0xff]
      %v3336 = vld [vmem:[#allocation4 + $0x9d] sm:$0xff]
      %v3337 = vld [vmem:[#allocation4 + $0xa5] sm:$0xff]
      %v3338 = vld [vmem:[#allocation4 + $0xad] sm:$0xff]
      %v3339 = vld [vmem:[#allocation4 + $0xb5] sm:$0xff]
      %v3340 = vld [vmem:[#allocation4 + $0xbd] sm:$0xff]
      %v3341 = vld [vmem:[#allocation4 + $0xc5] sm:$0xff]
      %v3342 = vld [vmem:[#allocation4 + $0xcd] sm:$0xff]
      %v3343 = vld [vmem:[#allocation4 + $0xd5] sm:$0xff]
      %v3344 = vld [vmem:[#allocation4 + $0xdd] sm:$0xff]
      %v3345 = vld [vmem:[#allocation4 + $0xe5] sm:$0xff]
      %v3346 = vld [vmem:[#allocation4 + $0xed] sm:$0xff]
      %v3347 = vld [vmem:[#allocation4 + $0xf5] sm:$0xff]
      %v3348 = vld [vmem:[#allocation4 + $0xfd] sm:$0xff]
      %v3349 = vld [vmem:[#allocation4 + $0x105] sm:$0xff]
      %v3350 = vld [vmem:[#allocation4 + $0x10d] sm:$0xff]
      %v3351 = vpack.c.bf16 %v3319, %v3319
      %v3352 = vpack.c.bf16 %v3320, %v3320
      %v3353 = vpack.c.bf16 %v3321, %v3321
      %v3354 = vpack.c.bf16 %v3322, %v3322
      %v3355 = vpack.c.bf16 %v3323, %v3323
      %v3356 = vpack.c.bf16 %v3324, %v3324
      %v3357 = vpack.c.bf16 %v3325, %v3325
      %v3358 = vpack.c.bf16 %v3326, %v3326
      %v3359 = vpack.c.bf16 %v3327, %v3327
      %v3360 = vpack.c.bf16 %v3328, %v3328
      %v3361 = vpack.c.bf16 %v3329, %v3329
      %v3362 = vpack.c.bf16 %v3330, %v3330
      %v3363 = vpack.c.bf16 %v3331, %v3331
      %v3364 = vpack.c.bf16 %v3332, %v3332
      %v3365 = vpack.c.bf16 %v3333, %v3333
      %v3366 = vpack.c.bf16 %v3334, %v3334
      %v3367 = vpack.c.bf16 %v3335, %v3335
      %v3368 = vpack.c.bf16 %v3336, %v3336
      %v3369 = vpack.c.bf16 %v3337, %v3337
      %v3370 = vpack.c.bf16 %v3338, %v3338
      %v3371 = vpack.c.bf16 %v3339, %v3339
      %v3372 = vpack.c.bf16 %v3340, %v3340
      %v3373 = vpack.c.bf16 %v3341, %v3341
      %v3374 = vpack.c.bf16 %v3342, %v3342
      %v3375 = vpack.c.bf16 %v3343, %v3343
      %v3376 = vpack.c.bf16 %v3344, %v3344
      %v3377 = vpack.c.bf16 %v3345, %v3345
      %v3378 = vpack.c.bf16 %v3346, %v3346
      %v3379 = vpack.c.bf16 %v3347, %v3347
      %v3380 = vpack.c.bf16 %v3348, %v3348
      %v3381 = vpack.c.bf16 %v3349, %v3349
      %v3382 = vpack.c.bf16 %v3350, %v3350
      %3383 = vst.msk [vmem:[#allocation5 + $0x8] sm:$0xf] %vm1843, %v3351
      %3384 = vst.msk [vmem:[#allocation5 + $0x24] sm:$0xf] %vm1843, %v3352
      %3385 = vst.msk [vmem:[#allocation5 + $0x40] sm:$0xf] %vm1843, %v3353
      %3386 = vst.msk [vmem:[#allocation5 + $0x5c] sm:$0xf] %vm1843, %v3354
      %3387 = vst.msk [vmem:[#allocation5 + $0x78] sm:$0xf] %vm1843, %v3355
      %3388 = vst.msk [vmem:[#allocation5 + $0x94] sm:$0xf] %vm1843, %v3356
      %3389 = vst.msk [vmem:[#allocation5 + $0xb0] sm:$0xf] %vm1843, %v3357
      %3390 = vst.msk [vmem:[#allocation5 + $0xcc] sm:$0xf] %vm1843, %v3358
      %3391 = vst.msk [vmem:[#allocation5 + $0xe8] sm:$0xf] %vm1843, %v3359
      %3392 = vst.msk [vmem:[#allocation5 + $0x104] sm:$0xf] %vm1843, %v3360
      %3393 = vst.msk [vmem:[#allocation5 + $0x120] sm:$0xf] %vm1843, %v3361
      %3394 = vst.msk [vmem:[#allocation5 + $0x13c] sm:$0xf] %vm1843, %v3362
      %3395 = vst.msk [vmem:[#allocation5 + $0x158] sm:$0xf] %vm1843, %v3363
      %3396 = vst.msk [vmem:[#allocation5 + $0x174] sm:$0xf] %vm1843, %v3364
      %3397 = vst.msk [vmem:[#allocation5 + $0x190] sm:$0xf] %vm1843, %v3365
      %3398 = vst.msk [vmem:[#allocation5 + $0x1ac] sm:$0xf] %vm1843, %v3366
      %3399 = vst.msk [vmem:[#allocation5 + $0x1c8] sm:$0xf] %vm1843, %v3367
      %3400 = vst.msk [vmem:[#allocation5 + $0x1e4] sm:$0xf] %vm1843, %v3368
      %3401 = vst.msk [vmem:[#allocation5 + $0x200] sm:$0xf] %vm1843, %v3369
      %3402 = vst.msk [vmem:[#allocation5 + $0x21c] sm:$0xf] %vm1843, %v3370
      %3403 = vst.msk [vmem:[#allocation5 + $0x238] sm:$0xf] %vm1843, %v3371
      %3404 = vst.msk [vmem:[#allocation5 + $0x254] sm:$0xf] %vm1843, %v3372
      %3405 = vst.msk [vmem:[#allocation5 + $0x270] sm:$0xf] %vm1843, %v3373
      %3406 = vst.msk [vmem:[#allocation5 + $0x28c] sm:$0xf] %vm1843, %v3374
      %3407 = vst.msk [vmem:[#allocation5 + $0x2a8] sm:$0xf] %vm1843, %v3375
      %3408 = vst.msk [vmem:[#allocation5 + $0x2c4] sm:$0xf] %vm1843, %v3376
      %3409 = vst.msk [vmem:[#allocation5 + $0x2e0] sm:$0xf] %vm1843, %v3377
      %3410 = vst.msk [vmem:[#allocation5 + $0x2fc] sm:$0xf] %vm1843, %v3378
      %3411 = vst.msk [vmem:[#allocation5 + $0x318] sm:$0xf] %vm1843, %v3379
      %3412 = vst.msk [vmem:[#allocation5 + $0x334] sm:$0xf] %vm1843, %v3380
      %3413 = vst.msk [vmem:[#allocation5 + $0x350] sm:$0xf] %vm1843, %v3381
      %3414 = vst.msk [vmem:[#allocation5 + $0x36c] sm:$0xf] %vm1843, %v3382
      %v3415 = vld [vmem:[#allocation4 + $0x16] sm:$0xff]
      %v3416 = vld [vmem:[#allocation4 + $0x1e] sm:$0xff]
      %v3417 = vld [vmem:[#allocation4 + $0x26] sm:$0xff]
      %v3418 = vld [vmem:[#allocation4 + $0x2e] sm:$0xff]
      %v3419 = vld [vmem:[#allocation4 + $0x36] sm:$0xff]
      %v3420 = vld [vmem:[#allocation4 + $0x3e] sm:$0xff]
      %v3421 = vld [vmem:[#allocation4 + $0x46] sm:$0xff]
      %v3422 = vld [vmem:[#allocation4 + $0x4e] sm:$0xff]
      %v3423 = vld [vmem:[#allocation4 + $0x56] sm:$0xff]
      %v3424 = vld [vmem:[#allocation4 + $0x5e] sm:$0xff]
      %v3425 = vld [vmem:[#allocation4 + $0x66] sm:$0xff]
      %v3426 = vld [vmem:[#allocation4 + $0x6e] sm:$0xff]
      %v3427 = vld [vmem:[#allocation4 + $0x76] sm:$0xff]
      %v3428 = vld [vmem:[#allocation4 + $0x7e] sm:$0xff]
      %v3429 = vld [vmem:[#allocation4 + $0x86] sm:$0xff]
      %v3430 = vld [vmem:[#allocation4 + $0x8e] sm:$0xff]
      %v3431 = vld [vmem:[#allocation4 + $0x96] sm:$0xff]
      %v3432 = vld [vmem:[#allocation4 + $0x9e] sm:$0xff]
      %v3433 = vld [vmem:[#allocation4 + $0xa6] sm:$0xff]
      %v3434 = vld [vmem:[#allocation4 + $0xae] sm:$0xff]
      %v3435 = vld [vmem:[#allocation4 + $0xb6] sm:$0xff]
      %v3436 = vld [vmem:[#allocation4 + $0xbe] sm:$0xff]
      %v3437 = vld [vmem:[#allocation4 + $0xc6] sm:$0xff]
      %v3438 = vld [vmem:[#allocation4 + $0xce] sm:$0xff]
      %v3439 = vld [vmem:[#allocation4 + $0xd6] sm:$0xff]
      %v3440 = vld [vmem:[#allocation4 + $0xde] sm:$0xff]
      %v3441 = vld [vmem:[#allocation4 + $0xe6] sm:$0xff]
      %v3442 = vld [vmem:[#allocation4 + $0xee] sm:$0xff]
      %v3443 = vld [vmem:[#allocation4 + $0xf6] sm:$0xff]
      %v3444 = vld [vmem:[#allocation4 + $0xfe] sm:$0xff]
      %v3445 = vld [vmem:[#allocation4 + $0x106] sm:$0xff]
      %v3446 = vld [vmem:[#allocation4 + $0x10e] sm:$0xff]
      %v3447 = vpack.c.bf16 %v3415, %v3415
      %v3448 = vpack.c.bf16 %v3416, %v3416
      %v3449 = vpack.c.bf16 %v3417, %v3417
      %v3450 = vpack.c.bf16 %v3418, %v3418
      %v3451 = vpack.c.bf16 %v3419, %v3419
      %v3452 = vpack.c.bf16 %v3420, %v3420
      %v3453 = vpack.c.bf16 %v3421, %v3421
      %v3454 = vpack.c.bf16 %v3422, %v3422
      %v3455 = vpack.c.bf16 %v3423, %v3423
      %v3456 = vpack.c.bf16 %v3424, %v3424
      %v3457 = vpack.c.bf16 %v3425, %v3425
      %v3458 = vpack.c.bf16 %v3426, %v3426
      %v3459 = vpack.c.bf16 %v3427, %v3427
      %v3460 = vpack.c.bf16 %v3428, %v3428
      %v3461 = vpack.c.bf16 %v3429, %v3429
      %v3462 = vpack.c.bf16 %v3430, %v3430
      %v3463 = vpack.c.bf16 %v3431, %v3431
      %v3464 = vpack.c.bf16 %v3432, %v3432
      %v3465 = vpack.c.bf16 %v3433, %v3433
      %v3466 = vpack.c.bf16 %v3434, %v3434
      %v3467 = vpack.c.bf16 %v3435, %v3435
      %v3468 = vpack.c.bf16 %v3436, %v3436
      %v3469 = vpack.c.bf16 %v3437, %v3437
      %v3470 = vpack.c.bf16 %v3438, %v3438
      %v3471 = vpack.c.bf16 %v3439, %v3439
      %v3472 = vpack.c.bf16 %v3440, %v3440
      %v3473 = vpack.c.bf16 %v3441, %v3441
      %v3474 = vpack.c.bf16 %v3442, %v3442
      %v3475 = vpack.c.bf16 %v3443, %v3443
      %v3476 = vpack.c.bf16 %v3444, %v3444
      %v3477 = vpack.c.bf16 %v3445, %v3445
      %v3478 = vpack.c.bf16 %v3446, %v3446
      %3511 = vrot.lane.b32.xlu0 %v3447, 32
      %v3512 = vpop.permute.xlu0 %3511
      %3513 = vrot.lane.b32.xlu0 %v3448, 32
      %v3514 = vpop.permute.xlu0 %3513
      %3515 = vrot.lane.b32.xlu0 %v3449, 32
      %v3516 = vpop.permute.xlu0 %3515
      %3517 = vrot.lane.b32.xlu0 %v3450, 32
      %v3518 = vpop.permute.xlu0 %3517
      %3519 = vrot.lane.b32.xlu0 %v3451, 32
      %v3520 = vpop.permute.xlu0 %3519
      %3521 = vrot.lane.b32.xlu0 %v3452, 32
      %v3522 = vpop.permute.xlu0 %3521
      %3523 = vrot.lane.b32.xlu0 %v3453, 32
      %v3524 = vpop.permute.xlu0 %3523
      %3525 = vrot.lane.b32.xlu0 %v3454, 32
      %v3526 = vpop.permute.xlu0 %3525
      %3527 = vrot.lane.b32.xlu0 %v3455, 32
      %v3528 = vpop.permute.xlu0 %3527
      %3529 = vrot.lane.b32.xlu0 %v3456, 32
      %v3530 = vpop.permute.xlu0 %3529
      %3531 = vrot.lane.b32.xlu0 %v3457, 32
      %v3532 = vpop.permute.xlu0 %3531
      %3533 = vrot.lane.b32.xlu0 %v3458, 32
      %v3534 = vpop.permute.xlu0 %3533
      %3535 = vrot.lane.b32.xlu0 %v3459, 32
      %v3536 = vpop.permute.xlu0 %3535
      %3537 = vrot.lane.b32.xlu0 %v3460, 32
      %v3538 = vpop.permute.xlu0 %3537
      %3539 = vrot.lane.b32.xlu0 %v3461, 32
      %v3540 = vpop.permute.xlu0 %3539
      %3541 = vrot.lane.b32.xlu0 %v3462, 32
      %v3542 = vpop.permute.xlu0 %3541
      %3543 = vrot.lane.b32.xlu0 %v3463, 32
      %v3544 = vpop.permute.xlu0 %3543
      %3545 = vrot.lane.b32.xlu0 %v3464, 32
      %v3546 = vpop.permute.xlu0 %3545
      %3547 = vrot.lane.b32.xlu0 %v3465, 32
      %v3548 = vpop.permute.xlu0 %3547
      %3549 = vrot.lane.b32.xlu0 %v3466, 32
      %v3550 = vpop.permute.xlu0 %3549
      %3551 = vrot.lane.b32.xlu0 %v3467, 32
      %v3552 = vpop.permute.xlu0 %3551
      %3553 = vrot.lane.b32.xlu0 %v3468, 32
      %v3554 = vpop.permute.xlu0 %3553
      %3555 = vrot.lane.b32.xlu0 %v3469, 32
      %v3556 = vpop.permute.xlu0 %3555
      %3557 = vrot.lane.b32.xlu0 %v3470, 32
      %v3558 = vpop.permute.xlu0 %3557
      %3559 = vrot.lane.b32.xlu0 %v3471, 32
      %v3560 = vpop.permute.xlu0 %3559
      %3561 = vrot.lane.b32.xlu0 %v3472, 32
      %v3562 = vpop.permute.xlu0 %3561
      %3563 = vrot.lane.b32.xlu0 %v3473, 32
      %v3564 = vpop.permute.xlu0 %3563
      %3565 = vrot.lane.b32.xlu0 %v3474, 32
      %v3566 = vpop.permute.xlu0 %3565
      %3567 = vrot.lane.b32.xlu0 %v3475, 32
      %v3568 = vpop.permute.xlu0 %3567
      %3569 = vrot.lane.b32.xlu0 %v3476, 32
      %v3570 = vpop.permute.xlu0 %3569
      %3571 = vrot.lane.b32.xlu0 %v3477, 32
      %v3572 = vpop.permute.xlu0 %3571
      %3573 = vrot.lane.b32.xlu0 %v3478, 32
      %v3574 = vpop.permute.xlu0 %3573
      %3607 = vst.msk [vmem:[#allocation5 + $0x8] sm:$0xf] %vm2068, %v3512
      %3608 = vst.msk [vmem:[#allocation5 + $0x24] sm:$0xf] %vm2068, %v3514
      %3609 = vst.msk [vmem:[#allocation5 + $0x40] sm:$0xf] %vm2068, %v3516
      %3610 = vst.msk [vmem:[#allocation5 + $0x5c] sm:$0xf] %vm2068, %v3518
      %3611 = vst.msk [vmem:[#allocation5 + $0x78] sm:$0xf] %vm2068, %v3520
      %3612 = vst.msk [vmem:[#allocation5 + $0x94] sm:$0xf] %vm2068, %v3522
      %3613 = vst.msk [vmem:[#allocation5 + $0xb0] sm:$0xf] %vm2068, %v3524
      %3614 = vst.msk [vmem:[#allocation5 + $0xcc] sm:$0xf] %vm2068, %v3526
      %3615 = vst.msk [vmem:[#allocation5 + $0xe8] sm:$0xf] %vm2068, %v3528
      %3616 = vst.msk [vmem:[#allocation5 + $0x104] sm:$0xf] %vm2068, %v3530
      %3617 = vst.msk [vmem:[#allocation5 + $0x120] sm:$0xf] %vm2068, %v3532
      %3618 = vst.msk [vmem:[#allocation5 + $0x13c] sm:$0xf] %vm2068, %v3534
      %3619 = vst.msk [vmem:[#allocation5 + $0x158] sm:$0xf] %vm2068, %v3536
      %3620 = vst.msk [vmem:[#allocation5 + $0x174] sm:$0xf] %vm2068, %v3538
      %3621 = vst.msk [vmem:[#allocation5 + $0x190] sm:$0xf] %vm2068, %v3540
      %3622 = vst.msk [vmem:[#allocation5 + $0x1ac] sm:$0xf] %vm2068, %v3542
      %3623 = vst.msk [vmem:[#allocation5 + $0x1c8] sm:$0xf] %vm2068, %v3544
      %3624 = vst.msk [vmem:[#allocation5 + $0x1e4] sm:$0xf] %vm2068, %v3546
      %3625 = vst.msk [vmem:[#allocation5 + $0x200] sm:$0xf] %vm2068, %v3548
      %3626 = vst.msk [vmem:[#allocation5 + $0x21c] sm:$0xf] %vm2068, %v3550
      %3627 = vst.msk [vmem:[#allocation5 + $0x238] sm:$0xf] %vm2068, %v3552
      %3628 = vst.msk [vmem:[#allocation5 + $0x254] sm:$0xf] %vm2068, %v3554
      %3629 = vst.msk [vmem:[#allocation5 + $0x270] sm:$0xf] %vm2068, %v3556
      %3630 = vst.msk [vmem:[#allocation5 + $0x28c] sm:$0xf] %vm2068, %v3558
      %3631 = vst.msk [vmem:[#allocation5 + $0x2a8] sm:$0xf] %vm2068, %v3560
      %3632 = vst.msk [vmem:[#allocation5 + $0x2c4] sm:$0xf] %vm2068, %v3562
      %3633 = vst.msk [vmem:[#allocation5 + $0x2e0] sm:$0xf] %vm2068, %v3564
      %3634 = vst.msk [vmem:[#allocation5 + $0x2fc] sm:$0xf] %vm2068, %v3566
      %3635 = vst.msk [vmem:[#allocation5 + $0x318] sm:$0xf] %vm2068, %v3568
      %3636 = vst.msk [vmem:[#allocation5 + $0x334] sm:$0xf] %vm2068, %v3570
      %3637 = vst.msk [vmem:[#allocation5 + $0x350] sm:$0xf] %vm2068, %v3572
      %3638 = vst.msk [vmem:[#allocation5 + $0x36c] sm:$0xf] %vm2068, %v3574
      %v3639 = vld [vmem:[#allocation4 + $0x24] sm:$0xff]
      %v3640 = vld [vmem:[#allocation4 + $0x2c] sm:$0xff]
      %v3641 = vld [vmem:[#allocation4 + $0x34] sm:$0xff]
      %v3642 = vld [vmem:[#allocation4 + $0x3c] sm:$0xff]
      %v3643 = vld [vmem:[#allocation4 + $0x44] sm:$0xff]
      %v3644 = vld [vmem:[#allocation4 + $0x4c] sm:$0xff]
      %v3645 = vld [vmem:[#allocation4 + $0x54] sm:$0xff]
      %v3646 = vld [vmem:[#allocation4 + $0x5c] sm:$0xff]
      %v3647 = vld [vmem:[#allocation4 + $0x64] sm:$0xff]
      %v3648 = vld [vmem:[#allocation4 + $0x6c] sm:$0xff]
      %v3649 = vld [vmem:[#allocation4 + $0x74] sm:$0xff]
      %v3650 = vld [vmem:[#allocation4 + $0x7c] sm:$0xff]
      %v3651 = vld [vmem:[#allocation4 + $0x84] sm:$0xff]
      %v3652 = vld [vmem:[#allocation4 + $0x8c] sm:$0xff]
      %v3653 = vld [vmem:[#allocation4 + $0x94] sm:$0xff]
      %v3654 = vld [vmem:[#allocation4 + $0x9c] sm:$0xff]
      %v3655 = vld [vmem:[#allocation4 + $0xa4] sm:$0xff]
      %v3656 = vld [vmem:[#allocation4 + $0xac] sm:$0xff]
      %v3657 = vld [vmem:[#allocation4 + $0xb4] sm:$0xff]
      %v3658 = vld [vmem:[#allocation4 + $0xbc] sm:$0xff]
      %v3659 = vld [vmem:[#allocation4 + $0xc4] sm:$0xff]
      %v3660 = vld [vmem:[#allocation4 + $0xcc] sm:$0xff]
      %v3661 = vld [vmem:[#allocation4 + $0xd4] sm:$0xff]
      %v3662 = vld [vmem:[#allocation4 + $0xdc] sm:$0xff]
      %v3663 = vld [vmem:[#allocation4 + $0xe4] sm:$0xff]
      %v3664 = vld [vmem:[#allocation4 + $0xec] sm:$0xff]
      %v3665 = vld [vmem:[#allocation4 + $0xf4] sm:$0xff]
      %v3666 = vld [vmem:[#allocation4 + $0xfc] sm:$0xff]
      %v3667 = vld [vmem:[#allocation4 + $0x104] sm:$0xff]
      %v3668 = vld [vmem:[#allocation4 + $0x10c] sm:$0xff]
      %v3669 = vld [vmem:[#allocation4 + $0x114] sm:$0xff]
      %v3670 = vld [vmem:[#allocation4 + $0x11c] sm:$0xff]
      %v3671 = vpack.c.bf16 %v3639, %v3639
      %v3672 = vpack.c.bf16 %v3640, %v3640
      %v3673 = vpack.c.bf16 %v3641, %v3641
      %v3674 = vpack.c.bf16 %v3642, %v3642
      %v3675 = vpack.c.bf16 %v3643, %v3643
      %v3676 = vpack.c.bf16 %v3644, %v3644
      %v3677 = vpack.c.bf16 %v3645, %v3645
      %v3678 = vpack.c.bf16 %v3646, %v3646
      %v3679 = vpack.c.bf16 %v3647, %v3647
      %v3680 = vpack.c.bf16 %v3648, %v3648
      %v3681 = vpack.c.bf16 %v3649, %v3649
      %v3682 = vpack.c.bf16 %v3650, %v3650
      %v3683 = vpack.c.bf16 %v3651, %v3651
      %v3684 = vpack.c.bf16 %v3652, %v3652
      %v3685 = vpack.c.bf16 %v3653, %v3653
      %v3686 = vpack.c.bf16 %v3654, %v3654
      %v3687 = vpack.c.bf16 %v3655, %v3655
      %v3688 = vpack.c.bf16 %v3656, %v3656
      %v3689 = vpack.c.bf16 %v3657, %v3657
      %v3690 = vpack.c.bf16 %v3658, %v3658
      %v3691 = vpack.c.bf16 %v3659, %v3659
      %v3692 = vpack.c.bf16 %v3660, %v3660
      %v3693 = vpack.c.bf16 %v3661, %v3661
      %v3694 = vpack.c.bf16 %v3662, %v3662
      %v3695 = vpack.c.bf16 %v3663, %v3663
      %v3696 = vpack.c.bf16 %v3664, %v3664
      %v3697 = vpack.c.bf16 %v3665, %v3665
      %v3698 = vpack.c.bf16 %v3666, %v3666
      %v3699 = vpack.c.bf16 %v3667, %v3667
      %v3700 = vpack.c.bf16 %v3668, %v3668
      %v3701 = vpack.c.bf16 %v3669, %v3669
      %v3702 = vpack.c.bf16 %v3670, %v3670
      %3735 = vrot.lane.b32.xlu0 %v3671, 64
      %v3736 = vpop.permute.xlu0 %3735
      %3737 = vrot.lane.b32.xlu0 %v3672, 64
      %v3738 = vpop.permute.xlu0 %3737
      %3739 = vrot.lane.b32.xlu0 %v3673, 64
      %v3740 = vpop.permute.xlu0 %3739
      %3741 = vrot.lane.b32.xlu0 %v3674, 64
      %v3742 = vpop.permute.xlu0 %3741
      %3743 = vrot.lane.b32.xlu0 %v3675, 64
      %v3744 = vpop.permute.xlu0 %3743
      %3745 = vrot.lane.b32.xlu0 %v3676, 64
      %v3746 = vpop.permute.xlu0 %3745
      %3747 = vrot.lane.b32.xlu0 %v3677, 64
      %v3748 = vpop.permute.xlu0 %3747
      %3749 = vrot.lane.b32.xlu0 %v3678, 64
      %v3750 = vpop.permute.xlu0 %3749
      %3751 = vrot.lane.b32.xlu0 %v3679, 64
      %v3752 = vpop.permute.xlu0 %3751
      %3753 = vrot.lane.b32.xlu0 %v3680, 64
      %v3754 = vpop.permute.xlu0 %3753
      %3755 = vrot.lane.b32.xlu0 %v3681, 64
      %v3756 = vpop.permute.xlu0 %3755
      %3757 = vrot.lane.b32.xlu0 %v3682, 64
      %v3758 = vpop.permute.xlu0 %3757
      %3759 = vrot.lane.b32.xlu0 %v3683, 64
      %v3760 = vpop.permute.xlu0 %3759
      %3761 = vrot.lane.b32.xlu0 %v3684, 64
      %v3762 = vpop.permute.xlu0 %3761
      %3763 = vrot.lane.b32.xlu0 %v3685, 64
      %v3764 = vpop.permute.xlu0 %3763
      %3765 = vrot.lane.b32.xlu0 %v3686, 64
      %v3766 = vpop.permute.xlu0 %3765
      %3767 = vrot.lane.b32.xlu0 %v3687, 64
      %v3768 = vpop.permute.xlu0 %3767
      %3769 = vrot.lane.b32.xlu0 %v3688, 64
      %v3770 = vpop.permute.xlu0 %3769
      %3771 = vrot.lane.b32.xlu0 %v3689, 64
      %v3772 = vpop.permute.xlu0 %3771
      %3773 = vrot.lane.b32.xlu0 %v3690, 64
      %v3774 = vpop.permute.xlu0 %3773
      %3775 = vrot.lane.b32.xlu0 %v3691, 64
      %v3776 = vpop.permute.xlu0 %3775
      %3777 = vrot.lane.b32.xlu0 %v3692, 64
      %v3778 = vpop.permute.xlu0 %3777
      %3779 = vrot.lane.b32.xlu0 %v3693, 64
      %v3780 = vpop.permute.xlu0 %3779
      %3781 = vrot.lane.b32.xlu0 %v3694, 64
      %v3782 = vpop.permute.xlu0 %3781
      %3783 = vrot.lane.b32.xlu0 %v3695, 64
      %v3784 = vpop.permute.xlu0 %3783
      %3785 = vrot.lane.b32.xlu0 %v3696, 64
      %v3786 = vpop.permute.xlu0 %3785
      %3787 = vrot.lane.b32.xlu0 %v3697, 64
      %v3788 = vpop.permute.xlu0 %3787
      %3789 = vrot.lane.b32.xlu0 %v3698, 64
      %v3790 = vpop.permute.xlu0 %3789
      %3791 = vrot.lane.b32.xlu0 %v3699, 64
      %v3792 = vpop.permute.xlu0 %3791
      %3793 = vrot.lane.b32.xlu0 %v3700, 64
      %v3794 = vpop.permute.xlu0 %3793
      %3795 = vrot.lane.b32.xlu0 %v3701, 64
      %v3796 = vpop.permute.xlu0 %3795
      %3797 = vrot.lane.b32.xlu0 %v3702, 64
      %v3798 = vpop.permute.xlu0 %3797
      %3831 = vst.msk [vmem:[#allocation5 + $0x8] sm:$0xf] %vm2293, %v3736
      %3832 = vst.msk [vmem:[#allocation5 + $0x24] sm:$0xf] %vm2293, %v3738
      %3833 = vst.msk [vmem:[#allocation5 + $0x40] sm:$0xf] %vm2293, %v3740
      %3834 = vst.msk [vmem:[#allocation5 + $0x5c] sm:$0xf] %vm2293, %v3742
      %3835 = vst.msk [vmem:[#allocation5 + $0x78] sm:$0xf] %vm2293, %v3744
      %3836 = vst.msk [vmem:[#allocation5 + $0x94] sm:$0xf] %vm2293, %v3746
      %3837 = vst.msk [vmem:[#allocation5 + $0xb0] sm:$0xf] %vm2293, %v3748
      %3838 = vst.msk [vmem:[#allocation5 + $0xcc] sm:$0xf] %vm2293, %v3750
      %3839 = vst.msk [vmem:[#allocation5 + $0xe8] sm:$0xf] %vm2293, %v3752
      %3840 = vst.msk [vmem:[#allocation5 + $0x104] sm:$0xf] %vm2293, %v3754
      %3841 = vst.msk [vmem:[#allocation5 + $0x120] sm:$0xf] %vm2293, %v3756
      %3842 = vst.msk [vmem:[#allocation5 + $0x13c] sm:$0xf] %vm2293, %v3758
      %3843 = vst.msk [vmem:[#allocation5 + $0x158] sm:$0xf] %vm2293, %v3760
      %3844 = vst.msk [vmem:[#allocation5 + $0x174] sm:$0xf] %vm2293, %v3762
      %3845 = vst.msk [vmem:[#allocation5 + $0x190] sm:$0xf] %vm2293, %v3764
      %3846 = vst.msk [vmem:[#allocation5 + $0x1ac] sm:$0xf] %vm2293, %v3766
      %3847 = vst.msk [vmem:[#allocation5 + $0x1c8] sm:$0xf] %vm2293, %v3768
      %3848 = vst.msk [vmem:[#allocation5 + $0x1e4] sm:$0xf] %vm2293, %v3770
      %3849 = vst.msk [vmem:[#allocation5 + $0x200] sm:$0xf] %vm2293, %v3772
      %3850 = vst.msk [vmem:[#allocation5 + $0x21c] sm:$0xf] %vm2293, %v3774
      %3851 = vst.msk [vmem:[#allocation5 + $0x238] sm:$0xf] %vm2293, %v3776
      %3852 = vst.msk [vmem:[#allocation5 + $0x254] sm:$0xf] %vm2293, %v3778
      %3853 = vst.msk [vmem:[#allocation5 + $0x270] sm:$0xf] %vm2293, %v3780
      %3854 = vst.msk [vmem:[#allocation5 + $0x28c] sm:$0xf] %vm2293, %v3782
      %3855 = vst.msk [vmem:[#allocation5 + $0x2a8] sm:$0xf] %vm2293, %v3784
      %3856 = vst.msk [vmem:[#allocation5 + $0x2c4] sm:$0xf] %vm2293, %v3786
      %3857 = vst.msk [vmem:[#allocation5 + $0x2e0] sm:$0xf] %vm2293, %v3788
      %3858 = vst.msk [vmem:[#allocation5 + $0x2fc] sm:$0xf] %vm2293, %v3790
      %3859 = vst.msk [vmem:[#allocation5 + $0x318] sm:$0xf] %vm2293, %v3792
      %3860 = vst.msk [vmem:[#allocation5 + $0x334] sm:$0xf] %vm2293, %v3794
      %3861 = vst.msk [vmem:[#allocation5 + $0x350] sm:$0xf] %vm2293, %v3796
      %3862 = vst.msk [vmem:[#allocation5 + $0x36c] sm:$0xf] %vm2293, %v3798
      %v3863 = vld [vmem:[#allocation4 + $0x25] sm:$0xff]
      %v3864 = vld [vmem:[#allocation4 + $0x2d] sm:$0xff]
      %v3865 = vld [vmem:[#allocation4 + $0x35] sm:$0xff]
      %v3866 = vld [vmem:[#allocation4 + $0x3d] sm:$0xff]
      %v3867 = vld [vmem:[#allocation4 + $0x45] sm:$0xff]
      %v3868 = vld [vmem:[#allocation4 + $0x4d] sm:$0xff]
      %v3869 = vld [vmem:[#allocation4 + $0x55] sm:$0xff]
      %v3870 = vld [vmem:[#allocation4 + $0x5d] sm:$0xff]
      %v3871 = vld [vmem:[#allocation4 + $0x65] sm:$0xff]
      %v3872 = vld [vmem:[#allocation4 + $0x6d] sm:$0xff]
      %v3873 = vld [vmem:[#allocation4 + $0x75] sm:$0xff]
      %v3874 = vld [vmem:[#allocation4 + $0x7d] sm:$0xff]
      %v3875 = vld [vmem:[#allocation4 + $0x85] sm:$0xff]
      %v3876 = vld [vmem:[#allocation4 + $0x8d] sm:$0xff]
      %v3877 = vld [vmem:[#allocation4 + $0x95] sm:$0xff]
      %v3878 = vld [vmem:[#allocation4 + $0x9d] sm:$0xff]
      %v3879 = vld [vmem:[#allocation4 + $0xa5] sm:$0xff]
      %v3880 = vld [vmem:[#allocation4 + $0xad] sm:$0xff]
      %v3881 = vld [vmem:[#allocation4 + $0xb5] sm:$0xff]
      %v3882 = vld [vmem:[#allocation4 + $0xbd] sm:$0xff]
      %v3883 = vld [vmem:[#allocation4 + $0xc5] sm:$0xff]
      %v3884 = vld [vmem:[#allocation4 + $0xcd] sm:$0xff]
      %v3885 = vld [vmem:[#allocation4 + $0xd5] sm:$0xff]
      %v3886 = vld [vmem:[#allocation4 + $0xdd] sm:$0xff]
      %v3887 = vld [vmem:[#allocation4 + $0xe5] sm:$0xff]
      %v3888 = vld [vmem:[#allocation4 + $0xed] sm:$0xff]
      %v3889 = vld [vmem:[#allocation4 + $0xf5] sm:$0xff]
      %v3890 = vld [vmem:[#allocation4 + $0xfd] sm:$0xff]
      %v3891 = vld [vmem:[#allocation4 + $0x105] sm:$0xff]
      %v3892 = vld [vmem:[#allocation4 + $0x10d] sm:$0xff]
      %v3893 = vld [vmem:[#allocation4 + $0x115] sm:$0xff]
      %v3894 = vld [vmem:[#allocation4 + $0x11d] sm:$0xff]
      %v3895 = vpack.c.bf16 %v3863, %v3863
      %v3896 = vpack.c.bf16 %v3864, %v3864
      %v3897 = vpack.c.bf16 %v3865, %v3865
      %v3898 = vpack.c.bf16 %v3866, %v3866
      %v3899 = vpack.c.bf16 %v3867, %v3867
      %v3900 = vpack.c.bf16 %v3868, %v3868
      %v3901 = vpack.c.bf16 %v3869, %v3869
      %v3902 = vpack.c.bf16 %v3870, %v3870
      %v3903 = vpack.c.bf16 %v3871, %v3871
      %v3904 = vpack.c.bf16 %v3872, %v3872
      %v3905 = vpack.c.bf16 %v3873, %v3873
      %v3906 = vpack.c.bf16 %v3874, %v3874
      %v3907 = vpack.c.bf16 %v3875, %v3875
      %v3908 = vpack.c.bf16 %v3876, %v3876
      %v3909 = vpack.c.bf16 %v3877, %v3877
      %v3910 = vpack.c.bf16 %v3878, %v3878
      %v3911 = vpack.c.bf16 %v3879, %v3879
      %v3912 = vpack.c.bf16 %v3880, %v3880
      %v3913 = vpack.c.bf16 %v3881, %v3881
      %v3914 = vpack.c.bf16 %v3882, %v3882
      %v3915 = vpack.c.bf16 %v3883, %v3883
      %v3916 = vpack.c.bf16 %v3884, %v3884
      %v3917 = vpack.c.bf16 %v3885, %v3885
      %v3918 = vpack.c.bf16 %v3886, %v3886
      %v3919 = vpack.c.bf16 %v3887, %v3887
      %v3920 = vpack.c.bf16 %v3888, %v3888
      %v3921 = vpack.c.bf16 %v3889, %v3889
      %v3922 = vpack.c.bf16 %v3890, %v3890
      %v3923 = vpack.c.bf16 %v3891, %v3891
      %v3924 = vpack.c.bf16 %v3892, %v3892
      %v3925 = vpack.c.bf16 %v3893, %v3893
      %v3926 = vpack.c.bf16 %v3894, %v3894
      %3959 = vrot.lane.b32.xlu0 %v3895, 96
      %v3960 = vpop.permute.xlu0 %3959
      %3961 = vrot.lane.b32.xlu0 %v3896, 96
      %v3962 = vpop.permute.xlu0 %3961
      %3963 = vrot.lane.b32.xlu0 %v3897, 96
      %v3964 = vpop.permute.xlu0 %3963
      %3965 = vrot.lane.b32.xlu0 %v3898, 96
      %v3966 = vpop.permute.xlu0 %3965
      %3967 = vrot.lane.b32.xlu0 %v3899, 96
      %v3968 = vpop.permute.xlu0 %3967
      %3969 = vrot.lane.b32.xlu0 %v3900, 96
      %v3970 = vpop.permute.xlu0 %3969
      %3971 = vrot.lane.b32.xlu0 %v3901, 96
      %v3972 = vpop.permute.xlu0 %3971
      %3973 = vrot.lane.b32.xlu0 %v3902, 96
      %v3974 = vpop.permute.xlu0 %3973
      %3975 = vrot.lane.b32.xlu0 %v3903, 96
      %v3976 = vpop.permute.xlu0 %3975
      %3977 = vrot.lane.b32.xlu0 %v3904, 96
      %v3978 = vpop.permute.xlu0 %3977
      %3979 = vrot.lane.b32.xlu0 %v3905, 96
      %v3980 = vpop.permute.xlu0 %3979
      %3981 = vrot.lane.b32.xlu0 %v3906, 96
      %v3982 = vpop.permute.xlu0 %3981
      %3983 = vrot.lane.b32.xlu0 %v3907, 96
      %v3984 = vpop.permute.xlu0 %3983
      %3985 = vrot.lane.b32.xlu0 %v3908, 96
      %v3986 = vpop.permute.xlu0 %3985
      %3987 = vrot.lane.b32.xlu0 %v3909, 96
      %v3988 = vpop.permute.xlu0 %3987
      %3989 = vrot.lane.b32.xlu0 %v3910, 96
      %v3990 = vpop.permute.xlu0 %3989
      %3991 = vrot.lane.b32.xlu0 %v3911, 96
      %v3992 = vpop.permute.xlu0 %3991
      %3993 = vrot.lane.b32.xlu0 %v3912, 96
      %v3994 = vpop.permute.xlu0 %3993
      %3995 = vrot.lane.b32.xlu0 %v3913, 96
      %v3996 = vpop.permute.xlu0 %3995
      %3997 = vrot.lane.b32.xlu0 %v3914, 96
      %v3998 = vpop.permute.xlu0 %3997
      %3999 = vrot.lane.b32.xlu0 %v3915, 96
      %v4000 = vpop.permute.xlu0 %3999
      %4001 = vrot.lane.b32.xlu0 %v3916, 96
      %v4002 = vpop.permute.xlu0 %4001
      %4003 = vrot.lane.b32.xlu0 %v3917, 96
      %v4004 = vpop.permute.xlu0 %4003
      %4005 = vrot.lane.b32.xlu0 %v3918, 96
      %v4006 = vpop.permute.xlu0 %4005
      %4007 = vrot.lane.b32.xlu0 %v3919, 96
      %v4008 = vpop.permute.xlu0 %4007
      %4009 = vrot.lane.b32.xlu0 %v3920, 96
      %v4010 = vpop.permute.xlu0 %4009
      %4011 = vrot.lane.b32.xlu0 %v3921, 96
      %v4012 = vpop.permute.xlu0 %4011
      %4013 = vrot.lane.b32.xlu0 %v3922, 96
      %v4014 = vpop.permute.xlu0 %4013
      %4015 = vrot.lane.b32.xlu0 %v3923, 96
      %v4016 = vpop.permute.xlu0 %4015
      %4017 = vrot.lane.b32.xlu0 %v3924, 96
      %v4018 = vpop.permute.xlu0 %4017
      %4019 = vrot.lane.b32.xlu0 %v3925, 96
      %v4020 = vpop.permute.xlu0 %4019
      %4021 = vrot.lane.b32.xlu0 %v3926, 96
      %v4022 = vpop.permute.xlu0 %4021
      %4055 = vst.msk [vmem:[#allocation5 + $0x8] sm:$0xf] %vm2518, %v3960
      %4056 = vst.msk [vmem:[#allocation5 + $0x24] sm:$0xf] %vm2518, %v3962
      %4057 = vst.msk [vmem:[#allocation5 + $0x40] sm:$0xf] %vm2518, %v3964
      %4058 = vst.msk [vmem:[#allocation5 + $0x5c] sm:$0xf] %vm2518, %v3966
      %4059 = vst.msk [vmem:[#allocation5 + $0x78] sm:$0xf] %vm2518, %v3968
      %4060 = vst.msk [vmem:[#allocation5 + $0x94] sm:$0xf] %vm2518, %v3970
      %4061 = vst.msk [vmem:[#allocation5 + $0xb0] sm:$0xf] %vm2518, %v3972
      %4062 = vst.msk [vmem:[#allocation5 + $0xcc] sm:$0xf] %vm2518, %v3974
      %4063 = vst.msk [vmem:[#allocation5 + $0xe8] sm:$0xf] %vm2518, %v3976
      %4064 = vst.msk [vmem:[#allocation5 + $0x104] sm:$0xf] %vm2518, %v3978
      %4065 = vst.msk [vmem:[#allocation5 + $0x120] sm:$0xf] %vm2518, %v3980
      %4066 = vst.msk [vmem:[#allocation5 + $0x13c] sm:$0xf] %vm2518, %v3982
      %4067 = vst.msk [vmem:[#allocation5 + $0x158] sm:$0xf] %vm2518, %v3984
      %4068 = vst.msk [vmem:[#allocation5 + $0x174] sm:$0xf] %vm2518, %v3986
      %4069 = vst.msk [vmem:[#allocation5 + $0x190] sm:$0xf] %vm2518, %v3988
      %4070 = vst.msk [vmem:[#allocation5 + $0x1ac] sm:$0xf] %vm2518, %v3990
      %4071 = vst.msk [vmem:[#allocation5 + $0x1c8] sm:$0xf] %vm2518, %v3992
      %4072 = vst.msk [vmem:[#allocation5 + $0x1e4] sm:$0xf] %vm2518, %v3994
      %4073 = vst.msk [vmem:[#allocation5 + $0x200] sm:$0xf] %vm2518, %v3996
      %4074 = vst.msk [vmem:[#allocation5 + $0x21c] sm:$0xf] %vm2518, %v3998
      %4075 = vst.msk [vmem:[#allocation5 + $0x238] sm:$0xf] %vm2518, %v4000
      %4076 = vst.msk [vmem:[#allocation5 + $0x254] sm:$0xf] %vm2518, %v4002
      %4077 = vst.msk [vmem:[#allocation5 + $0x270] sm:$0xf] %vm2518, %v4004
      %4078 = vst.msk [vmem:[#allocation5 + $0x28c] sm:$0xf] %vm2518, %v4006
      %4079 = vst.msk [vmem:[#allocation5 + $0x2a8] sm:$0xf] %vm2518, %v4008
      %4080 = vst.msk [vmem:[#allocation5 + $0x2c4] sm:$0xf] %vm2518, %v4010
      %4081 = vst.msk [vmem:[#allocation5 + $0x2e0] sm:$0xf] %vm2518, %v4012
      %4082 = vst.msk [vmem:[#allocation5 + $0x2fc] sm:$0xf] %vm2518, %v4014
      %4083 = vst.msk [vmem:[#allocation5 + $0x318] sm:$0xf] %vm2518, %v4016
      %4084 = vst.msk [vmem:[#allocation5 + $0x334] sm:$0xf] %vm2518, %v4018
      %4085 = vst.msk [vmem:[#allocation5 + $0x350] sm:$0xf] %vm2518, %v4020
      %4086 = vst.msk [vmem:[#allocation5 + $0x36c] sm:$0xf] %vm2518, %v4022
      %v4087 = vld [vmem:[#allocation4 + $0x26] sm:$0xff]
      %v4088 = vld [vmem:[#allocation4 + $0x2e] sm:$0xff]
      %v4089 = vld [vmem:[#allocation4 + $0x36] sm:$0xff]
      %v4090 = vld [vmem:[#allocation4 + $0x3e] sm:$0xff]
      %v4091 = vld [vmem:[#allocation4 + $0x46] sm:$0xff]
      %v4092 = vld [vmem:[#allocation4 + $0x4e] sm:$0xff]
      %v4093 = vld [vmem:[#allocation4 + $0x56] sm:$0xff]
      %v4094 = vld [vmem:[#allocation4 + $0x5e] sm:$0xff]
      %v4095 = vld [vmem:[#allocation4 + $0x66] sm:$0xff]
      %v4096 = vld [vmem:[#allocation4 + $0x6e] sm:$0xff]
      %v4097 = vld [vmem:[#allocation4 + $0x76] sm:$0xff]
      %v4098 = vld [vmem:[#allocation4 + $0x7e] sm:$0xff]
      %v4099 = vld [vmem:[#allocation4 + $0x86] sm:$0xff]
      %v4100 = vld [vmem:[#allocation4 + $0x8e] sm:$0xff]
      %v4101 = vld [vmem:[#allocation4 + $0x96] sm:$0xff]
      %v4102 = vld [vmem:[#allocation4 + $0x9e] sm:$0xff]
      %v4103 = vld [vmem:[#allocation4 + $0xa6] sm:$0xff]
      %v4104 = vld [vmem:[#allocation4 + $0xae] sm:$0xff]
      %v4105 = vld [vmem:[#allocation4 + $0xb6] sm:$0xff]
      %v4106 = vld [vmem:[#allocation4 + $0xbe] sm:$0xff]
      %v4107 = vld [vmem:[#allocation4 + $0xc6] sm:$0xff]
      %v4108 = vld [vmem:[#allocation4 + $0xce] sm:$0xff]
      %v4109 = vld [vmem:[#allocation4 + $0xd6] sm:$0xff]
      %v4110 = vld [vmem:[#allocation4 + $0xde] sm:$0xff]
      %v4111 = vld [vmem:[#allocation4 + $0xe6] sm:$0xff]
      %v4112 = vld [vmem:[#allocation4 + $0xee] sm:$0xff]
      %v4113 = vld [vmem:[#allocation4 + $0xf6] sm:$0xff]
      %v4114 = vld [vmem:[#allocation4 + $0xfe] sm:$0xff]
      %v4115 = vld [vmem:[#allocation4 + $0x106] sm:$0xff]
      %v4116 = vld [vmem:[#allocation4 + $0x10e] sm:$0xff]
      %v4117 = vld [vmem:[#allocation4 + $0x116] sm:$0xff]
      %v4118 = vld [vmem:[#allocation4 + $0x11e] sm:$0xff]
      %v4119 = vpack.c.bf16 %v4087, %v4087
      %v4120 = vpack.c.bf16 %v4088, %v4088
      %v4121 = vpack.c.bf16 %v4089, %v4089
      %v4122 = vpack.c.bf16 %v4090, %v4090
      %v4123 = vpack.c.bf16 %v4091, %v4091
      %v4124 = vpack.c.bf16 %v4092, %v4092
      %v4125 = vpack.c.bf16 %v4093, %v4093
      %v4126 = vpack.c.bf16 %v4094, %v4094
      %v4127 = vpack.c.bf16 %v4095, %v4095
      %v4128 = vpack.c.bf16 %v4096, %v4096
      %v4129 = vpack.c.bf16 %v4097, %v4097
      %v4130 = vpack.c.bf16 %v4098, %v4098
      %v4131 = vpack.c.bf16 %v4099, %v4099
      %v4132 = vpack.c.bf16 %v4100, %v4100
      %v4133 = vpack.c.bf16 %v4101, %v4101
      %v4134 = vpack.c.bf16 %v4102, %v4102
      %v4135 = vpack.c.bf16 %v4103, %v4103
      %v4136 = vpack.c.bf16 %v4104, %v4104
      %v4137 = vpack.c.bf16 %v4105, %v4105
      %v4138 = vpack.c.bf16 %v4106, %v4106
      %v4139 = vpack.c.bf16 %v4107, %v4107
      %v4140 = vpack.c.bf16 %v4108, %v4108
      %v4141 = vpack.c.bf16 %v4109, %v4109
      %v4142 = vpack.c.bf16 %v4110, %v4110
      %v4143 = vpack.c.bf16 %v4111, %v4111
      %v4144 = vpack.c.bf16 %v4112, %v4112
      %v4145 = vpack.c.bf16 %v4113, %v4113
      %v4146 = vpack.c.bf16 %v4114, %v4114
      %v4147 = vpack.c.bf16 %v4115, %v4115
      %v4148 = vpack.c.bf16 %v4116, %v4116
      %v4149 = vpack.c.bf16 %v4117, %v4117
      %v4150 = vpack.c.bf16 %v4118, %v4118
      %4151 = vst.msk [vmem:[#allocation5 + $0xc] sm:$0xf] %vm1843, %v4119
      %4152 = vst.msk [vmem:[#allocation5 + $0x28] sm:$0xf] %vm1843, %v4120
      %4153 = vst.msk [vmem:[#allocation5 + $0x44] sm:$0xf] %vm1843, %v4121
      %4154 = vst.msk [vmem:[#allocation5 + $0x60] sm:$0xf] %vm1843, %v4122
      %4155 = vst.msk [vmem:[#allocation5 + $0x7c] sm:$0xf] %vm1843, %v4123
      %4156 = vst.msk [vmem:[#allocation5 + $0x98] sm:$0xf] %vm1843, %v4124
      %4157 = vst.msk [vmem:[#allocation5 + $0xb4] sm:$0xf] %vm1843, %v4125
      %4158 = vst.msk [vmem:[#allocation5 + $0xd0] sm:$0xf] %vm1843, %v4126
      %4159 = vst.msk [vmem:[#allocation5 + $0xec] sm:$0xf] %vm1843, %v4127
      %4160 = vst.msk [vmem:[#allocation5 + $0x108] sm:$0xf] %vm1843, %v4128
      %4161 = vst.msk [vmem:[#allocation5 + $0x124] sm:$0xf] %vm1843, %v4129
      %4162 = vst.msk [vmem:[#allocation5 + $0x140] sm:$0xf] %vm1843, %v4130
      %4163 = vst.msk [vmem:[#allocation5 + $0x15c] sm:$0xf] %vm1843, %v4131
      %4164 = vst.msk [vmem:[#allocation5 + $0x178] sm:$0xf] %vm1843, %v4132
      %4165 = vst.msk [vmem:[#allocation5 + $0x194] sm:$0xf] %vm1843, %v4133
      %4166 = vst.msk [vmem:[#allocation5 + $0x1b0] sm:$0xf] %vm1843, %v4134
      %4167 = vst.msk [vmem:[#allocation5 + $0x1cc] sm:$0xf] %vm1843, %v4135
      %4168 = vst.msk [vmem:[#allocation5 + $0x1e8] sm:$0xf] %vm1843, %v4136
      %4169 = vst.msk [vmem:[#allocation5 + $0x204] sm:$0xf] %vm1843, %v4137
      %4170 = vst.msk [vmem:[#allocation5 + $0x220] sm:$0xf] %vm1843, %v4138
      %4171 = vst.msk [vmem:[#allocation5 + $0x23c] sm:$0xf] %vm1843, %v4139
      %4172 = vst.msk [vmem:[#allocation5 + $0x258] sm:$0xf] %vm1843, %v4140
      %4173 = vst.msk [vmem:[#allocation5 + $0x274] sm:$0xf] %vm1843, %v4141
      %4174 = vst.msk [vmem:[#allocation5 + $0x290] sm:$0xf] %vm1843, %v4142
      %4175 = vst.msk [vmem:[#allocation5 + $0x2ac] sm:$0xf] %vm1843, %v4143
      %4176 = vst.msk [vmem:[#allocation5 + $0x2c8] sm:$0xf] %vm1843, %v4144
      %4177 = vst.msk [vmem:[#allocation5 + $0x2e4] sm:$0xf] %vm1843, %v4145
      %4178 = vst.msk [vmem:[#allocation5 + $0x300] sm:$0xf] %vm1843, %v4146
      %4179 = vst.msk [vmem:[#allocation5 + $0x31c] sm:$0xf] %vm1843, %v4147
      %4180 = vst.msk [vmem:[#allocation5 + $0x338] sm:$0xf] %vm1843, %v4148
      %4181 = vst.msk [vmem:[#allocation5 + $0x354] sm:$0xf] %vm1843, %v4149
      %4182 = vst.msk [vmem:[#allocation5 + $0x370] sm:$0xf] %vm1843, %v4150
      %v4183 = vld [vmem:[#allocation4 + $0x27] sm:$0xff]
      %v4184 = vld [vmem:[#allocation4 + $0x2f] sm:$0xff]
      %v4185 = vld [vmem:[#allocation4 + $0x37] sm:$0xff]
      %v4186 = vld [vmem:[#allocation4 + $0x3f] sm:$0xff]
      %v4187 = vld [vmem:[#allocation4 + $0x47] sm:$0xff]
      %v4188 = vld [vmem:[#allocation4 + $0x4f] sm:$0xff]
      %v4189 = vld [vmem:[#allocation4 + $0x57] sm:$0xff]
      %v4190 = vld [vmem:[#allocation4 + $0x5f] sm:$0xff]
      %v4191 = vld [vmem:[#allocation4 + $0x67] sm:$0xff]
      %v4192 = vld [vmem:[#allocation4 + $0x6f] sm:$0xff]
      %v4193 = vld [vmem:[#allocation4 + $0x77] sm:$0xff]
      %v4194 = vld [vmem:[#allocation4 + $0x7f] sm:$0xff]
      %v4195 = vld [vmem:[#allocation4 + $0x87] sm:$0xff]
      %v4196 = vld [vmem:[#allocation4 + $0x8f] sm:$0xff]
      %v4197 = vld [vmem:[#allocation4 + $0x97] sm:$0xff]
      %v4198 = vld [vmem:[#allocation4 + $0x9f] sm:$0xff]
      %v4199 = vld [vmem:[#allocation4 + $0xa7] sm:$0xff]
      %v4200 = vld [vmem:[#allocation4 + $0xaf] sm:$0xff]
      %v4201 = vld [vmem:[#allocation4 + $0xb7] sm:$0xff]
      %v4202 = vld [vmem:[#allocation4 + $0xbf] sm:$0xff]
      %v4203 = vld [vmem:[#allocation4 + $0xc7] sm:$0xff]
      %v4204 = vld [vmem:[#allocation4 + $0xcf] sm:$0xff]
      %v4205 = vld [vmem:[#allocation4 + $0xd7] sm:$0xff]
      %v4206 = vld [vmem:[#allocation4 + $0xdf] sm:$0xff]
      %v4207 = vld [vmem:[#allocation4 + $0xe7] sm:$0xff]
      %v4208 = vld [vmem:[#allocation4 + $0xef] sm:$0xff]
      %v4209 = vld [vmem:[#allocation4 + $0xf7] sm:$0xff]
      %v4210 = vld [vmem:[#allocation4 + $0xff] sm:$0xff]
      %v4211 = vld [vmem:[#allocation4 + $0x107] sm:$0xff]
      %v4212 = vld [vmem:[#allocation4 + $0x10f] sm:$0xff]
      %v4213 = vld [vmem:[#allocation4 + $0x117] sm:$0xff]
      %v4214 = vld [vmem:[#allocation4 + $0x11f] sm:$0xff]
      %v4215 = vpack.c.bf16 %v4183, %v4183
      %v4216 = vpack.c.bf16 %v4184, %v4184
      %v4217 = vpack.c.bf16 %v4185, %v4185
      %v4218 = vpack.c.bf16 %v4186, %v4186
      %v4219 = vpack.c.bf16 %v4187, %v4187
      %v4220 = vpack.c.bf16 %v4188, %v4188
      %v4221 = vpack.c.bf16 %v4189, %v4189
      %v4222 = vpack.c.bf16 %v4190, %v4190
      %v4223 = vpack.c.bf16 %v4191, %v4191
      %v4224 = vpack.c.bf16 %v4192, %v4192
      %v4225 = vpack.c.bf16 %v4193, %v4193
      %v4226 = vpack.c.bf16 %v4194, %v4194
      %v4227 = vpack.c.bf16 %v4195, %v4195
      %v4228 = vpack.c.bf16 %v4196, %v4196
      %v4229 = vpack.c.bf16 %v4197, %v4197
      %v4230 = vpack.c.bf16 %v4198, %v4198
      %v4231 = vpack.c.bf16 %v4199, %v4199
      %v4232 = vpack.c.bf16 %v4200, %v4200
      %v4233 = vpack.c.bf16 %v4201, %v4201
      %v4234 = vpack.c.bf16 %v4202, %v4202
      %v4235 = vpack.c.bf16 %v4203, %v4203
      %v4236 = vpack.c.bf16 %v4204, %v4204
      %v4237 = vpack.c.bf16 %v4205, %v4205
      %v4238 = vpack.c.bf16 %v4206, %v4206
      %v4239 = vpack.c.bf16 %v4207, %v4207
      %v4240 = vpack.c.bf16 %v4208, %v4208
      %v4241 = vpack.c.bf16 %v4209, %v4209
      %v4242 = vpack.c.bf16 %v4210, %v4210
      %v4243 = vpack.c.bf16 %v4211, %v4211
      %v4244 = vpack.c.bf16 %v4212, %v4212
      %v4245 = vpack.c.bf16 %v4213, %v4213
      %v4246 = vpack.c.bf16 %v4214, %v4214
      %4279 = vrot.lane.b32.xlu0 %v4215, 32
      %v4280 = vpop.permute.xlu0 %4279
      %4281 = vrot.lane.b32.xlu0 %v4216, 32
      %v4282 = vpop.permute.xlu0 %4281
      %4283 = vrot.lane.b32.xlu0 %v4217, 32
      %v4284 = vpop.permute.xlu0 %4283
      %4285 = vrot.lane.b32.xlu0 %v4218, 32
      %v4286 = vpop.permute.xlu0 %4285
      %4287 = vrot.lane.b32.xlu0 %v4219, 32
      %v4288 = vpop.permute.xlu0 %4287
      %4289 = vrot.lane.b32.xlu0 %v4220, 32
      %v4290 = vpop.permute.xlu0 %4289
      %4291 = vrot.lane.b32.xlu0 %v4221, 32
      %v4292 = vpop.permute.xlu0 %4291
      %4293 = vrot.lane.b32.xlu0 %v4222, 32
      %v4294 = vpop.permute.xlu0 %4293
      %4295 = vrot.lane.b32.xlu0 %v4223, 32
      %v4296 = vpop.permute.xlu0 %4295
      %4297 = vrot.lane.b32.xlu0 %v4224, 32
      %v4298 = vpop.permute.xlu0 %4297
      %4299 = vrot.lane.b32.xlu0 %v4225, 32
      %v4300 = vpop.permute.xlu0 %4299
      %4301 = vrot.lane.b32.xlu0 %v4226, 32
      %v4302 = vpop.permute.xlu0 %4301
      %4303 = vrot.lane.b32.xlu0 %v4227, 32
      %v4304 = vpop.permute.xlu0 %4303
      %4305 = vrot.lane.b32.xlu0 %v4228, 32
      %v4306 = vpop.permute.xlu0 %4305
      %4307 = vrot.lane.b32.xlu0 %v4229, 32
      %v4308 = vpop.permute.xlu0 %4307
      %4309 = vrot.lane.b32.xlu0 %v4230, 32
      %v4310 = vpop.permute.xlu0 %4309
      %4311 = vrot.lane.b32.xlu0 %v4231, 32
      %v4312 = vpop.permute.xlu0 %4311
      %4313 = vrot.lane.b32.xlu0 %v4232, 32
      %v4314 = vpop.permute.xlu0 %4313
      %4315 = vrot.lane.b32.xlu0 %v4233, 32
      %v4316 = vpop.permute.xlu0 %4315
      %4317 = vrot.lane.b32.xlu0 %v4234, 32
      %v4318 = vpop.permute.xlu0 %4317
      %4319 = vrot.lane.b32.xlu0 %v4235, 32
      %v4320 = vpop.permute.xlu0 %4319
      %4321 = vrot.lane.b32.xlu0 %v4236, 32
      %v4322 = vpop.permute.xlu0 %4321
      %4323 = vrot.lane.b32.xlu0 %v4237, 32
      %v4324 = vpop.permute.xlu0 %4323
      %4325 = vrot.lane.b32.xlu0 %v4238, 32
      %v4326 = vpop.permute.xlu0 %4325
      %4327 = vrot.lane.b32.xlu0 %v4239, 32
      %v4328 = vpop.permute.xlu0 %4327
      %4329 = vrot.lane.b32.xlu0 %v4240, 32
      %v4330 = vpop.permute.xlu0 %4329
      %4331 = vrot.lane.b32.xlu0 %v4241, 32
      %v4332 = vpop.permute.xlu0 %4331
      %4333 = vrot.lane.b32.xlu0 %v4242, 32
      %v4334 = vpop.permute.xlu0 %4333
      %4335 = vrot.lane.b32.xlu0 %v4243, 32
      %v4336 = vpop.permute.xlu0 %4335
      %4337 = vrot.lane.b32.xlu0 %v4244, 32
      %v4338 = vpop.permute.xlu0 %4337
      %4339 = vrot.lane.b32.xlu0 %v4245, 32
      %v4340 = vpop.permute.xlu0 %4339
      %4341 = vrot.lane.b32.xlu0 %v4246, 32
      %v4342 = vpop.permute.xlu0 %4341
      %4375 = vst.msk [vmem:[#allocation5 + $0xc] sm:$0xf] %vm2068, %v4280
      %4376 = vst.msk [vmem:[#allocation5 + $0x28] sm:$0xf] %vm2068, %v4282
      %4377 = vst.msk [vmem:[#allocation5 + $0x44] sm:$0xf] %vm2068, %v4284
      %4378 = vst.msk [vmem:[#allocation5 + $0x60] sm:$0xf] %vm2068, %v4286
      %4379 = vst.msk [vmem:[#allocation5 + $0x7c] sm:$0xf] %vm2068, %v4288
      %4380 = vst.msk [vmem:[#allocation5 + $0x98] sm:$0xf] %vm2068, %v4290
      %4381 = vst.msk [vmem:[#allocation5 + $0xb4] sm:$0xf] %vm2068, %v4292
      %4382 = vst.msk [vmem:[#allocation5 + $0xd0] sm:$0xf] %vm2068, %v4294
      %4383 = vst.msk [vmem:[#allocation5 + $0xec] sm:$0xf] %vm2068, %v4296
      %4384 = vst.msk [vmem:[#allocation5 + $0x108] sm:$0xf] %vm2068, %v4298
      %4385 = vst.msk [vmem:[#allocation5 + $0x124] sm:$0xf] %vm2068, %v4300
      %4386 = vst.msk [vmem:[#allocation5 + $0x140] sm:$0xf] %vm2068, %v4302
      %4387 = vst.msk [vmem:[#allocation5 + $0x15c] sm:$0xf] %vm2068, %v4304
      %4388 = vst.msk [vmem:[#allocation5 + $0x178] sm:$0xf] %vm2068, %v4306
      %4389 = vst.msk [vmem:[#allocation5 + $0x194] sm:$0xf] %vm2068, %v4308
      %4390 = vst.msk [vmem:[#allocation5 + $0x1b0] sm:$0xf] %vm2068, %v4310
      %4391 = vst.msk [vmem:[#allocation5 + $0x1cc] sm:$0xf] %vm2068, %v4312
      %4392 = vst.msk [vmem:[#allocation5 + $0x1e8] sm:$0xf] %vm2068, %v4314
      %4393 = vst.msk [vmem:[#allocation5 + $0x204] sm:$0xf] %vm2068, %v4316
      %4394 = vst.msk [vmem:[#allocation5 + $0x220] sm:$0xf] %vm2068, %v4318
      %4395 = vst.msk [vmem:[#allocation5 + $0x23c] sm:$0xf] %vm2068, %v4320
      %4396 = vst.msk [vmem:[#allocation5 + $0x258] sm:$0xf] %vm2068, %v4322
      %4397 = vst.msk [vmem:[#allocation5 + $0x274] sm:$0xf] %vm2068, %v4324
      %4398 = vst.msk [vmem:[#allocation5 + $0x290] sm:$0xf] %vm2068, %v4326
      %4399 = vst.msk [vmem:[#allocation5 + $0x2ac] sm:$0xf] %vm2068, %v4328
      %4400 = vst.msk [vmem:[#allocation5 + $0x2c8] sm:$0xf] %vm2068, %v4330
      %4401 = vst.msk [vmem:[#allocation5 + $0x2e4] sm:$0xf] %vm2068, %v4332
      %4402 = vst.msk [vmem:[#allocation5 + $0x300] sm:$0xf] %vm2068, %v4334
      %4403 = vst.msk [vmem:[#allocation5 + $0x31c] sm:$0xf] %vm2068, %v4336
      %4404 = vst.msk [vmem:[#allocation5 + $0x338] sm:$0xf] %vm2068, %v4338
      %4405 = vst.msk [vmem:[#allocation5 + $0x354] sm:$0xf] %vm2068, %v4340
      %4406 = vst.msk [vmem:[#allocation5 + $0x370] sm:$0xf] %vm2068, %v4342
      %v4407 = vld [vmem:[#allocation4 + $0x28] sm:$0xff]
      %v4408 = vld [vmem:[#allocation4 + $0x30] sm:$0xff]
      %v4409 = vld [vmem:[#allocation4 + $0x38] sm:$0xff]
      %v4410 = vld [vmem:[#allocation4 + $0x40] sm:$0xff]
      %v4411 = vld [vmem:[#allocation4 + $0x48] sm:$0xff]
      %v4412 = vld [vmem:[#allocation4 + $0x50] sm:$0xff]
      %v4413 = vld [vmem:[#allocation4 + $0x58] sm:$0xff]
      %v4414 = vld [vmem:[#allocation4 + $0x60] sm:$0xff]
      %v4415 = vld [vmem:[#allocation4 + $0x68] sm:$0xff]
      %v4416 = vld [vmem:[#allocation4 + $0x70] sm:$0xff]
      %v4417 = vld [vmem:[#allocation4 + $0x78] sm:$0xff]
      %v4418 = vld [vmem:[#allocation4 + $0x80] sm:$0xff]
      %v4419 = vld [vmem:[#allocation4 + $0x88] sm:$0xff]
      %v4420 = vld [vmem:[#allocation4 + $0x90] sm:$0xff]
      %v4421 = vld [vmem:[#allocation4 + $0x98] sm:$0xff]
      %v4422 = vld [vmem:[#allocation4 + $0xa0] sm:$0xff]
      %v4423 = vld [vmem:[#allocation4 + $0xa8] sm:$0xff]
      %v4424 = vld [vmem:[#allocation4 + $0xb0] sm:$0xff]
      %v4425 = vld [vmem:[#allocation4 + $0xb8] sm:$0xff]
      %v4426 = vld [vmem:[#allocation4 + $0xc0] sm:$0xff]
      %v4427 = vld [vmem:[#allocation4 + $0xc8] sm:$0xff]
      %v4428 = vld [vmem:[#allocation4 + $0xd0] sm:$0xff]
      %v4429 = vld [vmem:[#allocation4 + $0xd8] sm:$0xff]
      %v4430 = vld [vmem:[#allocation4 + $0xe0] sm:$0xff]
      %v4431 = vld [vmem:[#allocation4 + $0xe8] sm:$0xff]
      %v4432 = vld [vmem:[#allocation4 + $0xf0] sm:$0xff]
      %v4433 = vld [vmem:[#allocation4 + $0xf8] sm:$0xff]
      %v4434 = vld [vmem:[#allocation4 + $0x100] sm:$0xff]
      %v4435 = vld [vmem:[#allocation4 + $0x108] sm:$0xff]
      %v4436 = vld [vmem:[#allocation4 + $0x110] sm:$0xff]
      %v4437 = vld [vmem:[#allocation4 + $0x118] sm:$0xff]
      %v4438 = vld [vmem:[#allocation4 + $0x120] sm:$0xff]
      %v4439 = vpack.c.bf16 %v4407, %v4407
      %v4440 = vpack.c.bf16 %v4408, %v4408
      %v4441 = vpack.c.bf16 %v4409, %v4409
      %v4442 = vpack.c.bf16 %v4410, %v4410
      %v4443 = vpack.c.bf16 %v4411, %v4411
      %v4444 = vpack.c.bf16 %v4412, %v4412
      %v4445 = vpack.c.bf16 %v4413, %v4413
      %v4446 = vpack.c.bf16 %v4414, %v4414
      %v4447 = vpack.c.bf16 %v4415, %v4415
      %v4448 = vpack.c.bf16 %v4416, %v4416
      %v4449 = vpack.c.bf16 %v4417, %v4417
      %v4450 = vpack.c.bf16 %v4418, %v4418
      %v4451 = vpack.c.bf16 %v4419, %v4419
      %v4452 = vpack.c.bf16 %v4420, %v4420
      %v4453 = vpack.c.bf16 %v4421, %v4421
      %v4454 = vpack.c.bf16 %v4422, %v4422
      %v4455 = vpack.c.bf16 %v4423, %v4423
      %v4456 = vpack.c.bf16 %v4424, %v4424
      %v4457 = vpack.c.bf16 %v4425, %v4425
      %v4458 = vpack.c.bf16 %v4426, %v4426
      %v4459 = vpack.c.bf16 %v4427, %v4427
      %v4460 = vpack.c.bf16 %v4428, %v4428
      %v4461 = vpack.c.bf16 %v4429, %v4429
      %v4462 = vpack.c.bf16 %v4430, %v4430
      %v4463 = vpack.c.bf16 %v4431, %v4431
      %v4464 = vpack.c.bf16 %v4432, %v4432
      %v4465 = vpack.c.bf16 %v4433, %v4433
      %v4466 = vpack.c.bf16 %v4434, %v4434
      %v4467 = vpack.c.bf16 %v4435, %v4435
      %v4468 = vpack.c.bf16 %v4436, %v4436
      %v4469 = vpack.c.bf16 %v4437, %v4437
      %v4470 = vpack.c.bf16 %v4438, %v4438
      %4503 = vrot.lane.b32.xlu0 %v4439, 64
      %v4504 = vpop.permute.xlu0 %4503
      %4505 = vrot.lane.b32.xlu0 %v4440, 64
      %v4506 = vpop.permute.xlu0 %4505
      %4507 = vrot.lane.b32.xlu0 %v4441, 64
      %v4508 = vpop.permute.xlu0 %4507
      %4509 = vrot.lane.b32.xlu0 %v4442, 64
      %v4510 = vpop.permute.xlu0 %4509
      %4511 = vrot.lane.b32.xlu0 %v4443, 64
      %v4512 = vpop.permute.xlu0 %4511
      %4513 = vrot.lane.b32.xlu0 %v4444, 64
      %v4514 = vpop.permute.xlu0 %4513
      %4515 = vrot.lane.b32.xlu0 %v4445, 64
      %v4516 = vpop.permute.xlu0 %4515
      %4517 = vrot.lane.b32.xlu0 %v4446, 64
      %v4518 = vpop.permute.xlu0 %4517
      %4519 = vrot.lane.b32.xlu0 %v4447, 64
      %v4520 = vpop.permute.xlu0 %4519
      %4521 = vrot.lane.b32.xlu0 %v4448, 64
      %v4522 = vpop.permute.xlu0 %4521
      %4523 = vrot.lane.b32.xlu0 %v4449, 64
      %v4524 = vpop.permute.xlu0 %4523
      %4525 = vrot.lane.b32.xlu0 %v4450, 64
      %v4526 = vpop.permute.xlu0 %4525
      %4527 = vrot.lane.b32.xlu0 %v4451, 64
      %v4528 = vpop.permute.xlu0 %4527
      %4529 = vrot.lane.b32.xlu0 %v4452, 64
      %v4530 = vpop.permute.xlu0 %4529
      %4531 = vrot.lane.b32.xlu0 %v4453, 64
      %v4532 = vpop.permute.xlu0 %4531
      %4533 = vrot.lane.b32.xlu0 %v4454, 64
      %v4534 = vpop.permute.xlu0 %4533
      %4535 = vrot.lane.b32.xlu0 %v4455, 64
      %v4536 = vpop.permute.xlu0 %4535
      %4537 = vrot.lane.b32.xlu0 %v4456, 64
      %v4538 = vpop.permute.xlu0 %4537
      %4539 = vrot.lane.b32.xlu0 %v4457, 64
      %v4540 = vpop.permute.xlu0 %4539
      %4541 = vrot.lane.b32.xlu0 %v4458, 64
      %v4542 = vpop.permute.xlu0 %4541
      %4543 = vrot.lane.b32.xlu0 %v4459, 64
      %v4544 = vpop.permute.xlu0 %4543
      %4545 = vrot.lane.b32.xlu0 %v4460, 64
      %v4546 = vpop.permute.xlu0 %4545
      %4547 = vrot.lane.b32.xlu0 %v4461, 64
      %v4548 = vpop.permute.xlu0 %4547
      %4549 = vrot.lane.b32.xlu0 %v4462, 64
      %v4550 = vpop.permute.xlu0 %4549
      %4551 = vrot.lane.b32.xlu0 %v4463, 64
      %v4552 = vpop.permute.xlu0 %4551
      %4553 = vrot.lane.b32.xlu0 %v4464, 64
      %v4554 = vpop.permute.xlu0 %4553
      %4555 = vrot.lane.b32.xlu0 %v4465, 64
      %v4556 = vpop.permute.xlu0 %4555
      %4557 = vrot.lane.b32.xlu0 %v4466, 64
      %v4558 = vpop.permute.xlu0 %4557
      %4559 = vrot.lane.b32.xlu0 %v4467, 64
      %v4560 = vpop.permute.xlu0 %4559
      %4561 = vrot.lane.b32.xlu0 %v4468, 64
      %v4562 = vpop.permute.xlu0 %4561
      %4563 = vrot.lane.b32.xlu0 %v4469, 64
      %v4564 = vpop.permute.xlu0 %4563
      %4565 = vrot.lane.b32.xlu0 %v4470, 64
      %v4566 = vpop.permute.xlu0 %4565
      %4599 = vst.msk [vmem:[#allocation5 + $0xc] sm:$0xf] %vm2293, %v4504
      %4600 = vst.msk [vmem:[#allocation5 + $0x28] sm:$0xf] %vm2293, %v4506
      %4601 = vst.msk [vmem:[#allocation5 + $0x44] sm:$0xf] %vm2293, %v4508
      %4602 = vst.msk [vmem:[#allocation5 + $0x60] sm:$0xf] %vm2293, %v4510
      %4603 = vst.msk [vmem:[#allocation5 + $0x7c] sm:$0xf] %vm2293, %v4512
      %4604 = vst.msk [vmem:[#allocation5 + $0x98] sm:$0xf] %vm2293, %v4514
      %4605 = vst.msk [vmem:[#allocation5 + $0xb4] sm:$0xf] %vm2293, %v4516
      %4606 = vst.msk [vmem:[#allocation5 + $0xd0] sm:$0xf] %vm2293, %v4518
      %4607 = vst.msk [vmem:[#allocation5 + $0xec] sm:$0xf] %vm2293, %v4520
      %4608 = vst.msk [vmem:[#allocation5 + $0x108] sm:$0xf] %vm2293, %v4522
      %4609 = vst.msk [vmem:[#allocation5 + $0x124] sm:$0xf] %vm2293, %v4524
      %4610 = vst.msk [vmem:[#allocation5 + $0x140] sm:$0xf] %vm2293, %v4526
      %4611 = vst.msk [vmem:[#allocation5 + $0x15c] sm:$0xf] %vm2293, %v4528
      %4612 = vst.msk [vmem:[#allocation5 + $0x178] sm:$0xf] %vm2293, %v4530
      %4613 = vst.msk [vmem:[#allocation5 + $0x194] sm:$0xf] %vm2293, %v4532
      %4614 = vst.msk [vmem:[#allocation5 + $0x1b0] sm:$0xf] %vm2293, %v4534
      %4615 = vst.msk [vmem:[#allocation5 + $0x1cc] sm:$0xf] %vm2293, %v4536
      %4616 = vst.msk [vmem:[#allocation5 + $0x1e8] sm:$0xf] %vm2293, %v4538
      %4617 = vst.msk [vmem:[#allocation5 + $0x204] sm:$0xf] %vm2293, %v4540
      %4618 = vst.msk [vmem:[#allocation5 + $0x220] sm:$0xf] %vm2293, %v4542
      %4619 = vst.msk [vmem:[#allocation5 + $0x23c] sm:$0xf] %vm2293, %v4544
      %4620 = vst.msk [vmem:[#allocation5 + $0x258] sm:$0xf] %vm2293, %v4546
      %4621 = vst.msk [vmem:[#allocation5 + $0x274] sm:$0xf] %vm2293, %v4548
      %4622 = vst.msk [vmem:[#allocation5 + $0x290] sm:$0xf] %vm2293, %v4550
      %4623 = vst.msk [vmem:[#allocation5 + $0x2ac] sm:$0xf] %vm2293, %v4552
      %4624 = vst.msk [vmem:[#allocation5 + $0x2c8] sm:$0xf] %vm2293, %v4554
      %4625 = vst.msk [vmem:[#allocation5 + $0x2e4] sm:$0xf] %vm2293, %v4556
      %4626 = vst.msk [vmem:[#allocation5 + $0x300] sm:$0xf] %vm2293, %v4558
      %4627 = vst.msk [vmem:[#allocation5 + $0x31c] sm:$0xf] %vm2293, %v4560
      %4628 = vst.msk [vmem:[#allocation5 + $0x338] sm:$0xf] %vm2293, %v4562
      %4629 = vst.msk [vmem:[#allocation5 + $0x354] sm:$0xf] %vm2293, %v4564
      %4630 = vst.msk [vmem:[#allocation5 + $0x370] sm:$0xf] %vm2293, %v4566
      %v4631 = vld [vmem:[#allocation4 + $0x36] sm:$0xff]
      %v4632 = vld [vmem:[#allocation4 + $0x3e] sm:$0xff]
      %v4633 = vld [vmem:[#allocation4 + $0x46] sm:$0xff]
      %v4634 = vld [vmem:[#allocation4 + $0x4e] sm:$0xff]
      %v4635 = vld [vmem:[#allocation4 + $0x56] sm:$0xff]
      %v4636 = vld [vmem:[#allocation4 + $0x5e] sm:$0xff]
      %v4637 = vld [vmem:[#allocation4 + $0x66] sm:$0xff]
      %v4638 = vld [vmem:[#allocation4 + $0x6e] sm:$0xff]
      %v4639 = vld [vmem:[#allocation4 + $0x76] sm:$0xff]
      %v4640 = vld [vmem:[#allocation4 + $0x7e] sm:$0xff]
      %v4641 = vld [vmem:[#allocation4 + $0x86] sm:$0xff]
      %v4642 = vld [vmem:[#allocation4 + $0x8e] sm:$0xff]
      %v4643 = vld [vmem:[#allocation4 + $0x96] sm:$0xff]
      %v4644 = vld [vmem:[#allocation4 + $0x9e] sm:$0xff]
      %v4645 = vld [vmem:[#allocation4 + $0xa6] sm:$0xff]
      %v4646 = vld [vmem:[#allocation4 + $0xae] sm:$0xff]
      %v4647 = vld [vmem:[#allocation4 + $0xb6] sm:$0xff]
      %v4648 = vld [vmem:[#allocation4 + $0xbe] sm:$0xff]
      %v4649 = vld [vmem:[#allocation4 + $0xc6] sm:$0xff]
      %v4650 = vld [vmem:[#allocation4 + $0xce] sm:$0xff]
      %v4651 = vld [vmem:[#allocation4 + $0xd6] sm:$0xff]
      %v4652 = vld [vmem:[#allocation4 + $0xde] sm:$0xff]
      %v4653 = vld [vmem:[#allocation4 + $0xe6] sm:$0xff]
      %v4654 = vld [vmem:[#allocation4 + $0xee] sm:$0xff]
      %v4655 = vld [vmem:[#allocation4 + $0xf6] sm:$0xff]
      %v4656 = vld [vmem:[#allocation4 + $0xfe] sm:$0xff]
      %v4657 = vld [vmem:[#allocation4 + $0x106] sm:$0xff]
      %v4658 = vld [vmem:[#allocation4 + $0x10e] sm:$0xff]
      %v4659 = vld [vmem:[#allocation4 + $0x116] sm:$0xff]
      %v4660 = vld [vmem:[#allocation4 + $0x11e] sm:$0xff]
      %v4661 = vld [vmem:[#allocation4 + $0x126] sm:$0xff]
      %v4662 = vld [vmem:[#allocation4 + $0x12e] sm:$0xff]
      %v4663 = vpack.c.bf16 %v4631, %v4631
      %v4664 = vpack.c.bf16 %v4632, %v4632
      %v4665 = vpack.c.bf16 %v4633, %v4633
      %v4666 = vpack.c.bf16 %v4634, %v4634
      %v4667 = vpack.c.bf16 %v4635, %v4635
      %v4668 = vpack.c.bf16 %v4636, %v4636
      %v4669 = vpack.c.bf16 %v4637, %v4637
      %v4670 = vpack.c.bf16 %v4638, %v4638
      %v4671 = vpack.c.bf16 %v4639, %v4639
      %v4672 = vpack.c.bf16 %v4640, %v4640
      %v4673 = vpack.c.bf16 %v4641, %v4641
      %v4674 = vpack.c.bf16 %v4642, %v4642
      %v4675 = vpack.c.bf16 %v4643, %v4643
      %v4676 = vpack.c.bf16 %v4644, %v4644
      %v4677 = vpack.c.bf16 %v4645, %v4645
      %v4678 = vpack.c.bf16 %v4646, %v4646
      %v4679 = vpack.c.bf16 %v4647, %v4647
      %v4680 = vpack.c.bf16 %v4648, %v4648
      %v4681 = vpack.c.bf16 %v4649, %v4649
      %v4682 = vpack.c.bf16 %v4650, %v4650
      %v4683 = vpack.c.bf16 %v4651, %v4651
      %v4684 = vpack.c.bf16 %v4652, %v4652
      %v4685 = vpack.c.bf16 %v4653, %v4653
      %v4686 = vpack.c.bf16 %v4654, %v4654
      %v4687 = vpack.c.bf16 %v4655, %v4655
      %v4688 = vpack.c.bf16 %v4656, %v4656
      %v4689 = vpack.c.bf16 %v4657, %v4657
      %v4690 = vpack.c.bf16 %v4658, %v4658
      %v4691 = vpack.c.bf16 %v4659, %v4659
      %v4692 = vpack.c.bf16 %v4660, %v4660
      %v4693 = vpack.c.bf16 %v4661, %v4661
      %v4694 = vpack.c.bf16 %v4662, %v4662
      %4727 = vrot.lane.b32.xlu0 %v4663, 96
      %v4728 = vpop.permute.xlu0 %4727
      %4729 = vrot.lane.b32.xlu0 %v4664, 96
      %v4730 = vpop.permute.xlu0 %4729
      %4731 = vrot.lane.b32.xlu0 %v4665, 96
      %v4732 = vpop.permute.xlu0 %4731
      %4733 = vrot.lane.b32.xlu0 %v4666, 96
      %v4734 = vpop.permute.xlu0 %4733
      %4735 = vrot.lane.b32.xlu0 %v4667, 96
      %v4736 = vpop.permute.xlu0 %4735
      %4737 = vrot.lane.b32.xlu0 %v4668, 96
      %v4738 = vpop.permute.xlu0 %4737
      %4739 = vrot.lane.b32.xlu0 %v4669, 96
      %v4740 = vpop.permute.xlu0 %4739
      %4741 = vrot.lane.b32.xlu0 %v4670, 96
      %v4742 = vpop.permute.xlu0 %4741
      %4743 = vrot.lane.b32.xlu0 %v4671, 96
      %v4744 = vpop.permute.xlu0 %4743
      %4745 = vrot.lane.b32.xlu0 %v4672, 96
      %v4746 = vpop.permute.xlu0 %4745
      %4747 = vrot.lane.b32.xlu0 %v4673, 96
      %v4748 = vpop.permute.xlu0 %4747
      %4749 = vrot.lane.b32.xlu0 %v4674, 96
      %v4750 = vpop.permute.xlu0 %4749
      %4751 = vrot.lane.b32.xlu0 %v4675, 96
      %v4752 = vpop.permute.xlu0 %4751
      %4753 = vrot.lane.b32.xlu0 %v4676, 96
      %v4754 = vpop.permute.xlu0 %4753
      %4755 = vrot.lane.b32.xlu0 %v4677, 96
      %v4756 = vpop.permute.xlu0 %4755
      %4757 = vrot.lane.b32.xlu0 %v4678, 96
      %v4758 = vpop.permute.xlu0 %4757
      %4759 = vrot.lane.b32.xlu0 %v4679, 96
      %v4760 = vpop.permute.xlu0 %4759
      %4761 = vrot.lane.b32.xlu0 %v4680, 96
      %v4762 = vpop.permute.xlu0 %4761
      %4763 = vrot.lane.b32.xlu0 %v4681, 96
      %v4764 = vpop.permute.xlu0 %4763
      %4765 = vrot.lane.b32.xlu0 %v4682, 96
      %v4766 = vpop.permute.xlu0 %4765
      %4767 = vrot.lane.b32.xlu0 %v4683, 96
      %v4768 = vpop.permute.xlu0 %4767
      %4769 = vrot.lane.b32.xlu0 %v4684, 96
      %v4770 = vpop.permute.xlu0 %4769
      %4771 = vrot.lane.b32.xlu0 %v4685, 96
      %v4772 = vpop.permute.xlu0 %4771
      %4773 = vrot.lane.b32.xlu0 %v4686, 96
      %v4774 = vpop.permute.xlu0 %4773
      %4775 = vrot.lane.b32.xlu0 %v4687, 96
      %v4776 = vpop.permute.xlu0 %4775
      %4777 = vrot.lane.b32.xlu0 %v4688, 96
      %v4778 = vpop.permute.xlu0 %4777
      %4779 = vrot.lane.b32.xlu0 %v4689, 96
      %v4780 = vpop.permute.xlu0 %4779
      %4781 = vrot.lane.b32.xlu0 %v4690, 96
      %v4782 = vpop.permute.xlu0 %4781
      %4783 = vrot.lane.b32.xlu0 %v4691, 96
      %v4784 = vpop.permute.xlu0 %4783
      %4785 = vrot.lane.b32.xlu0 %v4692, 96
      %v4786 = vpop.permute.xlu0 %4785
      %4787 = vrot.lane.b32.xlu0 %v4693, 96
      %v4788 = vpop.permute.xlu0 %4787
      %4789 = vrot.lane.b32.xlu0 %v4694, 96
      %v4790 = vpop.permute.xlu0 %4789
      %4823 = vst.msk [vmem:[#allocation5 + $0xc] sm:$0xf] %vm2518, %v4728
      %4824 = vst.msk [vmem:[#allocation5 + $0x28] sm:$0xf] %vm2518, %v4730
      %4825 = vst.msk [vmem:[#allocation5 + $0x44] sm:$0xf] %vm2518, %v4732
      %4826 = vst.msk [vmem:[#allocation5 + $0x60] sm:$0xf] %vm2518, %v4734
      %4827 = vst.msk [vmem:[#allocation5 + $0x7c] sm:$0xf] %vm2518, %v4736
      %4828 = vst.msk [vmem:[#allocation5 + $0x98] sm:$0xf] %vm2518, %v4738
      %4829 = vst.msk [vmem:[#allocation5 + $0xb4] sm:$0xf] %vm2518, %v4740
      %4830 = vst.msk [vmem:[#allocation5 + $0xd0] sm:$0xf] %vm2518, %v4742
      %4831 = vst.msk [vmem:[#allocation5 + $0xec] sm:$0xf] %vm2518, %v4744
      %4832 = vst.msk [vmem:[#allocation5 + $0x108] sm:$0xf] %vm2518, %v4746
      %4833 = vst.msk [vmem:[#allocation5 + $0x124] sm:$0xf] %vm2518, %v4748
      %4834 = vst.msk [vmem:[#allocation5 + $0x140] sm:$0xf] %vm2518, %v4750
      %4835 = vst.msk [vmem:[#allocation5 + $0x15c] sm:$0xf] %vm2518, %v4752
      %4836 = vst.msk [vmem:[#allocation5 + $0x178] sm:$0xf] %vm2518, %v4754
      %4837 = vst.msk [vmem:[#allocation5 + $0x194] sm:$0xf] %vm2518, %v4756
      %4838 = vst.msk [vmem:[#allocation5 + $0x1b0] sm:$0xf] %vm2518, %v4758
      %4839 = vst.msk [vmem:[#allocation5 + $0x1cc] sm:$0xf] %vm2518, %v4760
      %4840 = vst.msk [vmem:[#allocation5 + $0x1e8] sm:$0xf] %vm2518, %v4762
      %4841 = vst.msk [vmem:[#allocation5 + $0x204] sm:$0xf] %vm2518, %v4764
      %4842 = vst.msk [vmem:[#allocation5 + $0x220] sm:$0xf] %vm2518, %v4766
      %4843 = vst.msk [vmem:[#allocation5 + $0x23c] sm:$0xf] %vm2518, %v4768
      %4844 = vst.msk [vmem:[#allocation5 + $0x258] sm:$0xf] %vm2518, %v4770
      %4845 = vst.msk [vmem:[#allocation5 + $0x274] sm:$0xf] %vm2518, %v4772
      %4846 = vst.msk [vmem:[#allocation5 + $0x290] sm:$0xf] %vm2518, %v4774
      %4847 = vst.msk [vmem:[#allocation5 + $0x2ac] sm:$0xf] %vm2518, %v4776
      %4848 = vst.msk [vmem:[#allocation5 + $0x2c8] sm:$0xf] %vm2518, %v4778
      %4849 = vst.msk [vmem:[#allocation5 + $0x2e4] sm:$0xf] %vm2518, %v4780
      %4850 = vst.msk [vmem:[#allocation5 + $0x300] sm:$0xf] %vm2518, %v4782
      %4851 = vst.msk [vmem:[#allocation5 + $0x31c] sm:$0xf] %vm2518, %v4784
      %4852 = vst.msk [vmem:[#allocation5 + $0x338] sm:$0xf] %vm2518, %v4786
      %4853 = vst.msk [vmem:[#allocation5 + $0x354] sm:$0xf] %vm2518, %v4788
      %4854 = vst.msk [vmem:[#allocation5 + $0x370] sm:$0xf] %vm2518, %v4790
      %v4855 = vld [vmem:[#allocation4 + $0x37] sm:$0xff]
      %v4856 = vld [vmem:[#allocation4 + $0x3f] sm:$0xff]
      %v4857 = vld [vmem:[#allocation4 + $0x47] sm:$0xff]
      %v4858 = vld [vmem:[#allocation4 + $0x4f] sm:$0xff]
      %v4859 = vld [vmem:[#allocation4 + $0x57] sm:$0xff]
      %v4860 = vld [vmem:[#allocation4 + $0x5f] sm:$0xff]
      %v4861 = vld [vmem:[#allocation4 + $0x67] sm:$0xff]
      %v4862 = vld [vmem:[#allocation4 + $0x6f] sm:$0xff]
      %v4863 = vld [vmem:[#allocation4 + $0x77] sm:$0xff]
      %v4864 = vld [vmem:[#allocation4 + $0x7f] sm:$0xff]
      %v4865 = vld [vmem:[#allocation4 + $0x87] sm:$0xff]
      %v4866 = vld [vmem:[#allocation4 + $0x8f] sm:$0xff]
      %v4867 = vld [vmem:[#allocation4 + $0x97] sm:$0xff]
      %v4868 = vld [vmem:[#allocation4 + $0x9f] sm:$0xff]
      %v4869 = vld [vmem:[#allocation4 + $0xa7] sm:$0xff]
      %v4870 = vld [vmem:[#allocation4 + $0xaf] sm:$0xff]
      %v4871 = vld [vmem:[#allocation4 + $0xb7] sm:$0xff]
      %v4872 = vld [vmem:[#allocation4 + $0xbf] sm:$0xff]
      %v4873 = vld [vmem:[#allocation4 + $0xc7] sm:$0xff]
      %v4874 = vld [vmem:[#allocation4 + $0xcf] sm:$0xff]
      %v4875 = vld [vmem:[#allocation4 + $0xd7] sm:$0xff]
      %v4876 = vld [vmem:[#allocation4 + $0xdf] sm:$0xff]
      %v4877 = vld [vmem:[#allocation4 + $0xe7] sm:$0xff]
      %v4878 = vld [vmem:[#allocation4 + $0xef] sm:$0xff]
      %v4879 = vld [vmem:[#allocation4 + $0xf7] sm:$0xff]
      %v4880 = vld [vmem:[#allocation4 + $0xff] sm:$0xff]
      %v4881 = vld [vmem:[#allocation4 + $0x107] sm:$0xff]
      %v4882 = vld [vmem:[#allocation4 + $0x10f] sm:$0xff]
      %v4883 = vld [vmem:[#allocation4 + $0x117] sm:$0xff]
      %v4884 = vld [vmem:[#allocation4 + $0x11f] sm:$0xff]
      %v4885 = vld [vmem:[#allocation4 + $0x127] sm:$0xff]
      %v4886 = vld [vmem:[#allocation4 + $0x12f] sm:$0xff]
      %v4887 = vpack.c.bf16 %v4855, %v4855
      %v4888 = vpack.c.bf16 %v4856, %v4856
      %v4889 = vpack.c.bf16 %v4857, %v4857
      %v4890 = vpack.c.bf16 %v4858, %v4858
      %v4891 = vpack.c.bf16 %v4859, %v4859
      %v4892 = vpack.c.bf16 %v4860, %v4860
      %v4893 = vpack.c.bf16 %v4861, %v4861
      %v4894 = vpack.c.bf16 %v4862, %v4862
      %v4895 = vpack.c.bf16 %v4863, %v4863
      %v4896 = vpack.c.bf16 %v4864, %v4864
      %v4897 = vpack.c.bf16 %v4865, %v4865
      %v4898 = vpack.c.bf16 %v4866, %v4866
      %v4899 = vpack.c.bf16 %v4867, %v4867
      %v4900 = vpack.c.bf16 %v4868, %v4868
      %v4901 = vpack.c.bf16 %v4869, %v4869
      %v4902 = vpack.c.bf16 %v4870, %v4870
      %v4903 = vpack.c.bf16 %v4871, %v4871
      %v4904 = vpack.c.bf16 %v4872, %v4872
      %v4905 = vpack.c.bf16 %v4873, %v4873
      %v4906 = vpack.c.bf16 %v4874, %v4874
      %v4907 = vpack.c.bf16 %v4875, %v4875
      %v4908 = vpack.c.bf16 %v4876, %v4876
      %v4909 = vpack.c.bf16 %v4877, %v4877
      %v4910 = vpack.c.bf16 %v4878, %v4878
      %v4911 = vpack.c.bf16 %v4879, %v4879
      %v4912 = vpack.c.bf16 %v4880, %v4880
      %v4913 = vpack.c.bf16 %v4881, %v4881
      %v4914 = vpack.c.bf16 %v4882, %v4882
      %v4915 = vpack.c.bf16 %v4883, %v4883
      %v4916 = vpack.c.bf16 %v4884, %v4884
      %v4917 = vpack.c.bf16 %v4885, %v4885
      %v4918 = vpack.c.bf16 %v4886, %v4886
      %4919 = vst.msk [vmem:[#allocation5 + $0x10] sm:$0xf] %vm1843, %v4887
      %4920 = vst.msk [vmem:[#allocation5 + $0x2c] sm:$0xf] %vm1843, %v4888
      %4921 = vst.msk [vmem:[#allocation5 + $0x48] sm:$0xf] %vm1843, %v4889
      %4922 = vst.msk [vmem:[#allocation5 + $0x64] sm:$0xf] %vm1843, %v4890
      %4923 = vst.msk [vmem:[#allocation5 + $0x80] sm:$0xf] %vm1843, %v4891
      %4924 = vst.msk [vmem:[#allocation5 + $0x9c] sm:$0xf] %vm1843, %v4892
      %4925 = vst.msk [vmem:[#allocation5 + $0xb8] sm:$0xf] %vm1843, %v4893
      %4926 = vst.msk [vmem:[#allocation5 + $0xd4] sm:$0xf] %vm1843, %v4894
      %4927 = vst.msk [vmem:[#allocation5 + $0xf0] sm:$0xf] %vm1843, %v4895
      %4928 = vst.msk [vmem:[#allocation5 + $0x10c] sm:$0xf] %vm1843, %v4896
      %4929 = vst.msk [vmem:[#allocation5 + $0x128] sm:$0xf] %vm1843, %v4897
      %4930 = vst.msk [vmem:[#allocation5 + $0x144] sm:$0xf] %vm1843, %v4898
      %4931 = vst.msk [vmem:[#allocation5 + $0x160] sm:$0xf] %vm1843, %v4899
      %4932 = vst.msk [vmem:[#allocation5 + $0x17c] sm:$0xf] %vm1843, %v4900
      %4933 = vst.msk [vmem:[#allocation5 + $0x198] sm:$0xf] %vm1843, %v4901
      %4934 = vst.msk [vmem:[#allocation5 + $0x1b4] sm:$0xf] %vm1843, %v4902
      %4935 = vst.msk [vmem:[#allocation5 + $0x1d0] sm:$0xf] %vm1843, %v4903
      %4936 = vst.msk [vmem:[#allocation5 + $0x1ec] sm:$0xf] %vm1843, %v4904
      %4937 = vst.msk [vmem:[#allocation5 + $0x208] sm:$0xf] %vm1843, %v4905
      %4938 = vst.msk [vmem:[#allocation5 + $0x224] sm:$0xf] %vm1843, %v4906
      %4939 = vst.msk [vmem:[#allocation5 + $0x240] sm:$0xf] %vm1843, %v4907
      %4940 = vst.msk [vmem:[#allocation5 + $0x25c] sm:$0xf] %vm1843, %v4908
      %4941 = vst.msk [vmem:[#allocation5 + $0x278] sm:$0xf] %vm1843, %v4909
      %4942 = vst.msk [vmem:[#allocation5 + $0x294] sm:$0xf] %vm1843, %v4910
      %4943 = vst.msk [vmem:[#allocation5 + $0x2b0] sm:$0xf] %vm1843, %v4911
      %4944 = vst.msk [vmem:[#allocation5 + $0x2cc] sm:$0xf] %vm1843, %v4912
      %4945 = vst.msk [vmem:[#allocation5 + $0x2e8] sm:$0xf] %vm1843, %v4913
      %4946 = vst.msk [vmem:[#allocation5 + $0x304] sm:$0xf] %vm1843, %v4914
      %4947 = vst.msk [vmem:[#allocation5 + $0x320] sm:$0xf] %vm1843, %v4915
      %4948 = vst.msk [vmem:[#allocation5 + $0x33c] sm:$0xf] %vm1843, %v4916
      %4949 = vst.msk [vmem:[#allocation5 + $0x358] sm:$0xf] %vm1843, %v4917
      %4950 = vst.msk [vmem:[#allocation5 + $0x374] sm:$0xf] %vm1843, %v4918
      %v4951 = vld [vmem:[#allocation4 + $0x38] sm:$0xff]
      %v4952 = vld [vmem:[#allocation4 + $0x40] sm:$0xff]
      %v4953 = vld [vmem:[#allocation4 + $0x48] sm:$0xff]
      %v4954 = vld [vmem:[#allocation4 + $0x50] sm:$0xff]
      %v4955 = vld [vmem:[#allocation4 + $0x58] sm:$0xff]
      %v4956 = vld [vmem:[#allocation4 + $0x60] sm:$0xff]
      %v4957 = vld [vmem:[#allocation4 + $0x68] sm:$0xff]
      %v4958 = vld [vmem:[#allocation4 + $0x70] sm:$0xff]
      %v4959 = vld [vmem:[#allocation4 + $0x78] sm:$0xff]
      %v4960 = vld [vmem:[#allocation4 + $0x80] sm:$0xff]
      %v4961 = vld [vmem:[#allocation4 + $0x88] sm:$0xff]
      %v4962 = vld [vmem:[#allocation4 + $0x90] sm:$0xff]
      %v4963 = vld [vmem:[#allocation4 + $0x98] sm:$0xff]
      %v4964 = vld [vmem:[#allocation4 + $0xa0] sm:$0xff]
      %v4965 = vld [vmem:[#allocation4 + $0xa8] sm:$0xff]
      %v4966 = vld [vmem:[#allocation4 + $0xb0] sm:$0xff]
      %v4967 = vld [vmem:[#allocation4 + $0xb8] sm:$0xff]
      %v4968 = vld [vmem:[#allocation4 + $0xc0] sm:$0xff]
      %v4969 = vld [vmem:[#allocation4 + $0xc8] sm:$0xff]
      %v4970 = vld [vmem:[#allocation4 + $0xd0] sm:$0xff]
      %v4971 = vld [vmem:[#allocation4 + $0xd8] sm:$0xff]
      %v4972 = vld [vmem:[#allocation4 + $0xe0] sm:$0xff]
      %v4973 = vld [vmem:[#allocation4 + $0xe8] sm:$0xff]
      %v4974 = vld [vmem:[#allocation4 + $0xf0] sm:$0xff]
      %v4975 = vld [vmem:[#allocation4 + $0xf8] sm:$0xff]
      %v4976 = vld [vmem:[#allocation4 + $0x100] sm:$0xff]
      %v4977 = vld [vmem:[#allocation4 + $0x108] sm:$0xff]
      %v4978 = vld [vmem:[#allocation4 + $0x110] sm:$0xff]
      %v4979 = vld [vmem:[#allocation4 + $0x118] sm:$0xff]
      %v4980 = vld [vmem:[#allocation4 + $0x120] sm:$0xff]
      %v4981 = vld [vmem:[#allocation4 + $0x128] sm:$0xff]
      %v4982 = vld [vmem:[#allocation4 + $0x130] sm:$0xff]
      %v4983 = vpack.c.bf16 %v4951, %v4951
      %v4984 = vpack.c.bf16 %v4952, %v4952
      %v4985 = vpack.c.bf16 %v4953, %v4953
      %v4986 = vpack.c.bf16 %v4954, %v4954
      %v4987 = vpack.c.bf16 %v4955, %v4955
      %v4988 = vpack.c.bf16 %v4956, %v4956
      %v4989 = vpack.c.bf16 %v4957, %v4957
      %v4990 = vpack.c.bf16 %v4958, %v4958
      %v4991 = vpack.c.bf16 %v4959, %v4959
      %v4992 = vpack.c.bf16 %v4960, %v4960
      %v4993 = vpack.c.bf16 %v4961, %v4961
      %v4994 = vpack.c.bf16 %v4962, %v4962
      %v4995 = vpack.c.bf16 %v4963, %v4963
      %v4996 = vpack.c.bf16 %v4964, %v4964
      %v4997 = vpack.c.bf16 %v4965, %v4965
      %v4998 = vpack.c.bf16 %v4966, %v4966
      %v4999 = vpack.c.bf16 %v4967, %v4967
      %v5000 = vpack.c.bf16 %v4968, %v4968
      %v5001 = vpack.c.bf16 %v4969, %v4969
      %v5002 = vpack.c.bf16 %v4970, %v4970
      %v5003 = vpack.c.bf16 %v4971, %v4971
      %v5004 = vpack.c.bf16 %v4972, %v4972
      %v5005 = vpack.c.bf16 %v4973, %v4973
      %v5006 = vpack.c.bf16 %v4974, %v4974
      %v5007 = vpack.c.bf16 %v4975, %v4975
      %v5008 = vpack.c.bf16 %v4976, %v4976
      %v5009 = vpack.c.bf16 %v4977, %v4977
      %v5010 = vpack.c.bf16 %v4978, %v4978
      %v5011 = vpack.c.bf16 %v4979, %v4979
      %v5012 = vpack.c.bf16 %v4980, %v4980
      %v5013 = vpack.c.bf16 %v4981, %v4981
      %v5014 = vpack.c.bf16 %v4982, %v4982
      %5047 = vrot.lane.b32.xlu0 %v4983, 32
      %v5048 = vpop.permute.xlu0 %5047
      %5049 = vrot.lane.b32.xlu0 %v4984, 32
      %v5050 = vpop.permute.xlu0 %5049
      %5051 = vrot.lane.b32.xlu0 %v4985, 32
      %v5052 = vpop.permute.xlu0 %5051
      %5053 = vrot.lane.b32.xlu0 %v4986, 32
      %v5054 = vpop.permute.xlu0 %5053
      %5055 = vrot.lane.b32.xlu0 %v4987, 32
      %v5056 = vpop.permute.xlu0 %5055
      %5057 = vrot.lane.b32.xlu0 %v4988, 32
      %v5058 = vpop.permute.xlu0 %5057
      %5059 = vrot.lane.b32.xlu0 %v4989, 32
      %v5060 = vpop.permute.xlu0 %5059
      %5061 = vrot.lane.b32.xlu0 %v4990, 32
      %v5062 = vpop.permute.xlu0 %5061
      %5063 = vrot.lane.b32.xlu0 %v4991, 32
      %v5064 = vpop.permute.xlu0 %5063
      %5065 = vrot.lane.b32.xlu0 %v4992, 32
      %v5066 = vpop.permute.xlu0 %5065
      %5067 = vrot.lane.b32.xlu0 %v4993, 32
      %v5068 = vpop.permute.xlu0 %5067
      %5069 = vrot.lane.b32.xlu0 %v4994, 32
      %v5070 = vpop.permute.xlu0 %5069
      %5071 = vrot.lane.b32.xlu0 %v4995, 32
      %v5072 = vpop.permute.xlu0 %5071
      %5073 = vrot.lane.b32.xlu0 %v4996, 32
      %v5074 = vpop.permute.xlu0 %5073
      %5075 = vrot.lane.b32.xlu0 %v4997, 32
      %v5076 = vpop.permute.xlu0 %5075
      %5077 = vrot.lane.b32.xlu0 %v4998, 32
      %v5078 = vpop.permute.xlu0 %5077
      %5079 = vrot.lane.b32.xlu0 %v4999, 32
      %v5080 = vpop.permute.xlu0 %5079
      %5081 = vrot.lane.b32.xlu0 %v5000, 32
      %v5082 = vpop.permute.xlu0 %5081
      %5083 = vrot.lane.b32.xlu0 %v5001, 32
      %v5084 = vpop.permute.xlu0 %5083
      %5085 = vrot.lane.b32.xlu0 %v5002, 32
      %v5086 = vpop.permute.xlu0 %5085
      %5087 = vrot.lane.b32.xlu0 %v5003, 32
      %v5088 = vpop.permute.xlu0 %5087
      %5089 = vrot.lane.b32.xlu0 %v5004, 32
      %v5090 = vpop.permute.xlu0 %5089
      %5091 = vrot.lane.b32.xlu0 %v5005, 32
      %v5092 = vpop.permute.xlu0 %5091
      %5093 = vrot.lane.b32.xlu0 %v5006, 32
      %v5094 = vpop.permute.xlu0 %5093
      %5095 = vrot.lane.b32.xlu0 %v5007, 32
      %v5096 = vpop.permute.xlu0 %5095
      %5097 = vrot.lane.b32.xlu0 %v5008, 32
      %v5098 = vpop.permute.xlu0 %5097
      %5099 = vrot.lane.b32.xlu0 %v5009, 32
      %v5100 = vpop.permute.xlu0 %5099
      %5101 = vrot.lane.b32.xlu0 %v5010, 32
      %v5102 = vpop.permute.xlu0 %5101
      %5103 = vrot.lane.b32.xlu0 %v5011, 32
      %v5104 = vpop.permute.xlu0 %5103
      %5105 = vrot.lane.b32.xlu0 %v5012, 32
      %v5106 = vpop.permute.xlu0 %5105
      %5107 = vrot.lane.b32.xlu0 %v5013, 32
      %v5108 = vpop.permute.xlu0 %5107
      %5109 = vrot.lane.b32.xlu0 %v5014, 32
      %v5110 = vpop.permute.xlu0 %5109
      %5143 = vst.msk [vmem:[#allocation5 + $0x10] sm:$0xf] %vm2068, %v5048
      %5144 = vst.msk [vmem:[#allocation5 + $0x2c] sm:$0xf] %vm2068, %v5050
      %5145 = vst.msk [vmem:[#allocation5 + $0x48] sm:$0xf] %vm2068, %v5052
      %5146 = vst.msk [vmem:[#allocation5 + $0x64] sm:$0xf] %vm2068, %v5054
      %5147 = vst.msk [vmem:[#allocation5 + $0x80] sm:$0xf] %vm2068, %v5056
      %5148 = vst.msk [vmem:[#allocation5 + $0x9c] sm:$0xf] %vm2068, %v5058
      %5149 = vst.msk [vmem:[#allocation5 + $0xb8] sm:$0xf] %vm2068, %v5060
      %5150 = vst.msk [vmem:[#allocation5 + $0xd4] sm:$0xf] %vm2068, %v5062
      %5151 = vst.msk [vmem:[#allocation5 + $0xf0] sm:$0xf] %vm2068, %v5064
      %5152 = vst.msk [vmem:[#allocation5 + $0x10c] sm:$0xf] %vm2068, %v5066
      %5153 = vst.msk [vmem:[#allocation5 + $0x128] sm:$0xf] %vm2068, %v5068
      %5154 = vst.msk [vmem:[#allocation5 + $0x144] sm:$0xf] %vm2068, %v5070
      %5155 = vst.msk [vmem:[#allocation5 + $0x160] sm:$0xf] %vm2068, %v5072
      %5156 = vst.msk [vmem:[#allocation5 + $0x17c] sm:$0xf] %vm2068, %v5074
      %5157 = vst.msk [vmem:[#allocation5 + $0x198] sm:$0xf] %vm2068, %v5076
      %5158 = vst.msk [vmem:[#allocation5 + $0x1b4] sm:$0xf] %vm2068, %v5078
      %5159 = vst.msk [vmem:[#allocation5 + $0x1d0] sm:$0xf] %vm2068, %v5080
      %5160 = vst.msk [vmem:[#allocation5 + $0x1ec] sm:$0xf] %vm2068, %v5082
      %5161 = vst.msk [vmem:[#allocation5 + $0x208] sm:$0xf] %vm2068, %v5084
      %5162 = vst.msk [vmem:[#allocation5 + $0x224] sm:$0xf] %vm2068, %v5086
      %5163 = vst.msk [vmem:[#allocation5 + $0x240] sm:$0xf] %vm2068, %v5088
      %5164 = vst.msk [vmem:[#allocation5 + $0x25c] sm:$0xf] %vm2068, %v5090
      %5165 = vst.msk [vmem:[#allocation5 + $0x278] sm:$0xf] %vm2068, %v5092
      %5166 = vst.msk [vmem:[#allocation5 + $0x294] sm:$0xf] %vm2068, %v5094
      %5167 = vst.msk [vmem:[#allocation5 + $0x2b0] sm:$0xf] %vm2068, %v5096
      %5168 = vst.msk [vmem:[#allocation5 + $0x2cc] sm:$0xf] %vm2068, %v5098
      %5169 = vst.msk [vmem:[#allocation5 + $0x2e8] sm:$0xf] %vm2068, %v5100
      %5170 = vst.msk [vmem:[#allocation5 + $0x304] sm:$0xf] %vm2068, %v5102
      %5171 = vst.msk [vmem:[#allocation5 + $0x320] sm:$0xf] %vm2068, %v5104
      %5172 = vst.msk [vmem:[#allocation5 + $0x33c] sm:$0xf] %vm2068, %v5106
      %5173 = vst.msk [vmem:[#allocation5 + $0x358] sm:$0xf] %vm2068, %v5108
      %5174 = vst.msk [vmem:[#allocation5 + $0x374] sm:$0xf] %vm2068, %v5110
      %v5175 = vld [vmem:[#allocation4 + $0x39] sm:$0xff]
      %v5176 = vld [vmem:[#allocation4 + $0x41] sm:$0xff]
      %v5177 = vld [vmem:[#allocation4 + $0x49] sm:$0xff]
      %v5178 = vld [vmem:[#allocation4 + $0x51] sm:$0xff]
      %v5179 = vld [vmem:[#allocation4 + $0x59] sm:$0xff]
      %v5180 = vld [vmem:[#allocation4 + $0x61] sm:$0xff]
      %v5181 = vld [vmem:[#allocation4 + $0x69] sm:$0xff]
      %v5182 = vld [vmem:[#allocation4 + $0x71] sm:$0xff]
      %v5183 = vld [vmem:[#allocation4 + $0x79] sm:$0xff]
      %v5184 = vld [vmem:[#allocation4 + $0x81] sm:$0xff]
      %v5185 = vld [vmem:[#allocation4 + $0x89] sm:$0xff]
      %v5186 = vld [vmem:[#allocation4 + $0x91] sm:$0xff]
      %v5187 = vld [vmem:[#allocation4 + $0x99] sm:$0xff]
      %v5188 = vld [vmem:[#allocation4 + $0xa1] sm:$0xff]
      %v5189 = vld [vmem:[#allocation4 + $0xa9] sm:$0xff]
      %v5190 = vld [vmem:[#allocation4 + $0xb1] sm:$0xff]
      %v5191 = vld [vmem:[#allocation4 + $0xb9] sm:$0xff]
      %v5192 = vld [vmem:[#allocation4 + $0xc1] sm:$0xff]
      %v5193 = vld [vmem:[#allocation4 + $0xc9] sm:$0xff]
      %v5194 = vld [vmem:[#allocation4 + $0xd1] sm:$0xff]
      %v5195 = vld [vmem:[#allocation4 + $0xd9] sm:$0xff]
      %v5196 = vld [vmem:[#allocation4 + $0xe1] sm:$0xff]
      %v5197 = vld [vmem:[#allocation4 + $0xe9] sm:$0xff]
      %v5198 = vld [vmem:[#allocation4 + $0xf1] sm:$0xff]
      %v5199 = vld [vmem:[#allocation4 + $0xf9] sm:$0xff]
      %v5200 = vld [vmem:[#allocation4 + $0x101] sm:$0xff]
      %v5201 = vld [vmem:[#allocation4 + $0x109] sm:$0xff]
      %v5202 = vld [vmem:[#allocation4 + $0x111] sm:$0xff]
      %v5203 = vld [vmem:[#allocation4 + $0x119] sm:$0xff]
      %v5204 = vld [vmem:[#allocation4 + $0x121] sm:$0xff]
      %v5205 = vld [vmem:[#allocation4 + $0x129] sm:$0xff]
      %v5206 = vld [vmem:[#allocation4 + $0x131] sm:$0xff]
      %v5207 = vpack.c.bf16 %v5175, %v5175
      %v5208 = vpack.c.bf16 %v5176, %v5176
      %v5209 = vpack.c.bf16 %v5177, %v5177
      %v5210 = vpack.c.bf16 %v5178, %v5178
      %v5211 = vpack.c.bf16 %v5179, %v5179
      %v5212 = vpack.c.bf16 %v5180, %v5180
      %v5213 = vpack.c.bf16 %v5181, %v5181
      %v5214 = vpack.c.bf16 %v5182, %v5182
      %v5215 = vpack.c.bf16 %v5183, %v5183
      %v5216 = vpack.c.bf16 %v5184, %v5184
      %v5217 = vpack.c.bf16 %v5185, %v5185
      %v5218 = vpack.c.bf16 %v5186, %v5186
      %v5219 = vpack.c.bf16 %v5187, %v5187
      %v5220 = vpack.c.bf16 %v5188, %v5188
      %v5221 = vpack.c.bf16 %v5189, %v5189
      %v5222 = vpack.c.bf16 %v5190, %v5190
      %v5223 = vpack.c.bf16 %v5191, %v5191
      %v5224 = vpack.c.bf16 %v5192, %v5192
      %v5225 = vpack.c.bf16 %v5193, %v5193
      %v5226 = vpack.c.bf16 %v5194, %v5194
      %v5227 = vpack.c.bf16 %v5195, %v5195
      %v5228 = vpack.c.bf16 %v5196, %v5196
      %v5229 = vpack.c.bf16 %v5197, %v5197
      %v5230 = vpack.c.bf16 %v5198, %v5198
      %v5231 = vpack.c.bf16 %v5199, %v5199
      %v5232 = vpack.c.bf16 %v5200, %v5200
      %v5233 = vpack.c.bf16 %v5201, %v5201
      %v5234 = vpack.c.bf16 %v5202, %v5202
      %v5235 = vpack.c.bf16 %v5203, %v5203
      %v5236 = vpack.c.bf16 %v5204, %v5204
      %v5237 = vpack.c.bf16 %v5205, %v5205
      %v5238 = vpack.c.bf16 %v5206, %v5206
      %5271 = vrot.lane.b32.xlu0 %v5207, 64
      %v5272 = vpop.permute.xlu0 %5271
      %5273 = vrot.lane.b32.xlu0 %v5208, 64
      %v5274 = vpop.permute.xlu0 %5273
      %5275 = vrot.lane.b32.xlu0 %v5209, 64
      %v5276 = vpop.permute.xlu0 %5275
      %5277 = vrot.lane.b32.xlu0 %v5210, 64
      %v5278 = vpop.permute.xlu0 %5277
      %5279 = vrot.lane.b32.xlu0 %v5211, 64
      %v5280 = vpop.permute.xlu0 %5279
      %5281 = vrot.lane.b32.xlu0 %v5212, 64
      %v5282 = vpop.permute.xlu0 %5281
      %5283 = vrot.lane.b32.xlu0 %v5213, 64
      %v5284 = vpop.permute.xlu0 %5283
      %5285 = vrot.lane.b32.xlu0 %v5214, 64
      %v5286 = vpop.permute.xlu0 %5285
      %5287 = vrot.lane.b32.xlu0 %v5215, 64
      %v5288 = vpop.permute.xlu0 %5287
      %5289 = vrot.lane.b32.xlu0 %v5216, 64
      %v5290 = vpop.permute.xlu0 %5289
      %5291 = vrot.lane.b32.xlu0 %v5217, 64
      %v5292 = vpop.permute.xlu0 %5291
      %5293 = vrot.lane.b32.xlu0 %v5218, 64
      %v5294 = vpop.permute.xlu0 %5293
      %5295 = vrot.lane.b32.xlu0 %v5219, 64
      %v5296 = vpop.permute.xlu0 %5295
      %5297 = vrot.lane.b32.xlu0 %v5220, 64
      %v5298 = vpop.permute.xlu0 %5297
      %5299 = vrot.lane.b32.xlu0 %v5221, 64
      %v5300 = vpop.permute.xlu0 %5299
      %5301 = vrot.lane.b32.xlu0 %v5222, 64
      %v5302 = vpop.permute.xlu0 %5301
      %5303 = vrot.lane.b32.xlu0 %v5223, 64
      %v5304 = vpop.permute.xlu0 %5303
      %5305 = vrot.lane.b32.xlu0 %v5224, 64
      %v5306 = vpop.permute.xlu0 %5305
      %5307 = vrot.lane.b32.xlu0 %v5225, 64
      %v5308 = vpop.permute.xlu0 %5307
      %5309 = vrot.lane.b32.xlu0 %v5226, 64
      %v5310 = vpop.permute.xlu0 %5309
      %5311 = vrot.lane.b32.xlu0 %v5227, 64
      %v5312 = vpop.permute.xlu0 %5311
      %5313 = vrot.lane.b32.xlu0 %v5228, 64
      %v5314 = vpop.permute.xlu0 %5313
      %5315 = vrot.lane.b32.xlu0 %v5229, 64
      %v5316 = vpop.permute.xlu0 %5315
      %5317 = vrot.lane.b32.xlu0 %v5230, 64
      %v5318 = vpop.permute.xlu0 %5317
      %5319 = vrot.lane.b32.xlu0 %v5231, 64
      %v5320 = vpop.permute.xlu0 %5319
      %5321 = vrot.lane.b32.xlu0 %v5232, 64
      %v5322 = vpop.permute.xlu0 %5321
      %5323 = vrot.lane.b32.xlu0 %v5233, 64
      %v5324 = vpop.permute.xlu0 %5323
      %5325 = vrot.lane.b32.xlu0 %v5234, 64
      %v5326 = vpop.permute.xlu0 %5325
      %5327 = vrot.lane.b32.xlu0 %v5235, 64
      %v5328 = vpop.permute.xlu0 %5327
      %5329 = vrot.lane.b32.xlu0 %v5236, 64
      %v5330 = vpop.permute.xlu0 %5329
      %5331 = vrot.lane.b32.xlu0 %v5237, 64
      %v5332 = vpop.permute.xlu0 %5331
      %5333 = vrot.lane.b32.xlu0 %v5238, 64
      %v5334 = vpop.permute.xlu0 %5333
      %5367 = vst.msk [vmem:[#allocation5 + $0x10] sm:$0xf] %vm2293, %v5272
      %5368 = vst.msk [vmem:[#allocation5 + $0x2c] sm:$0xf] %vm2293, %v5274
      %5369 = vst.msk [vmem:[#allocation5 + $0x48] sm:$0xf] %vm2293, %v5276
      %5370 = vst.msk [vmem:[#allocation5 + $0x64] sm:$0xf] %vm2293, %v5278
      %5371 = vst.msk [vmem:[#allocation5 + $0x80] sm:$0xf] %vm2293, %v5280
      %5372 = vst.msk [vmem:[#allocation5 + $0x9c] sm:$0xf] %vm2293, %v5282
      %5373 = vst.msk [vmem:[#allocation5 + $0xb8] sm:$0xf] %vm2293, %v5284
      %5374 = vst.msk [vmem:[#allocation5 + $0xd4] sm:$0xf] %vm2293, %v5286
      %5375 = vst.msk [vmem:[#allocation5 + $0xf0] sm:$0xf] %vm2293, %v5288
      %5376 = vst.msk [vmem:[#allocation5 + $0x10c] sm:$0xf] %vm2293, %v5290
      %5377 = vst.msk [vmem:[#allocation5 + $0x128] sm:$0xf] %vm2293, %v5292
      %5378 = vst.msk [vmem:[#allocation5 + $0x144] sm:$0xf] %vm2293, %v5294
      %5379 = vst.msk [vmem:[#allocation5 + $0x160] sm:$0xf] %vm2293, %v5296
      %5380 = vst.msk [vmem:[#allocation5 + $0x17c] sm:$0xf] %vm2293, %v5298
      %5381 = vst.msk [vmem:[#allocation5 + $0x198] sm:$0xf] %vm2293, %v5300
      %5382 = vst.msk [vmem:[#allocation5 + $0x1b4] sm:$0xf] %vm2293, %v5302
      %5383 = vst.msk [vmem:[#allocation5 + $0x1d0] sm:$0xf] %vm2293, %v5304
      %5384 = vst.msk [vmem:[#allocation5 + $0x1ec] sm:$0xf] %vm2293, %v5306
      %5385 = vst.msk [vmem:[#allocation5 + $0x208] sm:$0xf] %vm2293, %v5308
      %5386 = vst.msk [vmem:[#allocation5 + $0x224] sm:$0xf] %vm2293, %v5310
      %5387 = vst.msk [vmem:[#allocation5 + $0x240] sm:$0xf] %vm2293, %v5312
      %5388 = vst.msk [vmem:[#allocation5 + $0x25c] sm:$0xf] %vm2293, %v5314
      %5389 = vst.msk [vmem:[#allocation5 + $0x278] sm:$0xf] %vm2293, %v5316
      %5390 = vst.msk [vmem:[#allocation5 + $0x294] sm:$0xf] %vm2293, %v5318
      %5391 = vst.msk [vmem:[#allocation5 + $0x2b0] sm:$0xf] %vm2293, %v5320
      %5392 = vst.msk [vmem:[#allocation5 + $0x2cc] sm:$0xf] %vm2293, %v5322
      %5393 = vst.msk [vmem:[#allocation5 + $0x2e8] sm:$0xf] %vm2293, %v5324
      %5394 = vst.msk [vmem:[#allocation5 + $0x304] sm:$0xf] %vm2293, %v5326
      %5395 = vst.msk [vmem:[#allocation5 + $0x320] sm:$0xf] %vm2293, %v5328
      %5396 = vst.msk [vmem:[#allocation5 + $0x33c] sm:$0xf] %vm2293, %v5330
      %5397 = vst.msk [vmem:[#allocation5 + $0x358] sm:$0xf] %vm2293, %v5332
      %5398 = vst.msk [vmem:[#allocation5 + $0x374] sm:$0xf] %vm2293, %v5334
      %v5399 = vld [vmem:[#allocation4 + $0x3a] sm:$0xff]
      %v5400 = vld [vmem:[#allocation4 + $0x42] sm:$0xff]
      %v5401 = vld [vmem:[#allocation4 + $0x4a] sm:$0xff]
      %v5402 = vld [vmem:[#allocation4 + $0x52] sm:$0xff]
      %v5403 = vld [vmem:[#allocation4 + $0x5a] sm:$0xff]
      %v5404 = vld [vmem:[#allocation4 + $0x62] sm:$0xff]
      %v5405 = vld [vmem:[#allocation4 + $0x6a] sm:$0xff]
      %v5406 = vld [vmem:[#allocation4 + $0x72] sm:$0xff]
      %v5407 = vld [vmem:[#allocation4 + $0x7a] sm:$0xff]
      %v5408 = vld [vmem:[#allocation4 + $0x82] sm:$0xff]
      %v5409 = vld [vmem:[#allocation4 + $0x8a] sm:$0xff]
      %v5410 = vld [vmem:[#allocation4 + $0x92] sm:$0xff]
      %v5411 = vld [vmem:[#allocation4 + $0x9a] sm:$0xff]
      %v5412 = vld [vmem:[#allocation4 + $0xa2] sm:$0xff]
      %v5413 = vld [vmem:[#allocation4 + $0xaa] sm:$0xff]
      %v5414 = vld [vmem:[#allocation4 + $0xb2] sm:$0xff]
      %v5415 = vld [vmem:[#allocation4 + $0xba] sm:$0xff]
      %v5416 = vld [vmem:[#allocation4 + $0xc2] sm:$0xff]
      %v5417 = vld [vmem:[#allocation4 + $0xca] sm:$0xff]
      %v5418 = vld [vmem:[#allocation4 + $0xd2] sm:$0xff]
      %v5419 = vld [vmem:[#allocation4 + $0xda] sm:$0xff]
      %v5420 = vld [vmem:[#allocation4 + $0xe2] sm:$0xff]
      %v5421 = vld [vmem:[#allocation4 + $0xea] sm:$0xff]
      %v5422 = vld [vmem:[#allocation4 + $0xf2] sm:$0xff]
      %v5423 = vld [vmem:[#allocation4 + $0xfa] sm:$0xff]
      %v5424 = vld [vmem:[#allocation4 + $0x102] sm:$0xff]
      %v5425 = vld [vmem:[#allocation4 + $0x10a] sm:$0xff]
      %v5426 = vld [vmem:[#allocation4 + $0x112] sm:$0xff]
      %v5427 = vld [vmem:[#allocation4 + $0x11a] sm:$0xff]
      %v5428 = vld [vmem:[#allocation4 + $0x122] sm:$0xff]
      %v5429 = vld [vmem:[#allocation4 + $0x12a] sm:$0xff]
      %v5430 = vld [vmem:[#allocation4 + $0x132] sm:$0xff]
      %v5431 = vpack.c.bf16 %v5399, %v5399
      %v5432 = vpack.c.bf16 %v5400, %v5400
      %v5433 = vpack.c.bf16 %v5401, %v5401
      %v5434 = vpack.c.bf16 %v5402, %v5402
      %v5435 = vpack.c.bf16 %v5403, %v5403
      %v5436 = vpack.c.bf16 %v5404, %v5404
      %v5437 = vpack.c.bf16 %v5405, %v5405
      %v5438 = vpack.c.bf16 %v5406, %v5406
      %v5439 = vpack.c.bf16 %v5407, %v5407
      %v5440 = vpack.c.bf16 %v5408, %v5408
      %v5441 = vpack.c.bf16 %v5409, %v5409
      %v5442 = vpack.c.bf16 %v5410, %v5410
      %v5443 = vpack.c.bf16 %v5411, %v5411
      %v5444 = vpack.c.bf16 %v5412, %v5412
      %v5445 = vpack.c.bf16 %v5413, %v5413
      %v5446 = vpack.c.bf16 %v5414, %v5414
      %v5447 = vpack.c.bf16 %v5415, %v5415
      %v5448 = vpack.c.bf16 %v5416, %v5416
      %v5449 = vpack.c.bf16 %v5417, %v5417
      %v5450 = vpack.c.bf16 %v5418, %v5418
      %v5451 = vpack.c.bf16 %v5419, %v5419
      %v5452 = vpack.c.bf16 %v5420, %v5420
      %v5453 = vpack.c.bf16 %v5421, %v5421
      %v5454 = vpack.c.bf16 %v5422, %v5422
      %v5455 = vpack.c.bf16 %v5423, %v5423
      %v5456 = vpack.c.bf16 %v5424, %v5424
      %v5457 = vpack.c.bf16 %v5425, %v5425
      %v5458 = vpack.c.bf16 %v5426, %v5426
      %v5459 = vpack.c.bf16 %v5427, %v5427
      %v5460 = vpack.c.bf16 %v5428, %v5428
      %v5461 = vpack.c.bf16 %v5429, %v5429
      %v5462 = vpack.c.bf16 %v5430, %v5430
      %5495 = vrot.lane.b32.xlu0 %v5431, 96
      %v5496 = vpop.permute.xlu0 %5495
      %5497 = vrot.lane.b32.xlu0 %v5432, 96
      %v5498 = vpop.permute.xlu0 %5497
      %5499 = vrot.lane.b32.xlu0 %v5433, 96
      %v5500 = vpop.permute.xlu0 %5499
      %5501 = vrot.lane.b32.xlu0 %v5434, 96
      %v5502 = vpop.permute.xlu0 %5501
      %5503 = vrot.lane.b32.xlu0 %v5435, 96
      %v5504 = vpop.permute.xlu0 %5503
      %5505 = vrot.lane.b32.xlu0 %v5436, 96
      %v5506 = vpop.permute.xlu0 %5505
      %5507 = vrot.lane.b32.xlu0 %v5437, 96
      %v5508 = vpop.permute.xlu0 %5507
      %5509 = vrot.lane.b32.xlu0 %v5438, 96
      %v5510 = vpop.permute.xlu0 %5509
      %5511 = vrot.lane.b32.xlu0 %v5439, 96
      %v5512 = vpop.permute.xlu0 %5511
      %5513 = vrot.lane.b32.xlu0 %v5440, 96
      %v5514 = vpop.permute.xlu0 %5513
      %5515 = vrot.lane.b32.xlu0 %v5441, 96
      %v5516 = vpop.permute.xlu0 %5515
      %5517 = vrot.lane.b32.xlu0 %v5442, 96
      %v5518 = vpop.permute.xlu0 %5517
      %5519 = vrot.lane.b32.xlu0 %v5443, 96
      %v5520 = vpop.permute.xlu0 %5519
      %5521 = vrot.lane.b32.xlu0 %v5444, 96
      %v5522 = vpop.permute.xlu0 %5521
      %5523 = vrot.lane.b32.xlu0 %v5445, 96
      %v5524 = vpop.permute.xlu0 %5523
      %5525 = vrot.lane.b32.xlu0 %v5446, 96
      %v5526 = vpop.permute.xlu0 %5525
      %5527 = vrot.lane.b32.xlu0 %v5447, 96
      %v5528 = vpop.permute.xlu0 %5527
      %5529 = vrot.lane.b32.xlu0 %v5448, 96
      %v5530 = vpop.permute.xlu0 %5529
      %5531 = vrot.lane.b32.xlu0 %v5449, 96
      %v5532 = vpop.permute.xlu0 %5531
      %5533 = vrot.lane.b32.xlu0 %v5450, 96
      %v5534 = vpop.permute.xlu0 %5533
      %5535 = vrot.lane.b32.xlu0 %v5451, 96
      %v5536 = vpop.permute.xlu0 %5535
      %5537 = vrot.lane.b32.xlu0 %v5452, 96
      %v5538 = vpop.permute.xlu0 %5537
      %5539 = vrot.lane.b32.xlu0 %v5453, 96
      %v5540 = vpop.permute.xlu0 %5539
      %5541 = vrot.lane.b32.xlu0 %v5454, 96
      %v5542 = vpop.permute.xlu0 %5541
      %5543 = vrot.lane.b32.xlu0 %v5455, 96
      %v5544 = vpop.permute.xlu0 %5543
      %5545 = vrot.lane.b32.xlu0 %v5456, 96
      %v5546 = vpop.permute.xlu0 %5545
      %5547 = vrot.lane.b32.xlu0 %v5457, 96
      %v5548 = vpop.permute.xlu0 %5547
      %5549 = vrot.lane.b32.xlu0 %v5458, 96
      %v5550 = vpop.permute.xlu0 %5549
      %5551 = vrot.lane.b32.xlu0 %v5459, 96
      %v5552 = vpop.permute.xlu0 %5551
      %5553 = vrot.lane.b32.xlu0 %v5460, 96
      %v5554 = vpop.permute.xlu0 %5553
      %5555 = vrot.lane.b32.xlu0 %v5461, 96
      %v5556 = vpop.permute.xlu0 %5555
      %5557 = vrot.lane.b32.xlu0 %v5462, 96
      %v5558 = vpop.permute.xlu0 %5557
      %5591 = vst.msk [vmem:[#allocation5 + $0x10] sm:$0xf] %vm2518, %v5496
      %5592 = vst.msk [vmem:[#allocation5 + $0x2c] sm:$0xf] %vm2518, %v5498
      %5593 = vst.msk [vmem:[#allocation5 + $0x48] sm:$0xf] %vm2518, %v5500
      %5594 = vst.msk [vmem:[#allocation5 + $0x64] sm:$0xf] %vm2518, %v5502
      %5595 = vst.msk [vmem:[#allocation5 + $0x80] sm:$0xf] %vm2518, %v5504
      %5596 = vst.msk [vmem:[#allocation5 + $0x9c] sm:$0xf] %vm2518, %v5506
      %5597 = vst.msk [vmem:[#allocation5 + $0xb8] sm:$0xf] %vm2518, %v5508
      %5598 = vst.msk [vmem:[#allocation5 + $0xd4] sm:$0xf] %vm2518, %v5510
      %5599 = vst.msk [vmem:[#allocation5 + $0xf0] sm:$0xf] %vm2518, %v5512
      %5600 = vst.msk [vmem:[#allocation5 + $0x10c] sm:$0xf] %vm2518, %v5514
      %5601 = vst.msk [vmem:[#allocation5 + $0x128] sm:$0xf] %vm2518, %v5516
      %5602 = vst.msk [vmem:[#allocation5 + $0x144] sm:$0xf] %vm2518, %v5518
      %5603 = vst.msk [vmem:[#allocation5 + $0x160] sm:$0xf] %vm2518, %v5520
      %5604 = vst.msk [vmem:[#allocation5 + $0x17c] sm:$0xf] %vm2518, %v5522
      %5605 = vst.msk [vmem:[#allocation5 + $0x198] sm:$0xf] %vm2518, %v5524
      %5606 = vst.msk [vmem:[#allocation5 + $0x1b4] sm:$0xf] %vm2518, %v5526
      %5607 = vst.msk [vmem:[#allocation5 + $0x1d0] sm:$0xf] %vm2518, %v5528
      %5608 = vst.msk [vmem:[#allocation5 + $0x1ec] sm:$0xf] %vm2518, %v5530
      %5609 = vst.msk [vmem:[#allocation5 + $0x208] sm:$0xf] %vm2518, %v5532
      %5610 = vst.msk [vmem:[#allocation5 + $0x224] sm:$0xf] %vm2518, %v5534
      %5611 = vst.msk [vmem:[#allocation5 + $0x240] sm:$0xf] %vm2518, %v5536
      %5612 = vst.msk [vmem:[#allocation5 + $0x25c] sm:$0xf] %vm2518, %v5538
      %5613 = vst.msk [vmem:[#allocation5 + $0x278] sm:$0xf] %vm2518, %v5540
      %5614 = vst.msk [vmem:[#allocation5 + $0x294] sm:$0xf] %vm2518, %v5542
      %5615 = vst.msk [vmem:[#allocation5 + $0x2b0] sm:$0xf] %vm2518, %v5544
      %5616 = vst.msk [vmem:[#allocation5 + $0x2cc] sm:$0xf] %vm2518, %v5546
      %5617 = vst.msk [vmem:[#allocation5 + $0x2e8] sm:$0xf] %vm2518, %v5548
      %5618 = vst.msk [vmem:[#allocation5 + $0x304] sm:$0xf] %vm2518, %v5550
      %5619 = vst.msk [vmem:[#allocation5 + $0x320] sm:$0xf] %vm2518, %v5552
      %5620 = vst.msk [vmem:[#allocation5 + $0x33c] sm:$0xf] %vm2518, %v5554
      %5621 = vst.msk [vmem:[#allocation5 + $0x358] sm:$0xf] %vm2518, %v5556
      %5622 = vst.msk [vmem:[#allocation5 + $0x374] sm:$0xf] %vm2518, %v5558
      %v5623 = vld [vmem:[#allocation4 + $0x48] sm:$0xff]
      %v5624 = vld [vmem:[#allocation4 + $0x50] sm:$0xff]
      %v5625 = vld [vmem:[#allocation4 + $0x58] sm:$0xff]
      %v5626 = vld [vmem:[#allocation4 + $0x60] sm:$0xff]
      %v5627 = vld [vmem:[#allocation4 + $0x68] sm:$0xff]
      %v5628 = vld [vmem:[#allocation4 + $0x70] sm:$0xff]
      %v5629 = vld [vmem:[#allocation4 + $0x78] sm:$0xff]
      %v5630 = vld [vmem:[#allocation4 + $0x80] sm:$0xff]
      %v5631 = vld [vmem:[#allocation4 + $0x88] sm:$0xff]
      %v5632 = vld [vmem:[#allocation4 + $0x90] sm:$0xff]
      %v5633 = vld [vmem:[#allocation4 + $0x98] sm:$0xff]
      %v5634 = vld [vmem:[#allocation4 + $0xa0] sm:$0xff]
      %v5635 = vld [vmem:[#allocation4 + $0xa8] sm:$0xff]
      %v5636 = vld [vmem:[#allocation4 + $0xb0] sm:$0xff]
      %v5637 = vld [vmem:[#allocation4 + $0xb8] sm:$0xff]
      %v5638 = vld [vmem:[#allocation4 + $0xc0] sm:$0xff]
      %v5639 = vld [vmem:[#allocation4 + $0xc8] sm:$0xff]
      %v5640 = vld [vmem:[#allocation4 + $0xd0] sm:$0xff]
      %v5641 = vld [vmem:[#allocation4 + $0xd8] sm:$0xff]
      %v5642 = vld [vmem:[#allocation4 + $0xe0] sm:$0xff]
      %v5643 = vld [vmem:[#allocation4 + $0xe8] sm:$0xff]
      %v5644 = vld [vmem:[#allocation4 + $0xf0] sm:$0xff]
      %v5645 = vld [vmem:[#allocation4 + $0xf8] sm:$0xff]
      %v5646 = vld [vmem:[#allocation4 + $0x100] sm:$0xff]
      %v5647 = vld [vmem:[#allocation4 + $0x108] sm:$0xff]
      %v5648 = vld [vmem:[#allocation4 + $0x110] sm:$0xff]
      %v5649 = vld [vmem:[#allocation4 + $0x118] sm:$0xff]
      %v5650 = vld [vmem:[#allocation4 + $0x120] sm:$0xff]
      %v5651 = vld [vmem:[#allocation4 + $0x128] sm:$0xff]
      %v5652 = vld [vmem:[#allocation4 + $0x130] sm:$0xff]
      %v5653 = vld [vmem:[#allocation4 + $0x138] sm:$0xff]
      %v5654 = vld [vmem:[#allocation4 + $0x140] sm:$0xff]
      %v5655 = vpack.c.bf16 %v5623, %v5623
      %v5656 = vpack.c.bf16 %v5624, %v5624
      %v5657 = vpack.c.bf16 %v5625, %v5625
      %v5658 = vpack.c.bf16 %v5626, %v5626
      %v5659 = vpack.c.bf16 %v5627, %v5627
      %v5660 = vpack.c.bf16 %v5628, %v5628
      %v5661 = vpack.c.bf16 %v5629, %v5629
      %v5662 = vpack.c.bf16 %v5630, %v5630
      %v5663 = vpack.c.bf16 %v5631, %v5631
      %v5664 = vpack.c.bf16 %v5632, %v5632
      %v5665 = vpack.c.bf16 %v5633, %v5633
      %v5666 = vpack.c.bf16 %v5634, %v5634
      %v5667 = vpack.c.bf16 %v5635, %v5635
      %v5668 = vpack.c.bf16 %v5636, %v5636
      %v5669 = vpack.c.bf16 %v5637, %v5637
      %v5670 = vpack.c.bf16 %v5638, %v5638
      %v5671 = vpack.c.bf16 %v5639, %v5639
      %v5672 = vpack.c.bf16 %v5640, %v5640
      %v5673 = vpack.c.bf16 %v5641, %v5641
      %v5674 = vpack.c.bf16 %v5642, %v5642
      %v5675 = vpack.c.bf16 %v5643, %v5643
      %v5676 = vpack.c.bf16 %v5644, %v5644
      %v5677 = vpack.c.bf16 %v5645, %v5645
      %v5678 = vpack.c.bf16 %v5646, %v5646
      %v5679 = vpack.c.bf16 %v5647, %v5647
      %v5680 = vpack.c.bf16 %v5648, %v5648
      %v5681 = vpack.c.bf16 %v5649, %v5649
      %v5682 = vpack.c.bf16 %v5650, %v5650
      %v5683 = vpack.c.bf16 %v5651, %v5651
      %v5684 = vpack.c.bf16 %v5652, %v5652
      %v5685 = vpack.c.bf16 %v5653, %v5653
      %v5686 = vpack.c.bf16 %v5654, %v5654
      %5687 = vst.msk [vmem:[#allocation5 + $0x14] sm:$0xf] %vm1843, %v5655
      %5688 = vst.msk [vmem:[#allocation5 + $0x30] sm:$0xf] %vm1843, %v5656
      %5689 = vst.msk [vmem:[#allocation5 + $0x4c] sm:$0xf] %vm1843, %v5657
      %5690 = vst.msk [vmem:[#allocation5 + $0x68] sm:$0xf] %vm1843, %v5658
      %5691 = vst.msk [vmem:[#allocation5 + $0x84] sm:$0xf] %vm1843, %v5659
      %5692 = vst.msk [vmem:[#allocation5 + $0xa0] sm:$0xf] %vm1843, %v5660
      %5693 = vst.msk [vmem:[#allocation5 + $0xbc] sm:$0xf] %vm1843, %v5661
      %5694 = vst.msk [vmem:[#allocation5 + $0xd8] sm:$0xf] %vm1843, %v5662
      %5695 = vst.msk [vmem:[#allocation5 + $0xf4] sm:$0xf] %vm1843, %v5663
      %5696 = vst.msk [vmem:[#allocation5 + $0x110] sm:$0xf] %vm1843, %v5664
      %5697 = vst.msk [vmem:[#allocation5 + $0x12c] sm:$0xf] %vm1843, %v5665
      %5698 = vst.msk [vmem:[#allocation5 + $0x148] sm:$0xf] %vm1843, %v5666
      %5699 = vst.msk [vmem:[#allocation5 + $0x164] sm:$0xf] %vm1843, %v5667
      %5700 = vst.msk [vmem:[#allocation5 + $0x180] sm:$0xf] %vm1843, %v5668
      %5701 = vst.msk [vmem:[#allocation5 + $0x19c] sm:$0xf] %vm1843, %v5669
      %5702 = vst.msk [vmem:[#allocation5 + $0x1b8] sm:$0xf] %vm1843, %v5670
      %5703 = vst.msk [vmem:[#allocation5 + $0x1d4] sm:$0xf] %vm1843, %v5671
      %5704 = vst.msk [vmem:[#allocation5 + $0x1f0] sm:$0xf] %vm1843, %v5672
      %5705 = vst.msk [vmem:[#allocation5 + $0x20c] sm:$0xf] %vm1843, %v5673
      %5706 = vst.msk [vmem:[#allocation5 + $0x228] sm:$0xf] %vm1843, %v5674
      %5707 = vst.msk [vmem:[#allocation5 + $0x244] sm:$0xf] %vm1843, %v5675
      %5708 = vst.msk [vmem:[#allocation5 + $0x260] sm:$0xf] %vm1843, %v5676
      %5709 = vst.msk [vmem:[#allocation5 + $0x27c] sm:$0xf] %vm1843, %v5677
      %5710 = vst.msk [vmem:[#allocation5 + $0x298] sm:$0xf] %vm1843, %v5678
      %5711 = vst.msk [vmem:[#allocation5 + $0x2b4] sm:$0xf] %vm1843, %v5679
      %5712 = vst.msk [vmem:[#allocation5 + $0x2d0] sm:$0xf] %vm1843, %v5680
      %5713 = vst.msk [vmem:[#allocation5 + $0x2ec] sm:$0xf] %vm1843, %v5681
      %5714 = vst.msk [vmem:[#allocation5 + $0x308] sm:$0xf] %vm1843, %v5682
      %5715 = vst.msk [vmem:[#allocation5 + $0x324] sm:$0xf] %vm1843, %v5683
      %5716 = vst.msk [vmem:[#allocation5 + $0x340] sm:$0xf] %vm1843, %v5684
      %5717 = vst.msk [vmem:[#allocation5 + $0x35c] sm:$0xf] %vm1843, %v5685
      %5718 = vst.msk [vmem:[#allocation5 + $0x378] sm:$0xf] %vm1843, %v5686
      %v5719 = vld [vmem:[#allocation4 + $0x49] sm:$0xff]
      %v5720 = vld [vmem:[#allocation4 + $0x51] sm:$0xff]
      %v5721 = vld [vmem:[#allocation4 + $0x59] sm:$0xff]
      %v5722 = vld [vmem:[#allocation4 + $0x61] sm:$0xff]
      %v5723 = vld [vmem:[#allocation4 + $0x69] sm:$0xff]
      %v5724 = vld [vmem:[#allocation4 + $0x71] sm:$0xff]
      %v5725 = vld [vmem:[#allocation4 + $0x79] sm:$0xff]
      %v5726 = vld [vmem:[#allocation4 + $0x81] sm:$0xff]
      %v5727 = vld [vmem:[#allocation4 + $0x89] sm:$0xff]
      %v5728 = vld [vmem:[#allocation4 + $0x91] sm:$0xff]
      %v5729 = vld [vmem:[#allocation4 + $0x99] sm:$0xff]
      %v5730 = vld [vmem:[#allocation4 + $0xa1] sm:$0xff]
      %v5731 = vld [vmem:[#allocation4 + $0xa9] sm:$0xff]
      %v5732 = vld [vmem:[#allocation4 + $0xb1] sm:$0xff]
      %v5733 = vld [vmem:[#allocation4 + $0xb9] sm:$0xff]
      %v5734 = vld [vmem:[#allocation4 + $0xc1] sm:$0xff]
      %v5735 = vld [vmem:[#allocation4 + $0xc9] sm:$0xff]
      %v5736 = vld [vmem:[#allocation4 + $0xd1] sm:$0xff]
      %v5737 = vld [vmem:[#allocation4 + $0xd9] sm:$0xff]
      %v5738 = vld [vmem:[#allocation4 + $0xe1] sm:$0xff]
      %v5739 = vld [vmem:[#allocation4 + $0xe9] sm:$0xff]
      %v5740 = vld [vmem:[#allocation4 + $0xf1] sm:$0xff]
      %v5741 = vld [vmem:[#allocation4 + $0xf9] sm:$0xff]
      %v5742 = vld [vmem:[#allocation4 + $0x101] sm:$0xff]
      %v5743 = vld [vmem:[#allocation4 + $0x109] sm:$0xff]
      %v5744 = vld [vmem:[#allocation4 + $0x111] sm:$0xff]
      %v5745 = vld [vmem:[#allocation4 + $0x119] sm:$0xff]
      %v5746 = vld [vmem:[#allocation4 + $0x121] sm:$0xff]
      %v5747 = vld [vmem:[#allocation4 + $0x129] sm:$0xff]
      %v5748 = vld [vmem:[#allocation4 + $0x131] sm:$0xff]
      %v5749 = vld [vmem:[#allocation4 + $0x139] sm:$0xff]
      %v5750 = vld [vmem:[#allocation4 + $0x141] sm:$0xff]
      %v5751 = vpack.c.bf16 %v5719, %v5719
      %v5752 = vpack.c.bf16 %v5720, %v5720
      %v5753 = vpack.c.bf16 %v5721, %v5721
      %v5754 = vpack.c.bf16 %v5722, %v5722
      %v5755 = vpack.c.bf16 %v5723, %v5723
      %v5756 = vpack.c.bf16 %v5724, %v5724
      %v5757 = vpack.c.bf16 %v5725, %v5725
      %v5758 = vpack.c.bf16 %v5726, %v5726
      %v5759 = vpack.c.bf16 %v5727, %v5727
      %v5760 = vpack.c.bf16 %v5728, %v5728
      %v5761 = vpack.c.bf16 %v5729, %v5729
      %v5762 = vpack.c.bf16 %v5730, %v5730
      %v5763 = vpack.c.bf16 %v5731, %v5731
      %v5764 = vpack.c.bf16 %v5732, %v5732
      %v5765 = vpack.c.bf16 %v5733, %v5733
      %v5766 = vpack.c.bf16 %v5734, %v5734
      %v5767 = vpack.c.bf16 %v5735, %v5735
      %v5768 = vpack.c.bf16 %v5736, %v5736
      %v5769 = vpack.c.bf16 %v5737, %v5737
      %v5770 = vpack.c.bf16 %v5738, %v5738
      %v5771 = vpack.c.bf16 %v5739, %v5739
      %v5772 = vpack.c.bf16 %v5740, %v5740
      %v5773 = vpack.c.bf16 %v5741, %v5741
      %v5774 = vpack.c.bf16 %v5742, %v5742
      %v5775 = vpack.c.bf16 %v5743, %v5743
      %v5776 = vpack.c.bf16 %v5744, %v5744
      %v5777 = vpack.c.bf16 %v5745, %v5745
      %v5778 = vpack.c.bf16 %v5746, %v5746
      %v5779 = vpack.c.bf16 %v5747, %v5747
      %v5780 = vpack.c.bf16 %v5748, %v5748
      %v5781 = vpack.c.bf16 %v5749, %v5749
      %v5782 = vpack.c.bf16 %v5750, %v5750
      %5815 = vrot.lane.b32.xlu0 %v5751, 32
      %v5816 = vpop.permute.xlu0 %5815
      %5817 = vrot.lane.b32.xlu0 %v5752, 32
      %v5818 = vpop.permute.xlu0 %5817
      %5819 = vrot.lane.b32.xlu0 %v5753, 32
      %v5820 = vpop.permute.xlu0 %5819
      %5821 = vrot.lane.b32.xlu0 %v5754, 32
      %v5822 = vpop.permute.xlu0 %5821
      %5823 = vrot.lane.b32.xlu0 %v5755, 32
      %v5824 = vpop.permute.xlu0 %5823
      %5825 = vrot.lane.b32.xlu0 %v5756, 32
      %v5826 = vpop.permute.xlu0 %5825
      %5827 = vrot.lane.b32.xlu0 %v5757, 32
      %v5828 = vpop.permute.xlu0 %5827
      %5829 = vrot.lane.b32.xlu0 %v5758, 32
      %v5830 = vpop.permute.xlu0 %5829
      %5831 = vrot.lane.b32.xlu0 %v5759, 32
      %v5832 = vpop.permute.xlu0 %5831
      %5833 = vrot.lane.b32.xlu0 %v5760, 32
      %v5834 = vpop.permute.xlu0 %5833
      %5835 = vrot.lane.b32.xlu0 %v5761, 32
      %v5836 = vpop.permute.xlu0 %5835
      %5837 = vrot.lane.b32.xlu0 %v5762, 32
      %v5838 = vpop.permute.xlu0 %5837
      %5839 = vrot.lane.b32.xlu0 %v5763, 32
      %v5840 = vpop.permute.xlu0 %5839
      %5841 = vrot.lane.b32.xlu0 %v5764, 32
      %v5842 = vpop.permute.xlu0 %5841
      %5843 = vrot.lane.b32.xlu0 %v5765, 32
      %v5844 = vpop.permute.xlu0 %5843
      %5845 = vrot.lane.b32.xlu0 %v5766, 32
      %v5846 = vpop.permute.xlu0 %5845
      %5847 = vrot.lane.b32.xlu0 %v5767, 32
      %v5848 = vpop.permute.xlu0 %5847
      %5849 = vrot.lane.b32.xlu0 %v5768, 32
      %v5850 = vpop.permute.xlu0 %5849
      %5851 = vrot.lane.b32.xlu0 %v5769, 32
      %v5852 = vpop.permute.xlu0 %5851
      %5853 = vrot.lane.b32.xlu0 %v5770, 32
      %v5854 = vpop.permute.xlu0 %5853
      %5855 = vrot.lane.b32.xlu0 %v5771, 32
      %v5856 = vpop.permute.xlu0 %5855
      %5857 = vrot.lane.b32.xlu0 %v5772, 32
      %v5858 = vpop.permute.xlu0 %5857
      %5859 = vrot.lane.b32.xlu0 %v5773, 32
      %v5860 = vpop.permute.xlu0 %5859
      %5861 = vrot.lane.b32.xlu0 %v5774, 32
      %v5862 = vpop.permute.xlu0 %5861
      %5863 = vrot.lane.b32.xlu0 %v5775, 32
      %v5864 = vpop.permute.xlu0 %5863
      %5865 = vrot.lane.b32.xlu0 %v5776, 32
      %v5866 = vpop.permute.xlu0 %5865
      %5867 = vrot.lane.b32.xlu0 %v5777, 32
      %v5868 = vpop.permute.xlu0 %5867
      %5869 = vrot.lane.b32.xlu0 %v5778, 32
      %v5870 = vpop.permute.xlu0 %5869
      %5871 = vrot.lane.b32.xlu0 %v5779, 32
      %v5872 = vpop.permute.xlu0 %5871
      %5873 = vrot.lane.b32.xlu0 %v5780, 32
      %v5874 = vpop.permute.xlu0 %5873
      %5875 = vrot.lane.b32.xlu0 %v5781, 32
      %v5876 = vpop.permute.xlu0 %5875
      %5877 = vrot.lane.b32.xlu0 %v5782, 32
      %v5878 = vpop.permute.xlu0 %5877
      %5911 = vst.msk [vmem:[#allocation5 + $0x14] sm:$0xf] %vm2068, %v5816
      %5912 = vst.msk [vmem:[#allocation5 + $0x30] sm:$0xf] %vm2068, %v5818
      %5913 = vst.msk [vmem:[#allocation5 + $0x4c] sm:$0xf] %vm2068, %v5820
      %5914 = vst.msk [vmem:[#allocation5 + $0x68] sm:$0xf] %vm2068, %v5822
      %5915 = vst.msk [vmem:[#allocation5 + $0x84] sm:$0xf] %vm2068, %v5824
      %5916 = vst.msk [vmem:[#allocation5 + $0xa0] sm:$0xf] %vm2068, %v5826
      %5917 = vst.msk [vmem:[#allocation5 + $0xbc] sm:$0xf] %vm2068, %v5828
      %5918 = vst.msk [vmem:[#allocation5 + $0xd8] sm:$0xf] %vm2068, %v5830
      %5919 = vst.msk [vmem:[#allocation5 + $0xf4] sm:$0xf] %vm2068, %v5832
      %5920 = vst.msk [vmem:[#allocation5 + $0x110] sm:$0xf] %vm2068, %v5834
      %5921 = vst.msk [vmem:[#allocation5 + $0x12c] sm:$0xf] %vm2068, %v5836
      %5922 = vst.msk [vmem:[#allocation5 + $0x148] sm:$0xf] %vm2068, %v5838
      %5923 = vst.msk [vmem:[#allocation5 + $0x164] sm:$0xf] %vm2068, %v5840
      %5924 = vst.msk [vmem:[#allocation5 + $0x180] sm:$0xf] %vm2068, %v5842
      %5925 = vst.msk [vmem:[#allocation5 + $0x19c] sm:$0xf] %vm2068, %v5844
      %5926 = vst.msk [vmem:[#allocation5 + $0x1b8] sm:$0xf] %vm2068, %v5846
      %5927 = vst.msk [vmem:[#allocation5 + $0x1d4] sm:$0xf] %vm2068, %v5848
      %5928 = vst.msk [vmem:[#allocation5 + $0x1f0] sm:$0xf] %vm2068, %v5850
      %5929 = vst.msk [vmem:[#allocation5 + $0x20c] sm:$0xf] %vm2068, %v5852
      %5930 = vst.msk [vmem:[#allocation5 + $0x228] sm:$0xf] %vm2068, %v5854
      %5931 = vst.msk [vmem:[#allocation5 + $0x244] sm:$0xf] %vm2068, %v5856
      %5932 = vst.msk [vmem:[#allocation5 + $0x260] sm:$0xf] %vm2068, %v5858
      %5933 = vst.msk [vmem:[#allocation5 + $0x27c] sm:$0xf] %vm2068, %v5860
      %5934 = vst.msk [vmem:[#allocation5 + $0x298] sm:$0xf] %vm2068, %v5862
      %5935 = vst.msk [vmem:[#allocation5 + $0x2b4] sm:$0xf] %vm2068, %v5864
      %5936 = vst.msk [vmem:[#allocation5 + $0x2d0] sm:$0xf] %vm2068, %v5866
      %5937 = vst.msk [vmem:[#allocation5 + $0x2ec] sm:$0xf] %vm2068, %v5868
      %5938 = vst.msk [vmem:[#allocation5 + $0x308] sm:$0xf] %vm2068, %v5870
      %5939 = vst.msk [vmem:[#allocation5 + $0x324] sm:$0xf] %vm2068, %v5872
      %5940 = vst.msk [vmem:[#allocation5 + $0x340] sm:$0xf] %vm2068, %v5874
      %5941 = vst.msk [vmem:[#allocation5 + $0x35c] sm:$0xf] %vm2068, %v5876
      %5942 = vst.msk [vmem:[#allocation5 + $0x378] sm:$0xf] %vm2068, %v5878
      %v5943 = vld [vmem:[#allocation4 + $0x4a] sm:$0xff]
      %v5944 = vld [vmem:[#allocation4 + $0x52] sm:$0xff]
      %v5945 = vld [vmem:[#allocation4 + $0x5a] sm:$0xff]
      %v5946 = vld [vmem:[#allocation4 + $0x62] sm:$0xff]
      %v5947 = vld [vmem:[#allocation4 + $0x6a] sm:$0xff]
      %v5948 = vld [vmem:[#allocation4 + $0x72] sm:$0xff]
      %v5949 = vld [vmem:[#allocation4 + $0x7a] sm:$0xff]
      %v5950 = vld [vmem:[#allocation4 + $0x82] sm:$0xff]
      %v5951 = vld [vmem:[#allocation4 + $0x8a] sm:$0xff]
      %v5952 = vld [vmem:[#allocation4 + $0x92] sm:$0xff]
      %v5953 = vld [vmem:[#allocation4 + $0x9a] sm:$0xff]
      %v5954 = vld [vmem:[#allocation4 + $0xa2] sm:$0xff]
      %v5955 = vld [vmem:[#allocation4 + $0xaa] sm:$0xff]
      %v5956 = vld [vmem:[#allocation4 + $0xb2] sm:$0xff]
      %v5957 = vld [vmem:[#allocation4 + $0xba] sm:$0xff]
      %v5958 = vld [vmem:[#allocation4 + $0xc2] sm:$0xff]
      %v5959 = vld [vmem:[#allocation4 + $0xca] sm:$0xff]
      %v5960 = vld [vmem:[#allocation4 + $0xd2] sm:$0xff]
      %v5961 = vld [vmem:[#allocation4 + $0xda] sm:$0xff]
      %v5962 = vld [vmem:[#allocation4 + $0xe2] sm:$0xff]
      %v5963 = vld [vmem:[#allocation4 + $0xea] sm:$0xff]
      %v5964 = vld [vmem:[#allocation4 + $0xf2] sm:$0xff]
      %v5965 = vld [vmem:[#allocation4 + $0xfa] sm:$0xff]
      %v5966 = vld [vmem:[#allocation4 + $0x102] sm:$0xff]
      %v5967 = vld [vmem:[#allocation4 + $0x10a] sm:$0xff]
      %v5968 = vld [vmem:[#allocation4 + $0x112] sm:$0xff]
      %v5969 = vld [vmem:[#allocation4 + $0x11a] sm:$0xff]
      %v5970 = vld [vmem:[#allocation4 + $0x122] sm:$0xff]
      %v5971 = vld [vmem:[#allocation4 + $0x12a] sm:$0xff]
      %v5972 = vld [vmem:[#allocation4 + $0x132] sm:$0xff]
      %v5973 = vld [vmem:[#allocation4 + $0x13a] sm:$0xff]
      %v5974 = vld [vmem:[#allocation4 + $0x142] sm:$0xff]
      %v5975 = vpack.c.bf16 %v5943, %v5943
      %v5976 = vpack.c.bf16 %v5944, %v5944
      %v5977 = vpack.c.bf16 %v5945, %v5945
      %v5978 = vpack.c.bf16 %v5946, %v5946
      %v5979 = vpack.c.bf16 %v5947, %v5947
      %v5980 = vpack.c.bf16 %v5948, %v5948
      %v5981 = vpack.c.bf16 %v5949, %v5949
      %v5982 = vpack.c.bf16 %v5950, %v5950
      %v5983 = vpack.c.bf16 %v5951, %v5951
      %v5984 = vpack.c.bf16 %v5952, %v5952
      %v5985 = vpack.c.bf16 %v5953, %v5953
      %v5986 = vpack.c.bf16 %v5954, %v5954
      %v5987 = vpack.c.bf16 %v5955, %v5955
      %v5988 = vpack.c.bf16 %v5956, %v5956
      %v5989 = vpack.c.bf16 %v5957, %v5957
      %v5990 = vpack.c.bf16 %v5958, %v5958
      %v5991 = vpack.c.bf16 %v5959, %v5959
      %v5992 = vpack.c.bf16 %v5960, %v5960
      %v5993 = vpack.c.bf16 %v5961, %v5961
      %v5994 = vpack.c.bf16 %v5962, %v5962
      %v5995 = vpack.c.bf16 %v5963, %v5963
      %v5996 = vpack.c.bf16 %v5964, %v5964
      %v5997 = vpack.c.bf16 %v5965, %v5965
      %v5998 = vpack.c.bf16 %v5966, %v5966
      %v5999 = vpack.c.bf16 %v5967, %v5967
      %v6000 = vpack.c.bf16 %v5968, %v5968
      %v6001 = vpack.c.bf16 %v5969, %v5969
      %v6002 = vpack.c.bf16 %v5970, %v5970
      %v6003 = vpack.c.bf16 %v5971, %v5971
      %v6004 = vpack.c.bf16 %v5972, %v5972
      %v6005 = vpack.c.bf16 %v5973, %v5973
      %v6006 = vpack.c.bf16 %v5974, %v5974
      %6039 = vrot.lane.b32.xlu0 %v5975, 64
      %v6040 = vpop.permute.xlu0 %6039
      %6041 = vrot.lane.b32.xlu0 %v5976, 64
      %v6042 = vpop.permute.xlu0 %6041
      %6043 = vrot.lane.b32.xlu0 %v5977, 64
      %v6044 = vpop.permute.xlu0 %6043
      %6045 = vrot.lane.b32.xlu0 %v5978, 64
      %v6046 = vpop.permute.xlu0 %6045
      %6047 = vrot.lane.b32.xlu0 %v5979, 64
      %v6048 = vpop.permute.xlu0 %6047
      %6049 = vrot.lane.b32.xlu0 %v5980, 64
      %v6050 = vpop.permute.xlu0 %6049
      %6051 = vrot.lane.b32.xlu0 %v5981, 64
      %v6052 = vpop.permute.xlu0 %6051
      %6053 = vrot.lane.b32.xlu0 %v5982, 64
      %v6054 = vpop.permute.xlu0 %6053
      %6055 = vrot.lane.b32.xlu0 %v5983, 64
      %v6056 = vpop.permute.xlu0 %6055
      %6057 = vrot.lane.b32.xlu0 %v5984, 64
      %v6058 = vpop.permute.xlu0 %6057
      %6059 = vrot.lane.b32.xlu0 %v5985, 64
      %v6060 = vpop.permute.xlu0 %6059
      %6061 = vrot.lane.b32.xlu0 %v5986, 64
      %v6062 = vpop.permute.xlu0 %6061
      %6063 = vrot.lane.b32.xlu0 %v5987, 64
      %v6064 = vpop.permute.xlu0 %6063
      %6065 = vrot.lane.b32.xlu0 %v5988, 64
      %v6066 = vpop.permute.xlu0 %6065
      %6067 = vrot.lane.b32.xlu0 %v5989, 64
      %v6068 = vpop.permute.xlu0 %6067
      %6069 = vrot.lane.b32.xlu0 %v5990, 64
      %v6070 = vpop.permute.xlu0 %6069
      %6071 = vrot.lane.b32.xlu0 %v5991, 64
      %v6072 = vpop.permute.xlu0 %6071
      %6073 = vrot.lane.b32.xlu0 %v5992, 64
      %v6074 = vpop.permute.xlu0 %6073
      %6075 = vrot.lane.b32.xlu0 %v5993, 64
      %v6076 = vpop.permute.xlu0 %6075
      %6077 = vrot.lane.b32.xlu0 %v5994, 64
      %v6078 = vpop.permute.xlu0 %6077
      %6079 = vrot.lane.b32.xlu0 %v5995, 64
      %v6080 = vpop.permute.xlu0 %6079
      %6081 = vrot.lane.b32.xlu0 %v5996, 64
      %v6082 = vpop.permute.xlu0 %6081
      %6083 = vrot.lane.b32.xlu0 %v5997, 64
      %v6084 = vpop.permute.xlu0 %6083
      %6085 = vrot.lane.b32.xlu0 %v5998, 64
      %v6086 = vpop.permute.xlu0 %6085
      %6087 = vrot.lane.b32.xlu0 %v5999, 64
      %v6088 = vpop.permute.xlu0 %6087
      %6089 = vrot.lane.b32.xlu0 %v6000, 64
      %v6090 = vpop.permute.xlu0 %6089
      %6091 = vrot.lane.b32.xlu0 %v6001, 64
      %v6092 = vpop.permute.xlu0 %6091
      %6093 = vrot.lane.b32.xlu0 %v6002, 64
      %v6094 = vpop.permute.xlu0 %6093
      %6095 = vrot.lane.b32.xlu0 %v6003, 64
      %v6096 = vpop.permute.xlu0 %6095
      %6097 = vrot.lane.b32.xlu0 %v6004, 64
      %v6098 = vpop.permute.xlu0 %6097
      %6099 = vrot.lane.b32.xlu0 %v6005, 64
      %v6100 = vpop.permute.xlu0 %6099
      %6101 = vrot.lane.b32.xlu0 %v6006, 64
      %v6102 = vpop.permute.xlu0 %6101
      %6135 = vst.msk [vmem:[#allocation5 + $0x14] sm:$0xf] %vm2293, %v6040
      %6136 = vst.msk [vmem:[#allocation5 + $0x30] sm:$0xf] %vm2293, %v6042
      %6137 = vst.msk [vmem:[#allocation5 + $0x4c] sm:$0xf] %vm2293, %v6044
      %6138 = vst.msk [vmem:[#allocation5 + $0x68] sm:$0xf] %vm2293, %v6046
      %6139 = vst.msk [vmem:[#allocation5 + $0x84] sm:$0xf] %vm2293, %v6048
      %6140 = vst.msk [vmem:[#allocation5 + $0xa0] sm:$0xf] %vm2293, %v6050
      %6141 = vst.msk [vmem:[#allocation5 + $0xbc] sm:$0xf] %vm2293, %v6052
      %6142 = vst.msk [vmem:[#allocation5 + $0xd8] sm:$0xf] %vm2293, %v6054
      %6143 = vst.msk [vmem:[#allocation5 + $0xf4] sm:$0xf] %vm2293, %v6056
      %6144 = vst.msk [vmem:[#allocation5 + $0x110] sm:$0xf] %vm2293, %v6058
      %6145 = vst.msk [vmem:[#allocation5 + $0x12c] sm:$0xf] %vm2293, %v6060
      %6146 = vst.msk [vmem:[#allocation5 + $0x148] sm:$0xf] %vm2293, %v6062
      %6147 = vst.msk [vmem:[#allocation5 + $0x164] sm:$0xf] %vm2293, %v6064
      %6148 = vst.msk [vmem:[#allocation5 + $0x180] sm:$0xf] %vm2293, %v6066
      %6149 = vst.msk [vmem:[#allocation5 + $0x19c] sm:$0xf] %vm2293, %v6068
      %6150 = vst.msk [vmem:[#allocation5 + $0x1b8] sm:$0xf] %vm2293, %v6070
      %6151 = vst.msk [vmem:[#allocation5 + $0x1d4] sm:$0xf] %vm2293, %v6072
      %6152 = vst.msk [vmem:[#allocation5 + $0x1f0] sm:$0xf] %vm2293, %v6074
      %6153 = vst.msk [vmem:[#allocation5 + $0x20c] sm:$0xf] %vm2293, %v6076
      %6154 = vst.msk [vmem:[#allocation5 + $0x228] sm:$0xf] %vm2293, %v6078
      %6155 = vst.msk [vmem:[#allocation5 + $0x244] sm:$0xf] %vm2293, %v6080
      %6156 = vst.msk [vmem:[#allocation5 + $0x260] sm:$0xf] %vm2293, %v6082
      %6157 = vst.msk [vmem:[#allocation5 + $0x27c] sm:$0xf] %vm2293, %v6084
      %6158 = vst.msk [vmem:[#allocation5 + $0x298] sm:$0xf] %vm2293, %v6086
      %6159 = vst.msk [vmem:[#allocation5 + $0x2b4] sm:$0xf] %vm2293, %v6088
      %6160 = vst.msk [vmem:[#allocation5 + $0x2d0] sm:$0xf] %vm2293, %v6090
      %6161 = vst.msk [vmem:[#allocation5 + $0x2ec] sm:$0xf] %vm2293, %v6092
      %6162 = vst.msk [vmem:[#allocation5 + $0x308] sm:$0xf] %vm2293, %v6094
      %6163 = vst.msk [vmem:[#allocation5 + $0x324] sm:$0xf] %vm2293, %v6096
      %6164 = vst.msk [vmem:[#allocation5 + $0x340] sm:$0xf] %vm2293, %v6098
      %6165 = vst.msk [vmem:[#allocation5 + $0x35c] sm:$0xf] %vm2293, %v6100
      %6166 = vst.msk [vmem:[#allocation5 + $0x378] sm:$0xf] %vm2293, %v6102
      %v6167 = vld [vmem:[#allocation4 + $0x4b] sm:$0xff]
      %v6168 = vld [vmem:[#allocation4 + $0x53] sm:$0xff]
      %v6169 = vld [vmem:[#allocation4 + $0x5b] sm:$0xff]
      %v6170 = vld [vmem:[#allocation4 + $0x63] sm:$0xff]
      %v6171 = vld [vmem:[#allocation4 + $0x6b] sm:$0xff]
      %v6172 = vld [vmem:[#allocation4 + $0x73] sm:$0xff]
      %v6173 = vld [vmem:[#allocation4 + $0x7b] sm:$0xff]
      %v6174 = vld [vmem:[#allocation4 + $0x83] sm:$0xff]
      %v6175 = vld [vmem:[#allocation4 + $0x8b] sm:$0xff]
      %v6176 = vld [vmem:[#allocation4 + $0x93] sm:$0xff]
      %v6177 = vld [vmem:[#allocation4 + $0x9b] sm:$0xff]
      %v6178 = vld [vmem:[#allocation4 + $0xa3] sm:$0xff]
      %v6179 = vld [vmem:[#allocation4 + $0xab] sm:$0xff]
      %v6180 = vld [vmem:[#allocation4 + $0xb3] sm:$0xff]
      %v6181 = vld [vmem:[#allocation4 + $0xbb] sm:$0xff]
      %v6182 = vld [vmem:[#allocation4 + $0xc3] sm:$0xff]
      %v6183 = vld [vmem:[#allocation4 + $0xcb] sm:$0xff]
      %v6184 = vld [vmem:[#allocation4 + $0xd3] sm:$0xff]
      %v6185 = vld [vmem:[#allocation4 + $0xdb] sm:$0xff]
      %v6186 = vld [vmem:[#allocation4 + $0xe3] sm:$0xff]
      %v6187 = vld [vmem:[#allocation4 + $0xeb] sm:$0xff]
      %v6188 = vld [vmem:[#allocation4 + $0xf3] sm:$0xff]
      %v6189 = vld [vmem:[#allocation4 + $0xfb] sm:$0xff]
      %v6190 = vld [vmem:[#allocation4 + $0x103] sm:$0xff]
      %v6191 = vld [vmem:[#allocation4 + $0x10b] sm:$0xff]
      %v6192 = vld [vmem:[#allocation4 + $0x113] sm:$0xff]
      %v6193 = vld [vmem:[#allocation4 + $0x11b] sm:$0xff]
      %v6194 = vld [vmem:[#allocation4 + $0x123] sm:$0xff]
      %v6195 = vld [vmem:[#allocation4 + $0x12b] sm:$0xff]
      %v6196 = vld [vmem:[#allocation4 + $0x133] sm:$0xff]
      %v6197 = vld [vmem:[#allocation4 + $0x13b] sm:$0xff]
      %v6198 = vld [vmem:[#allocation4 + $0x143] sm:$0xff]
      %v6199 = vpack.c.bf16 %v6167, %v6167
      %v6200 = vpack.c.bf16 %v6168, %v6168
      %v6201 = vpack.c.bf16 %v6169, %v6169
      %v6202 = vpack.c.bf16 %v6170, %v6170
      %v6203 = vpack.c.bf16 %v6171, %v6171
      %v6204 = vpack.c.bf16 %v6172, %v6172
      %v6205 = vpack.c.bf16 %v6173, %v6173
      %v6206 = vpack.c.bf16 %v6174, %v6174
      %v6207 = vpack.c.bf16 %v6175, %v6175
      %v6208 = vpack.c.bf16 %v6176, %v6176
      %v6209 = vpack.c.bf16 %v6177, %v6177
      %v6210 = vpack.c.bf16 %v6178, %v6178
      %v6211 = vpack.c.bf16 %v6179, %v6179
      %v6212 = vpack.c.bf16 %v6180, %v6180
      %v6213 = vpack.c.bf16 %v6181, %v6181
      %v6214 = vpack.c.bf16 %v6182, %v6182
      %v6215 = vpack.c.bf16 %v6183, %v6183
      %v6216 = vpack.c.bf16 %v6184, %v6184
      %v6217 = vpack.c.bf16 %v6185, %v6185
      %v6218 = vpack.c.bf16 %v6186, %v6186
      %v6219 = vpack.c.bf16 %v6187, %v6187
      %v6220 = vpack.c.bf16 %v6188, %v6188
      %v6221 = vpack.c.bf16 %v6189, %v6189
      %v6222 = vpack.c.bf16 %v6190, %v6190
      %v6223 = vpack.c.bf16 %v6191, %v6191
      %v6224 = vpack.c.bf16 %v6192, %v6192
      %v6225 = vpack.c.bf16 %v6193, %v6193
      %v6226 = vpack.c.bf16 %v6194, %v6194
      %v6227 = vpack.c.bf16 %v6195, %v6195
      %v6228 = vpack.c.bf16 %v6196, %v6196
      %v6229 = vpack.c.bf16 %v6197, %v6197
      %v6230 = vpack.c.bf16 %v6198, %v6198
      %6263 = vrot.lane.b32.xlu0 %v6199, 96
      %v6264 = vpop.permute.xlu0 %6263
      %6265 = vrot.lane.b32.xlu0 %v6200, 96
      %v6266 = vpop.permute.xlu0 %6265
      %6267 = vrot.lane.b32.xlu0 %v6201, 96
      %v6268 = vpop.permute.xlu0 %6267
      %6269 = vrot.lane.b32.xlu0 %v6202, 96
      %v6270 = vpop.permute.xlu0 %6269
      %6271 = vrot.lane.b32.xlu0 %v6203, 96
      %v6272 = vpop.permute.xlu0 %6271
      %6273 = vrot.lane.b32.xlu0 %v6204, 96
      %v6274 = vpop.permute.xlu0 %6273
      %6275 = vrot.lane.b32.xlu0 %v6205, 96
      %v6276 = vpop.permute.xlu0 %6275
      %6277 = vrot.lane.b32.xlu0 %v6206, 96
      %v6278 = vpop.permute.xlu0 %6277
      %6279 = vrot.lane.b32.xlu0 %v6207, 96
      %v6280 = vpop.permute.xlu0 %6279
      %6281 = vrot.lane.b32.xlu0 %v6208, 96
      %v6282 = vpop.permute.xlu0 %6281
      %6283 = vrot.lane.b32.xlu0 %v6209, 96
      %v6284 = vpop.permute.xlu0 %6283
      %6285 = vrot.lane.b32.xlu0 %v6210, 96
      %v6286 = vpop.permute.xlu0 %6285
      %6287 = vrot.lane.b32.xlu0 %v6211, 96
      %v6288 = vpop.permute.xlu0 %6287
      %6289 = vrot.lane.b32.xlu0 %v6212, 96
      %v6290 = vpop.permute.xlu0 %6289
      %6291 = vrot.lane.b32.xlu0 %v6213, 96
      %v6292 = vpop.permute.xlu0 %6291
      %6293 = vrot.lane.b32.xlu0 %v6214, 96
      %v6294 = vpop.permute.xlu0 %6293
      %6295 = vrot.lane.b32.xlu0 %v6215, 96
      %v6296 = vpop.permute.xlu0 %6295
      %6297 = vrot.lane.b32.xlu0 %v6216, 96
      %v6298 = vpop.permute.xlu0 %6297
      %6299 = vrot.lane.b32.xlu0 %v6217, 96
      %v6300 = vpop.permute.xlu0 %6299
      %6301 = vrot.lane.b32.xlu0 %v6218, 96
      %v6302 = vpop.permute.xlu0 %6301
      %6303 = vrot.lane.b32.xlu0 %v6219, 96
      %v6304 = vpop.permute.xlu0 %6303
      %6305 = vrot.lane.b32.xlu0 %v6220, 96
      %v6306 = vpop.permute.xlu0 %6305
      %6307 = vrot.lane.b32.xlu0 %v6221, 96
      %v6308 = vpop.permute.xlu0 %6307
      %6309 = vrot.lane.b32.xlu0 %v6222, 96
      %v6310 = vpop.permute.xlu0 %6309
      %6311 = vrot.lane.b32.xlu0 %v6223, 96
      %v6312 = vpop.permute.xlu0 %6311
      %6313 = vrot.lane.b32.xlu0 %v6224, 96
      %v6314 = vpop.permute.xlu0 %6313
      %6315 = vrot.lane.b32.xlu0 %v6225, 96
      %v6316 = vpop.permute.xlu0 %6315
      %6317 = vrot.lane.b32.xlu0 %v6226, 96
      %v6318 = vpop.permute.xlu0 %6317
      %6319 = vrot.lane.b32.xlu0 %v6227, 96
      %v6320 = vpop.permute.xlu0 %6319
      %6321 = vrot.lane.b32.xlu0 %v6228, 96
      %v6322 = vpop.permute.xlu0 %6321
      %6323 = vrot.lane.b32.xlu0 %v6229, 96
      %v6324 = vpop.permute.xlu0 %6323
      %6325 = vrot.lane.b32.xlu0 %v6230, 96
      %v6326 = vpop.permute.xlu0 %6325
      %6359 = vst.msk [vmem:[#allocation5 + $0x14] sm:$0xf] %vm2518, %v6264
      %6360 = vst.msk [vmem:[#allocation5 + $0x30] sm:$0xf] %vm2518, %v6266
      %6361 = vst.msk [vmem:[#allocation5 + $0x4c] sm:$0xf] %vm2518, %v6268
      %6362 = vst.msk [vmem:[#allocation5 + $0x68] sm:$0xf] %vm2518, %v6270
      %6363 = vst.msk [vmem:[#allocation5 + $0x84] sm:$0xf] %vm2518, %v6272
      %6364 = vst.msk [vmem:[#allocation5 + $0xa0] sm:$0xf] %vm2518, %v6274
      %6365 = vst.msk [vmem:[#allocation5 + $0xbc] sm:$0xf] %vm2518, %v6276
      %6366 = vst.msk [vmem:[#allocation5 + $0xd8] sm:$0xf] %vm2518, %v6278
      %6367 = vst.msk [vmem:[#allocation5 + $0xf4] sm:$0xf] %vm2518, %v6280
      %6368 = vst.msk [vmem:[#allocation5 + $0x110] sm:$0xf] %vm2518, %v6282
      %6369 = vst.msk [vmem:[#allocation5 + $0x12c] sm:$0xf] %vm2518, %v6284
      %6370 = vst.msk [vmem:[#allocation5 + $0x148] sm:$0xf] %vm2518, %v6286
      %6371 = vst.msk [vmem:[#allocation5 + $0x164] sm:$0xf] %vm2518, %v6288
      %6372 = vst.msk [vmem:[#allocation5 + $0x180] sm:$0xf] %vm2518, %v6290
      %6373 = vst.msk [vmem:[#allocation5 + $0x19c] sm:$0xf] %vm2518, %v6292
      %6374 = vst.msk [vmem:[#allocation5 + $0x1b8] sm:$0xf] %vm2518, %v6294
      %6375 = vst.msk [vmem:[#allocation5 + $0x1d4] sm:$0xf] %vm2518, %v6296
      %6376 = vst.msk [vmem:[#allocation5 + $0x1f0] sm:$0xf] %vm2518, %v6298
      %6377 = vst.msk [vmem:[#allocation5 + $0x20c] sm:$0xf] %vm2518, %v6300
      %6378 = vst.msk [vmem:[#allocation5 + $0x228] sm:$0xf] %vm2518, %v6302
      %6379 = vst.msk [vmem:[#allocation5 + $0x244] sm:$0xf] %vm2518, %v6304
      %6380 = vst.msk [vmem:[#allocation5 + $0x260] sm:$0xf] %vm2518, %v6306
      %6381 = vst.msk [vmem:[#allocation5 + $0x27c] sm:$0xf] %vm2518, %v6308
      %6382 = vst.msk [vmem:[#allocation5 + $0x298] sm:$0xf] %vm2518, %v6310
      %6383 = vst.msk [vmem:[#allocation5 + $0x2b4] sm:$0xf] %vm2518, %v6312
      %6384 = vst.msk [vmem:[#allocation5 + $0x2d0] sm:$0xf] %vm2518, %v6314
      %6385 = vst.msk [vmem:[#allocation5 + $0x2ec] sm:$0xf] %vm2518, %v6316
      %6386 = vst.msk [vmem:[#allocation5 + $0x308] sm:$0xf] %vm2518, %v6318
      %6387 = vst.msk [vmem:[#allocation5 + $0x324] sm:$0xf] %vm2518, %v6320
      %6388 = vst.msk [vmem:[#allocation5 + $0x340] sm:$0xf] %vm2518, %v6322
      %6389 = vst.msk [vmem:[#allocation5 + $0x35c] sm:$0xf] %vm2518, %v6324
      %6390 = vst.msk [vmem:[#allocation5 + $0x378] sm:$0xf] %vm2518, %v6326
      %v6391 = vld [vmem:[#allocation4 + $0x4c] sm:$0xff]
      %v6392 = vld [vmem:[#allocation4 + $0x54] sm:$0xff]
      %v6393 = vld [vmem:[#allocation4 + $0x5c] sm:$0xff]
      %v6394 = vld [vmem:[#allocation4 + $0x64] sm:$0xff]
      %v6395 = vld [vmem:[#allocation4 + $0x6c] sm:$0xff]
      %v6396 = vld [vmem:[#allocation4 + $0x74] sm:$0xff]
      %v6397 = vld [vmem:[#allocation4 + $0x7c] sm:$0xff]
      %v6398 = vld [vmem:[#allocation4 + $0x84] sm:$0xff]
      %v6399 = vld [vmem:[#allocation4 + $0x8c] sm:$0xff]
      %v6400 = vld [vmem:[#allocation4 + $0x94] sm:$0xff]
      %v6401 = vld [vmem:[#allocation4 + $0x9c] sm:$0xff]
      %v6402 = vld [vmem:[#allocation4 + $0xa4] sm:$0xff]
      %v6403 = vld [vmem:[#allocation4 + $0xac] sm:$0xff]
      %v6404 = vld [vmem:[#allocation4 + $0xb4] sm:$0xff]
      %v6405 = vld [vmem:[#allocation4 + $0xbc] sm:$0xff]
      %v6406 = vld [vmem:[#allocation4 + $0xc4] sm:$0xff]
      %v6407 = vld [vmem:[#allocation4 + $0xcc] sm:$0xff]
      %v6408 = vld [vmem:[#allocation4 + $0xd4] sm:$0xff]
      %v6409 = vld [vmem:[#allocation4 + $0xdc] sm:$0xff]
      %v6410 = vld [vmem:[#allocation4 + $0xe4] sm:$0xff]
      %v6411 = vld [vmem:[#allocation4 + $0xec] sm:$0xff]
      %v6412 = vld [vmem:[#allocation4 + $0xf4] sm:$0xff]
      %v6413 = vld [vmem:[#allocation4 + $0xfc] sm:$0xff]
      %v6414 = vld [vmem:[#allocation4 + $0x104] sm:$0xff]
      %v6415 = vld [vmem:[#allocation4 + $0x10c] sm:$0xff]
      %v6416 = vld [vmem:[#allocation4 + $0x114] sm:$0xff]
      %v6417 = vld [vmem:[#allocation4 + $0x11c] sm:$0xff]
      %v6418 = vld [vmem:[#allocation4 + $0x124] sm:$0xff]
      %v6419 = vld [vmem:[#allocation4 + $0x12c] sm:$0xff]
      %v6420 = vld [vmem:[#allocation4 + $0x134] sm:$0xff]
      %v6421 = vld [vmem:[#allocation4 + $0x13c] sm:$0xff]
      %v6422 = vld [vmem:[#allocation4 + $0x144] sm:$0xff]
      %v6423 = vpack.c.bf16 %v6391, %v6391
      %v6424 = vpack.c.bf16 %v6392, %v6392
      %v6425 = vpack.c.bf16 %v6393, %v6393
      %v6426 = vpack.c.bf16 %v6394, %v6394
      %v6427 = vpack.c.bf16 %v6395, %v6395
      %v6428 = vpack.c.bf16 %v6396, %v6396
      %v6429 = vpack.c.bf16 %v6397, %v6397
      %v6430 = vpack.c.bf16 %v6398, %v6398
      %v6431 = vpack.c.bf16 %v6399, %v6399
      %v6432 = vpack.c.bf16 %v6400, %v6400
      %v6433 = vpack.c.bf16 %v6401, %v6401
      %v6434 = vpack.c.bf16 %v6402, %v6402
      %v6435 = vpack.c.bf16 %v6403, %v6403
      %v6436 = vpack.c.bf16 %v6404, %v6404
      %v6437 = vpack.c.bf16 %v6405, %v6405
      %v6438 = vpack.c.bf16 %v6406, %v6406
      %v6439 = vpack.c.bf16 %v6407, %v6407
      %v6440 = vpack.c.bf16 %v6408, %v6408
      %v6441 = vpack.c.bf16 %v6409, %v6409
      %v6442 = vpack.c.bf16 %v6410, %v6410
      %v6443 = vpack.c.bf16 %v6411, %v6411
      %v6444 = vpack.c.bf16 %v6412, %v6412
      %v6445 = vpack.c.bf16 %v6413, %v6413
      %v6446 = vpack.c.bf16 %v6414, %v6414
      %v6447 = vpack.c.bf16 %v6415, %v6415
      %v6448 = vpack.c.bf16 %v6416, %v6416
      %v6449 = vpack.c.bf16 %v6417, %v6417
      %v6450 = vpack.c.bf16 %v6418, %v6418
      %v6451 = vpack.c.bf16 %v6419, %v6419
      %v6452 = vpack.c.bf16 %v6420, %v6420
      %v6453 = vpack.c.bf16 %v6421, %v6421
      %v6454 = vpack.c.bf16 %v6422, %v6422
      %6455 = vst.msk [vmem:[#allocation5 + $0x18] sm:$0xf] %vm1843, %v6423
      %6456 = vst.msk [vmem:[#allocation5 + $0x34] sm:$0xf] %vm1843, %v6424
      %6457 = vst.msk [vmem:[#allocation5 + $0x50] sm:$0xf] %vm1843, %v6425
      %6458 = vst.msk [vmem:[#allocation5 + $0x6c] sm:$0xf] %vm1843, %v6426
      %6459 = vst.msk [vmem:[#allocation5 + $0x88] sm:$0xf] %vm1843, %v6427
      %6460 = vst.msk [vmem:[#allocation5 + $0xa4] sm:$0xf] %vm1843, %v6428
      %6461 = vst.msk [vmem:[#allocation5 + $0xc0] sm:$0xf] %vm1843, %v6429
      %6462 = vst.msk [vmem:[#allocation5 + $0xdc] sm:$0xf] %vm1843, %v6430
      %6463 = vst.msk [vmem:[#allocation5 + $0xf8] sm:$0xf] %vm1843, %v6431
      %6464 = vst.msk [vmem:[#allocation5 + $0x114] sm:$0xf] %vm1843, %v6432
      %6465 = vst.msk [vmem:[#allocation5 + $0x130] sm:$0xf] %vm1843, %v6433
      %6466 = vst.msk [vmem:[#allocation5 + $0x14c] sm:$0xf] %vm1843, %v6434
      %6467 = vst.msk [vmem:[#allocation5 + $0x168] sm:$0xf] %vm1843, %v6435
      %6468 = vst.msk [vmem:[#allocation5 + $0x184] sm:$0xf] %vm1843, %v6436
      %6469 = vst.msk [vmem:[#allocation5 + $0x1a0] sm:$0xf] %vm1843, %v6437
      %6470 = vst.msk [vmem:[#allocation5 + $0x1bc] sm:$0xf] %vm1843, %v6438
      %6471 = vst.msk [vmem:[#allocation5 + $0x1d8] sm:$0xf] %vm1843, %v6439
      %6472 = vst.msk [vmem:[#allocation5 + $0x1f4] sm:$0xf] %vm1843, %v6440
      %6473 = vst.msk [vmem:[#allocation5 + $0x210] sm:$0xf] %vm1843, %v6441
      %6474 = vst.msk [vmem:[#allocation5 + $0x22c] sm:$0xf] %vm1843, %v6442
      %6475 = vst.msk [vmem:[#allocation5 + $0x248] sm:$0xf] %vm1843, %v6443
      %6476 = vst.msk [vmem:[#allocation5 + $0x264] sm:$0xf] %vm1843, %v6444
      %6477 = vst.msk [vmem:[#allocation5 + $0x280] sm:$0xf] %vm1843, %v6445
      %6478 = vst.msk [vmem:[#allocation5 + $0x29c] sm:$0xf] %vm1843, %v6446
      %6479 = vst.msk [vmem:[#allocation5 + $0x2b8] sm:$0xf] %vm1843, %v6447
      %6480 = vst.msk [vmem:[#allocation5 + $0x2d4] sm:$0xf] %vm1843, %v6448
      %6481 = vst.msk [vmem:[#allocation5 + $0x2f0] sm:$0xf] %vm1843, %v6449
      %6482 = vst.msk [vmem:[#allocation5 + $0x30c] sm:$0xf] %vm1843, %v6450
      %6483 = vst.msk [vmem:[#allocation5 + $0x328] sm:$0xf] %vm1843, %v6451
      %6484 = vst.msk [vmem:[#allocation5 + $0x344] sm:$0xf] %vm1843, %v6452
      %6485 = vst.msk [vmem:[#allocation5 + $0x360] sm:$0xf] %vm1843, %v6453
      %6486 = vst.msk [vmem:[#allocation5 + $0x37c] sm:$0xf] %vm1843, %v6454
      %v6487 = vld [vmem:[#allocation5] sm:$0xff]
      %v6488 = vld [vmem:[#allocation5 + $0x8] sm:$0xff]
      %v6489 = vld [vmem:[#allocation5 + $0x10] sm:$0xff]
      %v6490 = vld [vmem:[#allocation5 + $0x18] sm:$0xf]
      %v6491 = vld [vmem:[#allocation5 + $0x1c] sm:$0xff]
      %v6492 = vld [vmem:[#allocation5 + $0x24] sm:$0xff]
      %v6493 = vld [vmem:[#allocation5 + $0x2c] sm:$0xff]
      %v6494 = vld [vmem:[#allocation5 + $0x34] sm:$0xf]
      %v6495 = vld [vmem:[#allocation5 + $0x38] sm:$0xff]
      %v6496 = vld [vmem:[#allocation5 + $0x40] sm:$0xff]
      %v6497 = vld [vmem:[#allocation5 + $0x48] sm:$0xff]
      %v6498 = vld [vmem:[#allocation5 + $0x50] sm:$0xf]
      %v6499 = vld [vmem:[#allocation5 + $0x54] sm:$0xff]
      %v6500 = vld [vmem:[#allocation5 + $0x5c] sm:$0xff]
      %v6501 = vld [vmem:[#allocation5 + $0x64] sm:$0xff]
      %v6502 = vld [vmem:[#allocation5 + $0x6c] sm:$0xf]
      %v6503 = vld [vmem:[#allocation5 + $0x70] sm:$0xff]
      %v6504 = vld [vmem:[#allocation5 + $0x78] sm:$0xff]
      %v6505 = vld [vmem:[#allocation5 + $0x80] sm:$0xff]
      %v6506 = vld [vmem:[#allocation5 + $0x88] sm:$0xf]
      %v6507 = vld [vmem:[#allocation5 + $0x8c] sm:$0xff]
      %v6508 = vld [vmem:[#allocation5 + $0x94] sm:$0xff]
      %v6509 = vld [vmem:[#allocation5 + $0x9c] sm:$0xff]
      %v6510 = vld [vmem:[#allocation5 + $0xa4] sm:$0xf]
      %v6511 = vld [vmem:[#allocation5 + $0xa8] sm:$0xff]
      %v6512 = vld [vmem:[#allocation5 + $0xb0] sm:$0xff]
      %v6513 = vld [vmem:[#allocation5 + $0xb8] sm:$0xff]
      %v6514 = vld [vmem:[#allocation5 + $0xc0] sm:$0xf]
      %v6515 = vld [vmem:[#allocation5 + $0xc4] sm:$0xff]
      %v6516 = vld [vmem:[#allocation5 + $0xcc] sm:$0xff]
      %v6517 = vld [vmem:[#allocation5 + $0xd4] sm:$0xff]
      %v6518 = vld [vmem:[#allocation5 + $0xdc] sm:$0xf]
      %v6519 = vld [vmem:[#allocation5 + $0xe0] sm:$0xff]
      %v6520 = vld [vmem:[#allocation5 + $0xe8] sm:$0xff]
      %v6521 = vld [vmem:[#allocation5 + $0xf0] sm:$0xff]
      %v6522 = vld [vmem:[#allocation5 + $0xf8] sm:$0xf]
      %v6523 = vld [vmem:[#allocation5 + $0xfc] sm:$0xff]
      %v6524 = vld [vmem:[#allocation5 + $0x104] sm:$0xff]
      %v6525 = vld [vmem:[#allocation5 + $0x10c] sm:$0xff]
      %v6526 = vld [vmem:[#allocation5 + $0x114] sm:$0xf]
      %v6527 = vld [vmem:[#allocation5 + $0x118] sm:$0xff]
      %v6528 = vld [vmem:[#allocation5 + $0x120] sm:$0xff]
      %v6529 = vld [vmem:[#allocation5 + $0x128] sm:$0xff]
      %v6530 = vld [vmem:[#allocation5 + $0x130] sm:$0xf]
      %v6531 = vld [vmem:[#allocation5 + $0x134] sm:$0xff]
      %v6532 = vld [vmem:[#allocation5 + $0x13c] sm:$0xff]
      %v6533 = vld [vmem:[#allocation5 + $0x144] sm:$0xff]
      %v6534 = vld [vmem:[#allocation5 + $0x14c] sm:$0xf]
      %v6535 = vld [vmem:[#allocation5 + $0x150] sm:$0xff]
      %v6536 = vld [vmem:[#allocation5 + $0x158] sm:$0xff]
      %v6537 = vld [vmem:[#allocation5 + $0x160] sm:$0xff]
      %v6538 = vld [vmem:[#allocation5 + $0x168] sm:$0xf]
      %v6539 = vld [vmem:[#allocation5 + $0x16c] sm:$0xff]
      %v6540 = vld [vmem:[#allocation5 + $0x174] sm:$0xff]
      %v6541 = vld [vmem:[#allocation5 + $0x17c] sm:$0xff]
      %v6542 = vld [vmem:[#allocation5 + $0x184] sm:$0xf]
      %v6543 = vld [vmem:[#allocation5 + $0x188] sm:$0xff]
      %v6544 = vld [vmem:[#allocation5 + $0x190] sm:$0xff]
      %v6545 = vld [vmem:[#allocation5 + $0x198] sm:$0xff]
      %v6546 = vld [vmem:[#allocation5 + $0x1a0] sm:$0xf]
      %v6547 = vld [vmem:[#allocation5 + $0x1a4] sm:$0xff]
      %v6548 = vld [vmem:[#allocation5 + $0x1ac] sm:$0xff]
      %v6549 = vld [vmem:[#allocation5 + $0x1b4] sm:$0xff]
      %v6550 = vld [vmem:[#allocation5 + $0x1bc] sm:$0xf]
      %v6551 = vld [vmem:[#allocation5 + $0x1c0] sm:$0xff]
      %v6552 = vld [vmem:[#allocation5 + $0x1c8] sm:$0xff]
      %v6553 = vld [vmem:[#allocation5 + $0x1d0] sm:$0xff]
      %v6554 = vld [vmem:[#allocation5 + $0x1d8] sm:$0xf]
      %v6555 = vld [vmem:[#allocation5 + $0x1dc] sm:$0xff]
      %v6556 = vld [vmem:[#allocation5 + $0x1e4] sm:$0xff]
      %v6557 = vld [vmem:[#allocation5 + $0x1ec] sm:$0xff]
      %v6558 = vld [vmem:[#allocation5 + $0x1f4] sm:$0xf]
      %v6559 = vld [vmem:[#allocation5 + $0x1f8] sm:$0xff]
      %v6560 = vld [vmem:[#allocation5 + $0x200] sm:$0xff]
      %v6561 = vld [vmem:[#allocation5 + $0x208] sm:$0xff]
      %v6562 = vld [vmem:[#allocation5 + $0x210] sm:$0xf]
      %v6563 = vld [vmem:[#allocation5 + $0x214] sm:$0xff]
      %v6564 = vld [vmem:[#allocation5 + $0x21c] sm:$0xff]
      %v6565 = vld [vmem:[#allocation5 + $0x224] sm:$0xff]
      %v6566 = vld [vmem:[#allocation5 + $0x22c] sm:$0xf]
      %v6567 = vld [vmem:[#allocation5 + $0x230] sm:$0xff]
      %v6568 = vld [vmem:[#allocation5 + $0x238] sm:$0xff]
      %v6569 = vld [vmem:[#allocation5 + $0x240] sm:$0xff]
      %v6570 = vld [vmem:[#allocation5 + $0x248] sm:$0xf]
      %v6571 = vld [vmem:[#allocation5 + $0x24c] sm:$0xff]
      %v6572 = vld [vmem:[#allocation5 + $0x254] sm:$0xff]
      %v6573 = vld [vmem:[#allocation5 + $0x25c] sm:$0xff]
      %v6574 = vld [vmem:[#allocation5 + $0x264] sm:$0xf]
      %v6575 = vld [vmem:[#allocation5 + $0x268] sm:$0xff]
      %v6576 = vld [vmem:[#allocation5 + $0x270] sm:$0xff]
      %v6577 = vld [vmem:[#allocation5 + $0x278] sm:$0xff]
      %v6578 = vld [vmem:[#allocation5 + $0x280] sm:$0xf]
      %v6579 = vld [vmem:[#allocation5 + $0x284] sm:$0xff]
      %v6580 = vld [vmem:[#allocation5 + $0x28c] sm:$0xff]
      %v6581 = vld [vmem:[#allocation5 + $0x294] sm:$0xff]
      %v6582 = vld [vmem:[#allocation5 + $0x29c] sm:$0xf]
      %v6583 = vld [vmem:[#allocation5 + $0x2a0] sm:$0xff]
      %v6584 = vld [vmem:[#allocation5 + $0x2a8] sm:$0xff]
      %v6585 = vld [vmem:[#allocation5 + $0x2b0] sm:$0xff]
      %v6586 = vld [vmem:[#allocation5 + $0x2b8] sm:$0xf]
      %v6587 = vld [vmem:[#allocation5 + $0x2bc] sm:$0xff]
      %v6588 = vld [vmem:[#allocation5 + $0x2c4] sm:$0xff]
      %v6589 = vld [vmem:[#allocation5 + $0x2cc] sm:$0xff]
      %v6590 = vld [vmem:[#allocation5 + $0x2d4] sm:$0xf]
      %v6591 = vld [vmem:[#allocation5 + $0x2d8] sm:$0xff]
      %v6592 = vld [vmem:[#allocation5 + $0x2e0] sm:$0xff]
      %v6593 = vld [vmem:[#allocation5 + $0x2e8] sm:$0xff]
      %v6594 = vld [vmem:[#allocation5 + $0x2f0] sm:$0xf]
      %v6595 = vld [vmem:[#allocation5 + $0x2f4] sm:$0xff]
      %v6596 = vld [vmem:[#allocation5 + $0x2fc] sm:$0xff]
      %v6597 = vld [vmem:[#allocation5 + $0x304] sm:$0xff]
      %v6598 = vld [vmem:[#allocation5 + $0x30c] sm:$0xf]
      %v6599 = vld [vmem:[#allocation5 + $0x310] sm:$0xff]
      %v6600 = vld [vmem:[#allocation5 + $0x318] sm:$0xff]
      %v6601 = vld [vmem:[#allocation5 + $0x320] sm:$0xff]
      %v6602 = vld [vmem:[#allocation5 + $0x328] sm:$0xf]
      %v6603 = vld [vmem:[#allocation5 + $0x32c] sm:$0xff]
      %v6604 = vld [vmem:[#allocation5 + $0x334] sm:$0xff]
      %v6605 = vld [vmem:[#allocation5 + $0x33c] sm:$0xff]
      %v6606 = vld [vmem:[#allocation5 + $0x344] sm:$0xf]
      %v6607 = vld [vmem:[#allocation5 + $0x348] sm:$0xff]
      %v6608 = vld [vmem:[#allocation5 + $0x350] sm:$0xff]
      %v6609 = vld [vmem:[#allocation5 + $0x358] sm:$0xff]
      %v6610 = vld [vmem:[#allocation5 + $0x360] sm:$0xf]
      %v6611 = vld [vmem:[#allocation5 + $0x364] sm:$0xff]
      %v6612 = vld [vmem:[#allocation5 + $0x36c] sm:$0xff]
      %v6613 = vld [vmem:[#allocation5 + $0x374] sm:$0xff]
      %v6614 = vld [vmem:[#allocation5 + $0x37c] sm:$0xf]
      %v6615 = vld [vmem:[%s3] sm:$0xf]
      %v6616 = vld [vmem:[%s3 + $0x4] sm:$0xf]
      %v6617 = vld [vmem:[%s3 + $0x8] sm:$0xf]
      %v6618 = vld [vmem:[%s3 + $0xc] sm:$0xf]
      %v6619 = vld [vmem:[%s3 + $0x10] sm:$0xf]
      %v6620 = vld [vmem:[%s3 + $0x14] sm:$0xf]
      %v6621 = vld [vmem:[%s3 + $0x18] sm:$0xf]
      %v6622 = vld [vmem:[%s3 + $0x1c] sm:$0xf]
      %v6623 = vld [vmem:[%s3 + $0x20] sm:$0xf]
      %v6624 = vld [vmem:[%s3 + $0x24] sm:$0xf]
      %v6625 = vld [vmem:[%s3 + $0x28] sm:$0xf]
      %v6626 = vld [vmem:[%s3 + $0x2c] sm:$0xf]
      %v6627 = vld [vmem:[%s3 + $0x30] sm:$0xf]
      %v6628 = vld [vmem:[%s3 + $0x34] sm:$0xf]
      %v6629 = vld [vmem:[%s3 + $0x38] sm:$0xf]
      %v6630 = vld [vmem:[%s3 + $0x3c] sm:$0xf]
      %v6631 = vld [vmem:[%s3 + $0x40] sm:$0xf]
      %v6632 = vld [vmem:[%s3 + $0x44] sm:$0xf]
      %v6633 = vld [vmem:[%s3 + $0x48] sm:$0xf]
      %v6634 = vld [vmem:[%s3 + $0x4c] sm:$0xf]
      %v6635 = vld [vmem:[%s3 + $0x50] sm:$0xf]
      %v6636 = vld [vmem:[%s3 + $0x54] sm:$0xf]
      %v6637 = vld [vmem:[%s3 + $0x58] sm:$0xf]
      %v6638 = vld [vmem:[%s3 + $0x5c] sm:$0xf]
      %v6639 = vld [vmem:[%s3 + $0x60] sm:$0xf]
      %v6640 = vld [vmem:[%s3 + $0x64] sm:$0xf]
      %v6641 = vld [vmem:[%s3 + $0x68] sm:$0xf]
      %v6642 = vld [vmem:[%s3 + $0x6c] sm:$0xf]
      %v6643 = vld [vmem:[%s3 + $0x70] sm:$0xf]
      %v6644 = vld [vmem:[%s3 + $0x74] sm:$0xf]
      %v6645 = vld [vmem:[%s3 + $0x78] sm:$0xf]
      %v6646 = vld [vmem:[%s3 + $0x7c] sm:$0xf]
      %v6647 = vld [vmem:[%s3 + $0x80] sm:$0xf]
      %v6648 = vld [vmem:[%s3 + $0x84] sm:$0xf]
      %v6649 = vld [vmem:[%s3 + $0x88] sm:$0xf]
      %v6650 = vld [vmem:[%s3 + $0x8c] sm:$0xf]
      %v6651 = vld [vmem:[%s3 + $0x90] sm:$0xf]
      %v6652 = vld [vmem:[%s3 + $0x94] sm:$0xf]
      %v6653 = vld [vmem:[%s3 + $0x98] sm:$0xf]
      %v6654 = vld [vmem:[%s3 + $0x9c] sm:$0xf]
      %v6655 = vld [vmem:[%s3 + $0xa0] sm:$0xf]
      %v6656 = vld [vmem:[%s3 + $0xa4] sm:$0xf]
      %v6657 = vld [vmem:[%s3 + $0xa8] sm:$0xf]
      %v6658 = vld [vmem:[%s3 + $0xac] sm:$0xf]
      %v6659 = vld [vmem:[%s3 + $0xb0] sm:$0xf]
      %v6660 = vld [vmem:[%s3 + $0xb4] sm:$0xf]
      %v6661 = vld [vmem:[%s3 + $0xb8] sm:$0xf]
      %v6662 = vld [vmem:[%s3 + $0xbc] sm:$0xf]
      %v6663 = vld [vmem:[%s3 + $0xc0] sm:$0xf]
      %v6664 = vld [vmem:[%s3 + $0xc4] sm:$0xf]
      %v6665 = vld [vmem:[%s3 + $0xc8] sm:$0xf]
      %v6666 = vld [vmem:[%s3 + $0xcc] sm:$0xf]
      %v6667 = vld [vmem:[%s3 + $0xd0] sm:$0xf]
      %v6668 = vld [vmem:[%s3 + $0xd4] sm:$0xf]
      %v6669 = vld [vmem:[%s3 + $0xd8] sm:$0xf]
      %v6670 = vld [vmem:[%s3 + $0xdc] sm:$0xf]
      %v6671 = vld [vmem:[%s3 + $0xe0] sm:$0xf]
      %v6672 = vld [vmem:[%s3 + $0xe4] sm:$0xf]
      %v6673 = vld [vmem:[%s3 + $0xe8] sm:$0xf]
      %v6674 = vld [vmem:[%s3 + $0xec] sm:$0xf]
      %v6675 = vld [vmem:[%s3 + $0xf0] sm:$0xf]
      %v6676 = vld [vmem:[%s3 + $0xf4] sm:$0xf]
      %v6677 = vld [vmem:[%s3 + $0xf8] sm:$0xf]
      %v6678 = vld [vmem:[%s3 + $0xfc] sm:$0xf]
      %v6679 = vld [vmem:[%s3 + $0x100] sm:$0xf]
      %v6680 = vld [vmem:[%s3 + $0x104] sm:$0xf]
      %v6681 = vld [vmem:[%s3 + $0x108] sm:$0xf]
      %v6682 = vld [vmem:[%s3 + $0x10c] sm:$0xf]
      %v6683 = vld [vmem:[%s3 + $0x110] sm:$0xf]
      %v6684 = vld [vmem:[%s3 + $0x114] sm:$0xf]
      %v6685 = vld [vmem:[%s3 + $0x118] sm:$0xf]
      %v6686 = vld [vmem:[%s3 + $0x11c] sm:$0xf]
      %v6687 = vld [vmem:[%s3 + $0x120] sm:$0xf]
      %v6688 = vld [vmem:[%s3 + $0x124] sm:$0xf]
      %v6689 = vld [vmem:[%s3 + $0x128] sm:$0xf]
      %v6690 = vld [vmem:[%s3 + $0x12c] sm:$0xf]
      %v6691 = vld [vmem:[%s3 + $0x130] sm:$0xf]
      %v6692 = vld [vmem:[%s3 + $0x134] sm:$0xf]
      %v6693 = vld [vmem:[%s3 + $0x138] sm:$0xf]
      %v6694 = vld [vmem:[%s3 + $0x13c] sm:$0xf]
      %v6695 = vld [vmem:[%s3 + $0x140] sm:$0xf]
      %v6696 = vld [vmem:[%s3 + $0x144] sm:$0xf]
      %v6697 = vld [vmem:[%s3 + $0x148] sm:$0xf]
      %v6698 = vld [vmem:[%s3 + $0x14c] sm:$0xf]
      %v6699 = vld [vmem:[%s3 + $0x150] sm:$0xf]
      %v6700 = vld [vmem:[%s3 + $0x154] sm:$0xf]
      %v6701 = vld [vmem:[%s3 + $0x158] sm:$0xf]
      %v6702 = vld [vmem:[%s3 + $0x15c] sm:$0xf]
      %v6703 = vld [vmem:[%s3 + $0x160] sm:$0xf]
      %v6704 = vld [vmem:[%s3 + $0x164] sm:$0xf]
      %v6705 = vld [vmem:[%s3 + $0x168] sm:$0xf]
      %v6706 = vld [vmem:[%s3 + $0x16c] sm:$0xf]
      %v6707 = vld [vmem:[%s3 + $0x170] sm:$0xf]
      %v6708 = vld [vmem:[%s3 + $0x174] sm:$0xf]
      %v6709 = vld [vmem:[%s3 + $0x178] sm:$0xf]
      %v6710 = vld [vmem:[%s3 + $0x17c] sm:$0xf]
      %v6711 = vld [vmem:[%s3 + $0x180] sm:$0xf]
      %v6712 = vld [vmem:[%s3 + $0x184] sm:$0xf]
      %v6713 = vld [vmem:[%s3 + $0x188] sm:$0xf]
      %v6714 = vld [vmem:[%s3 + $0x18c] sm:$0xf]
      %v6715 = vld [vmem:[%s3 + $0x190] sm:$0xf]
      %v6716 = vld [vmem:[%s3 + $0x194] sm:$0xf]
      %v6717 = vld [vmem:[%s3 + $0x198] sm:$0xf]
      %v6718 = vld [vmem:[%s3 + $0x19c] sm:$0xf]
      %v6719 = vld [vmem:[%s3 + $0x1a0] sm:$0xf]
      %v6720 = vld [vmem:[%s3 + $0x1a4] sm:$0xf]
      %v6721 = vld [vmem:[%s3 + $0x1a8] sm:$0xf]
      %v6722 = vld [vmem:[%s3 + $0x1ac] sm:$0xf]
      %v6723 = vld [vmem:[%s3 + $0x1b0] sm:$0xf]
      %v6724 = vld [vmem:[%s3 + $0x1b4] sm:$0xf]
      %v6725 = vld [vmem:[%s3 + $0x1b8] sm:$0xf]
      %v6726 = vld [vmem:[%s3 + $0x1bc] sm:$0xf]
      %v6727 = vld [vmem:[%s4] sm:$0x1]
      %v6729 = vperm.slane %v6727, 0
      %v6859 = vunpack.c.l.b16 %v6487
      %v6860 = vunpack.c.h.b16 %v6487
      %v6861 = vunpack.c.l.b16 %v6488
      %v6862 = vunpack.c.h.b16 %v6488
      %v6863 = vunpack.c.l.b16 %v6489
      %v6864 = vunpack.c.h.b16 %v6489
      %v6865 = vunpack.c.l.b16 %v6490
      %v6866 = vunpack.c.l.b16 %v6491
      %v6867 = vunpack.c.h.b16 %v6491
      %v6868 = vunpack.c.l.b16 %v6492
      %v6869 = vunpack.c.h.b16 %v6492
      %v6870 = vunpack.c.l.b16 %v6493
      %v6871 = vunpack.c.h.b16 %v6493
      %v6872 = vunpack.c.l.b16 %v6494
      %v6873 = vunpack.c.l.b16 %v6495
      %v6874 = vunpack.c.h.b16 %v6495
      %v6875 = vunpack.c.l.b16 %v6496
      %v6876 = vunpack.c.h.b16 %v6496
      %v6877 = vunpack.c.l.b16 %v6497
      %v6878 = vunpack.c.h.b16 %v6497
      %v6879 = vunpack.c.l.b16 %v6498
      %v6880 = vunpack.c.l.b16 %v6499
      %v6881 = vunpack.c.h.b16 %v6499
      %v6882 = vunpack.c.l.b16 %v6500
      %v6883 = vunpack.c.h.b16 %v6500
      %v6884 = vunpack.c.l.b16 %v6501
      %v6885 = vunpack.c.h.b16 %v6501
      %v6886 = vunpack.c.l.b16 %v6502
      %v6887 = vunpack.c.l.b16 %v6503
      %v6888 = vunpack.c.h.b16 %v6503
      %v6889 = vunpack.c.l.b16 %v6504
      %v6890 = vunpack.c.h.b16 %v6504
      %v6891 = vunpack.c.l.b16 %v6505
      %v6892 = vunpack.c.h.b16 %v6505
      %v6893 = vunpack.c.l.b16 %v6506
      %v6894 = vunpack.c.l.b16 %v6507
      %v6895 = vunpack.c.h.b16 %v6507
      %v6896 = vunpack.c.l.b16 %v6508
      %v6897 = vunpack.c.h.b16 %v6508
      %v6898 = vunpack.c.l.b16 %v6509
      %v6899 = vunpack.c.h.b16 %v6509
      %v6900 = vunpack.c.l.b16 %v6510
      %v6901 = vunpack.c.l.b16 %v6511
      %v6902 = vunpack.c.h.b16 %v6511
      %v6903 = vunpack.c.l.b16 %v6512
      %v6904 = vunpack.c.h.b16 %v6512
      %v6905 = vunpack.c.l.b16 %v6513
      %v6906 = vunpack.c.h.b16 %v6513
      %v6907 = vunpack.c.l.b16 %v6514
      %v6908 = vunpack.c.l.b16 %v6515
      %v6909 = vunpack.c.h.b16 %v6515
      %v6910 = vunpack.c.l.b16 %v6516
      %v6911 = vunpack.c.h.b16 %v6516
      %v6912 = vunpack.c.l.b16 %v6517
      %v6913 = vunpack.c.h.b16 %v6517
      %v6914 = vunpack.c.l.b16 %v6518
      %v6915 = vunpack.c.l.b16 %v6519
      %v6916 = vunpack.c.h.b16 %v6519
      %v6917 = vunpack.c.l.b16 %v6520
      %v6918 = vunpack.c.h.b16 %v6520
      %v6919 = vunpack.c.l.b16 %v6521
      %v6920 = vunpack.c.h.b16 %v6521
      %v6921 = vunpack.c.l.b16 %v6522
      %v6922 = vunpack.c.l.b16 %v6523
      %v6923 = vunpack.c.h.b16 %v6523
      %v6924 = vunpack.c.l.b16 %v6524
      %v6925 = vunpack.c.h.b16 %v6524
      %v6926 = vunpack.c.l.b16 %v6525
      %v6927 = vunpack.c.h.b16 %v6525
      %v6928 = vunpack.c.l.b16 %v6526
      %v6929 = vunpack.c.l.b16 %v6527
      %v6930 = vunpack.c.h.b16 %v6527
      %v6931 = vunpack.c.l.b16 %v6528
      %v6932 = vunpack.c.h.b16 %v6528
      %v6933 = vunpack.c.l.b16 %v6529
      %v6934 = vunpack.c.h.b16 %v6529
      %v6935 = vunpack.c.l.b16 %v6530
      %v6936 = vunpack.c.l.b16 %v6531
      %v6937 = vunpack.c.h.b16 %v6531
      %v6938 = vunpack.c.l.b16 %v6532
      %v6939 = vunpack.c.h.b16 %v6532
      %v6940 = vunpack.c.l.b16 %v6533
      %v6941 = vunpack.c.h.b16 %v6533
      %v6942 = vunpack.c.l.b16 %v6534
      %v6943 = vunpack.c.l.b16 %v6535
      %v6944 = vunpack.c.h.b16 %v6535
      %v6945 = vunpack.c.l.b16 %v6536
      %v6946 = vunpack.c.h.b16 %v6536
      %v6947 = vunpack.c.l.b16 %v6537
      %v6948 = vunpack.c.h.b16 %v6537
      %v6949 = vunpack.c.l.b16 %v6538
      %v6950 = vunpack.c.l.b16 %v6539
      %v6951 = vunpack.c.h.b16 %v6539
      %v6952 = vunpack.c.l.b16 %v6540
      %v6953 = vunpack.c.h.b16 %v6540
      %v6954 = vunpack.c.l.b16 %v6541
      %v6955 = vunpack.c.h.b16 %v6541
      %v6956 = vunpack.c.l.b16 %v6542
      %v6957 = vunpack.c.l.b16 %v6543
      %v6958 = vunpack.c.h.b16 %v6543
      %v6959 = vunpack.c.l.b16 %v6544
      %v6960 = vunpack.c.h.b16 %v6544
      %v6961 = vunpack.c.l.b16 %v6545
      %v6962 = vunpack.c.h.b16 %v6545
      %v6963 = vunpack.c.l.b16 %v6546
      %v6964 = vunpack.c.l.b16 %v6547
      %v6965 = vunpack.c.h.b16 %v6547
      %v6966 = vunpack.c.l.b16 %v6548
      %v6967 = vunpack.c.h.b16 %v6548
      %v6968 = vunpack.c.l.b16 %v6549
      %v6969 = vunpack.c.h.b16 %v6549
      %v6970 = vunpack.c.l.b16 %v6550
      %v6971 = vunpack.c.l.b16 %v6551
      %v6972 = vunpack.c.h.b16 %v6551
      %v6973 = vunpack.c.l.b16 %v6552
      %v6974 = vunpack.c.h.b16 %v6552
      %v6975 = vunpack.c.l.b16 %v6553
      %v6976 = vunpack.c.h.b16 %v6553
      %v6977 = vunpack.c.l.b16 %v6554
      %v6978 = vunpack.c.l.b16 %v6555
      %v6979 = vunpack.c.h.b16 %v6555
      %v6980 = vunpack.c.l.b16 %v6556
      %v6981 = vunpack.c.h.b16 %v6556
      %v6982 = vunpack.c.l.b16 %v6557
      %v6983 = vunpack.c.h.b16 %v6557
      %v6984 = vunpack.c.l.b16 %v6558
      %v6985 = vunpack.c.l.b16 %v6559
      %v6986 = vunpack.c.h.b16 %v6559
      %v6987 = vunpack.c.l.b16 %v6560
      %v6988 = vunpack.c.h.b16 %v6560
      %v6989 = vunpack.c.l.b16 %v6561
      %v6990 = vunpack.c.h.b16 %v6561
      %v6991 = vunpack.c.l.b16 %v6562
      %v6992 = vunpack.c.l.b16 %v6563
      %v6993 = vunpack.c.h.b16 %v6563
      %v6994 = vunpack.c.l.b16 %v6564
      %v6995 = vunpack.c.h.b16 %v6564
      %v6996 = vunpack.c.l.b16 %v6565
      %v6997 = vunpack.c.h.b16 %v6565
      %v6998 = vunpack.c.l.b16 %v6566
      %v6999 = vunpack.c.l.b16 %v6567
      %v7000 = vunpack.c.h.b16 %v6567
      %v7001 = vunpack.c.l.b16 %v6568
      %v7002 = vunpack.c.h.b16 %v6568
      %v7003 = vunpack.c.l.b16 %v6569
      %v7004 = vunpack.c.h.b16 %v6569
      %v7005 = vunpack.c.l.b16 %v6570
      %v7006 = vunpack.c.l.b16 %v6571
      %v7007 = vunpack.c.h.b16 %v6571
      %v7008 = vunpack.c.l.b16 %v6572
      %v7009 = vunpack.c.h.b16 %v6572
      %v7010 = vunpack.c.l.b16 %v6573
      %v7011 = vunpack.c.h.b16 %v6573
      %v7012 = vunpack.c.l.b16 %v6574
      %v7013 = vunpack.c.l.b16 %v6575
      %v7014 = vunpack.c.h.b16 %v6575
      %v7015 = vunpack.c.l.b16 %v6576
      %v7016 = vunpack.c.h.b16 %v6576
      %v7017 = vunpack.c.l.b16 %v6577
      %v7018 = vunpack.c.h.b16 %v6577
      %v7019 = vunpack.c.l.b16 %v6578
      %v7020 = vunpack.c.l.b16 %v6579
      %v7021 = vunpack.c.h.b16 %v6579
      %v7022 = vunpack.c.l.b16 %v6580
      %v7023 = vunpack.c.h.b16 %v6580
      %v7024 = vunpack.c.l.b16 %v6581
      %v7025 = vunpack.c.h.b16 %v6581
      %v7026 = vunpack.c.l.b16 %v6582
      %v7027 = vunpack.c.l.b16 %v6583
      %v7028 = vunpack.c.h.b16 %v6583
      %v7029 = vunpack.c.l.b16 %v6584
      %v7030 = vunpack.c.h.b16 %v6584
      %v7031 = vunpack.c.l.b16 %v6585
      %v7032 = vunpack.c.h.b16 %v6585
      %v7033 = vunpack.c.l.b16 %v6586
      %v7034 = vunpack.c.l.b16 %v6587
      %v7035 = vunpack.c.h.b16 %v6587
      %v7036 = vunpack.c.l.b16 %v6588
      %v7037 = vunpack.c.h.b16 %v6588
      %v7038 = vunpack.c.l.b16 %v6589
      %v7039 = vunpack.c.h.b16 %v6589
      %v7040 = vunpack.c.l.b16 %v6590
      %v7041 = vunpack.c.l.b16 %v6591
      %v7042 = vunpack.c.h.b16 %v6591
      %v7043 = vunpack.c.l.b16 %v6592
      %v7044 = vunpack.c.h.b16 %v6592
      %v7045 = vunpack.c.l.b16 %v6593
      %v7046 = vunpack.c.h.b16 %v6593
      %v7047 = vunpack.c.l.b16 %v6594
      %v7048 = vunpack.c.l.b16 %v6595
      %v7049 = vunpack.c.h.b16 %v6595
      %v7050 = vunpack.c.l.b16 %v6596
      %v7051 = vunpack.c.h.b16 %v6596
      %v7052 = vunpack.c.l.b16 %v6597
      %v7053 = vunpack.c.h.b16 %v6597
      %v7054 = vunpack.c.l.b16 %v6598
      %v7055 = vunpack.c.l.b16 %v6599
      %v7056 = vunpack.c.h.b16 %v6599
      %v7057 = vunpack.c.l.b16 %v6600
      %v7058 = vunpack.c.h.b16 %v6600
      %v7059 = vunpack.c.l.b16 %v6601
      %v7060 = vunpack.c.h.b16 %v6601
      %v7061 = vunpack.c.l.b16 %v6602
      %v7062 = vunpack.c.l.b16 %v6603
      %v7063 = vunpack.c.h.b16 %v6603
      %v7064 = vunpack.c.l.b16 %v6604
      %v7065 = vunpack.c.h.b16 %v6604
      %v7066 = vunpack.c.l.b16 %v6605
      %v7067 = vunpack.c.h.b16 %v6605
      %v7068 = vunpack.c.l.b16 %v6606
      %v7069 = vunpack.c.l.b16 %v6607
      %v7070 = vunpack.c.h.b16 %v6607
      %v7071 = vunpack.c.l.b16 %v6608
      %v7072 = vunpack.c.h.b16 %v6608
      %v7073 = vunpack.c.l.b16 %v6609
      %v7074 = vunpack.c.h.b16 %v6609
      %v7075 = vunpack.c.l.b16 %v6610
      %v7076 = vunpack.c.l.b16 %v6611
      %v7077 = vunpack.c.h.b16 %v6611
      %v7078 = vunpack.c.l.b16 %v6612
      %v7079 = vunpack.c.h.b16 %v6612
      %v7080 = vunpack.c.l.b16 %v6613
      %v7081 = vunpack.c.h.b16 %v6613
      %v7082 = vunpack.c.l.b16 %v6614
      %v7083 = vpack.c.b16 %v6866, %v6859
      %v7084 = vpack.c.b16 %v6867, %v6860
      %v7085 = vpack.c.b16 %v6868, %v6861
      %v7086 = vpack.c.b16 %v6869, %v6862
      %v7087 = vpack.c.b16 %v6870, %v6863
      %v7088 = vpack.c.b16 %v6871, %v6864
      %v7089 = vpack.c.b16 %v6872, %v6865
      %v7090 = vpack.c.b16 %v6880, %v6873
      %v7091 = vpack.c.b16 %v6881, %v6874
      %v7092 = vpack.c.b16 %v6882, %v6875
      %v7093 = vpack.c.b16 %v6883, %v6876
      %v7094 = vpack.c.b16 %v6884, %v6877
      %v7095 = vpack.c.b16 %v6885, %v6878
      %v7096 = vpack.c.b16 %v6886, %v6879
      %v7097 = vpack.c.b16 %v6894, %v6887
      %v7098 = vpack.c.b16 %v6895, %v6888
      %v7099 = vpack.c.b16 %v6896, %v6889
      %v7100 = vpack.c.b16 %v6897, %v6890
      %v7101 = vpack.c.b16 %v6898, %v6891
      %v7102 = vpack.c.b16 %v6899, %v6892
      %v7103 = vpack.c.b16 %v6900, %v6893
      %v7104 = vpack.c.b16 %v6908, %v6901
      %v7105 = vpack.c.b16 %v6909, %v6902
      %v7106 = vpack.c.b16 %v6910, %v6903
      %v7107 = vpack.c.b16 %v6911, %v6904
      %v7108 = vpack.c.b16 %v6912, %v6905
      %v7109 = vpack.c.b16 %v6913, %v6906
      %v7110 = vpack.c.b16 %v6914, %v6907
      %v7111 = vpack.c.b16 %v6922, %v6915
      %v7112 = vpack.c.b16 %v6923, %v6916
      %v7113 = vpack.c.b16 %v6924, %v6917
      %v7114 = vpack.c.b16 %v6925, %v6918
      %v7115 = vpack.c.b16 %v6926, %v6919
      %v7116 = vpack.c.b16 %v6927, %v6920
      %v7117 = vpack.c.b16 %v6928, %v6921
      %v7118 = vpack.c.b16 %v6936, %v6929
      %v7119 = vpack.c.b16 %v6937, %v6930
      %v7120 = vpack.c.b16 %v6938, %v6931
      %v7121 = vpack.c.b16 %v6939, %v6932
      %v7122 = vpack.c.b16 %v6940, %v6933
      %v7123 = vpack.c.b16 %v6941, %v6934
      %v7124 = vpack.c.b16 %v6942, %v6935
      %v7125 = vpack.c.b16 %v6950, %v6943
      %v7126 = vpack.c.b16 %v6951, %v6944
      %v7127 = vpack.c.b16 %v6952, %v6945
      %v7128 = vpack.c.b16 %v6953, %v6946
      %v7129 = vpack.c.b16 %v6954, %v6947
      %v7130 = vpack.c.b16 %v6955, %v6948
      %v7131 = vpack.c.b16 %v6956, %v6949
      %v7132 = vpack.c.b16 %v6964, %v6957
      %v7133 = vpack.c.b16 %v6965, %v6958
      %v7134 = vpack.c.b16 %v6966, %v6959
      %v7135 = vpack.c.b16 %v6967, %v6960
      %v7136 = vpack.c.b16 %v6968, %v6961
      %v7137 = vpack.c.b16 %v6969, %v6962
      %v7138 = vpack.c.b16 %v6970, %v6963
      %v7139 = vpack.c.b16 %v6978, %v6971
      %v7140 = vpack.c.b16 %v6979, %v6972
      %v7141 = vpack.c.b16 %v6980, %v6973
      %v7142 = vpack.c.b16 %v6981, %v6974
      %v7143 = vpack.c.b16 %v6982, %v6975
      %v7144 = vpack.c.b16 %v6983, %v6976
      %v7145 = vpack.c.b16 %v6984, %v6977
      %v7146 = vpack.c.b16 %v6992, %v6985
      %v7147 = vpack.c.b16 %v6993, %v6986
      %v7148 = vpack.c.b16 %v6994, %v6987
      %v7149 = vpack.c.b16 %v6995, %v6988
      %v7150 = vpack.c.b16 %v6996, %v6989
      %v7151 = vpack.c.b16 %v6997, %v6990
      %v7152 = vpack.c.b16 %v6998, %v6991
      %v7153 = vpack.c.b16 %v7006, %v6999
      %v7154 = vpack.c.b16 %v7007, %v7000
      %v7155 = vpack.c.b16 %v7008, %v7001
      %v7156 = vpack.c.b16 %v7009, %v7002
      %v7157 = vpack.c.b16 %v7010, %v7003
      %v7158 = vpack.c.b16 %v7011, %v7004
      %v7159 = vpack.c.b16 %v7012, %v7005
      %v7160 = vpack.c.b16 %v7020, %v7013
      %v7161 = vpack.c.b16 %v7021, %v7014
      %v7162 = vpack.c.b16 %v7022, %v7015
      %v7163 = vpack.c.b16 %v7023, %v7016
      %v7164 = vpack.c.b16 %v7024, %v7017
      %v7165 = vpack.c.b16 %v7025, %v7018
      %v7166 = vpack.c.b16 %v7026, %v7019
      %v7167 = vpack.c.b16 %v7034, %v7027
      %v7168 = vpack.c.b16 %v7035, %v7028
      %v7169 = vpack.c.b16 %v7036, %v7029
      %v7170 = vpack.c.b16 %v7037, %v7030
      %v7171 = vpack.c.b16 %v7038, %v7031
      %v7172 = vpack.c.b16 %v7039, %v7032
      %v7173 = vpack.c.b16 %v7040, %v7033
      %v7174 = vpack.c.b16 %v7048, %v7041
      %v7175 = vpack.c.b16 %v7049, %v7042
      %v7176 = vpack.c.b16 %v7050, %v7043
      %v7177 = vpack.c.b16 %v7051, %v7044
      %v7178 = vpack.c.b16 %v7052, %v7045
      %v7179 = vpack.c.b16 %v7053, %v7046
      %v7180 = vpack.c.b16 %v7054, %v7047
      %v7181 = vpack.c.b16 %v7062, %v7055
      %v7182 = vpack.c.b16 %v7063, %v7056
      %v7183 = vpack.c.b16 %v7064, %v7057
      %v7184 = vpack.c.b16 %v7065, %v7058
      %v7185 = vpack.c.b16 %v7066, %v7059
      %v7186 = vpack.c.b16 %v7067, %v7060
      %v7187 = vpack.c.b16 %v7068, %v7061
      %v7188 = vpack.c.b16 %v7076, %v7069
      %v7189 = vpack.c.b16 %v7077, %v7070
      %v7190 = vpack.c.b16 %v7078, %v7071
      %v7191 = vpack.c.b16 %v7079, %v7072
      %v7192 = vpack.c.b16 %v7080, %v7073
      %v7193 = vpack.c.b16 %v7081, %v7074
      %v7194 = vpack.c.b16 %v7082, %v7075
      %v7419 = vunpack.c.l.b16 %v6615
      %v7420 = vunpack.c.l.b16 %v6616
      %v7421 = vunpack.c.l.b16 %v6617
      %v7422 = vunpack.c.l.b16 %v6618
      %v7423 = vunpack.c.l.b16 %v6619
      %v7424 = vunpack.c.l.b16 %v6620
      %v7425 = vunpack.c.l.b16 %v6621
      %v7426 = vunpack.c.l.b16 %v6622
      %v7427 = vunpack.c.l.b16 %v6623
      %v7428 = vunpack.c.l.b16 %v6624
      %v7429 = vunpack.c.l.b16 %v6625
      %v7430 = vunpack.c.l.b16 %v6626
      %v7431 = vunpack.c.l.b16 %v6627
      %v7432 = vunpack.c.l.b16 %v6628
      %v7433 = vunpack.c.l.b16 %v6629
      %v7434 = vunpack.c.l.b16 %v6630
      %v7435 = vunpack.c.l.b16 %v6631
      %v7436 = vunpack.c.l.b16 %v6632
      %v7437 = vunpack.c.l.b16 %v6633
      %v7438 = vunpack.c.l.b16 %v6634
      %v7439 = vunpack.c.l.b16 %v6635
      %v7440 = vunpack.c.l.b16 %v6636
      %v7441 = vunpack.c.l.b16 %v6637
      %v7442 = vunpack.c.l.b16 %v6638
      %v7443 = vunpack.c.l.b16 %v6639
      %v7444 = vunpack.c.l.b16 %v6640
      %v7445 = vunpack.c.l.b16 %v6641
      %v7446 = vunpack.c.l.b16 %v6642
      %v7447 = vunpack.c.l.b16 %v6643
      %v7448 = vunpack.c.l.b16 %v6644
      %v7449 = vunpack.c.l.b16 %v6645
      %v7450 = vunpack.c.l.b16 %v6646
      %v7451 = vunpack.c.l.b16 %v6647
      %v7452 = vunpack.c.l.b16 %v6648
      %v7453 = vunpack.c.l.b16 %v6649
      %v7454 = vunpack.c.l.b16 %v6650
      %v7455 = vunpack.c.l.b16 %v6651
      %v7456 = vunpack.c.l.b16 %v6652
      %v7457 = vunpack.c.l.b16 %v6653
      %v7458 = vunpack.c.l.b16 %v6654
      %v7459 = vunpack.c.l.b16 %v6655
      %v7460 = vunpack.c.l.b16 %v6656
      %v7461 = vunpack.c.l.b16 %v6657
      %v7462 = vunpack.c.l.b16 %v6658
      %v7463 = vunpack.c.l.b16 %v6659
      %v7464 = vunpack.c.l.b16 %v6660
      %v7465 = vunpack.c.l.b16 %v6661
      %v7466 = vunpack.c.l.b16 %v6662
      %v7467 = vunpack.c.l.b16 %v6663
      %v7468 = vunpack.c.l.b16 %v6664
      %v7469 = vunpack.c.l.b16 %v6665
      %v7470 = vunpack.c.l.b16 %v6666
      %v7471 = vunpack.c.l.b16 %v6667
      %v7472 = vunpack.c.l.b16 %v6668
      %v7473 = vunpack.c.l.b16 %v6669
      %v7474 = vunpack.c.l.b16 %v6670
      %v7475 = vunpack.c.l.b16 %v6671
      %v7476 = vunpack.c.l.b16 %v6672
      %v7477 = vunpack.c.l.b16 %v6673
      %v7478 = vunpack.c.l.b16 %v6674
      %v7479 = vunpack.c.l.b16 %v6675
      %v7480 = vunpack.c.l.b16 %v6676
      %v7481 = vunpack.c.l.b16 %v6677
      %v7482 = vunpack.c.l.b16 %v6678
      %v7483 = vunpack.c.l.b16 %v6679
      %v7484 = vunpack.c.l.b16 %v6680
      %v7485 = vunpack.c.l.b16 %v6681
      %v7486 = vunpack.c.l.b16 %v6682
      %v7487 = vunpack.c.l.b16 %v6683
      %v7488 = vunpack.c.l.b16 %v6684
      %v7489 = vunpack.c.l.b16 %v6685
      %v7490 = vunpack.c.l.b16 %v6686
      %v7491 = vunpack.c.l.b16 %v6687
      %v7492 = vunpack.c.l.b16 %v6688
      %v7493 = vunpack.c.l.b16 %v6689
      %v7494 = vunpack.c.l.b16 %v6690
      %v7495 = vunpack.c.l.b16 %v6691
      %v7496 = vunpack.c.l.b16 %v6692
      %v7497 = vunpack.c.l.b16 %v6693
      %v7498 = vunpack.c.l.b16 %v6694
      %v7499 = vunpack.c.l.b16 %v6695
      %v7500 = vunpack.c.l.b16 %v6696
      %v7501 = vunpack.c.l.b16 %v6697
      %v7502 = vunpack.c.l.b16 %v6698
      %v7503 = vunpack.c.l.b16 %v6699
      %v7504 = vunpack.c.l.b16 %v6700
      %v7505 = vunpack.c.l.b16 %v6701
      %v7506 = vunpack.c.l.b16 %v6702
      %v7507 = vunpack.c.l.b16 %v6703
      %v7508 = vunpack.c.l.b16 %v6704
      %v7509 = vunpack.c.l.b16 %v6705
      %v7510 = vunpack.c.l.b16 %v6706
      %v7511 = vunpack.c.l.b16 %v6707
      %v7512 = vunpack.c.l.b16 %v6708
      %v7513 = vunpack.c.l.b16 %v6709
      %v7514 = vunpack.c.l.b16 %v6710
      %v7515 = vunpack.c.l.b16 %v6711
      %v7516 = vunpack.c.l.b16 %v6712
      %v7517 = vunpack.c.l.b16 %v6713
      %v7518 = vunpack.c.l.b16 %v6714
      %v7519 = vunpack.c.l.b16 %v6715
      %v7520 = vunpack.c.l.b16 %v6716
      %v7521 = vunpack.c.l.b16 %v6717
      %v7522 = vunpack.c.l.b16 %v6718
      %v7523 = vunpack.c.l.b16 %v6719
      %v7524 = vunpack.c.l.b16 %v6720
      %v7525 = vunpack.c.l.b16 %v6721
      %v7526 = vunpack.c.l.b16 %v6722
      %v7527 = vunpack.c.l.b16 %v6723
      %v7528 = vunpack.c.l.b16 %v6724
      %v7529 = vunpack.c.l.b16 %v6725
      %v7530 = vunpack.c.l.b16 %v6726
      %v7531 = vpack.c.b16 %v7420, %v7419
      %v7532 = vpack.c.b16 %v7422, %v7421
      %v7533 = vpack.c.b16 %v7424, %v7423
      %v7534 = vpack.c.b16 %v7426, %v7425
      %v7535 = vpack.c.b16 %v7428, %v7427
      %v7536 = vpack.c.b16 %v7430, %v7429
      %v7537 = vpack.c.b16 %v7432, %v7431
      %v7538 = vpack.c.b16 %v7434, %v7433
      %v7539 = vpack.c.b16 %v7436, %v7435
      %v7540 = vpack.c.b16 %v7438, %v7437
      %v7541 = vpack.c.b16 %v7440, %v7439
      %v7542 = vpack.c.b16 %v7442, %v7441
      %v7543 = vpack.c.b16 %v7444, %v7443
      %v7544 = vpack.c.b16 %v7446, %v7445
      %v7545 = vpack.c.b16 %v7448, %v7447
      %v7546 = vpack.c.b16 %v7450, %v7449
      %v7547 = vpack.c.b16 %v7452, %v7451
      %v7548 = vpack.c.b16 %v7454, %v7453
      %v7549 = vpack.c.b16 %v7456, %v7455
      %v7550 = vpack.c.b16 %v7458, %v7457
      %v7551 = vpack.c.b16 %v7460, %v7459
      %v7552 = vpack.c.b16 %v7462, %v7461
      %v7553 = vpack.c.b16 %v7464, %v7463
      %v7554 = vpack.c.b16 %v7466, %v7465
      %v7555 = vpack.c.b16 %v7468, %v7467
      %v7556 = vpack.c.b16 %v7470, %v7469
      %v7557 = vpack.c.b16 %v7472, %v7471
      %v7558 = vpack.c.b16 %v7474, %v7473
      %v7559 = vpack.c.b16 %v7476, %v7475
      %v7560 = vpack.c.b16 %v7478, %v7477
      %v7561 = vpack.c.b16 %v7480, %v7479
      %v7562 = vpack.c.b16 %v7482, %v7481
      %v7563 = vpack.c.b16 %v7484, %v7483
      %v7564 = vpack.c.b16 %v7486, %v7485
      %v7565 = vpack.c.b16 %v7488, %v7487
      %v7566 = vpack.c.b16 %v7490, %v7489
      %v7567 = vpack.c.b16 %v7492, %v7491
      %v7568 = vpack.c.b16 %v7494, %v7493
      %v7569 = vpack.c.b16 %v7496, %v7495
      %v7570 = vpack.c.b16 %v7498, %v7497
      %v7571 = vpack.c.b16 %v7500, %v7499
      %v7572 = vpack.c.b16 %v7502, %v7501
      %v7573 = vpack.c.b16 %v7504, %v7503
      %v7574 = vpack.c.b16 %v7506, %v7505
      %v7575 = vpack.c.b16 %v7508, %v7507
      %v7576 = vpack.c.b16 %v7510, %v7509
      %v7577 = vpack.c.b16 %v7512, %v7511
      %v7578 = vpack.c.b16 %v7514, %v7513
      %v7579 = vpack.c.b16 %v7516, %v7515
      %v7580 = vpack.c.b16 %v7518, %v7517
      %v7581 = vpack.c.b16 %v7520, %v7519
      %v7582 = vpack.c.b16 %v7522, %v7521
      %v7583 = vpack.c.b16 %v7524, %v7523
      %v7584 = vpack.c.b16 %v7526, %v7525
      %v7585 = vpack.c.b16 %v7528, %v7527
      %v7586 = vpack.c.b16 %v7530, %v7529
      %7643 = vmatpush.bf16.msra.mxu0 %v7538
      %7644 = vmatpush.bf16.msra.mxu0 %v7537
      %7645 = vmatpush.bf16.msra.mxu0 %v7536
      %7646 = vmatpush.bf16.msra.mxu0 %v7535
      %7647 = vmatpush.bf16.msra.mxu0 %v7534
      %7648 = vmatpush.bf16.msra.mxu0 %v7533
      %7649 = vmatpush.bf16.msra.mxu0 %v7532
      %7650 = vmatpush.bf16.msra.mxu0 %v7531
      %7651 = vmatmul.bf16.gmra.mxu0 %v7083
      %v7652 = vpop.f32.mrf.mxu0
      %v7653 = vadd.f32 %v6729, %v7652
      %v7654 = vpop.f32.mrf.mxu0
      %v7655 = vadd.f32 %v6729, %v7654
      %7656 = vmatmul.bf16.gmra.mxu0 %v7090
      %v7657 = vpop.f32.mrf.mxu0
      %v7658 = vadd.f32 %v6729, %v7657
      %v7659 = vpop.f32.mrf.mxu0
      %v7660 = vadd.f32 %v6729, %v7659
      %7661 = vmatmul.bf16.gmra.mxu0 %v7097
      %v7662 = vpop.f32.mrf.mxu0
      %v7663 = vadd.f32 %v6729, %v7662
      %v7664 = vpop.f32.mrf.mxu0
      %v7665 = vadd.f32 %v6729, %v7664
      %7666 = vmatmul.bf16.gmra.mxu0 %v7104
      %v7667 = vpop.f32.mrf.mxu0
      %v7668 = vadd.f32 %v6729, %v7667
      %v7669 = vpop.f32.mrf.mxu0
      %v7670 = vadd.f32 %v6729, %v7669
      %7671 = vmatmul.bf16.gmra.mxu0 %v7111
      %v7672 = vpop.f32.mrf.mxu0
      %v7673 = vadd.f32 %v6729, %v7672
      %v7674 = vpop.f32.mrf.mxu0
      %v7675 = vadd.f32 %v6729, %v7674
      %7676 = vmatmul.bf16.gmra.mxu0 %v7118
      %v7677 = vpop.f32.mrf.mxu0
      %v7678 = vadd.f32 %v6729, %v7677
      %v7679 = vpop.f32.mrf.mxu0
      %v7680 = vadd.f32 %v6729, %v7679
      %7681 = vmatmul.bf16.gmra.mxu0 %v7125
      %v7682 = vpop.f32.mrf.mxu0
      %v7683 = vadd.f32 %v6729, %v7682
      %v7684 = vpop.f32.mrf.mxu0
      %v7685 = vadd.f32 %v6729, %v7684
      %7686 = vmatmul.bf16.gmra.mxu0 %v7132
      %v7687 = vpop.f32.mrf.mxu0
      %v7688 = vadd.f32 %v6729, %v7687
      %v7689 = vpop.f32.mrf.mxu0
      %v7690 = vadd.f32 %v6729, %v7689
      %7691 = vmatmul.bf16.gmra.mxu0 %v7139
      %v7692 = vpop.f32.mrf.mxu0
      %v7693 = vadd.f32 %v6729, %v7692
      %v7694 = vpop.f32.mrf.mxu0
      %v7695 = vadd.f32 %v6729, %v7694
      %7696 = vmatmul.bf16.gmra.mxu0 %v7146
      %v7697 = vpop.f32.mrf.mxu0
      %v7698 = vadd.f32 %v6729, %v7697
      %v7699 = vpop.f32.mrf.mxu0
      %v7700 = vadd.f32 %v6729, %v7699
      %7701 = vmatmul.bf16.gmra.mxu0 %v7153
      %v7702 = vpop.f32.mrf.mxu0
      %v7703 = vadd.f32 %v6729, %v7702
      %v7704 = vpop.f32.mrf.mxu0
      %v7705 = vadd.f32 %v6729, %v7704
      %7706 = vmatmul.bf16.gmra.mxu0 %v7160
      %v7707 = vpop.f32.mrf.mxu0
      %v7708 = vadd.f32 %v6729, %v7707
      %v7709 = vpop.f32.mrf.mxu0
      %v7710 = vadd.f32 %v6729, %v7709
      %7711 = vmatmul.bf16.gmra.mxu0 %v7167
      %v7712 = vpop.f32.mrf.mxu0
      %v7713 = vadd.f32 %v6729, %v7712
      %v7714 = vpop.f32.mrf.mxu0
      %v7715 = vadd.f32 %v6729, %v7714
      %7716 = vmatmul.bf16.gmra.mxu0 %v7174
      %v7717 = vpop.f32.mrf.mxu0
      %v7718 = vadd.f32 %v6729, %v7717
      %v7719 = vpop.f32.mrf.mxu0
      %v7720 = vadd.f32 %v6729, %v7719
      %7721 = vmatmul.bf16.gmra.mxu0 %v7181
      %v7722 = vpop.f32.mrf.mxu0
      %v7723 = vadd.f32 %v6729, %v7722
      %v7724 = vpop.f32.mrf.mxu0
      %v7725 = vadd.f32 %v6729, %v7724
      %7726 = vmatmul.bf16.gmra.mxu0 %v7188
      %v7727 = vpop.f32.mrf.mxu0
      %v7728 = vadd.f32 %v6729, %v7727
      %v7729 = vpop.f32.mrf.mxu0
      %v7730 = vadd.f32 %v6729, %v7729
      %7731 = vdwg.mxu0
      %7732 = vmatpush.bf16.msra.mxu0 %v7546
      %7733 = vmatpush.bf16.msra.mxu0 %v7545
      %7734 = vmatpush.bf16.msra.mxu0 %v7544
      %7735 = vmatpush.bf16.msra.mxu0 %v7543
      %7736 = vmatpush.bf16.msra.mxu0 %v7542
      %7737 = vmatpush.bf16.msra.mxu0 %v7541
      %7738 = vmatpush.bf16.msra.mxu0 %v7540
      %7739 = vmatpush.bf16.msra.mxu0 %v7539
      %7740 = vmatmul.bf16.gmra.mxu0 %v7084
      %v7741 = vpop.f32.mrf.mxu0
      %v7742 = vadd.f32 %v7653, %v7741
      %v7743 = vpop.f32.mrf.mxu0
      %v7744 = vadd.f32 %v7655, %v7743
      %7745 = vmatmul.bf16.gmra.mxu0 %v7091
      %v7746 = vpop.f32.mrf.mxu0
      %v7747 = vadd.f32 %v7658, %v7746
      %v7748 = vpop.f32.mrf.mxu0
      %v7749 = vadd.f32 %v7660, %v7748
      %7750 = vmatmul.bf16.gmra.mxu0 %v7098
      %v7751 = vpop.f32.mrf.mxu0
      %v7752 = vadd.f32 %v7663, %v7751
      %v7753 = vpop.f32.mrf.mxu0
      %v7754 = vadd.f32 %v7665, %v7753
      %7755 = vmatmul.bf16.gmra.mxu0 %v7105
      %v7756 = vpop.f32.mrf.mxu0
      %v7757 = vadd.f32 %v7668, %v7756
      %v7758 = vpop.f32.mrf.mxu0
      %v7759 = vadd.f32 %v7670, %v7758
      %7760 = vmatmul.bf16.gmra.mxu0 %v7112
      %v7761 = vpop.f32.mrf.mxu0
      %v7762 = vadd.f32 %v7673, %v7761
      %v7763 = vpop.f32.mrf.mxu0
      %v7764 = vadd.f32 %v7675, %v7763
      %7765 = vmatmul.bf16.gmra.mxu0 %v7119
      %v7766 = vpop.f32.mrf.mxu0
      %v7767 = vadd.f32 %v7678, %v7766
      %v7768 = vpop.f32.mrf.mxu0
      %v7769 = vadd.f32 %v7680, %v7768
      %7770 = vmatmul.bf16.gmra.mxu0 %v7126
      %v7771 = vpop.f32.mrf.mxu0
      %v7772 = vadd.f32 %v7683, %v7771
      %v7773 = vpop.f32.mrf.mxu0
      %v7774 = vadd.f32 %v7685, %v7773
      %7775 = vmatmul.bf16.gmra.mxu0 %v7133
      %v7776 = vpop.f32.mrf.mxu0
      %v7777 = vadd.f32 %v7688, %v7776
      %v7778 = vpop.f32.mrf.mxu0
      %v7779 = vadd.f32 %v7690, %v7778
      %7780 = vmatmul.bf16.gmra.mxu0 %v7140
      %v7781 = vpop.f32.mrf.mxu0
      %v7782 = vadd.f32 %v7693, %v7781
      %v7783 = vpop.f32.mrf.mxu0
      %v7784 = vadd.f32 %v7695, %v7783
      %7785 = vmatmul.bf16.gmra.mxu0 %v7147
      %v7786 = vpop.f32.mrf.mxu0
      %v7787 = vadd.f32 %v7698, %v7786
      %v7788 = vpop.f32.mrf.mxu0
      %v7789 = vadd.f32 %v7700, %v7788
      %7790 = vmatmul.bf16.gmra.mxu0 %v7154
      %v7791 = vpop.f32.mrf.mxu0
      %v7792 = vadd.f32 %v7703, %v7791
      %v7793 = vpop.f32.mrf.mxu0
      %v7794 = vadd.f32 %v7705, %v7793
      %7795 = vmatmul.bf16.gmra.mxu0 %v7161
      %v7796 = vpop.f32.mrf.mxu0
      %v7797 = vadd.f32 %v7708, %v7796
      %v7798 = vpop.f32.mrf.mxu0
      %v7799 = vadd.f32 %v7710, %v7798
      %7800 = vmatmul.bf16.gmra.mxu0 %v7168
      %v7801 = vpop.f32.mrf.mxu0
      %v7802 = vadd.f32 %v7713, %v7801
      %v7803 = vpop.f32.mrf.mxu0
      %v7804 = vadd.f32 %v7715, %v7803
      %7805 = vmatmul.bf16.gmra.mxu0 %v7175
      %v7806 = vpop.f32.mrf.mxu0
      %v7807 = vadd.f32 %v7718, %v7806
      %v7808 = vpop.f32.mrf.mxu0
      %v7809 = vadd.f32 %v7720, %v7808
      %7810 = vmatmul.bf16.gmra.mxu0 %v7182
      %v7811 = vpop.f32.mrf.mxu0
      %v7812 = vadd.f32 %v7723, %v7811
      %v7813 = vpop.f32.mrf.mxu0
      %v7814 = vadd.f32 %v7725, %v7813
      %7815 = vmatmul.bf16.gmra.mxu0 %v7189
      %v7816 = vpop.f32.mrf.mxu0
      %v7817 = vadd.f32 %v7728, %v7816
      %v7818 = vpop.f32.mrf.mxu0
      %v7819 = vadd.f32 %v7730, %v7818
      %7820 = vdwg.mxu0
      %7821 = vmatpush.bf16.msra.mxu0 %v7554
      %7822 = vmatpush.bf16.msra.mxu0 %v7553
      %7823 = vmatpush.bf16.msra.mxu0 %v7552
      %7824 = vmatpush.bf16.msra.mxu0 %v7551
      %7825 = vmatpush.bf16.msra.mxu0 %v7550
      %7826 = vmatpush.bf16.msra.mxu0 %v7549
      %7827 = vmatpush.bf16.msra.mxu0 %v7548
      %7828 = vmatpush.bf16.msra.mxu0 %v7547
      %7829 = vmatmul.bf16.gmra.mxu0 %v7085
      %v7830 = vpop.f32.mrf.mxu0
      %v7831 = vadd.f32 %v7742, %v7830
      %v7832 = vpop.f32.mrf.mxu0
      %v7833 = vadd.f32 %v7744, %v7832
      %7834 = vmatmul.bf16.gmra.mxu0 %v7092
      %v7835 = vpop.f32.mrf.mxu0
      %v7836 = vadd.f32 %v7747, %v7835
      %v7837 = vpop.f32.mrf.mxu0
      %v7838 = vadd.f32 %v7749, %v7837
      %7839 = vmatmul.bf16.gmra.mxu0 %v7099
      %v7840 = vpop.f32.mrf.mxu0
      %v7841 = vadd.f32 %v7752, %v7840
      %v7842 = vpop.f32.mrf.mxu0
      %v7843 = vadd.f32 %v7754, %v7842
      %7844 = vmatmul.bf16.gmra.mxu0 %v7106
      %v7845 = vpop.f32.mrf.mxu0
      %v7846 = vadd.f32 %v7757, %v7845
      %v7847 = vpop.f32.mrf.mxu0
      %v7848 = vadd.f32 %v7759, %v7847
      %7849 = vmatmul.bf16.gmra.mxu0 %v7113
      %v7850 = vpop.f32.mrf.mxu0
      %v7851 = vadd.f32 %v7762, %v7850
      %v7852 = vpop.f32.mrf.mxu0
      %v7853 = vadd.f32 %v7764, %v7852
      %7854 = vmatmul.bf16.gmra.mxu0 %v7120
      %v7855 = vpop.f32.mrf.mxu0
      %v7856 = vadd.f32 %v7767, %v7855
      %v7857 = vpop.f32.mrf.mxu0
      %v7858 = vadd.f32 %v7769, %v7857
      %7859 = vmatmul.bf16.gmra.mxu0 %v7127
      %v7860 = vpop.f32.mrf.mxu0
      %v7861 = vadd.f32 %v7772, %v7860
      %v7862 = vpop.f32.mrf.mxu0
      %v7863 = vadd.f32 %v7774, %v7862
      %7864 = vmatmul.bf16.gmra.mxu0 %v7134
      %v7865 = vpop.f32.mrf.mxu0
      %v7866 = vadd.f32 %v7777, %v7865
      %v7867 = vpop.f32.mrf.mxu0
      %v7868 = vadd.f32 %v7779, %v7867
      %7869 = vmatmul.bf16.gmra.mxu0 %v7141
      %v7870 = vpop.f32.mrf.mxu0
      %v7871 = vadd.f32 %v7782, %v7870
      %v7872 = vpop.f32.mrf.mxu0
      %v7873 = vadd.f32 %v7784, %v7872
      %7874 = vmatmul.bf16.gmra.mxu0 %v7148
      %v7875 = vpop.f32.mrf.mxu0
      %v7876 = vadd.f32 %v7787, %v7875
      %v7877 = vpop.f32.mrf.mxu0
      %v7878 = vadd.f32 %v7789, %v7877
      %7879 = vmatmul.bf16.gmra.mxu0 %v7155
      %v7880 = vpop.f32.mrf.mxu0
      %v7881 = vadd.f32 %v7792, %v7880
      %v7882 = vpop.f32.mrf.mxu0
      %v7883 = vadd.f32 %v7794, %v7882
      %7884 = vmatmul.bf16.gmra.mxu0 %v7162
      %v7885 = vpop.f32.mrf.mxu0
      %v7886 = vadd.f32 %v7797, %v7885
      %v7887 = vpop.f32.mrf.mxu0
      %v7888 = vadd.f32 %v7799, %v7887
      %7889 = vmatmul.bf16.gmra.mxu0 %v7169
      %v7890 = vpop.f32.mrf.mxu0
      %v7891 = vadd.f32 %v7802, %v7890
      %v7892 = vpop.f32.mrf.mxu0
      %v7893 = vadd.f32 %v7804, %v7892
      %7894 = vmatmul.bf16.gmra.mxu0 %v7176
      %v7895 = vpop.f32.mrf.mxu0
      %v7896 = vadd.f32 %v7807, %v7895
      %v7897 = vpop.f32.mrf.mxu0
      %v7898 = vadd.f32 %v7809, %v7897
      %7899 = vmatmul.bf16.gmra.mxu0 %v7183
      %v7900 = vpop.f32.mrf.mxu0
      %v7901 = vadd.f32 %v7812, %v7900
      %v7902 = vpop.f32.mrf.mxu0
      %v7903 = vadd.f32 %v7814, %v7902
      %7904 = vmatmul.bf16.gmra.mxu0 %v7190
      %v7905 = vpop.f32.mrf.mxu0
      %v7906 = vadd.f32 %v7817, %v7905
      %v7907 = vpop.f32.mrf.mxu0
      %v7908 = vadd.f32 %v7819, %v7907
      %7909 = vdwg.mxu0
      %7910 = vmatpush.bf16.msra.mxu0 %v7562
      %7911 = vmatpush.bf16.msra.mxu0 %v7561
      %7912 = vmatpush.bf16.msra.mxu0 %v7560
      %7913 = vmatpush.bf16.msra.mxu0 %v7559
      %7914 = vmatpush.bf16.msra.mxu0 %v7558
      %7915 = vmatpush.bf16.msra.mxu0 %v7557
      %7916 = vmatpush.bf16.msra.mxu0 %v7556
      %7917 = vmatpush.bf16.msra.mxu0 %v7555
      %7918 = vmatmul.bf16.gmra.mxu0 %v7086
      %v7919 = vpop.f32.mrf.mxu0
      %v7920 = vadd.f32 %v7831, %v7919
      %v7921 = vpop.f32.mrf.mxu0
      %v7922 = vadd.f32 %v7833, %v7921
      %7923 = vmatmul.bf16.gmra.mxu0 %v7093
      %v7924 = vpop.f32.mrf.mxu0
      %v7925 = vadd.f32 %v7836, %v7924
      %v7926 = vpop.f32.mrf.mxu0
      %v7927 = vadd.f32 %v7838, %v7926
      %7928 = vmatmul.bf16.gmra.mxu0 %v7100
      %v7929 = vpop.f32.mrf.mxu0
      %v7930 = vadd.f32 %v7841, %v7929
      %v7931 = vpop.f32.mrf.mxu0
      %v7932 = vadd.f32 %v7843, %v7931
      %7933 = vmatmul.bf16.gmra.mxu0 %v7107
      %v7934 = vpop.f32.mrf.mxu0
      %v7935 = vadd.f32 %v7846, %v7934
      %v7936 = vpop.f32.mrf.mxu0
      %v7937 = vadd.f32 %v7848, %v7936
      %7938 = vmatmul.bf16.gmra.mxu0 %v7114
      %v7939 = vpop.f32.mrf.mxu0
      %v7940 = vadd.f32 %v7851, %v7939
      %v7941 = vpop.f32.mrf.mxu0
      %v7942 = vadd.f32 %v7853, %v7941
      %7943 = vmatmul.bf16.gmra.mxu0 %v7121
      %v7944 = vpop.f32.mrf.mxu0
      %v7945 = vadd.f32 %v7856, %v7944
      %v7946 = vpop.f32.mrf.mxu0
      %v7947 = vadd.f32 %v7858, %v7946
      %7948 = vmatmul.bf16.gmra.mxu0 %v7128
      %v7949 = vpop.f32.mrf.mxu0
      %v7950 = vadd.f32 %v7861, %v7949
      %v7951 = vpop.f32.mrf.mxu0
      %v7952 = vadd.f32 %v7863, %v7951
      %7953 = vmatmul.bf16.gmra.mxu0 %v7135
      %v7954 = vpop.f32.mrf.mxu0
      %v7955 = vadd.f32 %v7866, %v7954
      %v7956 = vpop.f32.mrf.mxu0
      %v7957 = vadd.f32 %v7868, %v7956
      %7958 = vmatmul.bf16.gmra.mxu0 %v7142
      %v7959 = vpop.f32.mrf.mxu0
      %v7960 = vadd.f32 %v7871, %v7959
      %v7961 = vpop.f32.mrf.mxu0
      %v7962 = vadd.f32 %v7873, %v7961
      %7963 = vmatmul.bf16.gmra.mxu0 %v7149
      %v7964 = vpop.f32.mrf.mxu0
      %v7965 = vadd.f32 %v7876, %v7964
      %v7966 = vpop.f32.mrf.mxu0
      %v7967 = vadd.f32 %v7878, %v7966
      %7968 = vmatmul.bf16.gmra.mxu0 %v7156
      %v7969 = vpop.f32.mrf.mxu0
      %v7970 = vadd.f32 %v7881, %v7969
      %v7971 = vpop.f32.mrf.mxu0
      %v7972 = vadd.f32 %v7883, %v7971
      %7973 = vmatmul.bf16.gmra.mxu0 %v7163
      %v7974 = vpop.f32.mrf.mxu0
      %v7975 = vadd.f32 %v7886, %v7974
      %v7976 = vpop.f32.mrf.mxu0
      %v7977 = vadd.f32 %v7888, %v7976
      %7978 = vmatmul.bf16.gmra.mxu0 %v7170
      %v7979 = vpop.f32.mrf.mxu0
      %v7980 = vadd.f32 %v7891, %v7979
      %v7981 = vpop.f32.mrf.mxu0
      %v7982 = vadd.f32 %v7893, %v7981
      %7983 = vmatmul.bf16.gmra.mxu0 %v7177
      %v7984 = vpop.f32.mrf.mxu0
      %v7985 = vadd.f32 %v7896, %v7984
      %v7986 = vpop.f32.mrf.mxu0
      %v7987 = vadd.f32 %v7898, %v7986
      %7988 = vmatmul.bf16.gmra.mxu0 %v7184
      %v7989 = vpop.f32.mrf.mxu0
      %v7990 = vadd.f32 %v7901, %v7989
      %v7991 = vpop.f32.mrf.mxu0
      %v7992 = vadd.f32 %v7903, %v7991
      %7993 = vmatmul.bf16.gmra.mxu0 %v7191
      %v7994 = vpop.f32.mrf.mxu0
      %v7995 = vadd.f32 %v7906, %v7994
      %v7996 = vpop.f32.mrf.mxu0
      %v7997 = vadd.f32 %v7908, %v7996
      %7998 = vdwg.mxu0
      %7999 = vmatpush.bf16.msra.mxu0 %v7570
      %8000 = vmatpush.bf16.msra.mxu0 %v7569
      %8001 = vmatpush.bf16.msra.mxu0 %v7568
      %8002 = vmatpush.bf16.msra.mxu0 %v7567
      %8003 = vmatpush.bf16.msra.mxu0 %v7566
      %8004 = vmatpush.bf16.msra.mxu0 %v7565
      %8005 = vmatpush.bf16.msra.mxu0 %v7564
      %8006 = vmatpush.bf16.msra.mxu0 %v7563
      %8007 = vmatmul.bf16.gmra.mxu0 %v7087
      %v8008 = vpop.f32.mrf.mxu0
      %v8009 = vadd.f32 %v7920, %v8008
      %v8010 = vpop.f32.mrf.mxu0
      %v8011 = vadd.f32 %v7922, %v8010
      %8012 = vmatmul.bf16.gmra.mxu0 %v7094
      %v8013 = vpop.f32.mrf.mxu0
      %v8014 = vadd.f32 %v7925, %v8013
      %v8015 = vpop.f32.mrf.mxu0
      %v8016 = vadd.f32 %v7927, %v8015
      %8017 = vmatmul.bf16.gmra.mxu0 %v7101
      %v8018 = vpop.f32.mrf.mxu0
      %v8019 = vadd.f32 %v7930, %v8018
      %v8020 = vpop.f32.mrf.mxu0
      %v8021 = vadd.f32 %v7932, %v8020
      %8022 = vmatmul.bf16.gmra.mxu0 %v7108
      %v8023 = vpop.f32.mrf.mxu0
      %v8024 = vadd.f32 %v7935, %v8023
      %v8025 = vpop.f32.mrf.mxu0
      %v8026 = vadd.f32 %v7937, %v8025
      %8027 = vmatmul.bf16.gmra.mxu0 %v7115
      %v8028 = vpop.f32.mrf.mxu0
      %v8029 = vadd.f32 %v7940, %v8028
      %v8030 = vpop.f32.mrf.mxu0
      %v8031 = vadd.f32 %v7942, %v8030
      %8032 = vmatmul.bf16.gmra.mxu0 %v7122
      %v8033 = vpop.f32.mrf.mxu0
      %v8034 = vadd.f32 %v7945, %v8033
      %v8035 = vpop.f32.mrf.mxu0
      %v8036 = vadd.f32 %v7947, %v8035
      %8037 = vmatmul.bf16.gmra.mxu0 %v7129
      %v8038 = vpop.f32.mrf.mxu0
      %v8039 = vadd.f32 %v7950, %v8038
      %v8040 = vpop.f32.mrf.mxu0
      %v8041 = vadd.f32 %v7952, %v8040
      %8042 = vmatmul.bf16.gmra.mxu0 %v7136
      %v8043 = vpop.f32.mrf.mxu0
      %v8044 = vadd.f32 %v7955, %v8043
      %v8045 = vpop.f32.mrf.mxu0
      %v8046 = vadd.f32 %v7957, %v8045
      %8047 = vmatmul.bf16.gmra.mxu0 %v7143
      %v8048 = vpop.f32.mrf.mxu0
      %v8049 = vadd.f32 %v7960, %v8048
      %v8050 = vpop.f32.mrf.mxu0
      %v8051 = vadd.f32 %v7962, %v8050
      %8052 = vmatmul.bf16.gmra.mxu0 %v7150
      %v8053 = vpop.f32.mrf.mxu0
      %v8054 = vadd.f32 %v7965, %v8053
      %v8055 = vpop.f32.mrf.mxu0
      %v8056 = vadd.f32 %v7967, %v8055
      %8057 = vmatmul.bf16.gmra.mxu0 %v7157
      %v8058 = vpop.f32.mrf.mxu0
      %v8059 = vadd.f32 %v7970, %v8058
      %v8060 = vpop.f32.mrf.mxu0
      %v8061 = vadd.f32 %v7972, %v8060
      %8062 = vmatmul.bf16.gmra.mxu0 %v7164
      %v8063 = vpop.f32.mrf.mxu0
      %v8064 = vadd.f32 %v7975, %v8063
      %v8065 = vpop.f32.mrf.mxu0
      %v8066 = vadd.f32 %v7977, %v8065
      %8067 = vmatmul.bf16.gmra.mxu0 %v7171
      %v8068 = vpop.f32.mrf.mxu0
      %v8069 = vadd.f32 %v7980, %v8068
      %v8070 = vpop.f32.mrf.mxu0
      %v8071 = vadd.f32 %v7982, %v8070
      %8072 = vmatmul.bf16.gmra.mxu0 %v7178
      %v8073 = vpop.f32.mrf.mxu0
      %v8074 = vadd.f32 %v7985, %v8073
      %v8075 = vpop.f32.mrf.mxu0
      %v8076 = vadd.f32 %v7987, %v8075
      %8077 = vmatmul.bf16.gmra.mxu0 %v7185
      %v8078 = vpop.f32.mrf.mxu0
      %v8079 = vadd.f32 %v7990, %v8078
      %v8080 = vpop.f32.mrf.mxu0
      %v8081 = vadd.f32 %v7992, %v8080
      %8082 = vmatmul.bf16.gmra.mxu0 %v7192
      %v8083 = vpop.f32.mrf.mxu0
      %v8084 = vadd.f32 %v7995, %v8083
      %v8085 = vpop.f32.mrf.mxu0
      %v8086 = vadd.f32 %v7997, %v8085
      %8087 = vdwg.mxu0
      %8088 = vmatpush.bf16.msra.mxu0 %v7578
      %8089 = vmatpush.bf16.msra.mxu0 %v7577
      %8090 = vmatpush.bf16.msra.mxu0 %v7576
      %8091 = vmatpush.bf16.msra.mxu0 %v7575
      %8092 = vmatpush.bf16.msra.mxu0 %v7574
      %8093 = vmatpush.bf16.msra.mxu0 %v7573
      %8094 = vmatpush.bf16.msra.mxu0 %v7572
      %8095 = vmatpush.bf16.msra.mxu0 %v7571
      %8096 = vmatmul.bf16.gmra.mxu0 %v7088
      %v8097 = vpop.f32.mrf.mxu0
      %v8098 = vadd.f32 %v8009, %v8097
      %v8099 = vpop.f32.mrf.mxu0
      %v8100 = vadd.f32 %v8011, %v8099
      %8101 = vmatmul.bf16.gmra.mxu0 %v7095
      %v8102 = vpop.f32.mrf.mxu0
      %v8103 = vadd.f32 %v8014, %v8102
      %v8104 = vpop.f32.mrf.mxu0
      %v8105 = vadd.f32 %v8016, %v8104
      %8106 = vmatmul.bf16.gmra.mxu0 %v7102
      %v8107 = vpop.f32.mrf.mxu0
      %v8108 = vadd.f32 %v8019, %v8107
      %v8109 = vpop.f32.mrf.mxu0
      %v8110 = vadd.f32 %v8021, %v8109
      %8111 = vmatmul.bf16.gmra.mxu0 %v7109
      %v8112 = vpop.f32.mrf.mxu0
      %v8113 = vadd.f32 %v8024, %v8112
      %v8114 = vpop.f32.mrf.mxu0
      %v8115 = vadd.f32 %v8026, %v8114
      %8116 = vmatmul.bf16.gmra.mxu0 %v7116
      %v8117 = vpop.f32.mrf.mxu0
      %v8118 = vadd.f32 %v8029, %v8117
      %v8119 = vpop.f32.mrf.mxu0
      %v8120 = vadd.f32 %v8031, %v8119
      %8121 = vmatmul.bf16.gmra.mxu0 %v7123
      %v8122 = vpop.f32.mrf.mxu0
      %v8123 = vadd.f32 %v8034, %v8122
      %v8124 = vpop.f32.mrf.mxu0
      %v8125 = vadd.f32 %v8036, %v8124
      %8126 = vmatmul.bf16.gmra.mxu0 %v7130
      %v8127 = vpop.f32.mrf.mxu0
      %v8128 = vadd.f32 %v8039, %v8127
      %v8129 = vpop.f32.mrf.mxu0
      %v8130 = vadd.f32 %v8041, %v8129
      %8131 = vmatmul.bf16.gmra.mxu0 %v7137
      %v8132 = vpop.f32.mrf.mxu0
      %v8133 = vadd.f32 %v8044, %v8132
      %v8134 = vpop.f32.mrf.mxu0
      %v8135 = vadd.f32 %v8046, %v8134
      %8136 = vmatmul.bf16.gmra.mxu0 %v7144
      %v8137 = vpop.f32.mrf.mxu0
      %v8138 = vadd.f32 %v8049, %v8137
      %v8139 = vpop.f32.mrf.mxu0
      %v8140 = vadd.f32 %v8051, %v8139
      %8141 = vmatmul.bf16.gmra.mxu0 %v7151
      %v8142 = vpop.f32.mrf.mxu0
      %v8143 = vadd.f32 %v8054, %v8142
      %v8144 = vpop.f32.mrf.mxu0
      %v8145 = vadd.f32 %v8056, %v8144
      %8146 = vmatmul.bf16.gmra.mxu0 %v7158
      %v8147 = vpop.f32.mrf.mxu0
      %v8148 = vadd.f32 %v8059, %v8147
      %v8149 = vpop.f32.mrf.mxu0
      %v8150 = vadd.f32 %v8061, %v8149
      %8151 = vmatmul.bf16.gmra.mxu0 %v7165
      %v8152 = vpop.f32.mrf.mxu0
      %v8153 = vadd.f32 %v8064, %v8152
      %v8154 = vpop.f32.mrf.mxu0
      %v8155 = vadd.f32 %v8066, %v8154
      %8156 = vmatmul.bf16.gmra.mxu0 %v7172
      %v8157 = vpop.f32.mrf.mxu0
      %v8158 = vadd.f32 %v8069, %v8157
      %v8159 = vpop.f32.mrf.mxu0
      %v8160 = vadd.f32 %v8071, %v8159
      %8161 = vmatmul.bf16.gmra.mxu0 %v7179
      %v8162 = vpop.f32.mrf.mxu0
      %v8163 = vadd.f32 %v8074, %v8162
      %v8164 = vpop.f32.mrf.mxu0
      %v8165 = vadd.f32 %v8076, %v8164
      %8166 = vmatmul.bf16.gmra.mxu0 %v7186
      %v8167 = vpop.f32.mrf.mxu0
      %v8168 = vadd.f32 %v8079, %v8167
      %v8169 = vpop.f32.mrf.mxu0
      %v8170 = vadd.f32 %v8081, %v8169
      %8171 = vmatmul.bf16.gmra.mxu0 %v7193
      %v8172 = vpop.f32.mrf.mxu0
      %v8173 = vadd.f32 %v8084, %v8172
      %v8174 = vpop.f32.mrf.mxu0
      %v8175 = vadd.f32 %v8086, %v8174
      %8176 = vdwg.mxu0
      %8177 = vmatpush.bf16.msra.mxu0 %v7586
      %8178 = vmatpush.bf16.msra.mxu0 %v7585
      %8179 = vmatpush.bf16.msra.mxu0 %v7584
      %8180 = vmatpush.bf16.msra.mxu0 %v7583
      %8181 = vmatpush.bf16.msra.mxu0 %v7582
      %8182 = vmatpush.bf16.msra.mxu0 %v7581
      %8183 = vmatpush.bf16.msra.mxu0 %v7580
      %8184 = vmatpush.bf16.msra.mxu0 %v7579
      %8185 = vmatmul.bf16.gmra.mxu0 %v7089
      %v8186 = vpop.f32.mrf.mxu0
      %v8187 = vadd.f32 %v8098, %v8186
      %v8188 = vpop.f32.mrf.mxu0
      %v8189 = vadd.f32 %v8100, %v8188
      %8190 = vmatmul.bf16.gmra.mxu0 %v7096
      %v8191 = vpop.f32.mrf.mxu0
      %v8192 = vadd.f32 %v8103, %v8191
      %v8193 = vpop.f32.mrf.mxu0
      %v8194 = vadd.f32 %v8105, %v8193
      %8195 = vmatmul.bf16.gmra.mxu0 %v7103
      %v8196 = vpop.f32.mrf.mxu0
      %v8197 = vadd.f32 %v8108, %v8196
      %v8198 = vpop.f32.mrf.mxu0
      %v8199 = vadd.f32 %v8110, %v8198
      %8200 = vmatmul.bf16.gmra.mxu0 %v7110
      %v8201 = vpop.f32.mrf.mxu0
      %v8202 = vadd.f32 %v8113, %v8201
      %v8203 = vpop.f32.mrf.mxu0
      %v8204 = vadd.f32 %v8115, %v8203
      %8205 = vmatmul.bf16.gmra.mxu0 %v7117
      %v8206 = vpop.f32.mrf.mxu0
      %v8207 = vadd.f32 %v8118, %v8206
      %v8208 = vpop.f32.mrf.mxu0
      %v8209 = vadd.f32 %v8120, %v8208
      %8210 = vmatmul.bf16.gmra.mxu0 %v7124
      %v8211 = vpop.f32.mrf.mxu0
      %v8212 = vadd.f32 %v8123, %v8211
      %v8213 = vpop.f32.mrf.mxu0
      %v8214 = vadd.f32 %v8125, %v8213
      %8215 = vmatmul.bf16.gmra.mxu0 %v7131
      %v8216 = vpop.f32.mrf.mxu0
      %v8217 = vadd.f32 %v8128, %v8216
      %v8218 = vpop.f32.mrf.mxu0
      %v8219 = vadd.f32 %v8130, %v8218
      %8220 = vmatmul.bf16.gmra.mxu0 %v7138
      %v8221 = vpop.f32.mrf.mxu0
      %v8222 = vadd.f32 %v8133, %v8221
      %v8223 = vpop.f32.mrf.mxu0
      %v8224 = vadd.f32 %v8135, %v8223
      %8225 = vmatmul.bf16.gmra.mxu0 %v7145
      %v8226 = vpop.f32.mrf.mxu0
      %v8227 = vadd.f32 %v8138, %v8226
      %v8228 = vpop.f32.mrf.mxu0
      %v8229 = vadd.f32 %v8140, %v8228
      %8230 = vmatmul.bf16.gmra.mxu0 %v7152
      %v8231 = vpop.f32.mrf.mxu0
      %v8232 = vadd.f32 %v8143, %v8231
      %v8233 = vpop.f32.mrf.mxu0
      %v8234 = vadd.f32 %v8145, %v8233
      %8235 = vmatmul.bf16.gmra.mxu0 %v7159
      %v8236 = vpop.f32.mrf.mxu0
      %v8237 = vadd.f32 %v8148, %v8236
      %v8238 = vpop.f32.mrf.mxu0
      %v8239 = vadd.f32 %v8150, %v8238
      %8240 = vmatmul.bf16.gmra.mxu0 %v7166
      %v8241 = vpop.f32.mrf.mxu0
      %v8242 = vadd.f32 %v8153, %v8241
      %v8243 = vpop.f32.mrf.mxu0
      %v8244 = vadd.f32 %v8155, %v8243
      %8245 = vmatmul.bf16.gmra.mxu0 %v7173
      %v8246 = vpop.f32.mrf.mxu0
      %v8247 = vadd.f32 %v8158, %v8246
      %v8248 = vpop.f32.mrf.mxu0
      %v8249 = vadd.f32 %v8160, %v8248
      %8250 = vmatmul.bf16.gmra.mxu0 %v7180
      %v8251 = vpop.f32.mrf.mxu0
      %v8252 = vadd.f32 %v8163, %v8251
      %v8253 = vpop.f32.mrf.mxu0
      %v8254 = vadd.f32 %v8165, %v8253
      %8255 = vmatmul.bf16.gmra.mxu0 %v7187
      %v8256 = vpop.f32.mrf.mxu0
      %v8257 = vadd.f32 %v8168, %v8256
      %v8258 = vpop.f32.mrf.mxu0
      %v8259 = vadd.f32 %v8170, %v8258
      %8260 = vmatmul.bf16.gmra.mxu0 %v7194
      %v8261 = vpop.f32.mrf.mxu0
      %v8262 = vadd.f32 %v8173, %v8261
      %v8263 = vpop.f32.mrf.mxu0
      %v8264 = vadd.f32 %v8175, %v8263
      %8265 = vdwg.mxu0
      %v8266 = vmax.f32 %v8187, 0.0
      %v8267 = vmax.f32 %v8189, 0.0
      %v8268 = vmax.f32 %v8192, 0.0
      %v8269 = vmax.f32 %v8194, 0.0
      %v8270 = vmax.f32 %v8197, 0.0
      %v8271 = vmax.f32 %v8199, 0.0
      %v8272 = vmax.f32 %v8202, 0.0
      %v8273 = vmax.f32 %v8204, 0.0
      %v8274 = vmax.f32 %v8207, 0.0
      %v8275 = vmax.f32 %v8209, 0.0
      %v8276 = vmax.f32 %v8212, 0.0
      %v8277 = vmax.f32 %v8214, 0.0
      %v8278 = vmax.f32 %v8217, 0.0
      %v8279 = vmax.f32 %v8219, 0.0
      %v8280 = vmax.f32 %v8222, 0.0
      %v8281 = vmax.f32 %v8224, 0.0
      %v8282 = vmax.f32 %v8227, 0.0
      %v8283 = vmax.f32 %v8229, 0.0
      %v8284 = vmax.f32 %v8232, 0.0
      %v8285 = vmax.f32 %v8234, 0.0
      %v8286 = vmax.f32 %v8237, 0.0
      %v8287 = vmax.f32 %v8239, 0.0
      %v8288 = vmax.f32 %v8242, 0.0
      %v8289 = vmax.f32 %v8244, 0.0
      %v8290 = vmax.f32 %v8247, 0.0
      %v8291 = vmax.f32 %v8249, 0.0
      %v8292 = vmax.f32 %v8252, 0.0
      %v8293 = vmax.f32 %v8254, 0.0
      %v8294 = vmax.f32 %v8257, 0.0
      %v8295 = vmax.f32 %v8259, 0.0
      %v8296 = vmax.f32 %v8262, 0.0
      %v8297 = vmax.f32 %v8264, 0.0
      %vm8298 = vcmask 523264
      %8299 = vst.msk [vmem:[#allocation6] sm:$0xff] %vm8298, %v8266
      %8300 = vst.msk [vmem:[#allocation6 + $0x8] sm:$0xff] %vm8298, %v8267
      %8301 = vst.msk [vmem:[#allocation6 + $0x10] sm:$0xff] %vm8298, %v8268
      %8302 = vst.msk [vmem:[#allocation6 + $0x18] sm:$0xff] %vm8298, %v8269
      %8303 = vst.msk [vmem:[#allocation6 + $0x20] sm:$0xff] %vm8298, %v8270
      %8304 = vst.msk [vmem:[#allocation6 + $0x28] sm:$0xff] %vm8298, %v8271
      %8305 = vst.msk [vmem:[#allocation6 + $0x30] sm:$0xff] %vm8298, %v8272
      %8306 = vst.msk [vmem:[#allocation6 + $0x38] sm:$0xff] %vm8298, %v8273
      %8307 = vst.msk [vmem:[#allocation6 + $0x40] sm:$0xff] %vm8298, %v8274
      %8308 = vst.msk [vmem:[#allocation6 + $0x48] sm:$0xff] %vm8298, %v8275
      %8309 = vst.msk [vmem:[#allocation6 + $0x50] sm:$0xff] %vm8298, %v8276
      %8310 = vst.msk [vmem:[#allocation6 + $0x58] sm:$0xff] %vm8298, %v8277
      %8311 = vst.msk [vmem:[#allocation6 + $0x60] sm:$0xff] %vm8298, %v8278
      %8312 = vst.msk [vmem:[#allocation6 + $0x68] sm:$0xff] %vm8298, %v8279
      %8313 = vst.msk [vmem:[#allocation6 + $0x70] sm:$0xff] %vm8298, %v8280
      %8314 = vst.msk [vmem:[#allocation6 + $0x78] sm:$0xff] %vm8298, %v8281
      %8315 = vst.msk [vmem:[#allocation6 + $0x80] sm:$0xff] %vm8298, %v8282
      %8316 = vst.msk [vmem:[#allocation6 + $0x88] sm:$0xff] %vm8298, %v8283
      %8317 = vst.msk [vmem:[#allocation6 + $0x90] sm:$0xff] %vm8298, %v8284
      %8318 = vst.msk [vmem:[#allocation6 + $0x98] sm:$0xff] %vm8298, %v8285
      %8319 = vst.msk [vmem:[#allocation6 + $0xa0] sm:$0xff] %vm8298, %v8286
      %8320 = vst.msk [vmem:[#allocation6 + $0xa8] sm:$0xff] %vm8298, %v8287
      %8321 = vst.msk [vmem:[#allocation6 + $0xb0] sm:$0xff] %vm8298, %v8288
      %8322 = vst.msk [vmem:[#allocation6 + $0xb8] sm:$0xff] %vm8298, %v8289
      %8323 = vst.msk [vmem:[#allocation6 + $0xc0] sm:$0xff] %vm8298, %v8290
      %8324 = vst.msk [vmem:[#allocation6 + $0xc8] sm:$0xff] %vm8298, %v8291
      %8325 = vst.msk [vmem:[#allocation6 + $0xd0] sm:$0xff] %vm8298, %v8292
      %8326 = vst.msk [vmem:[#allocation6 + $0xd8] sm:$0xff] %vm8298, %v8293
      %8327 = vst.msk [vmem:[#allocation6 + $0xe0] sm:$0xff] %vm8298, %v8294
      %8328 = vst.msk [vmem:[#allocation6 + $0xe8] sm:$0xff] %vm8298, %v8295
      %8329 = vst.msk [vmem:[#allocation6 + $0xf0] sm:$0xff] %vm8298, %v8296
      %8330 = vst.msk [vmem:[#allocation6 + $0xf8] sm:$0xff] %vm8298, %v8297
      %v8331 = vld [vmem:[#allocation6] ss:$2 sm:$0xff]
      %s8332 = scalar_lea.vmem [#allocation6], 16
      %v8333 = vld [vmem:[%s8332] ss:$2 sm:$0xff]
      %s8334 = scalar_lea.vmem [#allocation6], 32
      %v8335 = vld [vmem:[%s8334] ss:$2 sm:$0xff]
      %s8336 = scalar_lea.vmem [#allocation6], 48
      %v8337 = vld [vmem:[%s8336] ss:$2 sm:$0xff]
      %s8338 = scalar_lea.vmem [#allocation6], 64
      %v8339 = vld [vmem:[%s8338] ss:$2 sm:$0xff]
      %s8340 = scalar_lea.vmem [#allocation6], 80
      %v8341 = vld [vmem:[%s8340] ss:$2 sm:$0xff]
      %s8342 = scalar_lea.vmem [#allocation6], 96
      %v8343 = vld [vmem:[%s8342] ss:$2 sm:$0xff]
      %s8344 = scalar_lea.vmem [#allocation6], 112
      %v8345 = vld [vmem:[%s8344] ss:$2 sm:$0xff]
      %s8346 = scalar_lea.vmem [#allocation6], 128
      %v8347 = vld [vmem:[%s8346] ss:$2 sm:$0xff]
      %s8348 = scalar_lea.vmem [#allocation6], 144
      %v8349 = vld [vmem:[%s8348] ss:$2 sm:$0xff]
      %s8350 = scalar_lea.vmem [#allocation6], 160
      %v8351 = vld [vmem:[%s8350] ss:$2 sm:$0xff]
      %s8352 = scalar_lea.vmem [#allocation6], 176
      %v8353 = vld [vmem:[%s8352] ss:$2 sm:$0xff]
      %s8354 = scalar_lea.vmem [#allocation6], 192
      %v8355 = vld [vmem:[%s8354] ss:$2 sm:$0xff]
      %s8356 = scalar_lea.vmem [#allocation6], 208
      %v8357 = vld [vmem:[%s8356] ss:$2 sm:$0xff]
      %s8358 = scalar_lea.vmem [#allocation6], 224
      %v8359 = vld [vmem:[%s8358] ss:$2 sm:$0xff]
      %s8360 = scalar_lea.vmem [#allocation6], 240
      %v8361 = vld [vmem:[%s8360] ss:$2 sm:$0x3f]
      %s8362 = scalar_lea.vmem [#allocation6], 1
      %v8363 = vld [vmem:[%s8362] ss:$2 sm:$0xff]
      %s8364 = scalar_lea.vmem [#allocation6], 17
      %v8365 = vld [vmem:[%s8364] ss:$2 sm:$0xff]
      %s8366 = scalar_lea.vmem [#allocation6], 33
      %v8367 = vld [vmem:[%s8366] ss:$2 sm:$0xff]
      %s8368 = scalar_lea.vmem [#allocation6], 49
      %v8369 = vld [vmem:[%s8368] ss:$2 sm:$0xff]
      %s8370 = scalar_lea.vmem [#allocation6], 65
      %v8371 = vld [vmem:[%s8370] ss:$2 sm:$0xff]
      %s8372 = scalar_lea.vmem [#allocation6], 81
      %v8373 = vld [vmem:[%s8372] ss:$2 sm:$0xff]
      %s8374 = scalar_lea.vmem [#allocation6], 97
      %v8375 = vld [vmem:[%s8374] ss:$2 sm:$0xff]
      %s8376 = scalar_lea.vmem [#allocation6], 113
      %v8377 = vld [vmem:[%s8376] ss:$2 sm:$0xff]
      %s8378 = scalar_lea.vmem [#allocation6], 129
      %v8379 = vld [vmem:[%s8378] ss:$2 sm:$0xff]
      %s8380 = scalar_lea.vmem [#allocation6], 145
      %v8381 = vld [vmem:[%s8380] ss:$2 sm:$0xff]
      %s8382 = scalar_lea.vmem [#allocation6], 161
      %v8383 = vld [vmem:[%s8382] ss:$2 sm:$0xff]
      %s8384 = scalar_lea.vmem [#allocation6], 177
      %v8385 = vld [vmem:[%s8384] ss:$2 sm:$0xff]
      %s8386 = scalar_lea.vmem [#allocation6], 193
      %v8387 = vld [vmem:[%s8386] ss:$2 sm:$0xff]
      %s8388 = scalar_lea.vmem [#allocation6], 209
      %v8389 = vld [vmem:[%s8388] ss:$2 sm:$0xff]
      %s8390 = scalar_lea.vmem [#allocation6], 225
      %v8391 = vld [vmem:[%s8390] ss:$2 sm:$0xff]
      %s8392 = scalar_lea.vmem [#allocation6], 241
      %v8393 = vld [vmem:[%s8392] ss:$2 sm:$0x3f]
      %v8394 = vmax.f32 %v8331, %v8363
      %v8395 = vmax.f32 %v8333, %v8365
      %v8396 = vmax.f32 %v8335, %v8367
      %v8397 = vmax.f32 %v8337, %v8369
      %v8398 = vmax.f32 %v8339, %v8371
      %v8399 = vmax.f32 %v8341, %v8373
      %v8400 = vmax.f32 %v8343, %v8375
      %v8401 = vmax.f32 %v8345, %v8377
      %v8402 = vmax.f32 %v8347, %v8379
      %v8403 = vmax.f32 %v8349, %v8381
      %v8404 = vmax.f32 %v8351, %v8383
      %v8405 = vmax.f32 %v8353, %v8385
      %v8406 = vmax.f32 %v8355, %v8387
      %v8407 = vmax.f32 %v8357, %v8389
      %v8408 = vmax.f32 %v8359, %v8391
      %v8409 = vmax.f32 %v8361, %v8393
      %8410 = vst.msk [vmem:[#allocation7] sm:$0xff] %vm8298, %v8394
      %8411 = vst.msk [vmem:[#allocation7 + $0x8] sm:$0xff] %vm8298, %v8395
      %8412 = vst.msk [vmem:[#allocation7 + $0x10] sm:$0xff] %vm8298, %v8396
      %8413 = vst.msk [vmem:[#allocation7 + $0x18] sm:$0xff] %vm8298, %v8397
      %8414 = vst.msk [vmem:[#allocation7 + $0x20] sm:$0xff] %vm8298, %v8398
      %8415 = vst.msk [vmem:[#allocation7 + $0x28] sm:$0xff] %vm8298, %v8399
      %8416 = vst.msk [vmem:[#allocation7 + $0x30] sm:$0xff] %vm8298, %v8400
      %8417 = vst.msk [vmem:[#allocation7 + $0x38] sm:$0xff] %vm8298, %v8401
      %8418 = vst.msk [vmem:[#allocation7 + $0x40] sm:$0xff] %vm8298, %v8402
      %8419 = vst.msk [vmem:[#allocation7 + $0x48] sm:$0xff] %vm8298, %v8403
      %8420 = vst.msk [vmem:[#allocation7 + $0x50] sm:$0xff] %vm8298, %v8404
      %8421 = vst.msk [vmem:[#allocation7 + $0x58] sm:$0xff] %vm8298, %v8405
      %8422 = vst.msk [vmem:[#allocation7 + $0x60] sm:$0xff] %vm8298, %v8406
      %8423 = vst.msk [vmem:[#allocation7 + $0x68] sm:$0xff] %vm8298, %v8407
      %8424 = vst.msk [vmem:[#allocation7 + $0x70] sm:$0xff] %vm8298, %v8408
      %vm8425 = vcmask 521216
      %8426 = vst.msk [vmem:[#allocation7 + $0x78] sm:$0x3f] %vm8425, %v8409
      %v8427 = vld [vmem:[#allocation7] sm:$0xff]
      %v8428 = vld [vmem:[#allocation7 + $0x8] sm:$0x1]
      %v8429 = vld [vmem:[#allocation7 + $0x9] sm:$0xff]
      %v8430 = vld [vmem:[#allocation7 + $0x11] sm:$0x1]
      %v8431 = vmax.f32 %v8427, %v8429
      %v8432 = vmax.f32 %v8428, %v8430
      %8433 = vst.msk [vmem:[%s224] sm:$0xff] %vm8298, %v8431
      %vm8434 = vcmask 516096
      %8435 = vst.msk [vmem:[%s224 + $0x8] sm:$0x1] %vm8434, %v8432
      %v8436 = vld [vmem:[#allocation7 + $0x12] sm:$0xff]
      %v8437 = vld [vmem:[#allocation7 + $0x1a] sm:$0x1]
      %v8438 = vld [vmem:[#allocation7 + $0x1b] sm:$0xff]
      %v8439 = vld [vmem:[#allocation7 + $0x23] sm:$0x1]
      %v8440 = vmax.f32 %v8436, %v8438
      %v8441 = vmax.f32 %v8437, %v8439
      %8442 = vst.msk [vmem:[%s224 + $0x9] sm:$0xff] %vm8298, %v8440
      %8443 = vst.msk [vmem:[%s224 + $0x11] sm:$0x1] %vm8434, %v8441
      %v8444 = vld [vmem:[#allocation7 + $0x24] sm:$0xff]
      %v8445 = vld [vmem:[#allocation7 + $0x2c] sm:$0x1]
      %v8446 = vld [vmem:[#allocation7 + $0x2d] sm:$0xff]
      %v8447 = vld [vmem:[#allocation7 + $0x35] sm:$0x1]
      %v8448 = vmax.f32 %v8444, %v8446
      %v8449 = vmax.f32 %v8445, %v8447
      %8450 = vst.msk [vmem:[%s224 + $0x12] sm:$0xff] %vm8298, %v8448
      %8451 = vst.msk [vmem:[%s224 + $0x1a] sm:$0x1] %vm8434, %v8449
      %v8452 = vld [vmem:[#allocation7 + $0x36] sm:$0xff]
      %v8453 = vld [vmem:[#allocation7 + $0x3e] sm:$0x1]
      %v8454 = vld [vmem:[#allocation7 + $0x3f] sm:$0xff]
      %v8455 = vld [vmem:[#allocation7 + $0x47] sm:$0x1]
      %v8456 = vmax.f32 %v8452, %v8454
      %v8457 = vmax.f32 %v8453, %v8455
      %8458 = vst.msk [vmem:[%s224 + $0x1b] sm:$0xff] %vm8298, %v8456
      %8459 = vst.msk [vmem:[%s224 + $0x23] sm:$0x1] %vm8434, %v8457
      %v8460 = vld [vmem:[#allocation7 + $0x48] sm:$0xff]
      %v8461 = vld [vmem:[#allocation7 + $0x50] sm:$0x1]
      %v8462 = vld [vmem:[#allocation7 + $0x51] sm:$0xff]
      %v8463 = vld [vmem:[#allocation7 + $0x59] sm:$0x1]
      %v8464 = vmax.f32 %v8460, %v8462
      %v8465 = vmax.f32 %v8461, %v8463
      %8466 = vst.msk [vmem:[%s224 + $0x24] sm:$0xff] %vm8298, %v8464
      %8467 = vst.msk [vmem:[%s224 + $0x2c] sm:$0x1] %vm8434, %v8465
      %v8468 = vld [vmem:[#allocation7 + $0x5a] sm:$0xff]
      %v8469 = vld [vmem:[#allocation7 + $0x62] sm:$0x1]
      %v8470 = vld [vmem:[#allocation7 + $0x63] sm:$0xff]
      %v8471 = vld [vmem:[#allocation7 + $0x6b] sm:$0x1]
      %v8472 = vmax.f32 %v8468, %v8470
      %v8473 = vmax.f32 %v8469, %v8471
      %8474 = vst.msk [vmem:[%s224 + $0x2d] sm:$0xff] %vm8298, %v8472
      %8475 = vst.msk [vmem:[%s224 + $0x35] sm:$0x1] %vm8434, %v8473
      %v8476 = vld [vmem:[#allocation7 + $0x6c] sm:$0xff]
      %v8477 = vld [vmem:[#allocation7 + $0x74] sm:$0x1]
      %v8478 = vld [vmem:[#allocation7 + $0x75] sm:$0xff]
      %v8479 = vld [vmem:[#allocation7 + $0x7d] sm:$0x1]
      %v8480 = vmax.f32 %v8476, %v8478
      %v8481 = vmax.f32 %v8477, %v8479
      %8482 = vst.msk [vmem:[%s224 + $0x36] sm:$0xff] %vm8298, %v8480
      %8483 = vst.msk [vmem:[%s224 + $0x3e] sm:$0x1] %vm8434, %v8481
      %p8484 = scmp.lt.s32.totalorder %s16, 1
      %s8485 = scalar_select %p8484, %s16, 1
      %s8486 = smul.addr %s8485, 8
      %s8487 = smul.addr %s8486, 8
      %s8488 = scalar_lea.vmem %s5, %s8487
      // Predicated region
      $region41: #{simple_cnn_forward.2} parent=39 // pred_check
        %p8489 = pneg %p144
      $region42: #{simple_cnn_forward.2} parent=39 // pred_check_branch
        %8491 = sbr.rel (%p8489) target = $region44
      $region43: #{simple_cnn_forward.2} parent=39 // pred_region
        _
      $region44: #{simple_cnn_forward.2} parent=39 // pred_fallthru
        _
    $region40: #{simple_cnn_forward.2} parent=5 // pred_fallthru
      _
    %p8492 = scmp.le.s32.totalorder 2, %s11
    // Predicated region
    $region45: #{simple_cnn_forward.2} parent=5 // pred_check
      %p8493 = pneg %p8492
    $region46: #{simple_cnn_forward.2} parent=5 // pred_check_branch
      %8495 = sbr.rel (%p8493) target = $region48
    $region47: #{simple_cnn_forward.2} parent=5 // pred_region
      %s8496 = ssub.s32 %s11, 2
      // Predicated region
      $region49: #{simple_cnn_forward.2} parent=47 // pred_check
        %p8497 = pneg %p150
      $region50: #{simple_cnn_forward.2} parent=47 // pred_check_branch
        %8499 = sbr.rel (%p8497) target = $region52
      $region51: #{simple_cnn_forward.2} parent=47 // pred_region
        %p8500 = scmp.lt.s32.totalorder %s17, 1
        %s8501 = scalar_select %p8500, %s17, 1
        %s8502 = smul.addr %s8501, 8
        %s8503 = smul.addr %s8502, 8
        %s8504 = scalar_lea.vmem %s5, %s8503
      $region52: #{simple_cnn_forward.2} parent=47 // pred_fallthru
        _
    $region48: #{simple_cnn_forward.2} parent=5 // pred_fallthru
      _
  $region6: #{simple_cnn_forward.2} parent=0 // loop_footer
    %s15 = sadd.s32 1, %s11
  $region7: #{simple_cnn_forward.2} parent=0 // loop_footer_branch
    %10 = sbr.rel target = $region3
  $region8: #{simple_cnn_forward.2} parent=0 // loop_exit
    _

</llo_original>
